<compile_context>
chip_gen: v7x
topology: tpu7x:2x2x1
jax: 0.10.0
libtpu: 0.0.40
codegen_flags: <defaults>
</compile_context>

<pallas_src>
import jax
import jax.numpy as jnp
import numpy as np
from jax.experimental import pallas as pl
from jax.experimental.pallas import tpu as pltpu

_BN_EPS = 1e-5
_LEAKY_SLOPE = 0.01            # torch.nn.LeakyReLU default negative_slope
_INV_SQRT2 = 0.7071067811865476


def _gelu_exact(x):
    # matches torch.nn.GELU() default (erf-based)
    return 0.5 * x * (1.0 + jax.lax.erf(x * _INV_SQRT2))


def _full_spec(shape):
    zeros = (0,) * len(shape)
    return pl.BlockSpec(shape, lambda *_: zeros)


# ----------------------------------------------------------------------------
# The single fused Pallas kernel
# ----------------------------------------------------------------------------
def _fused_net_kernel(p0_ref, w0_ref, s0_ref,
                      g1_ref, w1_ref, s1_ref,
                      g2_ref, w2_ref, s2_ref,
                      g3_ref, w3_ref, b3_ref,
                      pool_ref, fcw_ref, fcb_ref, o_ref):
    """Whole FeatureExtractorCNN forward, VMEM-resident, 2-D matmuls only."""

    def pool_max4(y):
        # 2x2 maxpool: rows are the 4 pooling phases stacked along M.
        # Row blocks are multiples of 8 -> sublane-aligned f32 slices.
        r = y.shape[0] // 4
        return jnp.maximum(jnp.maximum(y[0:r], y[r:2 * r]),
                           jnp.maximum(y[2 * r:3 * r], y[3 * r:4 * r]))

    def conv_gather(f, g, w):
        # f: (M, Cin)  bf16 feature rows, ordered (n, h, w)
        # g: (9R, M)   bf16 0/1 gather, block k = tap (di, dj); zero rows give
        #              the conv zero-padding.  g @ f copies rows exactly.
        # w: (9Cin, Cout) bf16 conv weight (BN scale pre-folded).
        cin = f.shape[1]
        r = g.shape[0] // 9
        pat = jnp.dot(g, f, preferred_element_type=jnp.float32)   # (9R, Cin)
        acc = None
        for k in range(9):
            blk = pat[k * r:(k + 1) * r].astype(jnp.bfloat16)      # (R, Cin)
            term = jnp.dot(blk, w[k * cin:(k + 1) * cin],
                           preferred_element_type=jnp.float32)     # (R, Cout)
            acc = term if acc is None else acc + term
        return acc                                                  # f32

    # ---- stage 0: one (4M, 9C) x (9C, 32) matmul + shift + GELU + maxpool
    y = jnp.dot(p0_ref[...], w0_ref[...], preferred_element_type=jnp.float32)
    y = _gelu_exact(y + s0_ref[...])
    f = pool_max4(y).astype(jnp.bfloat16)            # (N*H/2*W/2, 32)

    # ---- stage 1
    y = _gelu_exact(conv_gather(f, g1_ref[...], w1_ref[...]) + s1_ref[...])
    f = pool_max4(y).astype(jnp.bfloat16)            # (N*H/4*W/4, 64)

    # ---- stage 2
    y = _gelu_exact(conv_gather(f, g2_ref[...], w2_ref[...]) + s2_ref[...])
    f = pool_max4(y).astype(jnp.bfloat16)            # (N*H/8*W/8, 128)

    # ---- stage 3: conv + LeakyReLU + AdaptiveAvgPool(1,1) + Linear(256, 256)
    y = conv_gather(f, g3_ref[...], w3_ref[...]) + b3_ref[...]
    y = jnp.where(y >= 0.0, y, _LEAKY_SLOPE * y).astype(jnp.bfloat16)
    pooled = jnp.dot(pool_ref[...], y, preferred_element_type=jnp.float32)
    out = jnp.dot(pooled.astype(jnp.bfloat16), fcw_ref[...],
                  preferred_element_type=jnp.float32)
    o_ref[...] = out + fcb_ref[...]


def fused_feature_extractor(args, out_shape):
    return pl.pallas_call(
        _fused_net_kernel,
        out_shape=jax.ShapeDtypeStruct(out_shape, jnp.float32),
        grid=(1,),
        in_specs=[_full_spec(a.shape) for a in args],
        out_specs=_full_spec(out_shape),
        compiler_params=pltpu.CompilerParams(
            dimension_semantics=("arbitrary",)),
    )(*args)


# ----------------------------------------------------------------------------
# Trace-time helpers: stage-0 patches, gather matrices, BN folding
# ----------------------------------------------------------------------------
def _im2col_pool_phases_stacked(x):
    # x: (N, H, W, C) bf16 -> (4*N*(H//2)*(W//2), 9*C).
    # Rows ordered (phase=2a+b, n, ho, wo); columns ordered (di, dj, c),
    # matching the (3, 3, Cin, Cout) weight reshape.  Built from ONE
    # full-resolution patch tensor + 4 strided phase slices.
    N, H, W, C = x.shape
    xp = jnp.pad(x, ((0, 0), (1, 1), (1, 1), (0, 0)))
    full = jnp.concatenate([xp[:, di:di + H, dj:dj + W, :]
                            for di in range(3) for dj in range(3)], axis=-1)
    phases = [full[:, a::2, b::2, :] for a in range(2) for b in range(2)]
    return jnp.stack(phases, axis=0).reshape(4 * N * (H // 2) * (W // 2), 9 * C)


def _gather_stack(n, h, w, pooled):
    """Constant 0/1 matrix (9*R, n*h*w).  Block k = 3*di+dj maps flat
    (n, h, w)-ordered feature rows to tap (di, dj) of every conv output row;
    out-of-bounds taps are all-zero rows (= conv zero padding).  If `pooled`,
    the conv output rows are the 4 maxpool phases stacked (phase, n, ho, wo)."""
    if pooled:
        ho, wo = h // 2, w // 2
        rows = [((((a * 2 + b) * n + nn) * ho + i) * wo + j,
                 nn, 2 * i + a, 2 * j + b)
                for a in range(2) for b in range(2)
                for nn in range(n) for i in range(ho) for j in range(wo)]
        r_tot = 4 * n * ho * wo
    else:
        rows = [((nn * h + i) * w + j, nn, i, j)
                for nn in range(n) for i in range(h) for j in range(w)]
        r_tot = n * h * w
    m_tot = n * h * w
    g = np.zeros((9, r_tot, m_tot), np.float32)
    for di in range(3):
        for dj in range(3):
            k = di * 3 + dj
            for r, nn, hh, ww in rows:
                hi, wi = hh + di - 1, ww + dj - 1
                if 0 <= hi < h and 0 <= wi < w:
                    g[k, r, (nn * h + hi) * w + wi] = 1.0
    return g.reshape(9 * r_tot, m_tot)


def _fold_bn(params, idx):
    w = params[f"conv{idx}_w"]                       # (3, 3, Cin, Cout)
    cin, cout = w.shape[2], w.shape[3]
    inv_std = jax.lax.rsqrt(params[f"bn{idx}_var"] + _BN_EPS)
    scale = params[f"bn{idx}_gamma"] * inv_std
    shift = (params[f"conv{idx}_b"] - params[f"bn{idx}_mean"]) * scale \
        + params[f"bn{idx}_beta"]
    w_fold = (w.reshape(9 * cin, cout) * scale[None, :]).astype(jnp.bfloat16)
    return w_fold, shift.reshape(1, cout).astype(jnp.float32)


# ----------------------------------------------------------------------------
# Forward pass
# ----------------------------------------------------------------------------
def feature_extractor_forward(params, x_nchw):
    N, _, H, W = x_nchw.shape
    assert H % 8 == 0 and W % 8 == 0, "three 2x2 maxpools require H, W % 8 == 0"

    # NCHW -> NHWC, cast to bf16 BEFORE any patch glue
    x = jnp.transpose(x_nchw, (0, 2, 3, 1)).astype(jnp.bfloat16)

    # stage-0 stacked-phase patches: the only XLA-side activation work
    p0 = _im2col_pool_phases_stacked(x)              # (4*N*H/2*W/2, 27) bf16

    # inference-mode BN folded into the conv weights / shifts
    w0, s0 = _fold_bn(params, 0)
    w1, s1 = _fold_bn(params, 1)
    w2, s2 = _fold_bn(params, 2)
    w3 = params["conv3_w"].reshape(9 * 128, 256).astype(jnp.bfloat16)
    b3 = params["conv3_b"].reshape(1, 256).astype(jnp.float32)

    # trace-time constants: in-kernel im2col gathers + adaptive-avg-pool matrix
    g1 = jnp.asarray(_gather_stack(N, H // 2, W // 2, True), jnp.bfloat16)
    g2 = jnp.asarray(_gather_stack(N, H // 4, W // 4, True), jnp.bfloat16)
    g3 = jnp.asarray(_gather_stack(N, H // 8, W // 8, False), jnp.bfloat16)
    hw3 = (H // 8) * (W // 8)
    pool_mat = jnp.asarray(np.kron(np.eye(N), np.ones((1, hw3))) / hw3,
                           jnp.bfloat16)             # 1/4 is exact in bf16

    fc_w = params["fc_w"].astype(jnp.bfloat16)       # (in, out); see NOTE above
    fc_b = params["fc_b"].reshape(1, -1).astype(jnp.float32)

    args = (p0, w0, s0, g1, w1, s1, g2, w2, s2, g3, w3, b3,
            pool_mat, fc_w, fc_b)
    return fused_feature_extractor(args, (N, fc_w.shape[1]))


# ----------------------------------------------------------------------------
# Parameters and pure-JAX reference
# ----------------------------------------------------------------------------
def init_params(key):
    keys = jax.random.split(key, 10)
    params = {}
    chans = [(3, 32), (32, 64), (64, 128), (128, 256)]
    for idx, (cin, cout) in enumerate(chans):
        params[f"conv{idx}_w"] = 0.05 * jax.random.normal(
            keys[2 * idx], (3, 3, cin, cout), jnp.float32)
        params[f"conv{idx}_b"] = 0.05 * jax.random.normal(
            keys[2 * idx + 1], (cout,), jnp.float32)
    # BatchNorm params: PyTorch defaults (gamma=1, beta=0, running mean/var 0/1)
    for idx, (_, cout) in enumerate(chans[:3]):
        params[f"bn{idx}_gamma"] = jnp.ones((cout,), jnp.float32)
        params[f"bn{idx}_beta"] = jnp.zeros((cout,), jnp.float32)
        params[f"bn{idx}_mean"] = jnp.zeros((cout,), jnp.float32)
        params[f"bn{idx}_var"] = jnp.ones((cout,), jnp.float32)
    params["fc_w"] = 0.05 * jax.random.normal(keys[8], (256, 256), jnp.float32)
    params["fc_b"] = 0.05 * jax.random.normal(keys[9], (256,), jnp.float32)
    return params


def _reference_forward(params, x_nchw):
    # pure-JAX float32 reference for the correctness check
    x = jnp.transpose(x_nchw, (0, 2, 3, 1)).astype(jnp.float32)

    def conv(x, w, b):
        return jax.lax.conv_general_dilated(
            x, w, (1, 1), ((1, 1), (1, 1)),
            dimension_numbers=("NHWC", "HWIO", "NHWC")) + b

    for idx in range(3):
        y = conv(x, params[f"conv{idx}_w"], params[f"conv{idx}_b"])
        inv_std = 1.0 / jnp.sqrt(params[f"bn{idx}_var"] + _BN_EPS)
        y = (y - params[f"bn{idx}_mean"]) * (params[f"bn{idx}_gamma"] * inv_std) \
            + params[f"bn{idx}_beta"]
        y = jax.nn.gelu(y, approximate=False)
        N, H, W, C = y.shape
        x = y.reshape(N, H // 2, 2, W // 2, 2, C).max(axis=(2, 4))
    y = conv(x, params["conv3_w"], params["conv3_b"])
    y = jnp.where(y >= 0.0, y, _LEAKY_SLOPE * y)
    pooled = y.mean(axis=(1, 2))
    return pooled @ params["fc_w"] + params["fc_b"]


if __name__ == "__main__":
    key = jax.random.PRNGKey(0)
    pkey, xkey = jax.random.split(key)
    params = init_params(pkey)
    # PyTorch-style NCHW input: batch=2, C=3 (module requires 3), 16x16 spatial
    x = jax.random.normal(xkey, (2, 3, 16, 16), jnp.float32)

    out = jax.jit(feature_extractor_forward)(params, x)
    out = jax.block_until_ready(out)
    assert out.shape == (2, 256)

    # Tolerance accounts for bf16 matmul operands (f32 accumulation) throughout.
    ref = _reference_forward(params, x)
    np.testing.assert_allclose(np.asarray(out), np.asarray(ref),
                               rtol=2e-2, atol=2e-2)
    print("KERNEL_OK")
</pallas_src>

<mosaic_0001>
module attributes {stable_mosaic.version = 11 : i64} {
  func.func @_fused_net_kernel(%arg0: i32, %arg1: memref<512x27xbf16, #tpu.memory_space<vmem>>, %arg2: memref<27x32xbf16, #tpu.memory_space<vmem>>, %arg3: memref<1x32xf32, #tpu.memory_space<vmem>>, %arg4: memref<1152x128xbf16, #tpu.memory_space<vmem>>, %arg5: memref<288x64xbf16, #tpu.memory_space<vmem>>, %arg6: memref<1x64xf32, #tpu.memory_space<vmem>>, %arg7: memref<288x32xbf16, #tpu.memory_space<vmem>>, %arg8: memref<576x128xbf16, #tpu.memory_space<vmem>>, %arg9: memref<1x128xf32, #tpu.memory_space<vmem>>, %arg10: memref<72x8xbf16, #tpu.memory_space<vmem>>, %arg11: memref<1152x256xbf16, #tpu.memory_space<vmem>>, %arg12: memref<1x256xf32, #tpu.memory_space<vmem>>, %arg13: memref<2x8xbf16, #tpu.memory_space<vmem>>, %arg14: memref<256x256xbf16, #tpu.memory_space<vmem>>, %arg15: memref<1x256xf32, #tpu.memory_space<vmem>>, %arg16: memref<2x256xf32, #tpu.memory_space<vmem>>) attributes {dimension_semantics = [#tpu.dimension_semantics<arbitrary>], iteration_bounds = array<i64: 1>, scalar_prefetch = 0 : i64, scratch_operands = 0 : i64, tpu.core_type = #tpu.core_type<tc>, window_params = [{pipeline_mode = #tpu.pipeline_mode<synchronous>, transform_indices = @transform_0, window_bounds = array<i64: 512, 27>}, {pipeline_mode = #tpu.pipeline_mode<synchronous>, transform_indices = @transform_1, window_bounds = array<i64: 27, 32>}, {pipeline_mode = #tpu.pipeline_mode<synchronous>, transform_indices = @transform_2, window_bounds = array<i64: 1, 32>}, {pipeline_mode = #tpu.pipeline_mode<synchronous>, transform_indices = @transform_3, window_bounds = array<i64: 1152, 128>}, {pipeline_mode = #tpu.pipeline_mode<synchronous>, transform_indices = @transform_4, window_bounds = array<i64: 288, 64>}, {pipeline_mode = #tpu.pipeline_mode<synchronous>, transform_indices = @transform_5, window_bounds = array<i64: 1, 64>}, {pipeline_mode = #tpu.pipeline_mode<synchronous>, transform_indices = @transform_6, window_bounds = array<i64: 288, 32>}, {pipeline_mode = #tpu.pipeline_mode<synchronous>, transform_indices = @transform_7, window_bounds = array<i64: 576, 128>}, {pipeline_mode = #tpu.pipeline_mode<synchronous>, transform_indices = @transform_8, window_bounds = array<i64: 1, 128>}, {pipeline_mode = #tpu.pipeline_mode<synchronous>, transform_indices = @transform_9, window_bounds = array<i64: 72, 8>}, {pipeline_mode = #tpu.pipeline_mode<synchronous>, transform_indices = @transform_10, window_bounds = array<i64: 1152, 256>}, {pipeline_mode = #tpu.pipeline_mode<synchronous>, transform_indices = @transform_11, window_bounds = array<i64: 1, 256>}, {pipeline_mode = #tpu.pipeline_mode<synchronous>, transform_indices = @transform_12, window_bounds = array<i64: 2, 8>}, {pipeline_mode = #tpu.pipeline_mode<synchronous>, transform_indices = @transform_13, window_bounds = array<i64: 256, 256>}, {pipeline_mode = #tpu.pipeline_mode<synchronous>, transform_indices = @transform_14, window_bounds = array<i64: 1, 256>}, {pipeline_mode = #tpu.pipeline_mode<synchronous>, transform_indices = @transform_15, window_bounds = array<i64: 2, 256>}]} {
    %c0 = arith.constant 0 : index
    %c0_0 = arith.constant 0 : index
    %0 = vector.load %arg1[%c0, %c0_0] : memref<512x27xbf16, #tpu.memory_space<vmem>>, vector<512x27xbf16>
    %c0_1 = arith.constant 0 : index
    %c0_2 = arith.constant 0 : index
    %1 = vector.load %arg2[%c0_1, %c0_2] : memref<27x32xbf16, #tpu.memory_space<vmem>>, vector<27x32xbf16>
    %cst = arith.constant dense<0.000000e+00> : vector<512x32xf32>
    %2 = tpu.matmul %0, %1, %cst {dimension_numbers = #tpu.dot_dimension_numbers<[1], [0], [0], [1], [0, 0, 1, 1], [], []>} : vector<512x27xbf16>, vector<27x32xbf16>, vector<512x32xf32> -> vector<512x32xf32>
    %c0_3 = arith.constant 0 : index
    %c0_4 = arith.constant 0 : index
    %3 = vector.load %arg3[%c0_3, %c0_4] : memref<1x32xf32, #tpu.memory_space<vmem>>, vector<1x32xf32>
    %4 = vector.broadcast %3 : vector<1x32xf32> to vector<512x32xf32>
    %5 = arith.addf %2, %4 : vector<512x32xf32>
    %cst_5 = arith.constant 5.000000e-01 : f32
    %6 = vector.broadcast %cst_5 : f32 to vector<512x32xf32>
    %7 = arith.mulf %6, %5 : vector<512x32xf32>
    %cst_6 = arith.constant 0.707106769 : f32
    %8 = vector.broadcast %cst_6 : f32 to vector<512x32xf32>
    %9 = arith.mulf %5, %8 : vector<512x32xf32>
    %10 = math.erf %9 : vector<512x32xf32>
    %cst_7 = arith.constant 1.000000e+00 : f32
    %11 = vector.broadcast %cst_7 : f32 to vector<512x32xf32>
    %12 = arith.addf %11, %10 : vector<512x32xf32>
    %13 = arith.mulf %7, %12 : vector<512x32xf32>
    %14 = vector.extract_strided_slice %13 {offsets = [0, 0], sizes = [128, 32], strides = [1, 1]} : vector<512x32xf32> to vector<128x32xf32>
    %15 = vector.extract_strided_slice %13 {offsets = [128, 0], sizes = [128, 32], strides = [1, 1]} : vector<512x32xf32> to vector<128x32xf32>
    %16 = arith.maximumf %14, %15 : vector<128x32xf32>
    %17 = vector.extract_strided_slice %13 {offsets = [256, 0], sizes = [128, 32], strides = [1, 1]} : vector<512x32xf32> to vector<128x32xf32>
    %18 = vector.extract_strided_slice %13 {offsets = [384, 0], sizes = [128, 32], strides = [1, 1]} : vector<512x32xf32> to vector<128x32xf32>
    %19 = arith.maximumf %17, %18 : vector<128x32xf32>
    %20 = arith.maximumf %16, %19 : vector<128x32xf32>
    %21 = arith.truncf %20 : vector<128x32xf32> to vector<128x32xbf16>
    %c0_8 = arith.constant 0 : index
    %c0_9 = arith.constant 0 : index
    %22 = vector.load %arg4[%c0_8, %c0_9] : memref<1152x128xbf16, #tpu.memory_space<vmem>>, vector<1152x128xbf16>
    %c0_10 = arith.constant 0 : index
    %c0_11 = arith.constant 0 : index
    %23 = vector.load %arg5[%c0_10, %c0_11] : memref<288x64xbf16, #tpu.memory_space<vmem>>, vector<288x64xbf16>
    %cst_12 = arith.constant dense<0.000000e+00> : vector<1152x32xf32>
    %24 = tpu.matmul %22, %21, %cst_12 {dimension_numbers = #tpu.dot_dimension_numbers<[1], [0], [0], [1], [0, 0, 1, 1], [], []>} : vector<1152x128xbf16>, vector<128x32xbf16>, vector<1152x32xf32> -> vector<1152x32xf32>
    %25 = vector.extract_strided_slice %24 {offsets = [0, 0], sizes = [128, 32], strides = [1, 1]} : vector<1152x32xf32> to vector<128x32xf32>
    %26 = arith.truncf %25 : vector<128x32xf32> to vector<128x32xbf16>
    %27 = vector.extract_strided_slice %23 {offsets = [0, 0], sizes = [32, 64], strides = [1, 1]} : vector<288x64xbf16> to vector<32x64xbf16>
    %cst_13 = arith.constant dense<0.000000e+00> : vector<128x64xf32>
    %28 = tpu.matmul %26, %27, %cst_13 {dimension_numbers = #tpu.dot_dimension_numbers<[1], [0], [0], [1], [0, 0, 1, 1], [], []>} : vector<128x32xbf16>, vector<32x64xbf16>, vector<128x64xf32> -> vector<128x64xf32>
    %29 = vector.extract_strided_slice %24 {offsets = [128, 0], sizes = [128, 32], strides = [1, 1]} : vector<1152x32xf32> to vector<128x32xf32>
    %30 = arith.truncf %29 : vector<128x32xf32> to vector<128x32xbf16>
    %31 = vector.extract_strided_slice %23 {offsets = [32, 0], sizes = [32, 64], strides = [1, 1]} : vector<288x64xbf16> to vector<32x64xbf16>
    %cst_14 = arith.constant dense<0.000000e+00> : vector<128x64xf32>
    %32 = tpu.matmul %30, %31, %cst_14 {dimension_numbers = #tpu.dot_dimension_numbers<[1], [0], [0], [1], [0, 0, 1, 1], [], []>} : vector<128x32xbf16>, vector<32x64xbf16>, vector<128x64xf32> -> vector<128x64xf32>
    %33 = arith.addf %28, %32 : vector<128x64xf32>
    %34 = vector.extract_strided_slice %24 {offsets = [256, 0], sizes = [128, 32], strides = [1, 1]} : vector<1152x32xf32> to vector<128x32xf32>
    %35 = arith.truncf %34 : vector<128x32xf32> to vector<128x32xbf16>
    %36 = vector.extract_strided_slice %23 {offsets = [64, 0], sizes = [32, 64], strides = [1, 1]} : vector<288x64xbf16> to vector<32x64xbf16>
    %cst_15 = arith.constant dense<0.000000e+00> : vector<128x64xf32>
    %37 = tpu.matmul %35, %36, %cst_15 {dimension_numbers = #tpu.dot_dimension_numbers<[1], [0], [0], [1], [0, 0, 1, 1], [], []>} : vector<128x32xbf16>, vector<32x64xbf16>, vector<128x64xf32> -> vector<128x64xf32>
    %38 = arith.addf %33, %37 : vector<128x64xf32>
    %39 = vector.extract_strided_slice %24 {offsets = [384, 0], sizes = [128, 32], strides = [1, 1]} : vector<1152x32xf32> to vector<128x32xf32>
    %40 = arith.truncf %39 : vector<128x32xf32> to vector<128x32xbf16>
    %41 = vector.extract_strided_slice %23 {offsets = [96, 0], sizes = [32, 64], strides = [1, 1]} : vector<288x64xbf16> to vector<32x64xbf16>
    %cst_16 = arith.constant dense<0.000000e+00> : vector<128x64xf32>
    %42 = tpu.matmul %40, %41, %cst_16 {dimension_numbers = #tpu.dot_dimension_numbers<[1], [0], [0], [1], [0, 0, 1, 1], [], []>} : vector<128x32xbf16>, vector<32x64xbf16>, vector<128x64xf32> -> vector<128x64xf32>
    %43 = arith.addf %38, %42 : vector<128x64xf32>
    %44 = vector.extract_strided_slice %24 {offsets = [512, 0], sizes = [128, 32], strides = [1, 1]} : vector<1152x32xf32> to vector<128x32xf32>
    %45 = arith.truncf %44 : vector<128x32xf32> to vector<128x32xbf16>
    %46 = vector.extract_strided_slice %23 {offsets = [128, 0], sizes = [32, 64], strides = [1, 1]} : vector<288x64xbf16> to vector<32x64xbf16>
    %cst_17 = arith.constant dense<0.000000e+00> : vector<128x64xf32>
    %47 = tpu.matmul %45, %46, %cst_17 {dimension_numbers = #tpu.dot_dimension_numbers<[1], [0], [0], [1], [0, 0, 1, 1], [], []>} : vector<128x32xbf16>, vector<32x64xbf16>, vector<128x64xf32> -> vector<128x64xf32>
    %48 = arith.addf %43, %47 : vector<128x64xf32>
    %49 = vector.extract_strided_slice %24 {offsets = [640, 0], sizes = [128, 32], strides = [1, 1]} : vector<1152x32xf32> to vector<128x32xf32>
    %50 = arith.truncf %49 : vector<128x32xf32> to vector<128x32xbf16>
    %51 = vector.extract_strided_slice %23 {offsets = [160, 0], sizes = [32, 64], strides = [1, 1]} : vector<288x64xbf16> to vector<32x64xbf16>
    %cst_18 = arith.constant dense<0.000000e+00> : vector<128x64xf32>
    %52 = tpu.matmul %50, %51, %cst_18 {dimension_numbers = #tpu.dot_dimension_numbers<[1], [0], [0], [1], [0, 0, 1, 1], [], []>} : vector<128x32xbf16>, vector<32x64xbf16>, vector<128x64xf32> -> vector<128x64xf32>
    %53 = arith.addf %48, %52 : vector<128x64xf32>
    %54 = vector.extract_strided_slice %24 {offsets = [768, 0], sizes = [128, 32], strides = [1, 1]} : vector<1152x32xf32> to vector<128x32xf32>
    %55 = arith.truncf %54 : vector<128x32xf32> to vector<128x32xbf16>
    %56 = vector.extract_strided_slice %23 {offsets = [192, 0], sizes = [32, 64], strides = [1, 1]} : vector<288x64xbf16> to vector<32x64xbf16>
    %cst_19 = arith.constant dense<0.000000e+00> : vector<128x64xf32>
    %57 = tpu.matmul %55, %56, %cst_19 {dimension_numbers = #tpu.dot_dimension_numbers<[1], [0], [0], [1], [0, 0, 1, 1], [], []>} : vector<128x32xbf16>, vector<32x64xbf16>, vector<128x64xf32> -> vector<128x64xf32>
    %58 = arith.addf %53, %57 : vector<128x64xf32>
    %59 = vector.extract_strided_slice %24 {offsets = [896, 0], sizes = [128, 32], strides = [1, 1]} : vector<1152x32xf32> to vector<128x32xf32>
    %60 = arith.truncf %59 : vector<128x32xf32> to vector<128x32xbf16>
    %61 = vector.extract_strided_slice %23 {offsets = [224, 0], sizes = [32, 64], strides = [1, 1]} : vector<288x64xbf16> to vector<32x64xbf16>
    %cst_20 = arith.constant dense<0.000000e+00> : vector<128x64xf32>
    %62 = tpu.matmul %60, %61, %cst_20 {dimension_numbers = #tpu.dot_dimension_numbers<[1], [0], [0], [1], [0, 0, 1, 1], [], []>} : vector<128x32xbf16>, vector<32x64xbf16>, vector<128x64xf32> -> vector<128x64xf32>
    %63 = arith.addf %58, %62 : vector<128x64xf32>
    %64 = vector.extract_strided_slice %24 {offsets = [1024, 0], sizes = [128, 32], strides = [1, 1]} : vector<1152x32xf32> to vector<128x32xf32>
    %65 = arith.truncf %64 : vector<128x32xf32> to vector<128x32xbf16>
    %66 = vector.extract_strided_slice %23 {offsets = [256, 0], sizes = [32, 64], strides = [1, 1]} : vector<288x64xbf16> to vector<32x64xbf16>
    %cst_21 = arith.constant dense<0.000000e+00> : vector<128x64xf32>
    %67 = tpu.matmul %65, %66, %cst_21 {dimension_numbers = #tpu.dot_dimension_numbers<[1], [0], [0], [1], [0, 0, 1, 1], [], []>} : vector<128x32xbf16>, vector<32x64xbf16>, vector<128x64xf32> -> vector<128x64xf32>
    %68 = arith.addf %63, %67 : vector<128x64xf32>
    %c0_22 = arith.constant 0 : index
    %c0_23 = arith.constant 0 : index
    %69 = vector.load %arg6[%c0_22, %c0_23] : memref<1x64xf32, #tpu.memory_space<vmem>>, vector<1x64xf32>
    %70 = vector.broadcast %69 : vector<1x64xf32> to vector<128x64xf32>
    %71 = arith.addf %68, %70 : vector<128x64xf32>
    %cst_24 = arith.constant 5.000000e-01 : f32
    %72 = vector.broadcast %cst_24 : f32 to vector<128x64xf32>
    %73 = arith.mulf %72, %71 : vector<128x64xf32>
    %cst_25 = arith.constant 0.707106769 : f32
    %74 = vector.broadcast %cst_25 : f32 to vector<128x64xf32>
    %75 = arith.mulf %71, %74 : vector<128x64xf32>
    %76 = math.erf %75 : vector<128x64xf32>
    %cst_26 = arith.constant 1.000000e+00 : f32
    %77 = vector.broadcast %cst_26 : f32 to vector<128x64xf32>
    %78 = arith.addf %77, %76 : vector<128x64xf32>
    %79 = arith.mulf %73, %78 : vector<128x64xf32>
    %80 = vector.extract_strided_slice %79 {offsets = [0, 0], sizes = [32, 64], strides = [1, 1]} : vector<128x64xf32> to vector<32x64xf32>
    %81 = vector.extract_strided_slice %79 {offsets = [32, 0], sizes = [32, 64], strides = [1, 1]} : vector<128x64xf32> to vector<32x64xf32>
    %82 = arith.maximumf %80, %81 : vector<32x64xf32>
    %83 = vector.extract_strided_slice %79 {offsets = [64, 0], sizes = [32, 64], strides = [1, 1]} : vector<128x64xf32> to vector<32x64xf32>
    %84 = vector.extract_strided_slice %79 {offsets = [96, 0], sizes = [32, 64], strides = [1, 1]} : vector<128x64xf32> to vector<32x64xf32>
    %85 = arith.maximumf %83, %84 : vector<32x64xf32>
    %86 = arith.maximumf %82, %85 : vector<32x64xf32>
    %87 = arith.truncf %86 : vector<32x64xf32> to vector<32x64xbf16>
    %c0_27 = arith.constant 0 : index
    %c0_28 = arith.constant 0 : index
    %88 = vector.load %arg7[%c0_27, %c0_28] : memref<288x32xbf16, #tpu.memory_space<vmem>>, vector<288x32xbf16>
    %c0_29 = arith.constant 0 : index
    %c0_30 = arith.constant 0 : index
    %89 = vector.load %arg8[%c0_29, %c0_30] : memref<576x128xbf16, #tpu.memory_space<vmem>>, vector<576x128xbf16>
    %cst_31 = arith.constant dense<0.000000e+00> : vector<288x64xf32>
    %90 = tpu.matmul %88, %87, %cst_31 {dimension_numbers = #tpu.dot_dimension_numbers<[1], [0], [0], [1], [0, 0, 1, 1], [], []>} : vector<288x32xbf16>, vector<32x64xbf16>, vector<288x64xf32> -> vector<288x64xf32>
    %91 = vector.extract_strided_slice %90 {offsets = [0, 0], sizes = [32, 64], strides = [1, 1]} : vector<288x64xf32> to vector<32x64xf32>
    %92 = arith.truncf %91 : vector<32x64xf32> to vector<32x64xbf16>
    %93 = vector.extract_strided_slice %89 {offsets = [0, 0], sizes = [64, 128], strides = [1, 1]} : vector<576x128xbf16> to vector<64x128xbf16>
    %cst_32 = arith.constant dense<0.000000e+00> : vector<32x128xf32>
    %94 = tpu.matmul %92, %93, %cst_32 {dimension_numbers = #tpu.dot_dimension_numbers<[1], [0], [0], [1], [0, 0, 1, 1], [], []>} : vector<32x64xbf16>, vector<64x128xbf16>, vector<32x128xf32> -> vector<32x128xf32>
    %95 = vector.extract_strided_slice %90 {offsets = [32, 0], sizes = [32, 64], strides = [1, 1]} : vector<288x64xf32> to vector<32x64xf32>
    %96 = arith.truncf %95 : vector<32x64xf32> to vector<32x64xbf16>
    %97 = vector.extract_strided_slice %89 {offsets = [64, 0], sizes = [64, 128], strides = [1, 1]} : vector<576x128xbf16> to vector<64x128xbf16>
    %cst_33 = arith.constant dense<0.000000e+00> : vector<32x128xf32>
    %98 = tpu.matmul %96, %97, %cst_33 {dimension_numbers = #tpu.dot_dimension_numbers<[1], [0], [0], [1], [0, 0, 1, 1], [], []>} : vector<32x64xbf16>, vector<64x128xbf16>, vector<32x128xf32> -> vector<32x128xf32>
    %99 = arith.addf %94, %98 : vector<32x128xf32>
    %100 = vector.extract_strided_slice %90 {offsets = [64, 0], sizes = [32, 64], strides = [1, 1]} : vector<288x64xf32> to vector<32x64xf32>
    %101 = arith.truncf %100 : vector<32x64xf32> to vector<32x64xbf16>
    %102 = vector.extract_strided_slice %89 {offsets = [128, 0], sizes = [64, 128], strides = [1, 1]} : vector<576x128xbf16> to vector<64x128xbf16>
    %cst_34 = arith.constant dense<0.000000e+00> : vector<32x128xf32>
    %103 = tpu.matmul %101, %102, %cst_34 {dimension_numbers = #tpu.dot_dimension_numbers<[1], [0], [0], [1], [0, 0, 1, 1], [], []>} : vector<32x64xbf16>, vector<64x128xbf16>, vector<32x128xf32> -> vector<32x128xf32>
    %104 = arith.addf %99, %103 : vector<32x128xf32>
    %105 = vector.extract_strided_slice %90 {offsets = [96, 0], sizes = [32, 64], strides = [1, 1]} : vector<288x64xf32> to vector<32x64xf32>
    %106 = arith.truncf %105 : vector<32x64xf32> to vector<32x64xbf16>
    %107 = vector.extract_strided_slice %89 {offsets = [192, 0], sizes = [64, 128], strides = [1, 1]} : vector<576x128xbf16> to vector<64x128xbf16>
    %cst_35 = arith.constant dense<0.000000e+00> : vector<32x128xf32>
    %108 = tpu.matmul %106, %107, %cst_35 {dimension_numbers = #tpu.dot_dimension_numbers<[1], [0], [0], [1], [0, 0, 1, 1], [], []>} : vector<32x64xbf16>, vector<64x128xbf16>, vector<32x128xf32> -> vector<32x128xf32>
    %109 = arith.addf %104, %108 : vector<32x128xf32>
    %110 = vector.extract_strided_slice %90 {offsets = [128, 0], sizes = [32, 64], strides = [1, 1]} : vector<288x64xf32> to vector<32x64xf32>
    %111 = arith.truncf %110 : vector<32x64xf32> to vector<32x64xbf16>
    %112 = vector.extract_strided_slice %89 {offsets = [256, 0], sizes = [64, 128], strides = [1, 1]} : vector<576x128xbf16> to vector<64x128xbf16>
    %cst_36 = arith.constant dense<0.000000e+00> : vector<32x128xf32>
    %113 = tpu.matmul %111, %112, %cst_36 {dimension_numbers = #tpu.dot_dimension_numbers<[1], [0], [0], [1], [0, 0, 1, 1], [], []>} : vector<32x64xbf16>, vector<64x128xbf16>, vector<32x128xf32> -> vector<32x128xf32>
    %114 = arith.addf %109, %113 : vector<32x128xf32>
    %115 = vector.extract_strided_slice %90 {offsets = [160, 0], sizes = [32, 64], strides = [1, 1]} : vector<288x64xf32> to vector<32x64xf32>
    %116 = arith.truncf %115 : vector<32x64xf32> to vector<32x64xbf16>
    %117 = vector.extract_strided_slice %89 {offsets = [320, 0], sizes = [64, 128], strides = [1, 1]} : vector<576x128xbf16> to vector<64x128xbf16>
    %cst_37 = arith.constant dense<0.000000e+00> : vector<32x128xf32>
    %118 = tpu.matmul %116, %117, %cst_37 {dimension_numbers = #tpu.dot_dimension_numbers<[1], [0], [0], [1], [0, 0, 1, 1], [], []>} : vector<32x64xbf16>, vector<64x128xbf16>, vector<32x128xf32> -> vector<32x128xf32>
    %119 = arith.addf %114, %118 : vector<32x128xf32>
    %120 = vector.extract_strided_slice %90 {offsets = [192, 0], sizes = [32, 64], strides = [1, 1]} : vector<288x64xf32> to vector<32x64xf32>
    %121 = arith.truncf %120 : vector<32x64xf32> to vector<32x64xbf16>
    %122 = vector.extract_strided_slice %89 {offsets = [384, 0], sizes = [64, 128], strides = [1, 1]} : vector<576x128xbf16> to vector<64x128xbf16>
    %cst_38 = arith.constant dense<0.000000e+00> : vector<32x128xf32>
    %123 = tpu.matmul %121, %122, %cst_38 {dimension_numbers = #tpu.dot_dimension_numbers<[1], [0], [0], [1], [0, 0, 1, 1], [], []>} : vector<32x64xbf16>, vector<64x128xbf16>, vector<32x128xf32> -> vector<32x128xf32>
    %124 = arith.addf %119, %123 : vector<32x128xf32>
    %125 = vector.extract_strided_slice %90 {offsets = [224, 0], sizes = [32, 64], strides = [1, 1]} : vector<288x64xf32> to vector<32x64xf32>
    %126 = arith.truncf %125 : vector<32x64xf32> to vector<32x64xbf16>
    %127 = vector.extract_strided_slice %89 {offsets = [448, 0], sizes = [64, 128], strides = [1, 1]} : vector<576x128xbf16> to vector<64x128xbf16>
    %cst_39 = arith.constant dense<0.000000e+00> : vector<32x128xf32>
    %128 = tpu.matmul %126, %127, %cst_39 {dimension_numbers = #tpu.dot_dimension_numbers<[1], [0], [0], [1], [0, 0, 1, 1], [], []>} : vector<32x64xbf16>, vector<64x128xbf16>, vector<32x128xf32> -> vector<32x128xf32>
    %129 = arith.addf %124, %128 : vector<32x128xf32>
    %130 = vector.extract_strided_slice %90 {offsets = [256, 0], sizes = [32, 64], strides = [1, 1]} : vector<288x64xf32> to vector<32x64xf32>
    %131 = arith.truncf %130 : vector<32x64xf32> to vector<32x64xbf16>
    %132 = vector.extract_strided_slice %89 {offsets = [512, 0], sizes = [64, 128], strides = [1, 1]} : vector<576x128xbf16> to vector<64x128xbf16>
    %cst_40 = arith.constant dense<0.000000e+00> : vector<32x128xf32>
    %133 = tpu.matmul %131, %132, %cst_40 {dimension_numbers = #tpu.dot_dimension_numbers<[1], [0], [0], [1], [0, 0, 1, 1], [], []>} : vector<32x64xbf16>, vector<64x128xbf16>, vector<32x128xf32> -> vector<32x128xf32>
    %134 = arith.addf %129, %133 : vector<32x128xf32>
    %c0_41 = arith.constant 0 : index
    %c0_42 = arith.constant 0 : index
    %135 = vector.load %arg9[%c0_41, %c0_42] : memref<1x128xf32, #tpu.memory_space<vmem>>, vector<1x128xf32>
    %136 = vector.broadcast %135 : vector<1x128xf32> to vector<32x128xf32>
    %137 = arith.addf %134, %136 : vector<32x128xf32>
    %cst_43 = arith.constant 5.000000e-01 : f32
    %138 = vector.broadcast %cst_43 : f32 to vector<32x128xf32>
    %139 = arith.mulf %138, %137 : vector<32x128xf32>
    %cst_44 = arith.constant 0.707106769 : f32
    %140 = vector.broadcast %cst_44 : f32 to vector<32x128xf32>
    %141 = arith.mulf %137, %140 : vector<32x128xf32>
    %142 = math.erf %141 : vector<32x128xf32>
    %cst_45 = arith.constant 1.000000e+00 : f32
    %143 = vector.broadcast %cst_45 : f32 to vector<32x128xf32>
    %144 = arith.addf %143, %142 : vector<32x128xf32>
    %145 = arith.mulf %139, %144 : vector<32x128xf32>
    %146 = vector.extract_strided_slice %145 {offsets = [0, 0], sizes = [8, 128], strides = [1, 1]} : vector<32x128xf32> to vector<8x128xf32>
    %147 = vector.extract_strided_slice %145 {offsets = [8, 0], sizes = [8, 128], strides = [1, 1]} : vector<32x128xf32> to vector<8x128xf32>
    %148 = arith.maximumf %146, %147 : vector<8x128xf32>
    %149 = vector.extract_strided_slice %145 {offsets = [16, 0], sizes = [8, 128], strides = [1, 1]} : vector<32x128xf32> to vector<8x128xf32>
    %150 = vector.extract_strided_slice %145 {offsets = [24, 0], sizes = [8, 128], strides = [1, 1]} : vector<32x128xf32> to vector<8x128xf32>
    %151 = arith.maximumf %149, %150 : vector<8x128xf32>
    %152 = arith.maximumf %148, %151 : vector<8x128xf32>
    %153 = arith.truncf %152 : vector<8x128xf32> to vector<8x128xbf16>
    %c0_46 = arith.constant 0 : index
    %c0_47 = arith.constant 0 : index
    %154 = vector.load %arg10[%c0_46, %c0_47] : memref<72x8xbf16, #tpu.memory_space<vmem>>, vector<72x8xbf16>
    %c0_48 = arith.constant 0 : index
    %c0_49 = arith.constant 0 : index
    %155 = vector.load %arg11[%c0_48, %c0_49] : memref<1152x256xbf16, #tpu.memory_space<vmem>>, vector<1152x256xbf16>
    %cst_50 = arith.constant dense<0.000000e+00> : vector<72x128xf32>
    %156 = tpu.matmul %154, %153, %cst_50 {dimension_numbers = #tpu.dot_dimension_numbers<[1], [0], [0], [1], [0, 0, 1, 1], [], []>} : vector<72x8xbf16>, vector<8x128xbf16>, vector<72x128xf32> -> vector<72x128xf32>
    %157 = vector.extract_strided_slice %156 {offsets = [0, 0], sizes = [8, 128], strides = [1, 1]} : vector<72x128xf32> to vector<8x128xf32>
    %158 = arith.truncf %157 : vector<8x128xf32> to vector<8x128xbf16>
    %159 = vector.extract_strided_slice %155 {offsets = [0, 0], sizes = [128, 256], strides = [1, 1]} : vector<1152x256xbf16> to vector<128x256xbf16>
    %cst_51 = arith.constant dense<0.000000e+00> : vector<8x256xf32>
    %160 = tpu.matmul %158, %159, %cst_51 {dimension_numbers = #tpu.dot_dimension_numbers<[1], [0], [0], [1], [0, 0, 1, 1], [], []>} : vector<8x128xbf16>, vector<128x256xbf16>, vector<8x256xf32> -> vector<8x256xf32>
    %161 = vector.extract_strided_slice %156 {offsets = [8, 0], sizes = [8, 128], strides = [1, 1]} : vector<72x128xf32> to vector<8x128xf32>
    %162 = arith.truncf %161 : vector<8x128xf32> to vector<8x128xbf16>
    %163 = vector.extract_strided_slice %155 {offsets = [128, 0], sizes = [128, 256], strides = [1, 1]} : vector<1152x256xbf16> to vector<128x256xbf16>
    %cst_52 = arith.constant dense<0.000000e+00> : vector<8x256xf32>
    %164 = tpu.matmul %162, %163, %cst_52 {dimension_numbers = #tpu.dot_dimension_numbers<[1], [0], [0], [1], [0, 0, 1, 1], [], []>} : vector<8x128xbf16>, vector<128x256xbf16>, vector<8x256xf32> -> vector<8x256xf32>
    %165 = arith.addf %160, %164 : vector<8x256xf32>
    %166 = vector.extract_strided_slice %156 {offsets = [16, 0], sizes = [8, 128], strides = [1, 1]} : vector<72x128xf32> to vector<8x128xf32>
    %167 = arith.truncf %166 : vector<8x128xf32> to vector<8x128xbf16>
    %168 = vector.extract_strided_slice %155 {offsets = [256, 0], sizes = [128, 256], strides = [1, 1]} : vector<1152x256xbf16> to vector<128x256xbf16>
    %cst_53 = arith.constant dense<0.000000e+00> : vector<8x256xf32>
    %169 = tpu.matmul %167, %168, %cst_53 {dimension_numbers = #tpu.dot_dimension_numbers<[1], [0], [0], [1], [0, 0, 1, 1], [], []>} : vector<8x128xbf16>, vector<128x256xbf16>, vector<8x256xf32> -> vector<8x256xf32>
    %170 = arith.addf %165, %169 : vector<8x256xf32>
    %171 = vector.extract_strided_slice %156 {offsets = [24, 0], sizes = [8, 128], strides = [1, 1]} : vector<72x128xf32> to vector<8x128xf32>
    %172 = arith.truncf %171 : vector<8x128xf32> to vector<8x128xbf16>
    %173 = vector.extract_strided_slice %155 {offsets = [384, 0], sizes = [128, 256], strides = [1, 1]} : vector<1152x256xbf16> to vector<128x256xbf16>
    %cst_54 = arith.constant dense<0.000000e+00> : vector<8x256xf32>
    %174 = tpu.matmul %172, %173, %cst_54 {dimension_numbers = #tpu.dot_dimension_numbers<[1], [0], [0], [1], [0, 0, 1, 1], [], []>} : vector<8x128xbf16>, vector<128x256xbf16>, vector<8x256xf32> -> vector<8x256xf32>
    %175 = arith.addf %170, %174 : vector<8x256xf32>
    %176 = vector.extract_strided_slice %156 {offsets = [32, 0], sizes = [8, 128], strides = [1, 1]} : vector<72x128xf32> to vector<8x128xf32>
    %177 = arith.truncf %176 : vector<8x128xf32> to vector<8x128xbf16>
    %178 = vector.extract_strided_slice %155 {offsets = [512, 0], sizes = [128, 256], strides = [1, 1]} : vector<1152x256xbf16> to vector<128x256xbf16>
    %cst_55 = arith.constant dense<0.000000e+00> : vector<8x256xf32>
    %179 = tpu.matmul %177, %178, %cst_55 {dimension_numbers = #tpu.dot_dimension_numbers<[1], [0], [0], [1], [0, 0, 1, 1], [], []>} : vector<8x128xbf16>, vector<128x256xbf16>, vector<8x256xf32> -> vector<8x256xf32>
    %180 = arith.addf %175, %179 : vector<8x256xf32>
    %181 = vector.extract_strided_slice %156 {offsets = [40, 0], sizes = [8, 128], strides = [1, 1]} : vector<72x128xf32> to vector<8x128xf32>
    %182 = arith.truncf %181 : vector<8x128xf32> to vector<8x128xbf16>
    %183 = vector.extract_strided_slice %155 {offsets = [640, 0], sizes = [128, 256], strides = [1, 1]} : vector<1152x256xbf16> to vector<128x256xbf16>
    %cst_56 = arith.constant dense<0.000000e+00> : vector<8x256xf32>
    %184 = tpu.matmul %182, %183, %cst_56 {dimension_numbers = #tpu.dot_dimension_numbers<[1], [0], [0], [1], [0, 0, 1, 1], [], []>} : vector<8x128xbf16>, vector<128x256xbf16>, vector<8x256xf32> -> vector<8x256xf32>
    %185 = arith.addf %180, %184 : vector<8x256xf32>
    %186 = vector.extract_strided_slice %156 {offsets = [48, 0], sizes = [8, 128], strides = [1, 1]} : vector<72x128xf32> to vector<8x128xf32>
    %187 = arith.truncf %186 : vector<8x128xf32> to vector<8x128xbf16>
    %188 = vector.extract_strided_slice %155 {offsets = [768, 0], sizes = [128, 256], strides = [1, 1]} : vector<1152x256xbf16> to vector<128x256xbf16>
    %cst_57 = arith.constant dense<0.000000e+00> : vector<8x256xf32>
    %189 = tpu.matmul %187, %188, %cst_57 {dimension_numbers = #tpu.dot_dimension_numbers<[1], [0], [0], [1], [0, 0, 1, 1], [], []>} : vector<8x128xbf16>, vector<128x256xbf16>, vector<8x256xf32> -> vector<8x256xf32>
    %190 = arith.addf %185, %189 : vector<8x256xf32>
    %191 = vector.extract_strided_slice %156 {offsets = [56, 0], sizes = [8, 128], strides = [1, 1]} : vector<72x128xf32> to vector<8x128xf32>
    %192 = arith.truncf %191 : vector<8x128xf32> to vector<8x128xbf16>
    %193 = vector.extract_strided_slice %155 {offsets = [896, 0], sizes = [128, 256], strides = [1, 1]} : vector<1152x256xbf16> to vector<128x256xbf16>
    %cst_58 = arith.constant dense<0.000000e+00> : vector<8x256xf32>
    %194 = tpu.matmul %192, %193, %cst_58 {dimension_numbers = #tpu.dot_dimension_numbers<[1], [0], [0], [1], [0, 0, 1, 1], [], []>} : vector<8x128xbf16>, vector<128x256xbf16>, vector<8x256xf32> -> vector<8x256xf32>
    %195 = arith.addf %190, %194 : vector<8x256xf32>
    %196 = vector.extract_strided_slice %156 {offsets = [64, 0], sizes = [8, 128], strides = [1, 1]} : vector<72x128xf32> to vector<8x128xf32>
    %197 = arith.truncf %196 : vector<8x128xf32> to vector<8x128xbf16>
    %198 = vector.extract_strided_slice %155 {offsets = [1024, 0], sizes = [128, 256], strides = [1, 1]} : vector<1152x256xbf16> to vector<128x256xbf16>
    %cst_59 = arith.constant dense<0.000000e+00> : vector<8x256xf32>
    %199 = tpu.matmul %197, %198, %cst_59 {dimension_numbers = #tpu.dot_dimension_numbers<[1], [0], [0], [1], [0, 0, 1, 1], [], []>} : vector<8x128xbf16>, vector<128x256xbf16>, vector<8x256xf32> -> vector<8x256xf32>
    %200 = arith.addf %195, %199 : vector<8x256xf32>
    %c0_60 = arith.constant 0 : index
    %c0_61 = arith.constant 0 : index
    %201 = vector.load %arg12[%c0_60, %c0_61] : memref<1x256xf32, #tpu.memory_space<vmem>>, vector<1x256xf32>
    %202 = vector.broadcast %201 : vector<1x256xf32> to vector<8x256xf32>
    %203 = arith.addf %200, %202 : vector<8x256xf32>
    %cst_62 = arith.constant 0.000000e+00 : f32
    %204 = vector.broadcast %cst_62 : f32 to vector<8x256xf32>
    %205 = arith.cmpf oge, %203, %204 : vector<8x256xf32>
    %cst_63 = arith.constant 0.00999999977 : f32
    %206 = vector.broadcast %cst_63 : f32 to vector<8x256xf32>
    %207 = arith.mulf %206, %203 : vector<8x256xf32>
    %208 = arith.select %205, %203, %207 : vector<8x256xi1>, vector<8x256xf32>
    %209 = arith.truncf %208 : vector<8x256xf32> to vector<8x256xbf16>
    %c0_64 = arith.constant 0 : index
    %c0_65 = arith.constant 0 : index
    %210 = vector.load %arg13[%c0_64, %c0_65] : memref<2x8xbf16, #tpu.memory_space<vmem>>, vector<2x8xbf16>
    %cst_66 = arith.constant dense<0.000000e+00> : vector<2x256xf32>
    %211 = tpu.matmul %210, %209, %cst_66 {dimension_numbers = #tpu.dot_dimension_numbers<[1], [0], [0], [1], [0, 0, 1, 1], [], []>} : vector<2x8xbf16>, vector<8x256xbf16>, vector<2x256xf32> -> vector<2x256xf32>
    %212 = arith.truncf %211 : vector<2x256xf32> to vector<2x256xbf16>
    %c0_67 = arith.constant 0 : index
    %c0_68 = arith.constant 0 : index
    %213 = vector.load %arg14[%c0_67, %c0_68] : memref<256x256xbf16, #tpu.memory_space<vmem>>, vector<256x256xbf16>
    %cst_69 = arith.constant dense<0.000000e+00> : vector<2x256xf32>
    %214 = tpu.matmul %212, %213, %cst_69 {dimension_numbers = #tpu.dot_dimension_numbers<[1], [0], [0], [1], [0, 0, 1, 1], [], []>} : vector<2x256xbf16>, vector<256x256xbf16>, vector<2x256xf32> -> vector<2x256xf32>
    %c0_70 = arith.constant 0 : index
    %c0_71 = arith.constant 0 : index
    %215 = vector.load %arg15[%c0_70, %c0_71] : memref<1x256xf32, #tpu.memory_space<vmem>>, vector<1x256xf32>
    %216 = vector.broadcast %215 : vector<1x256xf32> to vector<2x256xf32>
    %217 = arith.addf %214, %216 : vector<2x256xf32>
    %c0_72 = arith.constant 0 : index
    %c0_73 = arith.constant 0 : index
    %218 = vector.load %arg16[%c0_72, %c0_73] : memref<2x256xf32, #tpu.memory_space<vmem>>, vector<2x256xf32>
    tpu.vector_store %arg16[%c0_72, %c0_73], %217 {strides = array<i32>} : memref<2x256xf32, #tpu.memory_space<vmem>>, vector<2x256xf32>,
    return
  }
  func.func @transform_0(%arg0: i32) -> (i32, i32) {
    %c0_i32 = arith.constant 0 : i32
    %c0_i32_0 = arith.constant 0 : i32
    %c0_i32_1 = arith.constant 0 : i32
    return %c0_i32, %c0_i32_0 : i32, i32
  }
  func.func @transform_1(%arg0: i32) -> (i32, i32) {
    %c0_i32 = arith.constant 0 : i32
    %c0_i32_0 = arith.constant 0 : i32
    %c0_i32_1 = arith.constant 0 : i32
    return %c0_i32, %c0_i32_0 : i32, i32
  }
  func.func @transform_2(%arg0: i32) -> (i32, i32) {
    %c0_i32 = arith.constant 0 : i32
    %c0_i32_0 = arith.constant 0 : i32
    %c0_i32_1 = arith.constant 0 : i32
    return %c0_i32, %c0_i32_0 : i32, i32
  }
  func.func @transform_3(%arg0: i32) -> (i32, i32) {
    %c0_i32 = arith.constant 0 : i32
    %c0_i32_0 = arith.constant 0 : i32
    %c0_i32_1 = arith.constant 0 : i32
    return %c0_i32, %c0_i32_0 : i32, i32
  }
  func.func @transform_4(%arg0: i32) -> (i32, i32) {
    %c0_i32 = arith.constant 0 : i32
    %c0_i32_0 = arith.constant 0 : i32
    %c0_i32_1 = arith.constant 0 : i32
    return %c0_i32, %c0_i32_0 : i32, i32
  }
  func.func @transform_5(%arg0: i32) -> (i32, i32) {
    %c0_i32 = arith.constant 0 : i32
    %c0_i32_0 = arith.constant 0 : i32
    %c0_i32_1 = arith.constant 0 : i32
    return %c0_i32, %c0_i32_0 : i32, i32
  }
  func.func @transform_6(%arg0: i32) -> (i32, i32) {
    %c0_i32 = arith.constant 0 : i32
    %c0_i32_0 = arith.constant 0 : i32
    %c0_i32_1 = arith.constant 0 : i32
    return %c0_i32, %c0_i32_0 : i32, i32
  }
  func.func @transform_7(%arg0: i32) -> (i32, i32) {
    %c0_i32 = arith.constant 0 : i32
    %c0_i32_0 = arith.constant 0 : i32
    %c0_i32_1 = arith.constant 0 : i32
    return %c0_i32, %c0_i32_0 : i32, i32
  }
  func.func @transform_8(%arg0: i32) -> (i32, i32) {
    %c0_i32 = arith.constant 0 : i32
    %c0_i32_0 = arith.constant 0 : i32
    %c0_i32_1 = arith.constant 0 : i32
    return %c0_i32, %c0_i32_0 : i32, i32
  }
  func.func @transform_9(%arg0: i32) -> (i32, i32) {
    %c0_i32 = arith.constant 0 : i32
    %c0_i32_0 = arith.constant 0 : i32
    %c0_i32_1 = arith.constant 0 : i32
    return %c0_i32, %c0_i32_0 : i32, i32
  }
  func.func @transform_10(%arg0: i32) -> (i32, i32) {
    %c0_i32 = arith.constant 0 : i32
    %c0_i32_0 = arith.constant 0 : i32
    %c0_i32_1 = arith.constant 0 : i32
    return %c0_i32, %c0_i32_0 : i32, i32
  }
  func.func @transform_11(%arg0: i32) -> (i32, i32) {
    %c0_i32 = arith.constant 0 : i32
    %c0_i32_0 = arith.constant 0 : i32
    %c0_i32_1 = arith.constant 0 : i32
    return %c0_i32, %c0_i32_0 : i32, i32
  }
  func.func @transform_12(%arg0: i32) -> (i32, i32) {
    %c0_i32 = arith.constant 0 : i32
    %c0_i32_0 = arith.constant 0 : i32
    %c0_i32_1 = arith.constant 0 : i32
    return %c0_i32, %c0_i32_0 : i32, i32
  }
  func.func @transform_13(%arg0: i32) -> (i32, i32) {
    %c0_i32 = arith.constant 0 : i32
    %c0_i32_0 = arith.constant 0 : i32
    %c0_i32_1 = arith.constant 0 : i32
    return %c0_i32, %c0_i32_0 : i32, i32
  }
  func.func @transform_14(%arg0: i32) -> (i32, i32) {
    %c0_i32 = arith.constant 0 : i32
    %c0_i32_0 = arith.constant 0 : i32
    %c0_i32_1 = arith.constant 0 : i32
    return %c0_i32, %c0_i32_0 : i32, i32
  }
  func.func @transform_15(%arg0: i32) -> (i32, i32) {
    %c0_i32 = arith.constant 0 : i32
    %c0_i32_0 = arith.constant 0 : i32
    %c0_i32_1 = arith.constant 0 : i32
    return %c0_i32, %c0_i32_0 : i32, i32
  }
}

</mosaic_0001>

<llo_original>
// kernel: feature_extractor_forward.1
$region0: #{feature_extractor_forward.1}
  #allocation0 [shape = 'u32[]', space=smem, size = 0x4, offset = 0x4, fixed_abs, tag = 'smem constant byte address 0x4 - core index']
  #allocation1 [shape = 'u32[144,128]{1,0:T(1,128)}', space=vmem, size = 0x12000, scoped, tag = 'internal scratch']
  %s0 = inlined_call_operand.vmem [shape: bf16[512,27], index: 0, kind: input, shape index: {}]
  %s1 = inlined_call_operand.vmem [shape: bf16[27,32], index: 1, kind: input, shape index: {}]
  %s2 = inlined_call_operand.vmem [shape: f32[1,32], index: 2, kind: input, shape index: {}]
  %s3 = inlined_call_operand.vmem [shape: bf16[1152,128], index: 3, kind: input, shape index: {}]
  %s4 = inlined_call_operand.vmem [shape: bf16[288,64], index: 4, kind: input, shape index: {}]
  %s5 = inlined_call_operand.vmem [shape: f32[1,64], index: 5, kind: input, shape index: {}]
  %s6 = inlined_call_operand.vmem [shape: bf16[288,32], index: 6, kind: input, shape index: {}]
  %s7 = inlined_call_operand.vmem [shape: bf16[576,128], index: 7, kind: input, shape index: {}]
  %s8 = inlined_call_operand.vmem [shape: f32[1,128], index: 8, kind: input, shape index: {}]
  %s9 = inlined_call_operand.vmem [shape: bf16[72,8], index: 9, kind: input, shape index: {}]
  %s10 = inlined_call_operand.vmem [shape: bf16[1152,256], index: 10, kind: input, shape index: {}]
  %s11 = inlined_call_operand.vmem [shape: f32[1,256], index: 11, kind: input, shape index: {}]
  %s12 = inlined_call_operand.vmem [shape: bf16[2,8], index: 12, kind: input, shape index: {}]
  %s13 = inlined_call_operand.vmem [shape: bf16[256,256], index: 13, kind: input, shape index: {}]
  %s14 = inlined_call_operand.vmem [shape: f32[1,256], index: 14, kind: input, shape index: {}]
  %s15 = inlined_call_operand.hbm [shape: f32[2,256], index: 15, kind: output, shape index: {}]
  %s16 = sld [smem:[#allocation0]]
  $region70: #{feature_extractor_forward.1} parent=0
    _
  %s18 = ssub.s32 1, %s16
  %s19 = scalar_select 0, %s18, %s16
  $region1: #{feature_extractor_forward.1} parent=0
    #allocation2 [shape = 'u8[2048]{0}', space=vmem, size = 0x800, scoped, tag = 'output window, operand 0, single buffered']
    #allocation3 [shape = 's32[1]{0}', space=sflag, size = 0x4, scoped, tag = 'scoped memory for feature_extractor_forward.1']
    %20 = vsyncpa [#allocation3], 0
    // Predicated region
    $region2: #{feature_extractor_forward.1} parent=1 // pred_check
      _
    $region3: #{feature_extractor_forward.1} parent=1 // pred_check_branch
      %22 = sbr.rel (0) target = $region5
    $region4: #{feature_extractor_forward.1} parent=1 // pred_region
      _
    $region5: #{feature_extractor_forward.1} parent=1 // pred_fallthru
      _
    // Predicated region
    $region6: #{feature_extractor_forward.1} parent=1 // pred_check
      _
    $region7: #{feature_extractor_forward.1} parent=1 // pred_check_branch
      %24 = sbr.rel (0) target = $region9
    $region8: #{feature_extractor_forward.1} parent=1 // pred_region
      _
    $region9: #{feature_extractor_forward.1} parent=1 // pred_fallthru
      _
    // Predicated region
    $region10: #{feature_extractor_forward.1} parent=1 // pred_check
      _
    $region11: #{feature_extractor_forward.1} parent=1 // pred_check_branch
      %26 = sbr.rel (0) target = $region13
    $region12: #{feature_extractor_forward.1} parent=1 // pred_region
      _
    $region13: #{feature_extractor_forward.1} parent=1 // pred_fallthru
      _
    // Predicated region
    $region14: #{feature_extractor_forward.1} parent=1 // pred_check
      _
    $region15: #{feature_extractor_forward.1} parent=1 // pred_check_branch
      %28 = sbr.rel (0) target = $region17
    $region16: #{feature_extractor_forward.1} parent=1 // pred_region
      _
    $region17: #{feature_extractor_forward.1} parent=1 // pred_fallthru
      _
    // Predicated region
    $region18: #{feature_extractor_forward.1} parent=1 // pred_check
      _
    $region19: #{feature_extractor_forward.1} parent=1 // pred_check_branch
      %30 = sbr.rel (0) target = $region21
    $region20: #{feature_extractor_forward.1} parent=1 // pred_region
      _
    $region21: #{feature_extractor_forward.1} parent=1 // pred_fallthru
      _
    // Predicated region
    $region22: #{feature_extractor_forward.1} parent=1 // pred_check
      _
    $region23: #{feature_extractor_forward.1} parent=1 // pred_check_branch
      %32 = sbr.rel (0) target = $region25
    $region24: #{feature_extractor_forward.1} parent=1 // pred_region
      _
    $region25: #{feature_extractor_forward.1} parent=1 // pred_fallthru
      _
    // Predicated region
    $region26: #{feature_extractor_forward.1} parent=1 // pred_check
      _
    $region27: #{feature_extractor_forward.1} parent=1 // pred_check_branch
      %34 = sbr.rel (0) target = $region29
    $region28: #{feature_extractor_forward.1} parent=1 // pred_region
      _
    $region29: #{feature_extractor_forward.1} parent=1 // pred_fallthru
      _
    // Predicated region
    $region30: #{feature_extractor_forward.1} parent=1 // pred_check
      _
    $region31: #{feature_extractor_forward.1} parent=1 // pred_check_branch
      %36 = sbr.rel (0) target = $region33
    $region32: #{feature_extractor_forward.1} parent=1 // pred_region
      _
    $region33: #{feature_extractor_forward.1} parent=1 // pred_fallthru
      _
    // Predicated region
    $region34: #{feature_extractor_forward.1} parent=1 // pred_check
      _
    $region35: #{feature_extractor_forward.1} parent=1 // pred_check_branch
      %38 = sbr.rel (0) target = $region37
    $region36: #{feature_extractor_forward.1} parent=1 // pred_region
      _
    $region37: #{feature_extractor_forward.1} parent=1 // pred_fallthru
      _
    // Predicated region
    $region38: #{feature_extractor_forward.1} parent=1 // pred_check
      _
    $region39: #{feature_extractor_forward.1} parent=1 // pred_check_branch
      %40 = sbr.rel (0) target = $region41
    $region40: #{feature_extractor_forward.1} parent=1 // pred_region
      _
    $region41: #{feature_extractor_forward.1} parent=1 // pred_fallthru
      _
    // Predicated region
    $region42: #{feature_extractor_forward.1} parent=1 // pred_check
      _
    $region43: #{feature_extractor_forward.1} parent=1 // pred_check_branch
      %42 = sbr.rel (0) target = $region45
    $region44: #{feature_extractor_forward.1} parent=1 // pred_region
      _
    $region45: #{feature_extractor_forward.1} parent=1 // pred_fallthru
      _
    // Predicated region
    $region46: #{feature_extractor_forward.1} parent=1 // pred_check
      _
    $region47: #{feature_extractor_forward.1} parent=1 // pred_check_branch
      %44 = sbr.rel (0) target = $region49
    $region48: #{feature_extractor_forward.1} parent=1 // pred_region
      _
    $region49: #{feature_extractor_forward.1} parent=1 // pred_fallthru
      _
    // Predicated region
    $region50: #{feature_extractor_forward.1} parent=1 // pred_check
      _
    $region51: #{feature_extractor_forward.1} parent=1 // pred_check_branch
      %46 = sbr.rel (0) target = $region53
    $region52: #{feature_extractor_forward.1} parent=1 // pred_region
      _
    $region53: #{feature_extractor_forward.1} parent=1 // pred_fallthru
      _
    // Predicated region
    $region54: #{feature_extractor_forward.1} parent=1 // pred_check
      _
    $region55: #{feature_extractor_forward.1} parent=1 // pred_check_branch
      %48 = sbr.rel (0) target = $region57
    $region56: #{feature_extractor_forward.1} parent=1 // pred_region
      _
    $region57: #{feature_extractor_forward.1} parent=1 // pred_fallthru
      _
    // Predicated region
    $region58: #{feature_extractor_forward.1} parent=1 // pred_check
      _
    $region59: #{feature_extractor_forward.1} parent=1 // pred_check_branch
      %50 = sbr.rel (0) target = $region61
    $region60: #{feature_extractor_forward.1} parent=1 // pred_region
      _
    $region61: #{feature_extractor_forward.1} parent=1 // pred_fallthru
      _
    %v52 = vld [vmem:[%s0] sm:$0xf]
    %v53 = vld [vmem:[%s0 + $0x4] sm:$0xf]
    %v54 = vld [vmem:[%s0 + $0x8] sm:$0xf]
    %v55 = vld [vmem:[%s0 + $0xc] sm:$0xf]
    %v56 = vld [vmem:[%s0 + $0x10] sm:$0xf]
    %v57 = vld [vmem:[%s0 + $0x14] sm:$0xf]
    %v58 = vld [vmem:[%s0 + $0x18] sm:$0xf]
    %v59 = vld [vmem:[%s0 + $0x1c] sm:$0xf]
    %v60 = vld [vmem:[%s0 + $0x20] sm:$0xf]
    %v61 = vld [vmem:[%s0 + $0x24] sm:$0xf]
    %v62 = vld [vmem:[%s0 + $0x28] sm:$0xf]
    %v63 = vld [vmem:[%s0 + $0x2c] sm:$0xf]
    %v64 = vld [vmem:[%s0 + $0x30] sm:$0xf]
    %v65 = vld [vmem:[%s0 + $0x34] sm:$0xf]
    %v66 = vld [vmem:[%s0 + $0x38] sm:$0xf]
    %v67 = vld [vmem:[%s0 + $0x3c] sm:$0xf]
    %v68 = vld [vmem:[%s0 + $0x40] sm:$0xf]
    %v69 = vld [vmem:[%s0 + $0x44] sm:$0xf]
    %v70 = vld [vmem:[%s0 + $0x48] sm:$0xf]
    %v71 = vld [vmem:[%s0 + $0x4c] sm:$0xf]
    %v72 = vld [vmem:[%s0 + $0x50] sm:$0xf]
    %v73 = vld [vmem:[%s0 + $0x54] sm:$0xf]
    %v74 = vld [vmem:[%s0 + $0x58] sm:$0xf]
    %v75 = vld [vmem:[%s0 + $0x5c] sm:$0xf]
    %v76 = vld [vmem:[%s0 + $0x60] sm:$0xf]
    %v77 = vld [vmem:[%s0 + $0x64] sm:$0xf]
    %v78 = vld [vmem:[%s0 + $0x68] sm:$0xf]
    %v79 = vld [vmem:[%s0 + $0x6c] sm:$0xf]
    %v80 = vld [vmem:[%s0 + $0x70] sm:$0xf]
    %v81 = vld [vmem:[%s0 + $0x74] sm:$0xf]
    %v82 = vld [vmem:[%s0 + $0x78] sm:$0xf]
    %v83 = vld [vmem:[%s0 + $0x7c] sm:$0xf]
    %v84 = vld [vmem:[%s0 + $0x80] sm:$0xf]
    %v85 = vld [vmem:[%s0 + $0x84] sm:$0xf]
    %v86 = vld [vmem:[%s0 + $0x88] sm:$0xf]
    %v87 = vld [vmem:[%s0 + $0x8c] sm:$0xf]
    %v88 = vld [vmem:[%s0 + $0x90] sm:$0xf]
    %v89 = vld [vmem:[%s0 + $0x94] sm:$0xf]
    %v90 = vld [vmem:[%s0 + $0x98] sm:$0xf]
    %v91 = vld [vmem:[%s0 + $0x9c] sm:$0xf]
    %v92 = vld [vmem:[%s0 + $0xa0] sm:$0xf]
    %v93 = vld [vmem:[%s0 + $0xa4] sm:$0xf]
    %v94 = vld [vmem:[%s0 + $0xa8] sm:$0xf]
    %v95 = vld [vmem:[%s0 + $0xac] sm:$0xf]
    %v96 = vld [vmem:[%s0 + $0xb0] sm:$0xf]
    %v97 = vld [vmem:[%s0 + $0xb4] sm:$0xf]
    %v98 = vld [vmem:[%s0 + $0xb8] sm:$0xf]
    %v99 = vld [vmem:[%s0 + $0xbc] sm:$0xf]
    %v100 = vld [vmem:[%s0 + $0xc0] sm:$0xf]
    %v101 = vld [vmem:[%s0 + $0xc4] sm:$0xf]
    %v102 = vld [vmem:[%s0 + $0xc8] sm:$0xf]
    %v103 = vld [vmem:[%s0 + $0xcc] sm:$0xf]
    %v104 = vld [vmem:[%s0 + $0xd0] sm:$0xf]
    %v105 = vld [vmem:[%s0 + $0xd4] sm:$0xf]
    %v106 = vld [vmem:[%s0 + $0xd8] sm:$0xf]
    %v107 = vld [vmem:[%s0 + $0xdc] sm:$0xf]
    %v108 = vld [vmem:[%s0 + $0xe0] sm:$0xf]
    %v109 = vld [vmem:[%s0 + $0xe4] sm:$0xf]
    %v110 = vld [vmem:[%s0 + $0xe8] sm:$0xf]
    %v111 = vld [vmem:[%s0 + $0xec] sm:$0xf]
    %v112 = vld [vmem:[%s0 + $0xf0] sm:$0xf]
    %v113 = vld [vmem:[%s0 + $0xf4] sm:$0xf]
    %v114 = vld [vmem:[%s0 + $0xf8] sm:$0xf]
    %v115 = vld [vmem:[%s0 + $0xfc] sm:$0xf]
    %v116 = vld [vmem:[%s1] sm:$0xf]
    %v117 = vld [vmem:[%s1 + $0x4] sm:$0xf]
    %v118 = vld [vmem:[%s1 + $0x8] sm:$0xf]
    %v119 = vld [vmem:[%s1 + $0xc] sm:$0x3]
    %v120 = vld [vmem:[%s2] sm:$0x1]
    %v122 = vlaneseq
    %v123 = vshrl.u32 %v122, 7
    %v124 = vsub.s32 0, %v123
    %v125 = vrot.slane %v120, %v124
    %v191 = vunpack.c.l.b16 %v52
    %v192 = vunpack.c.l.b16 %v53
    %v193 = vunpack.c.l.b16 %v54
    %v194 = vunpack.c.l.b16 %v55
    %v195 = vunpack.c.l.b16 %v56
    %v196 = vunpack.c.l.b16 %v57
    %v197 = vunpack.c.l.b16 %v58
    %v198 = vunpack.c.l.b16 %v59
    %v199 = vunpack.c.l.b16 %v60
    %v200 = vunpack.c.l.b16 %v61
    %v201 = vunpack.c.l.b16 %v62
    %v202 = vunpack.c.l.b16 %v63
    %v203 = vunpack.c.l.b16 %v64
    %v204 = vunpack.c.l.b16 %v65
    %v205 = vunpack.c.l.b16 %v66
    %v206 = vunpack.c.l.b16 %v67
    %v207 = vunpack.c.l.b16 %v68
    %v208 = vunpack.c.l.b16 %v69
    %v209 = vunpack.c.l.b16 %v70
    %v210 = vunpack.c.l.b16 %v71
    %v211 = vunpack.c.l.b16 %v72
    %v212 = vunpack.c.l.b16 %v73
    %v213 = vunpack.c.l.b16 %v74
    %v214 = vunpack.c.l.b16 %v75
    %v215 = vunpack.c.l.b16 %v76
    %v216 = vunpack.c.l.b16 %v77
    %v217 = vunpack.c.l.b16 %v78
    %v218 = vunpack.c.l.b16 %v79
    %v219 = vunpack.c.l.b16 %v80
    %v220 = vunpack.c.l.b16 %v81
    %v221 = vunpack.c.l.b16 %v82
    %v222 = vunpack.c.l.b16 %v83
    %v223 = vunpack.c.l.b16 %v84
    %v224 = vunpack.c.l.b16 %v85
    %v225 = vunpack.c.l.b16 %v86
    %v226 = vunpack.c.l.b16 %v87
    %v227 = vunpack.c.l.b16 %v88
    %v228 = vunpack.c.l.b16 %v89
    %v229 = vunpack.c.l.b16 %v90
    %v230 = vunpack.c.l.b16 %v91
    %v231 = vunpack.c.l.b16 %v92
    %v232 = vunpack.c.l.b16 %v93
    %v233 = vunpack.c.l.b16 %v94
    %v234 = vunpack.c.l.b16 %v95
    %v235 = vunpack.c.l.b16 %v96
    %v236 = vunpack.c.l.b16 %v97
    %v237 = vunpack.c.l.b16 %v98
    %v238 = vunpack.c.l.b16 %v99
    %v239 = vunpack.c.l.b16 %v100
    %v240 = vunpack.c.l.b16 %v101
    %v241 = vunpack.c.l.b16 %v102
    %v242 = vunpack.c.l.b16 %v103
    %v243 = vunpack.c.l.b16 %v104
    %v244 = vunpack.c.l.b16 %v105
    %v245 = vunpack.c.l.b16 %v106
    %v246 = vunpack.c.l.b16 %v107
    %v247 = vunpack.c.l.b16 %v108
    %v248 = vunpack.c.l.b16 %v109
    %v249 = vunpack.c.l.b16 %v110
    %v250 = vunpack.c.l.b16 %v111
    %v251 = vunpack.c.l.b16 %v112
    %v252 = vunpack.c.l.b16 %v113
    %v253 = vunpack.c.l.b16 %v114
    %v254 = vunpack.c.l.b16 %v115
    %v255 = vpack.c.b16 %v192, %v191
    %v256 = vpack.c.b16 %v194, %v193
    %v257 = vpack.c.b16 %v196, %v195
    %v258 = vpack.c.b16 %v198, %v197
    %v259 = vpack.c.b16 %v200, %v199
    %v260 = vpack.c.b16 %v202, %v201
    %v261 = vpack.c.b16 %v204, %v203
    %v262 = vpack.c.b16 %v206, %v205
    %v263 = vpack.c.b16 %v208, %v207
    %v264 = vpack.c.b16 %v210, %v209
    %v265 = vpack.c.b16 %v212, %v211
    %v266 = vpack.c.b16 %v214, %v213
    %v267 = vpack.c.b16 %v216, %v215
    %v268 = vpack.c.b16 %v218, %v217
    %v269 = vpack.c.b16 %v220, %v219
    %v270 = vpack.c.b16 %v222, %v221
    %v271 = vpack.c.b16 %v224, %v223
    %v272 = vpack.c.b16 %v226, %v225
    %v273 = vpack.c.b16 %v228, %v227
    %v274 = vpack.c.b16 %v230, %v229
    %v275 = vpack.c.b16 %v232, %v231
    %v276 = vpack.c.b16 %v234, %v233
    %v277 = vpack.c.b16 %v236, %v235
    %v278 = vpack.c.b16 %v238, %v237
    %v279 = vpack.c.b16 %v240, %v239
    %v280 = vpack.c.b16 %v242, %v241
    %v281 = vpack.c.b16 %v244, %v243
    %v282 = vpack.c.b16 %v246, %v245
    %v283 = vpack.c.b16 %v248, %v247
    %v284 = vpack.c.b16 %v250, %v249
    %v285 = vpack.c.b16 %v252, %v251
    %v286 = vpack.c.b16 %v254, %v253
    %v291 = vunpack.c.l.b16 %v116
    %v292 = vunpack.c.l.b16 %v117
    %v293 = vunpack.c.l.b16 %v118
    %v294 = vunpack.c.l.b16 %v119
    %v295 = vpack.c.b16 %v292, %v291
    %v296 = vpack.c.b16 %v294, %v293
    %vm298 = vcmask 220160
    %v300 = vsel %vm298, %v255, 0
    %v303 = vsel %vm298, %v256, 0
    %v306 = vsel %vm298, %v257, 0
    %v309 = vsel %vm298, %v258, 0
    %v312 = vsel %vm298, %v259, 0
    %v315 = vsel %vm298, %v260, 0
    %v318 = vsel %vm298, %v261, 0
    %v321 = vsel %vm298, %v262, 0
    %v324 = vsel %vm298, %v263, 0
    %v327 = vsel %vm298, %v264, 0
    %v330 = vsel %vm298, %v265, 0
    %v333 = vsel %vm298, %v266, 0
    %v336 = vsel %vm298, %v267, 0
    %v339 = vsel %vm298, %v268, 0
    %v342 = vsel %vm298, %v269, 0
    %v345 = vsel %vm298, %v270, 0
    %v348 = vsel %vm298, %v271, 0
    %v351 = vsel %vm298, %v272, 0
    %v354 = vsel %vm298, %v273, 0
    %v357 = vsel %vm298, %v274, 0
    %v360 = vsel %vm298, %v275, 0
    %v363 = vsel %vm298, %v276, 0
    %v366 = vsel %vm298, %v277, 0
    %v369 = vsel %vm298, %v278, 0
    %v372 = vsel %vm298, %v279, 0
    %v375 = vsel %vm298, %v280, 0
    %v378 = vsel %vm298, %v281, 0
    %v381 = vsel %vm298, %v282, 0
    %v384 = vsel %vm298, %v283, 0
    %v387 = vsel %vm298, %v284, 0
    %v390 = vsel %vm298, %v285, 0
    %v393 = vsel %vm298, %v286, 0
    %vm395 = vcmask 1044480
    %vm396 = vcmask 1045504
    %v397 = vsel %vm395, 4294967295, 65535
    %v398 = vsel %vm396, %v397, 0
    %v400 = vand.u32 %v296, %v398
    %402 = vmatprep.subr.bf16.mxu0 0
    %403 = vmatpush1.bf16.msra.mxu0 %v295
    %404 = vmatprep.subr.bf16.mxu0 0
    %405 = vmatpush1.bf16.msra.mxu0 %v400
    %406 = vmatprep.subr.bf16.mxu0 0
    %407 = vmatpush1.bf16.msra.mxu0 0
    %408 = vmatprep.subr.bf16.mxu0 0
    %409 = vmatpush1.bf16.msra.mxu0 0
    %410 = vmatprep.subr.bf16.mxu0 0
    %411 = vmatpush1.bf16.msra.mxu0 0
    %412 = vmatprep.subr.bf16.mxu0 0
    %413 = vmatpush1.bf16.msra.mxu0 0
    %414 = vmatprep.subr.bf16.mxu0 0
    %415 = vmatpush1.bf16.msra.mxu0 0
    %416 = vmatprep.subr.bf16.mxu0 0
    %417 = vmatpush1.bf16.msra.mxu0 0
    %418 = vmatprep.subr.bf16.mxu0 0
    %419 = vmatpush1.bf16.msra.mxu0 0
    %420 = vmatprep.subr.bf16.mxu0 0
    %421 = vmatpush1.bf16.msra.mxu0 0
    %422 = vmatprep.subr.bf16.mxu0 0
    %423 = vmatpush1.bf16.msra.mxu0 0
    %424 = vmatprep.subr.bf16.mxu0 0
    %425 = vmatpush1.bf16.msra.mxu0 0
    %426 = vmatprep.subr.bf16.mxu0 0
    %427 = vmatpush1.bf16.msra.mxu0 0
    %428 = vmatprep.subr.bf16.mxu0 0
    %429 = vmatpush1.bf16.msra.mxu0 0
    %430 = vmatprep.subr.bf16.mxu0 0
    %431 = vmatpush1.bf16.msra.mxu0 0
    %432 = vmatprep.subr.bf16.mxu0 0
    %433 = vmatpush1.bf16.msra.mxu0 0
    %434 = vmatprep.mubr.bf16.mxu0 0
    %435 = vmatmul.mubr.bf16.gmra.mrb[0].mxu0 %v300
    %v436 = vpop.f32.mrb[0].mxu0
    %v437 = vadd.f32 %v125, %v436
    %v438 = vpop.f32.mrb[0].mxu0
    %v439 = vpop.f32.mrb[0].mxu0
    %v440 = vadd.f32 %v125, %v439
    %v441 = vpop.f32.mrb[0].mxu0
    %442 = vmatprep.mubr.bf16.mxu0 0
    %443 = vmatmul.mubr.bf16.gmra.mrb[0].mxu0 %v303
    %v444 = vpop.f32.mrb[0].mxu0
    %v445 = vadd.f32 %v125, %v444
    %v446 = vpop.f32.mrb[0].mxu0
    %v447 = vpop.f32.mrb[0].mxu0
    %v448 = vadd.f32 %v125, %v447
    %v449 = vpop.f32.mrb[0].mxu0
    %450 = vmatprep.mubr.bf16.mxu0 0
    %451 = vmatmul.mubr.bf16.gmra.mrb[0].mxu0 %v306
    %v452 = vpop.f32.mrb[0].mxu0
    %v453 = vadd.f32 %v125, %v452
    %v454 = vpop.f32.mrb[0].mxu0
    %v455 = vpop.f32.mrb[0].mxu0
    %v456 = vadd.f32 %v125, %v455
    %v457 = vpop.f32.mrb[0].mxu0
    %458 = vmatprep.mubr.bf16.mxu0 0
    %459 = vmatmul.mubr.bf16.gmra.mrb[0].mxu0 %v309
    %v460 = vpop.f32.mrb[0].mxu0
    %v461 = vadd.f32 %v125, %v460
    %v462 = vpop.f32.mrb[0].mxu0
    %v463 = vpop.f32.mrb[0].mxu0
    %v464 = vadd.f32 %v125, %v463
    %v465 = vpop.f32.mrb[0].mxu0
    %466 = vmatprep.mubr.bf16.mxu0 0
    %467 = vmatmul.mubr.bf16.gmra.mrb[0].mxu0 %v312
    %v468 = vpop.f32.mrb[0].mxu0
    %v469 = vadd.f32 %v125, %v468
    %v470 = vpop.f32.mrb[0].mxu0
    %v471 = vpop.f32.mrb[0].mxu0
    %v472 = vadd.f32 %v125, %v471
    %v473 = vpop.f32.mrb[0].mxu0
    %474 = vmatprep.mubr.bf16.mxu0 0
    %475 = vmatmul.mubr.bf16.gmra.mrb[0].mxu0 %v315
    %v476 = vpop.f32.mrb[0].mxu0
    %v477 = vadd.f32 %v125, %v476
    %v478 = vpop.f32.mrb[0].mxu0
    %v479 = vpop.f32.mrb[0].mxu0
    %v480 = vadd.f32 %v125, %v479
    %v481 = vpop.f32.mrb[0].mxu0
    %482 = vmatprep.mubr.bf16.mxu0 0
    %483 = vmatmul.mubr.bf16.gmra.mrb[0].mxu0 %v318
    %v484 = vpop.f32.mrb[0].mxu0
    %v485 = vadd.f32 %v125, %v484
    %v486 = vpop.f32.mrb[0].mxu0
    %v487 = vpop.f32.mrb[0].mxu0
    %v488 = vadd.f32 %v125, %v487
    %v489 = vpop.f32.mrb[0].mxu0
    %490 = vmatprep.mubr.bf16.mxu0 0
    %491 = vmatmul.mubr.bf16.gmra.mrb[0].mxu0 %v321
    %v492 = vpop.f32.mrb[0].mxu0
    %v493 = vadd.f32 %v125, %v492
    %v494 = vpop.f32.mrb[0].mxu0
    %v495 = vpop.f32.mrb[0].mxu0
    %v496 = vadd.f32 %v125, %v495
    %v497 = vpop.f32.mrb[0].mxu0
    %498 = vmatprep.mubr.bf16.mxu0 0
    %499 = vmatmul.mubr.bf16.gmra.mrb[0].mxu0 %v324
    %v500 = vpop.f32.mrb[0].mxu0
    %v501 = vadd.f32 %v125, %v500
    %v502 = vpop.f32.mrb[0].mxu0
    %v503 = vpop.f32.mrb[0].mxu0
    %v504 = vadd.f32 %v125, %v503
    %v505 = vpop.f32.mrb[0].mxu0
    %506 = vmatprep.mubr.bf16.mxu0 0
    %507 = vmatmul.mubr.bf16.gmra.mrb[0].mxu0 %v327
    %v508 = vpop.f32.mrb[0].mxu0
    %v509 = vadd.f32 %v125, %v508
    %v510 = vpop.f32.mrb[0].mxu0
    %v511 = vpop.f32.mrb[0].mxu0
    %v512 = vadd.f32 %v125, %v511
    %v513 = vpop.f32.mrb[0].mxu0
    %514 = vmatprep.mubr.bf16.mxu0 0
    %515 = vmatmul.mubr.bf16.gmra.mrb[0].mxu0 %v330
    %v516 = vpop.f32.mrb[0].mxu0
    %v517 = vadd.f32 %v125, %v516
    %v518 = vpop.f32.mrb[0].mxu0
    %v519 = vpop.f32.mrb[0].mxu0
    %v520 = vadd.f32 %v125, %v519
    %v521 = vpop.f32.mrb[0].mxu0
    %522 = vmatprep.mubr.bf16.mxu0 0
    %523 = vmatmul.mubr.bf16.gmra.mrb[0].mxu0 %v333
    %v524 = vpop.f32.mrb[0].mxu0
    %v525 = vadd.f32 %v125, %v524
    %v526 = vpop.f32.mrb[0].mxu0
    %v527 = vpop.f32.mrb[0].mxu0
    %v528 = vadd.f32 %v125, %v527
    %v529 = vpop.f32.mrb[0].mxu0
    %530 = vmatprep.mubr.bf16.mxu0 0
    %531 = vmatmul.mubr.bf16.gmra.mrb[0].mxu0 %v336
    %v532 = vpop.f32.mrb[0].mxu0
    %v533 = vadd.f32 %v125, %v532
    %v534 = vpop.f32.mrb[0].mxu0
    %v535 = vpop.f32.mrb[0].mxu0
    %v536 = vadd.f32 %v125, %v535
    %v537 = vpop.f32.mrb[0].mxu0
    %538 = vmatprep.mubr.bf16.mxu0 0
    %539 = vmatmul.mubr.bf16.gmra.mrb[0].mxu0 %v339
    %v540 = vpop.f32.mrb[0].mxu0
    %v541 = vadd.f32 %v125, %v540
    %v542 = vpop.f32.mrb[0].mxu0
    %v543 = vpop.f32.mrb[0].mxu0
    %v544 = vadd.f32 %v125, %v543
    %v545 = vpop.f32.mrb[0].mxu0
    %546 = vmatprep.mubr.bf16.mxu0 0
    %547 = vmatmul.mubr.bf16.gmra.mrb[0].mxu0 %v342
    %v548 = vpop.f32.mrb[0].mxu0
    %v549 = vadd.f32 %v125, %v548
    %v550 = vpop.f32.mrb[0].mxu0
    %v551 = vpop.f32.mrb[0].mxu0
    %v552 = vadd.f32 %v125, %v551
    %v553 = vpop.f32.mrb[0].mxu0
    %554 = vmatprep.mubr.bf16.mxu0 0
    %555 = vmatmul.mubr.bf16.gmra.mrb[0].mxu0 %v345
    %v556 = vpop.f32.mrb[0].mxu0
    %v557 = vadd.f32 %v125, %v556
    %v558 = vpop.f32.mrb[0].mxu0
    %v559 = vpop.f32.mrb[0].mxu0
    %v560 = vadd.f32 %v125, %v559
    %v561 = vpop.f32.mrb[0].mxu0
    %562 = vmatprep.mubr.bf16.mxu0 0
    %563 = vmatmul.mubr.bf16.gmra.mrb[0].mxu0 %v348
    %v564 = vpop.f32.mrb[0].mxu0
    %v565 = vadd.f32 %v125, %v564
    %v566 = vpop.f32.mrb[0].mxu0
    %v567 = vpop.f32.mrb[0].mxu0
    %v568 = vadd.f32 %v125, %v567
    %v569 = vpop.f32.mrb[0].mxu0
    %570 = vmatprep.mubr.bf16.mxu0 0
    %571 = vmatmul.mubr.bf16.gmra.mrb[0].mxu0 %v351
    %v572 = vpop.f32.mrb[0].mxu0
    %v573 = vadd.f32 %v125, %v572
    %v574 = vpop.f32.mrb[0].mxu0
    %v575 = vpop.f32.mrb[0].mxu0
    %v576 = vadd.f32 %v125, %v575
    %v577 = vpop.f32.mrb[0].mxu0
    %578 = vmatprep.mubr.bf16.mxu0 0
    %579 = vmatmul.mubr.bf16.gmra.mrb[0].mxu0 %v354
    %v580 = vpop.f32.mrb[0].mxu0
    %v581 = vadd.f32 %v125, %v580
    %v582 = vpop.f32.mrb[0].mxu0
    %v583 = vpop.f32.mrb[0].mxu0
    %v584 = vadd.f32 %v125, %v583
    %v585 = vpop.f32.mrb[0].mxu0
    %586 = vmatprep.mubr.bf16.mxu0 0
    %587 = vmatmul.mubr.bf16.gmra.mrb[0].mxu0 %v357
    %v588 = vpop.f32.mrb[0].mxu0
    %v589 = vadd.f32 %v125, %v588
    %v590 = vpop.f32.mrb[0].mxu0
    %v591 = vpop.f32.mrb[0].mxu0
    %v592 = vadd.f32 %v125, %v591
    %v593 = vpop.f32.mrb[0].mxu0
    %594 = vmatprep.mubr.bf16.mxu0 0
    %595 = vmatmul.mubr.bf16.gmra.mrb[0].mxu0 %v360
    %v596 = vpop.f32.mrb[0].mxu0
    %v597 = vadd.f32 %v125, %v596
    %v598 = vpop.f32.mrb[0].mxu0
    %v599 = vpop.f32.mrb[0].mxu0
    %v600 = vadd.f32 %v125, %v599
    %v601 = vpop.f32.mrb[0].mxu0
    %602 = vmatprep.mubr.bf16.mxu0 0
    %603 = vmatmul.mubr.bf16.gmra.mrb[0].mxu0 %v363
    %v604 = vpop.f32.mrb[0].mxu0
    %v605 = vadd.f32 %v125, %v604
    %v606 = vpop.f32.mrb[0].mxu0
    %v607 = vpop.f32.mrb[0].mxu0
    %v608 = vadd.f32 %v125, %v607
    %v609 = vpop.f32.mrb[0].mxu0
    %610 = vmatprep.mubr.bf16.mxu0 0
    %611 = vmatmul.mubr.bf16.gmra.mrb[0].mxu0 %v366
    %v612 = vpop.f32.mrb[0].mxu0
    %v613 = vadd.f32 %v125, %v612
    %v614 = vpop.f32.mrb[0].mxu0
    %v615 = vpop.f32.mrb[0].mxu0
    %v616 = vadd.f32 %v125, %v615
    %v617 = vpop.f32.mrb[0].mxu0
    %618 = vmatprep.mubr.bf16.mxu0 0
    %619 = vmatmul.mubr.bf16.gmra.mrb[0].mxu0 %v369
    %v620 = vpop.f32.mrb[0].mxu0
    %v621 = vadd.f32 %v125, %v620
    %v622 = vpop.f32.mrb[0].mxu0
    %v623 = vpop.f32.mrb[0].mxu0
    %v624 = vadd.f32 %v125, %v623
    %v625 = vpop.f32.mrb[0].mxu0
    %626 = vmatprep.mubr.bf16.mxu0 0
    %627 = vmatmul.mubr.bf16.gmra.mrb[0].mxu0 %v372
    %v628 = vpop.f32.mrb[0].mxu0
    %v629 = vadd.f32 %v125, %v628
    %v630 = vpop.f32.mrb[0].mxu0
    %v631 = vpop.f32.mrb[0].mxu0
    %v632 = vadd.f32 %v125, %v631
    %v633 = vpop.f32.mrb[0].mxu0
    %634 = vmatprep.mubr.bf16.mxu0 0
    %635 = vmatmul.mubr.bf16.gmra.mrb[0].mxu0 %v375
    %v636 = vpop.f32.mrb[0].mxu0
    %v637 = vadd.f32 %v125, %v636
    %v638 = vpop.f32.mrb[0].mxu0
    %v639 = vpop.f32.mrb[0].mxu0
    %v640 = vadd.f32 %v125, %v639
    %v641 = vpop.f32.mrb[0].mxu0
    %642 = vmatprep.mubr.bf16.mxu0 0
    %643 = vmatmul.mubr.bf16.gmra.mrb[0].mxu0 %v378
    %v644 = vpop.f32.mrb[0].mxu0
    %v645 = vadd.f32 %v125, %v644
    %v646 = vpop.f32.mrb[0].mxu0
    %v647 = vpop.f32.mrb[0].mxu0
    %v648 = vadd.f32 %v125, %v647
    %v649 = vpop.f32.mrb[0].mxu0
    %650 = vmatprep.mubr.bf16.mxu0 0
    %651 = vmatmul.mubr.bf16.gmra.mrb[0].mxu0 %v381
    %v652 = vpop.f32.mrb[0].mxu0
    %v653 = vadd.f32 %v125, %v652
    %v654 = vpop.f32.mrb[0].mxu0
    %v655 = vpop.f32.mrb[0].mxu0
    %v656 = vadd.f32 %v125, %v655
    %v657 = vpop.f32.mrb[0].mxu0
    %658 = vmatprep.mubr.bf16.mxu0 0
    %659 = vmatmul.mubr.bf16.gmra.mrb[0].mxu0 %v384
    %v660 = vpop.f32.mrb[0].mxu0
    %v661 = vadd.f32 %v125, %v660
    %v662 = vpop.f32.mrb[0].mxu0
    %v663 = vpop.f32.mrb[0].mxu0
    %v664 = vadd.f32 %v125, %v663
    %v665 = vpop.f32.mrb[0].mxu0
    %666 = vmatprep.mubr.bf16.mxu0 0
    %667 = vmatmul.mubr.bf16.gmra.mrb[0].mxu0 %v387
    %v668 = vpop.f32.mrb[0].mxu0
    %v669 = vadd.f32 %v125, %v668
    %v670 = vpop.f32.mrb[0].mxu0
    %v671 = vpop.f32.mrb[0].mxu0
    %v672 = vadd.f32 %v125, %v671
    %v673 = vpop.f32.mrb[0].mxu0
    %674 = vmatprep.mubr.bf16.mxu0 0
    %675 = vmatmul.mubr.bf16.gmra.mrb[0].mxu0 %v390
    %v676 = vpop.f32.mrb[0].mxu0
    %v677 = vadd.f32 %v125, %v676
    %v678 = vpop.f32.mrb[0].mxu0
    %v679 = vpop.f32.mrb[0].mxu0
    %v680 = vadd.f32 %v125, %v679
    %v681 = vpop.f32.mrb[0].mxu0
    %682 = vmatprep.mubr.bf16.mxu0 0
    %683 = vmatmul.mubr.bf16.gmra.mrb[0].mxu0 %v393
    %v684 = vpop.f32.mrb[0].mxu0
    %v685 = vadd.f32 %v125, %v684
    %v686 = vpop.f32.mrb[0].mxu0
    %v687 = vpop.f32.mrb[0].mxu0
    %v688 = vadd.f32 %v125, %v687
    %v689 = vpop.f32.mrb[0].mxu0
    %690 = vdwg.mxu0
    %v691 = vmul.f32 %v437, 0.5
    %v692 = vmul.f32 %v440, 0.5
    %v693 = vmul.f32 %v445, 0.5
    %v694 = vmul.f32 %v448, 0.5
    %v695 = vmul.f32 %v453, 0.5
    %v696 = vmul.f32 %v456, 0.5
    %v697 = vmul.f32 %v461, 0.5
    %v698 = vmul.f32 %v464, 0.5
    %v699 = vmul.f32 %v469, 0.5
    %v700 = vmul.f32 %v472, 0.5
    %v701 = vmul.f32 %v477, 0.5
    %v702 = vmul.f32 %v480, 0.5
    %v703 = vmul.f32 %v485, 0.5
    %v704 = vmul.f32 %v488, 0.5
    %v705 = vmul.f32 %v493, 0.5
    %v706 = vmul.f32 %v496, 0.5
    %v707 = vmul.f32 %v501, 0.5
    %v708 = vmul.f32 %v504, 0.5
    %v709 = vmul.f32 %v509, 0.5
    %v710 = vmul.f32 %v512, 0.5
    %v711 = vmul.f32 %v517, 0.5
    %v712 = vmul.f32 %v520, 0.5
    %v713 = vmul.f32 %v525, 0.5
    %v714 = vmul.f32 %v528, 0.5
    %v715 = vmul.f32 %v533, 0.5
    %v716 = vmul.f32 %v536, 0.5
    %v717 = vmul.f32 %v541, 0.5
    %v718 = vmul.f32 %v544, 0.5
    %v719 = vmul.f32 %v549, 0.5
    %v720 = vmul.f32 %v552, 0.5
    %v721 = vmul.f32 %v557, 0.5
    %v722 = vmul.f32 %v560, 0.5
    %v723 = vmul.f32 %v565, 0.5
    %v724 = vmul.f32 %v568, 0.5
    %v725 = vmul.f32 %v573, 0.5
    %v726 = vmul.f32 %v576, 0.5
    %v727 = vmul.f32 %v581, 0.5
    %v728 = vmul.f32 %v584, 0.5
    %v729 = vmul.f32 %v589, 0.5
    %v730 = vmul.f32 %v592, 0.5
    %v731 = vmul.f32 %v597, 0.5
    %v732 = vmul.f32 %v600, 0.5
    %v733 = vmul.f32 %v605, 0.5
    %v734 = vmul.f32 %v608, 0.5
    %v735 = vmul.f32 %v613, 0.5
    %v736 = vmul.f32 %v616, 0.5
    %v737 = vmul.f32 %v621, 0.5
    %v738 = vmul.f32 %v624, 0.5
    %v739 = vmul.f32 %v629, 0.5
    %v740 = vmul.f32 %v632, 0.5
    %v741 = vmul.f32 %v637, 0.5
    %v742 = vmul.f32 %v640, 0.5
    %v743 = vmul.f32 %v645, 0.5
    %v744 = vmul.f32 %v648, 0.5
    %v745 = vmul.f32 %v653, 0.5
    %v746 = vmul.f32 %v656, 0.5
    %v747 = vmul.f32 %v661, 0.5
    %v748 = vmul.f32 %v664, 0.5
    %v749 = vmul.f32 %v669, 0.5
    %v750 = vmul.f32 %v672, 0.5
    %v751 = vmul.f32 %v677, 0.5
    %v752 = vmul.f32 %v680, 0.5
    %v753 = vmul.f32 %v685, 0.5
    %v754 = vmul.f32 %v688, 0.5
    %v755 = vmul.f32 %v437, 0.70710677
    %v756 = vmul.f32 %v440, 0.70710677
    %v757 = vmul.f32 %v445, 0.70710677
    %v758 = vmul.f32 %v448, 0.70710677
    %v759 = vmul.f32 %v453, 0.70710677
    %v760 = vmul.f32 %v456, 0.70710677
    %v761 = vmul.f32 %v461, 0.70710677
    %v762 = vmul.f32 %v464, 0.70710677
    %v763 = vmul.f32 %v469, 0.70710677
    %v764 = vmul.f32 %v472, 0.70710677
    %v765 = vmul.f32 %v477, 0.70710677
    %v766 = vmul.f32 %v480, 0.70710677
    %v767 = vmul.f32 %v485, 0.70710677
    %v768 = vmul.f32 %v488, 0.70710677
    %v769 = vmul.f32 %v493, 0.70710677
    %v770 = vmul.f32 %v496, 0.70710677
    %v771 = vmul.f32 %v501, 0.70710677
    %v772 = vmul.f32 %v504, 0.70710677
    %v773 = vmul.f32 %v509, 0.70710677
    %v774 = vmul.f32 %v512, 0.70710677
    %v775 = vmul.f32 %v517, 0.70710677
    %v776 = vmul.f32 %v520, 0.70710677
    %v777 = vmul.f32 %v525, 0.70710677
    %v778 = vmul.f32 %v528, 0.70710677
    %v779 = vmul.f32 %v533, 0.70710677
    %v780 = vmul.f32 %v536, 0.70710677
    %v781 = vmul.f32 %v541, 0.70710677
    %v782 = vmul.f32 %v544, 0.70710677
    %v783 = vmul.f32 %v549, 0.70710677
    %v784 = vmul.f32 %v552, 0.70710677
    %v785 = vmul.f32 %v557, 0.70710677
    %v786 = vmul.f32 %v560, 0.70710677
    %v787 = vmul.f32 %v565, 0.70710677
    %v788 = vmul.f32 %v568, 0.70710677
    %v789 = vmul.f32 %v573, 0.70710677
    %v790 = vmul.f32 %v576, 0.70710677
    %v791 = vmul.f32 %v581, 0.70710677
    %v792 = vmul.f32 %v584, 0.70710677
    %v793 = vmul.f32 %v589, 0.70710677
    %v794 = vmul.f32 %v592, 0.70710677
    %v795 = vmul.f32 %v597, 0.70710677
    %v796 = vmul.f32 %v600, 0.70710677
    %v797 = vmul.f32 %v605, 0.70710677
    %v798 = vmul.f32 %v608, 0.70710677
    %v799 = vmul.f32 %v613, 0.70710677
    %v800 = vmul.f32 %v616, 0.70710677
    %v801 = vmul.f32 %v621, 0.70710677
    %v802 = vmul.f32 %v624, 0.70710677
    %v803 = vmul.f32 %v629, 0.70710677
    %v804 = vmul.f32 %v632, 0.70710677
    %v805 = vmul.f32 %v637, 0.70710677
    %v806 = vmul.f32 %v640, 0.70710677
    %v807 = vmul.f32 %v645, 0.70710677
    %v808 = vmul.f32 %v648, 0.70710677
    %v809 = vmul.f32 %v653, 0.70710677
    %v810 = vmul.f32 %v656, 0.70710677
    %v811 = vmul.f32 %v661, 0.70710677
    %v812 = vmul.f32 %v664, 0.70710677
    %v813 = vmul.f32 %v669, 0.70710677
    %v814 = vmul.f32 %v672, 0.70710677
    %v815 = vmul.f32 %v677, 0.70710677
    %v816 = vmul.f32 %v680, 0.70710677
    %v817 = vmul.f32 %v685, 0.70710677
    %v818 = vmul.f32 %v688, 0.70710677
    %v819 = verf.f32.pop %v755
    %v820 = verf.f32.pop %v756
    %v821 = verf.f32.pop %v757
    %v822 = verf.f32.pop %v758
    %v823 = verf.f32.pop %v759
    %v824 = verf.f32.pop %v760
    %v825 = verf.f32.pop %v761
    %v826 = verf.f32.pop %v762
    %v827 = verf.f32.pop %v763
    %v828 = verf.f32.pop %v764
    %v829 = verf.f32.pop %v765
    %v830 = verf.f32.pop %v766
    %v831 = verf.f32.pop %v767
    %v832 = verf.f32.pop %v768
    %v833 = verf.f32.pop %v769
    %v834 = verf.f32.pop %v770
    %v835 = verf.f32.pop %v771
    %v836 = verf.f32.pop %v772
    %v837 = verf.f32.pop %v773
    %v838 = verf.f32.pop %v774
    %v839 = verf.f32.pop %v775
    %v840 = verf.f32.pop %v776
    %v841 = verf.f32.pop %v777
    %v842 = verf.f32.pop %v778
    %v843 = verf.f32.pop %v779
    %v844 = verf.f32.pop %v780
    %v845 = verf.f32.pop %v781
    %v846 = verf.f32.pop %v782
    %v847 = verf.f32.pop %v783
    %v848 = verf.f32.pop %v784
    %v849 = verf.f32.pop %v785
    %v850 = verf.f32.pop %v786
    %v851 = verf.f32.pop %v787
    %v852 = verf.f32.pop %v788
    %v853 = verf.f32.pop %v789
    %v854 = verf.f32.pop %v790
    %v855 = verf.f32.pop %v791
    %v856 = verf.f32.pop %v792
    %v857 = verf.f32.pop %v793
    %v858 = verf.f32.pop %v794
    %v859 = verf.f32.pop %v795
    %v860 = verf.f32.pop %v796
    %v861 = verf.f32.pop %v797
    %v862 = verf.f32.pop %v798
    %v863 = verf.f32.pop %v799
    %v864 = verf.f32.pop %v800
    %v865 = verf.f32.pop %v801
    %v866 = verf.f32.pop %v802
    %v867 = verf.f32.pop %v803
    %v868 = verf.f32.pop %v804
    %v869 = verf.f32.pop %v805
    %v870 = verf.f32.pop %v806
    %v871 = verf.f32.pop %v807
    %v872 = verf.f32.pop %v808
    %v873 = verf.f32.pop %v809
    %v874 = verf.f32.pop %v810
    %v875 = verf.f32.pop %v811
    %v876 = verf.f32.pop %v812
    %v877 = verf.f32.pop %v813
    %v878 = verf.f32.pop %v814
    %v879 = verf.f32.pop %v815
    %v880 = verf.f32.pop %v816
    %v881 = verf.f32.pop %v817
    %v882 = verf.f32.pop %v818
    %v883 = vadd.f32 %v819, 1.0
    %v884 = vadd.f32 %v820, 1.0
    %v885 = vadd.f32 %v821, 1.0
    %v886 = vadd.f32 %v822, 1.0
    %v887 = vadd.f32 %v823, 1.0
    %v888 = vadd.f32 %v824, 1.0
    %v889 = vadd.f32 %v825, 1.0
    %v890 = vadd.f32 %v826, 1.0
    %v891 = vadd.f32 %v827, 1.0
    %v892 = vadd.f32 %v828, 1.0
    %v893 = vadd.f32 %v829, 1.0
    %v894 = vadd.f32 %v830, 1.0
    %v895 = vadd.f32 %v831, 1.0
    %v896 = vadd.f32 %v832, 1.0
    %v897 = vadd.f32 %v833, 1.0
    %v898 = vadd.f32 %v834, 1.0
    %v899 = vadd.f32 %v835, 1.0
    %v900 = vadd.f32 %v836, 1.0
    %v901 = vadd.f32 %v837, 1.0
    %v902 = vadd.f32 %v838, 1.0
    %v903 = vadd.f32 %v839, 1.0
    %v904 = vadd.f32 %v840, 1.0
    %v905 = vadd.f32 %v841, 1.0
    %v906 = vadd.f32 %v842, 1.0
    %v907 = vadd.f32 %v843, 1.0
    %v908 = vadd.f32 %v844, 1.0
    %v909 = vadd.f32 %v845, 1.0
    %v910 = vadd.f32 %v846, 1.0
    %v911 = vadd.f32 %v847, 1.0
    %v912 = vadd.f32 %v848, 1.0
    %v913 = vadd.f32 %v849, 1.0
    %v914 = vadd.f32 %v850, 1.0
    %v915 = vadd.f32 %v851, 1.0
    %v916 = vadd.f32 %v852, 1.0
    %v917 = vadd.f32 %v853, 1.0
    %v918 = vadd.f32 %v854, 1.0
    %v919 = vadd.f32 %v855, 1.0
    %v920 = vadd.f32 %v856, 1.0
    %v921 = vadd.f32 %v857, 1.0
    %v922 = vadd.f32 %v858, 1.0
    %v923 = vadd.f32 %v859, 1.0
    %v924 = vadd.f32 %v860, 1.0
    %v925 = vadd.f32 %v861, 1.0
    %v926 = vadd.f32 %v862, 1.0
    %v927 = vadd.f32 %v863, 1.0
    %v928 = vadd.f32 %v864, 1.0
    %v929 = vadd.f32 %v865, 1.0
    %v930 = vadd.f32 %v866, 1.0
    %v931 = vadd.f32 %v867, 1.0
    %v932 = vadd.f32 %v868, 1.0
    %v933 = vadd.f32 %v869, 1.0
    %v934 = vadd.f32 %v870, 1.0
    %v935 = vadd.f32 %v871, 1.0
    %v936 = vadd.f32 %v872, 1.0
    %v937 = vadd.f32 %v873, 1.0
    %v938 = vadd.f32 %v874, 1.0
    %v939 = vadd.f32 %v875, 1.0
    %v940 = vadd.f32 %v876, 1.0
    %v941 = vadd.f32 %v877, 1.0
    %v942 = vadd.f32 %v878, 1.0
    %v943 = vadd.f32 %v879, 1.0
    %v944 = vadd.f32 %v880, 1.0
    %v945 = vadd.f32 %v881, 1.0
    %v946 = vadd.f32 %v882, 1.0
    %v947 = vmul.f32 %v691, %v883
    %v948 = vmul.f32 %v692, %v884
    %v949 = vmul.f32 %v693, %v885
    %v950 = vmul.f32 %v694, %v886
    %v951 = vmul.f32 %v695, %v887
    %v952 = vmul.f32 %v696, %v888
    %v953 = vmul.f32 %v697, %v889
    %v954 = vmul.f32 %v698, %v890
    %v955 = vmul.f32 %v699, %v891
    %v956 = vmul.f32 %v700, %v892
    %v957 = vmul.f32 %v701, %v893
    %v958 = vmul.f32 %v702, %v894
    %v959 = vmul.f32 %v703, %v895
    %v960 = vmul.f32 %v704, %v896
    %v961 = vmul.f32 %v705, %v897
    %v962 = vmul.f32 %v706, %v898
    %v963 = vmul.f32 %v707, %v899
    %v964 = vmul.f32 %v708, %v900
    %v965 = vmul.f32 %v709, %v901
    %v966 = vmul.f32 %v710, %v902
    %v967 = vmul.f32 %v711, %v903
    %v968 = vmul.f32 %v712, %v904
    %v969 = vmul.f32 %v713, %v905
    %v970 = vmul.f32 %v714, %v906
    %v971 = vmul.f32 %v715, %v907
    %v972 = vmul.f32 %v716, %v908
    %v973 = vmul.f32 %v717, %v909
    %v974 = vmul.f32 %v718, %v910
    %v975 = vmul.f32 %v719, %v911
    %v976 = vmul.f32 %v720, %v912
    %v977 = vmul.f32 %v721, %v913
    %v978 = vmul.f32 %v722, %v914
    %v979 = vmul.f32 %v723, %v915
    %v980 = vmul.f32 %v724, %v916
    %v981 = vmul.f32 %v725, %v917
    %v982 = vmul.f32 %v726, %v918
    %v983 = vmul.f32 %v727, %v919
    %v984 = vmul.f32 %v728, %v920
    %v985 = vmul.f32 %v729, %v921
    %v986 = vmul.f32 %v730, %v922
    %v987 = vmul.f32 %v731, %v923
    %v988 = vmul.f32 %v732, %v924
    %v989 = vmul.f32 %v733, %v925
    %v990 = vmul.f32 %v734, %v926
    %v991 = vmul.f32 %v735, %v927
    %v992 = vmul.f32 %v736, %v928
    %v993 = vmul.f32 %v737, %v929
    %v994 = vmul.f32 %v738, %v930
    %v995 = vmul.f32 %v739, %v931
    %v996 = vmul.f32 %v740, %v932
    %v997 = vmul.f32 %v741, %v933
    %v998 = vmul.f32 %v742, %v934
    %v999 = vmul.f32 %v743, %v935
    %v1000 = vmul.f32 %v744, %v936
    %v1001 = vmul.f32 %v745, %v937
    %v1002 = vmul.f32 %v746, %v938
    %v1003 = vmul.f32 %v747, %v939
    %v1004 = vmul.f32 %v748, %v940
    %v1005 = vmul.f32 %v749, %v941
    %v1006 = vmul.f32 %v750, %v942
    %v1007 = vmul.f32 %v751, %v943
    %v1008 = vmul.f32 %v752, %v944
    %v1009 = vmul.f32 %v753, %v945
    %v1010 = vmul.f32 %v754, %v946
    %v1011 = vmax.f32 %v947, %v963
    %v1012 = vmax.f32 %v948, %v964
    %v1013 = vmax.f32 %v949, %v965
    %v1014 = vmax.f32 %v950, %v966
    %v1015 = vmax.f32 %v951, %v967
    %v1016 = vmax.f32 %v952, %v968
    %v1017 = vmax.f32 %v953, %v969
    %v1018 = vmax.f32 %v954, %v970
    %v1019 = vmax.f32 %v955, %v971
    %v1020 = vmax.f32 %v956, %v972
    %v1021 = vmax.f32 %v957, %v973
    %v1022 = vmax.f32 %v958, %v974
    %v1023 = vmax.f32 %v959, %v975
    %v1024 = vmax.f32 %v960, %v976
    %v1025 = vmax.f32 %v961, %v977
    %v1026 = vmax.f32 %v962, %v978
    %v1027 = vmax.f32 %v979, %v995
    %v1028 = vmax.f32 %v980, %v996
    %v1029 = vmax.f32 %v981, %v997
    %v1030 = vmax.f32 %v982, %v998
    %v1031 = vmax.f32 %v983, %v999
    %v1032 = vmax.f32 %v984, %v1000
    %v1033 = vmax.f32 %v985, %v1001
    %v1034 = vmax.f32 %v986, %v1002
    %v1035 = vmax.f32 %v987, %v1003
    %v1036 = vmax.f32 %v988, %v1004
    %v1037 = vmax.f32 %v989, %v1005
    %v1038 = vmax.f32 %v990, %v1006
    %v1039 = vmax.f32 %v991, %v1007
    %v1040 = vmax.f32 %v992, %v1008
    %v1041 = vmax.f32 %v993, %v1009
    %v1042 = vmax.f32 %v994, %v1010
    %v1043 = vmax.f32 %v1011, %v1027
    %v1044 = vmax.f32 %v1012, %v1028
    %v1045 = vmax.f32 %v1013, %v1029
    %v1046 = vmax.f32 %v1014, %v1030
    %v1047 = vmax.f32 %v1015, %v1031
    %v1048 = vmax.f32 %v1016, %v1032
    %v1049 = vmax.f32 %v1017, %v1033
    %v1050 = vmax.f32 %v1018, %v1034
    %v1051 = vmax.f32 %v1019, %v1035
    %v1052 = vmax.f32 %v1020, %v1036
    %v1053 = vmax.f32 %v1021, %v1037
    %v1054 = vmax.f32 %v1022, %v1038
    %v1055 = vmax.f32 %v1023, %v1039
    %v1056 = vmax.f32 %v1024, %v1040
    %v1057 = vmax.f32 %v1025, %v1041
    %v1058 = vmax.f32 %v1026, %v1042
    %v1059 = vpack.c.bf16 %v1044, %v1043
    %v1060 = vpack.c.bf16 %v1046, %v1045
    %v1061 = vpack.c.bf16 %v1048, %v1047
    %v1062 = vpack.c.bf16 %v1050, %v1049
    %v1063 = vpack.c.bf16 %v1052, %v1051
    %v1064 = vpack.c.bf16 %v1054, %v1053
    %v1065 = vpack.c.bf16 %v1056, %v1055
    %v1066 = vpack.c.bf16 %v1058, %v1057
    %v1067 = vld [vmem:[%s3] sm:$0xf]
    %v1068 = vld [vmem:[%s3 + $0x4] sm:$0xf]
    %v1069 = vld [vmem:[%s3 + $0x8] sm:$0xf]
    %v1070 = vld [vmem:[%s3 + $0xc] sm:$0xf]
    %v1071 = vld [vmem:[%s3 + $0x10] sm:$0xf]
    %v1072 = vld [vmem:[%s3 + $0x14] sm:$0xf]
    %v1073 = vld [vmem:[%s3 + $0x18] sm:$0xf]
    %v1074 = vld [vmem:[%s3 + $0x1c] sm:$0xf]
    %v1075 = vld [vmem:[%s3 + $0x20] sm:$0xf]
    %v1076 = vld [vmem:[%s3 + $0x24] sm:$0xf]
    %v1077 = vld [vmem:[%s3 + $0x28] sm:$0xf]
    %v1078 = vld [vmem:[%s3 + $0x2c] sm:$0xf]
    %v1079 = vld [vmem:[%s3 + $0x30] sm:$0xf]
    %v1080 = vld [vmem:[%s3 + $0x34] sm:$0xf]
    %v1081 = vld [vmem:[%s3 + $0x38] sm:$0xf]
    %v1082 = vld [vmem:[%s3 + $0x3c] sm:$0xf]
    %v1083 = vld [vmem:[%s3 + $0x40] sm:$0xf]
    %v1084 = vld [vmem:[%s3 + $0x44] sm:$0xf]
    %v1085 = vld [vmem:[%s3 + $0x48] sm:$0xf]
    %v1086 = vld [vmem:[%s3 + $0x4c] sm:$0xf]
    %v1087 = vld [vmem:[%s3 + $0x50] sm:$0xf]
    %v1088 = vld [vmem:[%s3 + $0x54] sm:$0xf]
    %v1089 = vld [vmem:[%s3 + $0x58] sm:$0xf]
    %v1090 = vld [vmem:[%s3 + $0x5c] sm:$0xf]
    %v1091 = vld [vmem:[%s3 + $0x60] sm:$0xf]
    %v1092 = vld [vmem:[%s3 + $0x64] sm:$0xf]
    %v1093 = vld [vmem:[%s3 + $0x68] sm:$0xf]
    %v1094 = vld [vmem:[%s3 + $0x6c] sm:$0xf]
    %v1095 = vld [vmem:[%s3 + $0x70] sm:$0xf]
    %v1096 = vld [vmem:[%s3 + $0x74] sm:$0xf]
    %v1097 = vld [vmem:[%s3 + $0x78] sm:$0xf]
    %v1098 = vld [vmem:[%s3 + $0x7c] sm:$0xf]
    %v1099 = vld [vmem:[%s3 + $0x80] sm:$0xf]
    %v1100 = vld [vmem:[%s3 + $0x84] sm:$0xf]
    %v1101 = vld [vmem:[%s3 + $0x88] sm:$0xf]
    %v1102 = vld [vmem:[%s3 + $0x8c] sm:$0xf]
    %v1103 = vld [vmem:[%s3 + $0x90] sm:$0xf]
    %v1104 = vld [vmem:[%s3 + $0x94] sm:$0xf]
    %v1105 = vld [vmem:[%s3 + $0x98] sm:$0xf]
    %v1106 = vld [vmem:[%s3 + $0x9c] sm:$0xf]
    %v1107 = vld [vmem:[%s3 + $0xa0] sm:$0xf]
    %v1108 = vld [vmem:[%s3 + $0xa4] sm:$0xf]
    %v1109 = vld [vmem:[%s3 + $0xa8] sm:$0xf]
    %v1110 = vld [vmem:[%s3 + $0xac] sm:$0xf]
    %v1111 = vld [vmem:[%s3 + $0xb0] sm:$0xf]
    %v1112 = vld [vmem:[%s3 + $0xb4] sm:$0xf]
    %v1113 = vld [vmem:[%s3 + $0xb8] sm:$0xf]
    %v1114 = vld [vmem:[%s3 + $0xbc] sm:$0xf]
    %v1115 = vld [vmem:[%s3 + $0xc0] sm:$0xf]
    %v1116 = vld [vmem:[%s3 + $0xc4] sm:$0xf]
    %v1117 = vld [vmem:[%s3 + $0xc8] sm:$0xf]
    %v1118 = vld [vmem:[%s3 + $0xcc] sm:$0xf]
    %v1119 = vld [vmem:[%s3 + $0xd0] sm:$0xf]
    %v1120 = vld [vmem:[%s3 + $0xd4] sm:$0xf]
    %v1121 = vld [vmem:[%s3 + $0xd8] sm:$0xf]
    %v1122 = vld [vmem:[%s3 + $0xdc] sm:$0xf]
    %v1123 = vld [vmem:[%s3 + $0xe0] sm:$0xf]
    %v1124 = vld [vmem:[%s3 + $0xe4] sm:$0xf]
    %v1125 = vld [vmem:[%s3 + $0xe8] sm:$0xf]
    %v1126 = vld [vmem:[%s3 + $0xec] sm:$0xf]
    %v1127 = vld [vmem:[%s3 + $0xf0] sm:$0xf]
    %v1128 = vld [vmem:[%s3 + $0xf4] sm:$0xf]
    %v1129 = vld [vmem:[%s3 + $0xf8] sm:$0xf]
    %v1130 = vld [vmem:[%s3 + $0xfc] sm:$0xf]
    %v1131 = vld [vmem:[%s3 + $0x100] sm:$0xf]
    %v1132 = vld [vmem:[%s3 + $0x104] sm:$0xf]
    %v1133 = vld [vmem:[%s3 + $0x108] sm:$0xf]
    %v1134 = vld [vmem:[%s3 + $0x10c] sm:$0xf]
    %v1135 = vld [vmem:[%s3 + $0x110] sm:$0xf]
    %v1136 = vld [vmem:[%s3 + $0x114] sm:$0xf]
    %v1137 = vld [vmem:[%s3 + $0x118] sm:$0xf]
    %v1138 = vld [vmem:[%s3 + $0x11c] sm:$0xf]
    %v1139 = vld [vmem:[%s3 + $0x120] sm:$0xf]
    %v1140 = vld [vmem:[%s3 + $0x124] sm:$0xf]
    %v1141 = vld [vmem:[%s3 + $0x128] sm:$0xf]
    %v1142 = vld [vmem:[%s3 + $0x12c] sm:$0xf]
    %v1143 = vld [vmem:[%s3 + $0x130] sm:$0xf]
    %v1144 = vld [vmem:[%s3 + $0x134] sm:$0xf]
    %v1145 = vld [vmem:[%s3 + $0x138] sm:$0xf]
    %v1146 = vld [vmem:[%s3 + $0x13c] sm:$0xf]
    %v1147 = vld [vmem:[%s3 + $0x140] sm:$0xf]
    %v1148 = vld [vmem:[%s3 + $0x144] sm:$0xf]
    %v1149 = vld [vmem:[%s3 + $0x148] sm:$0xf]
    %v1150 = vld [vmem:[%s3 + $0x14c] sm:$0xf]
    %v1151 = vld [vmem:[%s3 + $0x150] sm:$0xf]
    %v1152 = vld [vmem:[%s3 + $0x154] sm:$0xf]
    %v1153 = vld [vmem:[%s3 + $0x158] sm:$0xf]
    %v1154 = vld [vmem:[%s3 + $0x15c] sm:$0xf]
    %v1155 = vld [vmem:[%s3 + $0x160] sm:$0xf]
    %v1156 = vld [vmem:[%s3 + $0x164] sm:$0xf]
    %v1157 = vld [vmem:[%s3 + $0x168] sm:$0xf]
    %v1158 = vld [vmem:[%s3 + $0x16c] sm:$0xf]
    %v1159 = vld [vmem:[%s3 + $0x170] sm:$0xf]
    %v1160 = vld [vmem:[%s3 + $0x174] sm:$0xf]
    %v1161 = vld [vmem:[%s3 + $0x178] sm:$0xf]
    %v1162 = vld [vmem:[%s3 + $0x17c] sm:$0xf]
    %v1163 = vld [vmem:[%s3 + $0x180] sm:$0xf]
    %v1164 = vld [vmem:[%s3 + $0x184] sm:$0xf]
    %v1165 = vld [vmem:[%s3 + $0x188] sm:$0xf]
    %v1166 = vld [vmem:[%s3 + $0x18c] sm:$0xf]
    %v1167 = vld [vmem:[%s3 + $0x190] sm:$0xf]
    %v1168 = vld [vmem:[%s3 + $0x194] sm:$0xf]
    %v1169 = vld [vmem:[%s3 + $0x198] sm:$0xf]
    %v1170 = vld [vmem:[%s3 + $0x19c] sm:$0xf]
    %v1171 = vld [vmem:[%s3 + $0x1a0] sm:$0xf]
    %v1172 = vld [vmem:[%s3 + $0x1a4] sm:$0xf]
    %v1173 = vld [vmem:[%s3 + $0x1a8] sm:$0xf]
    %v1174 = vld [vmem:[%s3 + $0x1ac] sm:$0xf]
    %v1175 = vld [vmem:[%s3 + $0x1b0] sm:$0xf]
    %v1176 = vld [vmem:[%s3 + $0x1b4] sm:$0xf]
    %v1177 = vld [vmem:[%s3 + $0x1b8] sm:$0xf]
    %v1178 = vld [vmem:[%s3 + $0x1bc] sm:$0xf]
    %v1179 = vld [vmem:[%s3 + $0x1c0] sm:$0xf]
    %v1180 = vld [vmem:[%s3 + $0x1c4] sm:$0xf]
    %v1181 = vld [vmem:[%s3 + $0x1c8] sm:$0xf]
    %v1182 = vld [vmem:[%s3 + $0x1cc] sm:$0xf]
    %v1183 = vld [vmem:[%s3 + $0x1d0] sm:$0xf]
    %v1184 = vld [vmem:[%s3 + $0x1d4] sm:$0xf]
    %v1185 = vld [vmem:[%s3 + $0x1d8] sm:$0xf]
    %v1186 = vld [vmem:[%s3 + $0x1dc] sm:$0xf]
    %v1187 = vld [vmem:[%s3 + $0x1e0] sm:$0xf]
    %v1188 = vld [vmem:[%s3 + $0x1e4] sm:$0xf]
    %v1189 = vld [vmem:[%s3 + $0x1e8] sm:$0xf]
    %v1190 = vld [vmem:[%s3 + $0x1ec] sm:$0xf]
    %v1191 = vld [vmem:[%s3 + $0x1f0] sm:$0xf]
    %v1192 = vld [vmem:[%s3 + $0x1f4] sm:$0xf]
    %v1193 = vld [vmem:[%s3 + $0x1f8] sm:$0xf]
    %v1194 = vld [vmem:[%s3 + $0x1fc] sm:$0xf]
    %v1195 = vld [vmem:[%s3 + $0x200] sm:$0xf]
    %v1196 = vld [vmem:[%s3 + $0x204] sm:$0xf]
    %v1197 = vld [vmem:[%s3 + $0x208] sm:$0xf]
    %v1198 = vld [vmem:[%s3 + $0x20c] sm:$0xf]
    %v1199 = vld [vmem:[%s3 + $0x210] sm:$0xf]
    %v1200 = vld [vmem:[%s3 + $0x214] sm:$0xf]
    %v1201 = vld [vmem:[%s3 + $0x218] sm:$0xf]
    %v1202 = vld [vmem:[%s3 + $0x21c] sm:$0xf]
    %v1203 = vld [vmem:[%s3 + $0x220] sm:$0xf]
    %v1204 = vld [vmem:[%s3 + $0x224] sm:$0xf]
    %v1205 = vld [vmem:[%s3 + $0x228] sm:$0xf]
    %v1206 = vld [vmem:[%s3 + $0x22c] sm:$0xf]
    %v1207 = vld [vmem:[%s3 + $0x230] sm:$0xf]
    %v1208 = vld [vmem:[%s3 + $0x234] sm:$0xf]
    %v1209 = vld [vmem:[%s3 + $0x238] sm:$0xf]
    %v1210 = vld [vmem:[%s3 + $0x23c] sm:$0xf]
    %v1211 = vld [vmem:[%s4] sm:$0xf]
    %v1212 = vld [vmem:[%s4 + $0x4] sm:$0xf]
    %v1213 = vld [vmem:[%s4 + $0x8] sm:$0xf]
    %v1214 = vld [vmem:[%s4 + $0xc] sm:$0xf]
    %v1215 = vld [vmem:[%s4 + $0x10] sm:$0xf]
    %v1216 = vld [vmem:[%s4 + $0x14] sm:$0xf]
    %v1217 = vld [vmem:[%s4 + $0x18] sm:$0xf]
    %v1218 = vld [vmem:[%s4 + $0x1c] sm:$0xf]
    %v1219 = vld [vmem:[%s4 + $0x20] sm:$0xf]
    %v1220 = vld [vmem:[%s4 + $0x24] sm:$0xf]
    %v1221 = vld [vmem:[%s4 + $0x28] sm:$0xf]
    %v1222 = vld [vmem:[%s4 + $0x2c] sm:$0xf]
    %v1223 = vld [vmem:[%s4 + $0x30] sm:$0xf]
    %v1224 = vld [vmem:[%s4 + $0x34] sm:$0xf]
    %v1225 = vld [vmem:[%s4 + $0x38] sm:$0xf]
    %v1226 = vld [vmem:[%s4 + $0x3c] sm:$0xf]
    %v1227 = vld [vmem:[%s4 + $0x40] sm:$0xf]
    %v1228 = vld [vmem:[%s4 + $0x44] sm:$0xf]
    %v1229 = vld [vmem:[%s4 + $0x48] sm:$0xf]
    %v1230 = vld [vmem:[%s4 + $0x4c] sm:$0xf]
    %v1231 = vld [vmem:[%s4 + $0x50] sm:$0xf]
    %v1232 = vld [vmem:[%s4 + $0x54] sm:$0xf]
    %v1233 = vld [vmem:[%s4 + $0x58] sm:$0xf]
    %v1234 = vld [vmem:[%s4 + $0x5c] sm:$0xf]
    %v1235 = vld [vmem:[%s4 + $0x60] sm:$0xf]
    %v1236 = vld [vmem:[%s4 + $0x64] sm:$0xf]
    %v1237 = vld [vmem:[%s4 + $0x68] sm:$0xf]
    %v1238 = vld [vmem:[%s4 + $0x6c] sm:$0xf]
    %v1239 = vld [vmem:[%s4 + $0x70] sm:$0xf]
    %v1240 = vld [vmem:[%s4 + $0x74] sm:$0xf]
    %v1241 = vld [vmem:[%s4 + $0x78] sm:$0xf]
    %v1242 = vld [vmem:[%s4 + $0x7c] sm:$0xf]
    %v1243 = vld [vmem:[%s4 + $0x80] sm:$0xf]
    %v1244 = vld [vmem:[%s4 + $0x84] sm:$0xf]
    %v1245 = vld [vmem:[%s4 + $0x88] sm:$0xf]
    %v1246 = vld [vmem:[%s4 + $0x8c] sm:$0xf]
    %v1391 = vunpack.c.l.b16 %v1067
    %v1392 = vunpack.c.l.b16 %v1068
    %v1393 = vunpack.c.l.b16 %v1069
    %v1394 = vunpack.c.l.b16 %v1070
    %v1395 = vunpack.c.l.b16 %v1071
    %v1396 = vunpack.c.l.b16 %v1072
    %v1397 = vunpack.c.l.b16 %v1073
    %v1398 = vunpack.c.l.b16 %v1074
    %v1399 = vunpack.c.l.b16 %v1075
    %v1400 = vunpack.c.l.b16 %v1076
    %v1401 = vunpack.c.l.b16 %v1077
    %v1402 = vunpack.c.l.b16 %v1078
    %v1403 = vunpack.c.l.b16 %v1079
    %v1404 = vunpack.c.l.b16 %v1080
    %v1405 = vunpack.c.l.b16 %v1081
    %v1406 = vunpack.c.l.b16 %v1082
    %v1407 = vunpack.c.l.b16 %v1083
    %v1408 = vunpack.c.l.b16 %v1084
    %v1409 = vunpack.c.l.b16 %v1085
    %v1410 = vunpack.c.l.b16 %v1086
    %v1411 = vunpack.c.l.b16 %v1087
    %v1412 = vunpack.c.l.b16 %v1088
    %v1413 = vunpack.c.l.b16 %v1089
    %v1414 = vunpack.c.l.b16 %v1090
    %v1415 = vunpack.c.l.b16 %v1091
    %v1416 = vunpack.c.l.b16 %v1092
    %v1417 = vunpack.c.l.b16 %v1093
    %v1418 = vunpack.c.l.b16 %v1094
    %v1419 = vunpack.c.l.b16 %v1095
    %v1420 = vunpack.c.l.b16 %v1096
    %v1421 = vunpack.c.l.b16 %v1097
    %v1422 = vunpack.c.l.b16 %v1098
    %v1423 = vunpack.c.l.b16 %v1099
    %v1424 = vunpack.c.l.b16 %v1100
    %v1425 = vunpack.c.l.b16 %v1101
    %v1426 = vunpack.c.l.b16 %v1102
    %v1427 = vunpack.c.l.b16 %v1103
    %v1428 = vunpack.c.l.b16 %v1104
    %v1429 = vunpack.c.l.b16 %v1105
    %v1430 = vunpack.c.l.b16 %v1106
    %v1431 = vunpack.c.l.b16 %v1107
    %v1432 = vunpack.c.l.b16 %v1108
    %v1433 = vunpack.c.l.b16 %v1109
    %v1434 = vunpack.c.l.b16 %v1110
    %v1435 = vunpack.c.l.b16 %v1111
    %v1436 = vunpack.c.l.b16 %v1112
    %v1437 = vunpack.c.l.b16 %v1113
    %v1438 = vunpack.c.l.b16 %v1114
    %v1439 = vunpack.c.l.b16 %v1115
    %v1440 = vunpack.c.l.b16 %v1116
    %v1441 = vunpack.c.l.b16 %v1117
    %v1442 = vunpack.c.l.b16 %v1118
    %v1443 = vunpack.c.l.b16 %v1119
    %v1444 = vunpack.c.l.b16 %v1120
    %v1445 = vunpack.c.l.b16 %v1121
    %v1446 = vunpack.c.l.b16 %v1122
    %v1447 = vunpack.c.l.b16 %v1123
    %v1448 = vunpack.c.l.b16 %v1124
    %v1449 = vunpack.c.l.b16 %v1125
    %v1450 = vunpack.c.l.b16 %v1126
    %v1451 = vunpack.c.l.b16 %v1127
    %v1452 = vunpack.c.l.b16 %v1128
    %v1453 = vunpack.c.l.b16 %v1129
    %v1454 = vunpack.c.l.b16 %v1130
    %v1455 = vunpack.c.l.b16 %v1131
    %v1456 = vunpack.c.l.b16 %v1132
    %v1457 = vunpack.c.l.b16 %v1133
    %v1458 = vunpack.c.l.b16 %v1134
    %v1459 = vunpack.c.l.b16 %v1135
    %v1460 = vunpack.c.l.b16 %v1136
    %v1461 = vunpack.c.l.b16 %v1137
    %v1462 = vunpack.c.l.b16 %v1138
    %v1463 = vunpack.c.l.b16 %v1139
    %v1464 = vunpack.c.l.b16 %v1140
    %v1465 = vunpack.c.l.b16 %v1141
    %v1466 = vunpack.c.l.b16 %v1142
    %v1467 = vunpack.c.l.b16 %v1143
    %v1468 = vunpack.c.l.b16 %v1144
    %v1469 = vunpack.c.l.b16 %v1145
    %v1470 = vunpack.c.l.b16 %v1146
    %v1471 = vunpack.c.l.b16 %v1147
    %v1472 = vunpack.c.l.b16 %v1148
    %v1473 = vunpack.c.l.b16 %v1149
    %v1474 = vunpack.c.l.b16 %v1150
    %v1475 = vunpack.c.l.b16 %v1151
    %v1476 = vunpack.c.l.b16 %v1152
    %v1477 = vunpack.c.l.b16 %v1153
    %v1478 = vunpack.c.l.b16 %v1154
    %v1479 = vunpack.c.l.b16 %v1155
    %v1480 = vunpack.c.l.b16 %v1156
    %v1481 = vunpack.c.l.b16 %v1157
    %v1482 = vunpack.c.l.b16 %v1158
    %v1483 = vunpack.c.l.b16 %v1159
    %v1484 = vunpack.c.l.b16 %v1160
    %v1485 = vunpack.c.l.b16 %v1161
    %v1486 = vunpack.c.l.b16 %v1162
    %v1487 = vunpack.c.l.b16 %v1163
    %v1488 = vunpack.c.l.b16 %v1164
    %v1489 = vunpack.c.l.b16 %v1165
    %v1490 = vunpack.c.l.b16 %v1166
    %v1491 = vunpack.c.l.b16 %v1167
    %v1492 = vunpack.c.l.b16 %v1168
    %v1493 = vunpack.c.l.b16 %v1169
    %v1494 = vunpack.c.l.b16 %v1170
    %v1495 = vunpack.c.l.b16 %v1171
    %v1496 = vunpack.c.l.b16 %v1172
    %v1497 = vunpack.c.l.b16 %v1173
    %v1498 = vunpack.c.l.b16 %v1174
    %v1499 = vunpack.c.l.b16 %v1175
    %v1500 = vunpack.c.l.b16 %v1176
    %v1501 = vunpack.c.l.b16 %v1177
    %v1502 = vunpack.c.l.b16 %v1178
    %v1503 = vunpack.c.l.b16 %v1179
    %v1504 = vunpack.c.l.b16 %v1180
    %v1505 = vunpack.c.l.b16 %v1181
    %v1506 = vunpack.c.l.b16 %v1182
    %v1507 = vunpack.c.l.b16 %v1183
    %v1508 = vunpack.c.l.b16 %v1184
    %v1509 = vunpack.c.l.b16 %v1185
    %v1510 = vunpack.c.l.b16 %v1186
    %v1511 = vunpack.c.l.b16 %v1187
    %v1512 = vunpack.c.l.b16 %v1188
    %v1513 = vunpack.c.l.b16 %v1189
    %v1514 = vunpack.c.l.b16 %v1190
    %v1515 = vunpack.c.l.b16 %v1191
    %v1516 = vunpack.c.l.b16 %v1192
    %v1517 = vunpack.c.l.b16 %v1193
    %v1518 = vunpack.c.l.b16 %v1194
    %v1519 = vunpack.c.l.b16 %v1195
    %v1520 = vunpack.c.l.b16 %v1196
    %v1521 = vunpack.c.l.b16 %v1197
    %v1522 = vunpack.c.l.b16 %v1198
    %v1523 = vunpack.c.l.b16 %v1199
    %v1524 = vunpack.c.l.b16 %v1200
    %v1525 = vunpack.c.l.b16 %v1201
    %v1526 = vunpack.c.l.b16 %v1202
    %v1527 = vunpack.c.l.b16 %v1203
    %v1528 = vunpack.c.l.b16 %v1204
    %v1529 = vunpack.c.l.b16 %v1205
    %v1530 = vunpack.c.l.b16 %v1206
    %v1531 = vunpack.c.l.b16 %v1207
    %v1532 = vunpack.c.l.b16 %v1208
    %v1533 = vunpack.c.l.b16 %v1209
    %v1534 = vunpack.c.l.b16 %v1210
    %v1535 = vpack.c.b16 %v1392, %v1391
    %v1536 = vpack.c.b16 %v1394, %v1393
    %v1537 = vpack.c.b16 %v1396, %v1395
    %v1538 = vpack.c.b16 %v1398, %v1397
    %v1539 = vpack.c.b16 %v1400, %v1399
    %v1540 = vpack.c.b16 %v1402, %v1401
    %v1541 = vpack.c.b16 %v1404, %v1403
    %v1542 = vpack.c.b16 %v1406, %v1405
    %v1543 = vpack.c.b16 %v1408, %v1407
    %v1544 = vpack.c.b16 %v1410, %v1409
    %v1545 = vpack.c.b16 %v1412, %v1411
    %v1546 = vpack.c.b16 %v1414, %v1413
    %v1547 = vpack.c.b16 %v1416, %v1415
    %v1548 = vpack.c.b16 %v1418, %v1417
    %v1549 = vpack.c.b16 %v1420, %v1419
    %v1550 = vpack.c.b16 %v1422, %v1421
    %v1551 = vpack.c.b16 %v1424, %v1423
    %v1552 = vpack.c.b16 %v1426, %v1425
    %v1553 = vpack.c.b16 %v1428, %v1427
    %v1554 = vpack.c.b16 %v1430, %v1429
    %v1555 = vpack.c.b16 %v1432, %v1431
    %v1556 = vpack.c.b16 %v1434, %v1433
    %v1557 = vpack.c.b16 %v1436, %v1435
    %v1558 = vpack.c.b16 %v1438, %v1437
    %v1559 = vpack.c.b16 %v1440, %v1439
    %v1560 = vpack.c.b16 %v1442, %v1441
    %v1561 = vpack.c.b16 %v1444, %v1443
    %v1562 = vpack.c.b16 %v1446, %v1445
    %v1563 = vpack.c.b16 %v1448, %v1447
    %v1564 = vpack.c.b16 %v1450, %v1449
    %v1565 = vpack.c.b16 %v1452, %v1451
    %v1566 = vpack.c.b16 %v1454, %v1453
    %v1567 = vpack.c.b16 %v1456, %v1455
    %v1568 = vpack.c.b16 %v1458, %v1457
    %v1569 = vpack.c.b16 %v1460, %v1459
    %v1570 = vpack.c.b16 %v1462, %v1461
    %v1571 = vpack.c.b16 %v1464, %v1463
    %v1572 = vpack.c.b16 %v1466, %v1465
    %v1573 = vpack.c.b16 %v1468, %v1467
    %v1574 = vpack.c.b16 %v1470, %v1469
    %v1575 = vpack.c.b16 %v1472, %v1471
    %v1576 = vpack.c.b16 %v1474, %v1473
    %v1577 = vpack.c.b16 %v1476, %v1475
    %v1578 = vpack.c.b16 %v1478, %v1477
    %v1579 = vpack.c.b16 %v1480, %v1479
    %v1580 = vpack.c.b16 %v1482, %v1481
    %v1581 = vpack.c.b16 %v1484, %v1483
    %v1582 = vpack.c.b16 %v1486, %v1485
    %v1583 = vpack.c.b16 %v1488, %v1487
    %v1584 = vpack.c.b16 %v1490, %v1489
    %v1585 = vpack.c.b16 %v1492, %v1491
    %v1586 = vpack.c.b16 %v1494, %v1493
    %v1587 = vpack.c.b16 %v1496, %v1495
    %v1588 = vpack.c.b16 %v1498, %v1497
    %v1589 = vpack.c.b16 %v1500, %v1499
    %v1590 = vpack.c.b16 %v1502, %v1501
    %v1591 = vpack.c.b16 %v1504, %v1503
    %v1592 = vpack.c.b16 %v1506, %v1505
    %v1593 = vpack.c.b16 %v1508, %v1507
    %v1594 = vpack.c.b16 %v1510, %v1509
    %v1595 = vpack.c.b16 %v1512, %v1511
    %v1596 = vpack.c.b16 %v1514, %v1513
    %v1597 = vpack.c.b16 %v1516, %v1515
    %v1598 = vpack.c.b16 %v1518, %v1517
    %v1599 = vpack.c.b16 %v1520, %v1519
    %v1600 = vpack.c.b16 %v1522, %v1521
    %v1601 = vpack.c.b16 %v1524, %v1523
    %v1602 = vpack.c.b16 %v1526, %v1525
    %v1603 = vpack.c.b16 %v1528, %v1527
    %v1604 = vpack.c.b16 %v1530, %v1529
    %v1605 = vpack.c.b16 %v1532, %v1531
    %v1606 = vpack.c.b16 %v1534, %v1533
    %1679 = vmatprep.subr.bf16.mxu0 0
    %1680 = vmatpush1.bf16.msra.mxu0 %v1059
    %1681 = vmatprep.subr.bf16.mxu0 0
    %1682 = vmatpush1.bf16.msra.mxu0 %v1060
    %1683 = vmatprep.subr.bf16.mxu0 0
    %1684 = vmatpush1.bf16.msra.mxu0 %v1061
    %1685 = vmatprep.subr.bf16.mxu0 0
    %1686 = vmatpush1.bf16.msra.mxu0 %v1062
    %1687 = vmatprep.subr.bf16.mxu0 0
    %1688 = vmatpush1.bf16.msra.mxu0 %v1063
    %1689 = vmatprep.subr.bf16.mxu0 0
    %1690 = vmatpush1.bf16.msra.mxu0 %v1064
    %1691 = vmatprep.subr.bf16.mxu0 0
    %1692 = vmatpush1.bf16.msra.mxu0 %v1065
    %1693 = vmatprep.subr.bf16.mxu0 0
    %1694 = vmatpush1.bf16.msra.mxu0 %v1066
    %1695 = vmatprep.subr.bf16.mxu0 0
    %1696 = vmatpush1.bf16.msra.mxu0 0
    %1697 = vmatprep.subr.bf16.mxu0 0
    %1698 = vmatpush1.bf16.msra.mxu0 0
    %1699 = vmatprep.subr.bf16.mxu0 0
    %1700 = vmatpush1.bf16.msra.mxu0 0
    %1701 = vmatprep.subr.bf16.mxu0 0
    %1702 = vmatpush1.bf16.msra.mxu0 0
    %1703 = vmatprep.subr.bf16.mxu0 0
    %1704 = vmatpush1.bf16.msra.mxu0 0
    %1705 = vmatprep.subr.bf16.mxu0 0
    %1706 = vmatpush1.bf16.msra.mxu0 0
    %1707 = vmatprep.subr.bf16.mxu0 0
    %1708 = vmatpush1.bf16.msra.mxu0 0
    %1709 = vmatprep.subr.bf16.mxu0 0
    %1710 = vmatpush1.bf16.msra.mxu0 0
    %1711 = vmatprep.mubr.bf16.mxu0 0
    %1712 = vmatmul.mubr.bf16.gmra.mrb[0].mxu0 %v1535
    %v1713 = vpop.f32.mrb[0].mxu0
    %v1714 = vadd.f32 0.0, %v1713
    %v1715 = vpop.f32.mrb[0].mxu0
    %v1716 = vpop.f32.mrb[0].mxu0
    %v1717 = vadd.f32 0.0, %v1716
    %v1718 = vpop.f32.mrb[0].mxu0
    %1719 = vmatprep.mubr.bf16.mxu0 0
    %1720 = vmatmul.mubr.bf16.gmra.mrb[0].mxu0 %v1536
    %v1721 = vpop.f32.mrb[0].mxu0
    %v1722 = vadd.f32 0.0, %v1721
    %v1723 = vpop.f32.mrb[0].mxu0
    %v1724 = vpop.f32.mrb[0].mxu0
    %v1725 = vadd.f32 0.0, %v1724
    %v1726 = vpop.f32.mrb[0].mxu0
    %1727 = vmatprep.mubr.bf16.mxu0 0
    %1728 = vmatmul.mubr.bf16.gmra.mrb[0].mxu0 %v1537
    %v1729 = vpop.f32.mrb[0].mxu0
    %v1730 = vadd.f32 0.0, %v1729
    %v1731 = vpop.f32.mrb[0].mxu0
    %v1732 = vpop.f32.mrb[0].mxu0
    %v1733 = vadd.f32 0.0, %v1732
    %v1734 = vpop.f32.mrb[0].mxu0
    %1735 = vmatprep.mubr.bf16.mxu0 0
    %1736 = vmatmul.mubr.bf16.gmra.mrb[0].mxu0 %v1538
    %v1737 = vpop.f32.mrb[0].mxu0
    %v1738 = vadd.f32 0.0, %v1737
    %v1739 = vpop.f32.mrb[0].mxu0
    %v1740 = vpop.f32.mrb[0].mxu0
    %v1741 = vadd.f32 0.0, %v1740
    %v1742 = vpop.f32.mrb[0].mxu0
    %1743 = vmatprep.mubr.bf16.mxu0 0
    %1744 = vmatmul.mubr.bf16.gmra.mrb[0].mxu0 %v1539
    %v1745 = vpop.f32.mrb[0].mxu0
    %v1746 = vadd.f32 0.0, %v1745
    %v1747 = vpop.f32.mrb[0].mxu0
    %v1748 = vpop.f32.mrb[0].mxu0
    %v1749 = vadd.f32 0.0, %v1748
    %v1750 = vpop.f32.mrb[0].mxu0
    %1751 = vmatprep.mubr.bf16.mxu0 0
    %1752 = vmatmul.mubr.bf16.gmra.mrb[0].mxu0 %v1540
    %v1753 = vpop.f32.mrb[0].mxu0
    %v1754 = vadd.f32 0.0, %v1753
    %v1755 = vpop.f32.mrb[0].mxu0
    %v1756 = vpop.f32.mrb[0].mxu0
    %v1757 = vadd.f32 0.0, %v1756
    %v1758 = vpop.f32.mrb[0].mxu0
    %1759 = vmatprep.mubr.bf16.mxu0 0
    %1760 = vmatmul.mubr.bf16.gmra.mrb[0].mxu0 %v1541
    %v1761 = vpop.f32.mrb[0].mxu0
    %v1762 = vadd.f32 0.0, %v1761
    %v1763 = vpop.f32.mrb[0].mxu0
    %v1764 = vpop.f32.mrb[0].mxu0
    %v1765 = vadd.f32 0.0, %v1764
    %v1766 = vpop.f32.mrb[0].mxu0
    %1767 = vmatprep.mubr.bf16.mxu0 0
    %1768 = vmatmul.mubr.bf16.gmra.mrb[0].mxu0 %v1542
    %v1769 = vpop.f32.mrb[0].mxu0
    %v1770 = vadd.f32 0.0, %v1769
    %v1771 = vpop.f32.mrb[0].mxu0
    %v1772 = vpop.f32.mrb[0].mxu0
    %v1773 = vadd.f32 0.0, %v1772
    %v1774 = vpop.f32.mrb[0].mxu0
    %1775 = vmatprep.mubr.bf16.mxu0 0
    %1776 = vmatmul.mubr.bf16.gmra.mrb[0].mxu0 %v1543
    %v1777 = vpop.f32.mrb[0].mxu0
    %v1778 = vadd.f32 0.0, %v1777
    %v1779 = vpop.f32.mrb[0].mxu0
    %v1780 = vpop.f32.mrb[0].mxu0
    %v1781 = vadd.f32 0.0, %v1780
    %v1782 = vpop.f32.mrb[0].mxu0
    %1783 = vmatprep.mubr.bf16.mxu0 0
    %1784 = vmatmul.mubr.bf16.gmra.mrb[0].mxu0 %v1544
    %v1785 = vpop.f32.mrb[0].mxu0
    %v1786 = vadd.f32 0.0, %v1785
    %v1787 = vpop.f32.mrb[0].mxu0
    %v1788 = vpop.f32.mrb[0].mxu0
    %v1789 = vadd.f32 0.0, %v1788
    %v1790 = vpop.f32.mrb[0].mxu0
    %1791 = vmatprep.mubr.bf16.mxu0 0
    %1792 = vmatmul.mubr.bf16.gmra.mrb[0].mxu0 %v1545
    %v1793 = vpop.f32.mrb[0].mxu0
    %v1794 = vadd.f32 0.0, %v1793
    %v1795 = vpop.f32.mrb[0].mxu0
    %v1796 = vpop.f32.mrb[0].mxu0
    %v1797 = vadd.f32 0.0, %v1796
    %v1798 = vpop.f32.mrb[0].mxu0
    %1799 = vmatprep.mubr.bf16.mxu0 0
    %1800 = vmatmul.mubr.bf16.gmra.mrb[0].mxu0 %v1546
    %v1801 = vpop.f32.mrb[0].mxu0
    %v1802 = vadd.f32 0.0, %v1801
    %v1803 = vpop.f32.mrb[0].mxu0
    %v1804 = vpop.f32.mrb[0].mxu0
    %v1805 = vadd.f32 0.0, %v1804
    %v1806 = vpop.f32.mrb[0].mxu0
    %1807 = vmatprep.mubr.bf16.mxu0 0
    %1808 = vmatmul.mubr.bf16.gmra.mrb[0].mxu0 %v1547
    %v1809 = vpop.f32.mrb[0].mxu0
    %v1810 = vadd.f32 0.0, %v1809
    %v1811 = vpop.f32.mrb[0].mxu0
    %v1812 = vpop.f32.mrb[0].mxu0
    %v1813 = vadd.f32 0.0, %v1812
    %v1814 = vpop.f32.mrb[0].mxu0
    %1815 = vmatprep.mubr.bf16.mxu0 0
    %1816 = vmatmul.mubr.bf16.gmra.mrb[0].mxu0 %v1548
    %v1817 = vpop.f32.mrb[0].mxu0
    %v1818 = vadd.f32 0.0, %v1817
    %v1819 = vpop.f32.mrb[0].mxu0
    %v1820 = vpop.f32.mrb[0].mxu0
    %v1821 = vadd.f32 0.0, %v1820
    %v1822 = vpop.f32.mrb[0].mxu0
    %1823 = vmatprep.mubr.bf16.mxu0 0
    %1824 = vmatmul.mubr.bf16.gmra.mrb[0].mxu0 %v1549
    %v1825 = vpop.f32.mrb[0].mxu0
    %v1826 = vadd.f32 0.0, %v1825
    %v1827 = vpop.f32.mrb[0].mxu0
    %v1828 = vpop.f32.mrb[0].mxu0
    %v1829 = vadd.f32 0.0, %v1828
    %v1830 = vpop.f32.mrb[0].mxu0
    %1831 = vmatprep.mubr.bf16.mxu0 0
    %1832 = vmatmul.mubr.bf16.gmra.mrb[0].mxu0 %v1550
    %v1833 = vpop.f32.mrb[0].mxu0
    %v1834 = vadd.f32 0.0, %v1833
    %v1835 = vpop.f32.mrb[0].mxu0
    %v1836 = vpop.f32.mrb[0].mxu0
    %v1837 = vadd.f32 0.0, %v1836
    %v1838 = vpop.f32.mrb[0].mxu0
    %1839 = vmatprep.mubr.bf16.mxu0 0
    %1840 = vmatmul.mubr.bf16.gmra.mrb[0].mxu0 %v1551
    %v1841 = vpop.f32.mrb[0].mxu0
    %v1842 = vadd.f32 0.0, %v1841
    %v1843 = vpop.f32.mrb[0].mxu0
    %v1844 = vpop.f32.mrb[0].mxu0
    %v1845 = vadd.f32 0.0, %v1844
    %v1846 = vpop.f32.mrb[0].mxu0
    %1847 = vmatprep.mubr.bf16.mxu0 0
    %1848 = vmatmul.mubr.bf16.gmra.mrb[0].mxu0 %v1552
    %v1849 = vpop.f32.mrb[0].mxu0
    %v1850 = vadd.f32 0.0, %v1849
    %v1851 = vpop.f32.mrb[0].mxu0
    %v1852 = vpop.f32.mrb[0].mxu0
    %v1853 = vadd.f32 0.0, %v1852
    %v1854 = vpop.f32.mrb[0].mxu0
    %1855 = vmatprep.mubr.bf16.mxu0 0
    %1856 = vmatmul.mubr.bf16.gmra.mrb[0].mxu0 %v1553
    %v1857 = vpop.f32.mrb[0].mxu0
    %v1858 = vadd.f32 0.0, %v1857
    %v1859 = vpop.f32.mrb[0].mxu0
    %v1860 = vpop.f32.mrb[0].mxu0
    %v1861 = vadd.f32 0.0, %v1860
    %v1862 = vpop.f32.mrb[0].mxu0
    %1863 = vmatprep.mubr.bf16.mxu0 0
    %1864 = vmatmul.mubr.bf16.gmra.mrb[0].mxu0 %v1554
    %v1865 = vpop.f32.mrb[0].mxu0
    %v1866 = vadd.f32 0.0, %v1865
    %v1867 = vpop.f32.mrb[0].mxu0
    %v1868 = vpop.f32.mrb[0].mxu0
    %v1869 = vadd.f32 0.0, %v1868
    %v1870 = vpop.f32.mrb[0].mxu0
    %1871 = vmatprep.mubr.bf16.mxu0 0
    %1872 = vmatmul.mubr.bf16.gmra.mrb[0].mxu0 %v1555
    %v1873 = vpop.f32.mrb[0].mxu0
    %v1874 = vadd.f32 0.0, %v1873
    %v1875 = vpop.f32.mrb[0].mxu0
    %v1876 = vpop.f32.mrb[0].mxu0
    %v1877 = vadd.f32 0.0, %v1876
    %v1878 = vpop.f32.mrb[0].mxu0
    %1879 = vmatprep.mubr.bf16.mxu0 0
    %1880 = vmatmul.mubr.bf16.gmra.mrb[0].mxu0 %v1556
    %v1881 = vpop.f32.mrb[0].mxu0
    %v1882 = vadd.f32 0.0, %v1881
    %v1883 = vpop.f32.mrb[0].mxu0
    %v1884 = vpop.f32.mrb[0].mxu0
    %v1885 = vadd.f32 0.0, %v1884
    %v1886 = vpop.f32.mrb[0].mxu0
    %1887 = vmatprep.mubr.bf16.mxu0 0
    %1888 = vmatmul.mubr.bf16.gmra.mrb[0].mxu0 %v1557
    %v1889 = vpop.f32.mrb[0].mxu0
    %v1890 = vadd.f32 0.0, %v1889
    %v1891 = vpop.f32.mrb[0].mxu0
    %v1892 = vpop.f32.mrb[0].mxu0
    %v1893 = vadd.f32 0.0, %v1892
    %v1894 = vpop.f32.mrb[0].mxu0
    %1895 = vmatprep.mubr.bf16.mxu0 0
    %1896 = vmatmul.mubr.bf16.gmra.mrb[0].mxu0 %v1558
    %v1897 = vpop.f32.mrb[0].mxu0
    %v1898 = vadd.f32 0.0, %v1897
    %v1899 = vpop.f32.mrb[0].mxu0
    %v1900 = vpop.f32.mrb[0].mxu0
    %v1901 = vadd.f32 0.0, %v1900
    %v1902 = vpop.f32.mrb[0].mxu0
    %1903 = vmatprep.mubr.bf16.mxu0 0
    %1904 = vmatmul.mubr.bf16.gmra.mrb[0].mxu0 %v1559
    %v1905 = vpop.f32.mrb[0].mxu0
    %v1906 = vadd.f32 0.0, %v1905
    %v1907 = vpop.f32.mrb[0].mxu0
    %v1908 = vpop.f32.mrb[0].mxu0
    %v1909 = vadd.f32 0.0, %v1908
    %v1910 = vpop.f32.mrb[0].mxu0
    %1911 = vmatprep.mubr.bf16.mxu0 0
    %1912 = vmatmul.mubr.bf16.gmra.mrb[0].mxu0 %v1560
    %v1913 = vpop.f32.mrb[0].mxu0
    %v1914 = vadd.f32 0.0, %v1913
    %v1915 = vpop.f32.mrb[0].mxu0
    %v1916 = vpop.f32.mrb[0].mxu0
    %v1917 = vadd.f32 0.0, %v1916
    %v1918 = vpop.f32.mrb[0].mxu0
    %1919 = vmatprep.mubr.bf16.mxu0 0
    %1920 = vmatmul.mubr.bf16.gmra.mrb[0].mxu0 %v1561
    %v1921 = vpop.f32.mrb[0].mxu0
    %v1922 = vadd.f32 0.0, %v1921
    %v1923 = vpop.f32.mrb[0].mxu0
    %v1924 = vpop.f32.mrb[0].mxu0
    %v1925 = vadd.f32 0.0, %v1924
    %v1926 = vpop.f32.mrb[0].mxu0
    %1927 = vmatprep.mubr.bf16.mxu0 0
    %1928 = vmatmul.mubr.bf16.gmra.mrb[0].mxu0 %v1562
    %v1929 = vpop.f32.mrb[0].mxu0
    %v1930 = vadd.f32 0.0, %v1929
    %v1931 = vpop.f32.mrb[0].mxu0
    %v1932 = vpop.f32.mrb[0].mxu0
    %v1933 = vadd.f32 0.0, %v1932
    %v1934 = vpop.f32.mrb[0].mxu0
    %1935 = vmatprep.mubr.bf16.mxu0 0
    %1936 = vmatmul.mubr.bf16.gmra.mrb[0].mxu0 %v1563
    %v1937 = vpop.f32.mrb[0].mxu0
    %v1938 = vadd.f32 0.0, %v1937
    %v1939 = vpop.f32.mrb[0].mxu0
    %v1940 = vpop.f32.mrb[0].mxu0
    %v1941 = vadd.f32 0.0, %v1940
    %v1942 = vpop.f32.mrb[0].mxu0
    %1943 = vmatprep.mubr.bf16.mxu0 0
    %1944 = vmatmul.mubr.bf16.gmra.mrb[0].mxu0 %v1564
    %v1945 = vpop.f32.mrb[0].mxu0
    %v1946 = vadd.f32 0.0, %v1945
    %v1947 = vpop.f32.mrb[0].mxu0
    %v1948 = vpop.f32.mrb[0].mxu0
    %v1949 = vadd.f32 0.0, %v1948
    %v1950 = vpop.f32.mrb[0].mxu0
    %1951 = vmatprep.mubr.bf16.mxu0 0
    %1952 = vmatmul.mubr.bf16.gmra.mrb[0].mxu0 %v1565
    %v1953 = vpop.f32.mrb[0].mxu0
    %v1954 = vadd.f32 0.0, %v1953
    %v1955 = vpop.f32.mrb[0].mxu0
    %v1956 = vpop.f32.mrb[0].mxu0
    %v1957 = vadd.f32 0.0, %v1956
    %v1958 = vpop.f32.mrb[0].mxu0
    %1959 = vmatprep.mubr.bf16.mxu0 0
    %1960 = vmatmul.mubr.bf16.gmra.mrb[0].mxu0 %v1566
    %v1961 = vpop.f32.mrb[0].mxu0
    %v1962 = vadd.f32 0.0, %v1961
    %v1963 = vpop.f32.mrb[0].mxu0
    %v1964 = vpop.f32.mrb[0].mxu0
    %v1965 = vadd.f32 0.0, %v1964
    %v1966 = vpop.f32.mrb[0].mxu0
    %1967 = vmatprep.mubr.bf16.mxu0 0
    %1968 = vmatmul.mubr.bf16.gmra.mrb[0].mxu0 %v1567
    %v1969 = vpop.f32.mrb[0].mxu0
    %v1970 = vadd.f32 0.0, %v1969
    %v1971 = vpop.f32.mrb[0].mxu0
    %v1972 = vpop.f32.mrb[0].mxu0
    %v1973 = vadd.f32 0.0, %v1972
    %v1974 = vpop.f32.mrb[0].mxu0
    %1975 = vmatprep.mubr.bf16.mxu0 0
    %1976 = vmatmul.mubr.bf16.gmra.mrb[0].mxu0 %v1568
    %v1977 = vpop.f32.mrb[0].mxu0
    %v1978 = vadd.f32 0.0, %v1977
    %v1979 = vpop.f32.mrb[0].mxu0
    %v1980 = vpop.f32.mrb[0].mxu0
    %v1981 = vadd.f32 0.0, %v1980
    %v1982 = vpop.f32.mrb[0].mxu0
    %1983 = vmatprep.mubr.bf16.mxu0 0
    %1984 = vmatmul.mubr.bf16.gmra.mrb[0].mxu0 %v1569
    %v1985 = vpop.f32.mrb[0].mxu0
    %v1986 = vadd.f32 0.0, %v1985
    %v1987 = vpop.f32.mrb[0].mxu0
    %v1988 = vpop.f32.mrb[0].mxu0
    %v1989 = vadd.f32 0.0, %v1988
    %v1990 = vpop.f32.mrb[0].mxu0
    %1991 = vmatprep.mubr.bf16.mxu0 0
    %1992 = vmatmul.mubr.bf16.gmra.mrb[0].mxu0 %v1570
    %v1993 = vpop.f32.mrb[0].mxu0
    %v1994 = vadd.f32 0.0, %v1993
    %v1995 = vpop.f32.mrb[0].mxu0
    %v1996 = vpop.f32.mrb[0].mxu0
    %v1997 = vadd.f32 0.0, %v1996
    %v1998 = vpop.f32.mrb[0].mxu0
    %1999 = vmatprep.mubr.bf16.mxu0 0
    %2000 = vmatmul.mubr.bf16.gmra.mrb[0].mxu0 %v1571
    %v2001 = vpop.f32.mrb[0].mxu0
    %v2002 = vadd.f32 0.0, %v2001
    %v2003 = vpop.f32.mrb[0].mxu0
    %v2004 = vpop.f32.mrb[0].mxu0
    %v2005 = vadd.f32 0.0, %v2004
    %v2006 = vpop.f32.mrb[0].mxu0
    %2007 = vmatprep.mubr.bf16.mxu0 0
    %2008 = vmatmul.mubr.bf16.gmra.mrb[0].mxu0 %v1572
    %v2009 = vpop.f32.mrb[0].mxu0
    %v2010 = vadd.f32 0.0, %v2009
    %v2011 = vpop.f32.mrb[0].mxu0
    %v2012 = vpop.f32.mrb[0].mxu0
    %v2013 = vadd.f32 0.0, %v2012
    %v2014 = vpop.f32.mrb[0].mxu0
    %2015 = vmatprep.mubr.bf16.mxu0 0
    %2016 = vmatmul.mubr.bf16.gmra.mrb[0].mxu0 %v1573
    %v2017 = vpop.f32.mrb[0].mxu0
    %v2018 = vadd.f32 0.0, %v2017
    %v2019 = vpop.f32.mrb[0].mxu0
    %v2020 = vpop.f32.mrb[0].mxu0
    %v2021 = vadd.f32 0.0, %v2020
    %v2022 = vpop.f32.mrb[0].mxu0
    %2023 = vmatprep.mubr.bf16.mxu0 0
    %2024 = vmatmul.mubr.bf16.gmra.mrb[0].mxu0 %v1574
    %v2025 = vpop.f32.mrb[0].mxu0
    %v2026 = vadd.f32 0.0, %v2025
    %v2027 = vpop.f32.mrb[0].mxu0
    %v2028 = vpop.f32.mrb[0].mxu0
    %v2029 = vadd.f32 0.0, %v2028
    %v2030 = vpop.f32.mrb[0].mxu0
    %2031 = vmatprep.mubr.bf16.mxu0 0
    %2032 = vmatmul.mubr.bf16.gmra.mrb[0].mxu0 %v1575
    %v2033 = vpop.f32.mrb[0].mxu0
    %v2034 = vadd.f32 0.0, %v2033
    %v2035 = vpop.f32.mrb[0].mxu0
    %v2036 = vpop.f32.mrb[0].mxu0
    %v2037 = vadd.f32 0.0, %v2036
    %v2038 = vpop.f32.mrb[0].mxu0
    %2039 = vmatprep.mubr.bf16.mxu0 0
    %2040 = vmatmul.mubr.bf16.gmra.mrb[0].mxu0 %v1576
    %v2041 = vpop.f32.mrb[0].mxu0
    %v2042 = vadd.f32 0.0, %v2041
    %v2043 = vpop.f32.mrb[0].mxu0
    %v2044 = vpop.f32.mrb[0].mxu0
    %v2045 = vadd.f32 0.0, %v2044
    %v2046 = vpop.f32.mrb[0].mxu0
    %2047 = vmatprep.mubr.bf16.mxu0 0
    %2048 = vmatmul.mubr.bf16.gmra.mrb[0].mxu0 %v1577
    %v2049 = vpop.f32.mrb[0].mxu0
    %v2050 = vadd.f32 0.0, %v2049
    %v2051 = vpop.f32.mrb[0].mxu0
    %v2052 = vpop.f32.mrb[0].mxu0
    %v2053 = vadd.f32 0.0, %v2052
    %v2054 = vpop.f32.mrb[0].mxu0
    %2055 = vmatprep.mubr.bf16.mxu0 0
    %2056 = vmatmul.mubr.bf16.gmra.mrb[0].mxu0 %v1578
    %v2057 = vpop.f32.mrb[0].mxu0
    %v2058 = vadd.f32 0.0, %v2057
    %v2059 = vpop.f32.mrb[0].mxu0
    %v2060 = vpop.f32.mrb[0].mxu0
    %v2061 = vadd.f32 0.0, %v2060
    %v2062 = vpop.f32.mrb[0].mxu0
    %2063 = vmatprep.mubr.bf16.mxu0 0
    %2064 = vmatmul.mubr.bf16.gmra.mrb[0].mxu0 %v1579
    %v2065 = vpop.f32.mrb[0].mxu0
    %v2066 = vadd.f32 0.0, %v2065
    %v2067 = vpop.f32.mrb[0].mxu0
    %v2068 = vpop.f32.mrb[0].mxu0
    %v2069 = vadd.f32 0.0, %v2068
    %v2070 = vpop.f32.mrb[0].mxu0
    %2071 = vmatprep.mubr.bf16.mxu0 0
    %2072 = vmatmul.mubr.bf16.gmra.mrb[0].mxu0 %v1580
    %v2073 = vpop.f32.mrb[0].mxu0
    %v2074 = vadd.f32 0.0, %v2073
    %v2075 = vpop.f32.mrb[0].mxu0
    %v2076 = vpop.f32.mrb[0].mxu0
    %v2077 = vadd.f32 0.0, %v2076
    %v2078 = vpop.f32.mrb[0].mxu0
    %2079 = vmatprep.mubr.bf16.mxu0 0
    %2080 = vmatmul.mubr.bf16.gmra.mrb[0].mxu0 %v1581
    %v2081 = vpop.f32.mrb[0].mxu0
    %v2082 = vadd.f32 0.0, %v2081
    %v2083 = vpop.f32.mrb[0].mxu0
    %v2084 = vpop.f32.mrb[0].mxu0
    %v2085 = vadd.f32 0.0, %v2084
    %v2086 = vpop.f32.mrb[0].mxu0
    %2087 = vmatprep.mubr.bf16.mxu0 0
    %2088 = vmatmul.mubr.bf16.gmra.mrb[0].mxu0 %v1582
    %v2089 = vpop.f32.mrb[0].mxu0
    %v2090 = vadd.f32 0.0, %v2089
    %v2091 = vpop.f32.mrb[0].mxu0
    %v2092 = vpop.f32.mrb[0].mxu0
    %v2093 = vadd.f32 0.0, %v2092
    %v2094 = vpop.f32.mrb[0].mxu0
    %2095 = vmatprep.mubr.bf16.mxu0 0
    %2096 = vmatmul.mubr.bf16.gmra.mrb[0].mxu0 %v1583
    %v2097 = vpop.f32.mrb[0].mxu0
    %v2098 = vadd.f32 0.0, %v2097
    %v2099 = vpop.f32.mrb[0].mxu0
    %v2100 = vpop.f32.mrb[0].mxu0
    %v2101 = vadd.f32 0.0, %v2100
    %v2102 = vpop.f32.mrb[0].mxu0
    %2103 = vmatprep.mubr.bf16.mxu0 0
    %2104 = vmatmul.mubr.bf16.gmra.mrb[0].mxu0 %v1584
    %v2105 = vpop.f32.mrb[0].mxu0
    %v2106 = vadd.f32 0.0, %v2105
    %v2107 = vpop.f32.mrb[0].mxu0
    %v2108 = vpop.f32.mrb[0].mxu0
    %v2109 = vadd.f32 0.0, %v2108
    %v2110 = vpop.f32.mrb[0].mxu0
    %2111 = vmatprep.mubr.bf16.mxu0 0
    %2112 = vmatmul.mubr.bf16.gmra.mrb[0].mxu0 %v1585
    %v2113 = vpop.f32.mrb[0].mxu0
    %v2114 = vadd.f32 0.0, %v2113
    %v2115 = vpop.f32.mrb[0].mxu0
    %v2116 = vpop.f32.mrb[0].mxu0
    %v2117 = vadd.f32 0.0, %v2116
    %v2118 = vpop.f32.mrb[0].mxu0
    %2119 = vmatprep.mubr.bf16.mxu0 0
    %2120 = vmatmul.mubr.bf16.gmra.mrb[0].mxu0 %v1586
    %v2121 = vpop.f32.mrb[0].mxu0
    %v2122 = vadd.f32 0.0, %v2121
    %v2123 = vpop.f32.mrb[0].mxu0
    %v2124 = vpop.f32.mrb[0].mxu0
    %v2125 = vadd.f32 0.0, %v2124
    %v2126 = vpop.f32.mrb[0].mxu0
    %2127 = vmatprep.mubr.bf16.mxu0 0
    %2128 = vmatmul.mubr.bf16.gmra.mrb[0].mxu0 %v1587
    %v2129 = vpop.f32.mrb[0].mxu0
    %v2130 = vadd.f32 0.0, %v2129
    %v2131 = vpop.f32.mrb[0].mxu0
    %v2132 = vpop.f32.mrb[0].mxu0
    %v2133 = vadd.f32 0.0, %v2132
    %v2134 = vpop.f32.mrb[0].mxu0
    %2135 = vmatprep.mubr.bf16.mxu0 0
    %2136 = vmatmul.mubr.bf16.gmra.mrb[0].mxu0 %v1588
    %v2137 = vpop.f32.mrb[0].mxu0
    %v2138 = vadd.f32 0.0, %v2137
    %v2139 = vpop.f32.mrb[0].mxu0
    %v2140 = vpop.f32.mrb[0].mxu0
    %v2141 = vadd.f32 0.0, %v2140
    %v2142 = vpop.f32.mrb[0].mxu0
    %2143 = vmatprep.mubr.bf16.mxu0 0
    %2144 = vmatmul.mubr.bf16.gmra.mrb[0].mxu0 %v1589
    %v2145 = vpop.f32.mrb[0].mxu0
    %v2146 = vadd.f32 0.0, %v2145
    %v2147 = vpop.f32.mrb[0].mxu0
    %v2148 = vpop.f32.mrb[0].mxu0
    %v2149 = vadd.f32 0.0, %v2148
    %v2150 = vpop.f32.mrb[0].mxu0
    %2151 = vmatprep.mubr.bf16.mxu0 0
    %2152 = vmatmul.mubr.bf16.gmra.mrb[0].mxu0 %v1590
    %v2153 = vpop.f32.mrb[0].mxu0
    %v2154 = vadd.f32 0.0, %v2153
    %v2155 = vpop.f32.mrb[0].mxu0
    %v2156 = vpop.f32.mrb[0].mxu0
    %v2157 = vadd.f32 0.0, %v2156
    %v2158 = vpop.f32.mrb[0].mxu0
    %2159 = vmatprep.mubr.bf16.mxu0 0
    %2160 = vmatmul.mubr.bf16.gmra.mrb[0].mxu0 %v1591
    %v2161 = vpop.f32.mrb[0].mxu0
    %v2162 = vadd.f32 0.0, %v2161
    %v2163 = vpop.f32.mrb[0].mxu0
    %v2164 = vpop.f32.mrb[0].mxu0
    %v2165 = vadd.f32 0.0, %v2164
    %v2166 = vpop.f32.mrb[0].mxu0
    %2167 = vmatprep.mubr.bf16.mxu0 0
    %2168 = vmatmul.mubr.bf16.gmra.mrb[0].mxu0 %v1592
    %v2169 = vpop.f32.mrb[0].mxu0
    %v2170 = vadd.f32 0.0, %v2169
    %v2171 = vpop.f32.mrb[0].mxu0
    %v2172 = vpop.f32.mrb[0].mxu0
    %v2173 = vadd.f32 0.0, %v2172
    %v2174 = vpop.f32.mrb[0].mxu0
    %2175 = vmatprep.mubr.bf16.mxu0 0
    %2176 = vmatmul.mubr.bf16.gmra.mrb[0].mxu0 %v1593
    %v2177 = vpop.f32.mrb[0].mxu0
    %v2178 = vadd.f32 0.0, %v2177
    %v2179 = vpop.f32.mrb[0].mxu0
    %v2180 = vpop.f32.mrb[0].mxu0
    %v2181 = vadd.f32 0.0, %v2180
    %v2182 = vpop.f32.mrb[0].mxu0
    %2183 = vmatprep.mubr.bf16.mxu0 0
    %2184 = vmatmul.mubr.bf16.gmra.mrb[0].mxu0 %v1594
    %v2185 = vpop.f32.mrb[0].mxu0
    %v2186 = vadd.f32 0.0, %v2185
    %v2187 = vpop.f32.mrb[0].mxu0
    %v2188 = vpop.f32.mrb[0].mxu0
    %v2189 = vadd.f32 0.0, %v2188
    %v2190 = vpop.f32.mrb[0].mxu0
    %2191 = vmatprep.mubr.bf16.mxu0 0
    %2192 = vmatmul.mubr.bf16.gmra.mrb[0].mxu0 %v1595
    %v2193 = vpop.f32.mrb[0].mxu0
    %v2194 = vadd.f32 0.0, %v2193
    %v2195 = vpop.f32.mrb[0].mxu0
    %v2196 = vpop.f32.mrb[0].mxu0
    %v2197 = vadd.f32 0.0, %v2196
    %v2198 = vpop.f32.mrb[0].mxu0
    %2199 = vmatprep.mubr.bf16.mxu0 0
    %2200 = vmatmul.mubr.bf16.gmra.mrb[0].mxu0 %v1596
    %v2201 = vpop.f32.mrb[0].mxu0
    %v2202 = vadd.f32 0.0, %v2201
    %v2203 = vpop.f32.mrb[0].mxu0
    %v2204 = vpop.f32.mrb[0].mxu0
    %v2205 = vadd.f32 0.0, %v2204
    %v2206 = vpop.f32.mrb[0].mxu0
    %2207 = vmatprep.mubr.bf16.mxu0 0
    %2208 = vmatmul.mubr.bf16.gmra.mrb[0].mxu0 %v1597
    %v2209 = vpop.f32.mrb[0].mxu0
    %v2210 = vadd.f32 0.0, %v2209
    %v2211 = vpop.f32.mrb[0].mxu0
    %v2212 = vpop.f32.mrb[0].mxu0
    %v2213 = vadd.f32 0.0, %v2212
    %v2214 = vpop.f32.mrb[0].mxu0
    %2215 = vmatprep.mubr.bf16.mxu0 0
    %2216 = vmatmul.mubr.bf16.gmra.mrb[0].mxu0 %v1598
    %v2217 = vpop.f32.mrb[0].mxu0
    %v2218 = vadd.f32 0.0, %v2217
    %v2219 = vpop.f32.mrb[0].mxu0
    %v2220 = vpop.f32.mrb[0].mxu0
    %v2221 = vadd.f32 0.0, %v2220
    %v2222 = vpop.f32.mrb[0].mxu0
    %2223 = vmatprep.mubr.bf16.mxu0 0
    %2224 = vmatmul.mubr.bf16.gmra.mrb[0].mxu0 %v1599
    %v2225 = vpop.f32.mrb[0].mxu0
    %v2226 = vadd.f32 0.0, %v2225
    %v2227 = vpop.f32.mrb[0].mxu0
    %v2228 = vpop.f32.mrb[0].mxu0
    %v2229 = vadd.f32 0.0, %v2228
    %v2230 = vpop.f32.mrb[0].mxu0
    %2231 = vmatprep.mubr.bf16.mxu0 0
    %2232 = vmatmul.mubr.bf16.gmra.mrb[0].mxu0 %v1600
    %v2233 = vpop.f32.mrb[0].mxu0
    %v2234 = vadd.f32 0.0, %v2233
    %v2235 = vpop.f32.mrb[0].mxu0
    %v2236 = vpop.f32.mrb[0].mxu0
    %v2237 = vadd.f32 0.0, %v2236
    %v2238 = vpop.f32.mrb[0].mxu0
    %2239 = vmatprep.mubr.bf16.mxu0 0
    %2240 = vmatmul.mubr.bf16.gmra.mrb[0].mxu0 %v1601
    %v2241 = vpop.f32.mrb[0].mxu0
    %v2242 = vadd.f32 0.0, %v2241
    %v2243 = vpop.f32.mrb[0].mxu0
    %v2244 = vpop.f32.mrb[0].mxu0
    %v2245 = vadd.f32 0.0, %v2244
    %v2246 = vpop.f32.mrb[0].mxu0
    %2247 = vmatprep.mubr.bf16.mxu0 0
    %2248 = vmatmul.mubr.bf16.gmra.mrb[0].mxu0 %v1602
    %v2249 = vpop.f32.mrb[0].mxu0
    %v2250 = vadd.f32 0.0, %v2249
    %v2251 = vpop.f32.mrb[0].mxu0
    %v2252 = vpop.f32.mrb[0].mxu0
    %v2253 = vadd.f32 0.0, %v2252
    %v2254 = vpop.f32.mrb[0].mxu0
    %2255 = vmatprep.mubr.bf16.mxu0 0
    %2256 = vmatmul.mubr.bf16.gmra.mrb[0].mxu0 %v1603
    %v2257 = vpop.f32.mrb[0].mxu0
    %v2258 = vadd.f32 0.0, %v2257
    %v2259 = vpop.f32.mrb[0].mxu0
    %v2260 = vpop.f32.mrb[0].mxu0
    %v2261 = vadd.f32 0.0, %v2260
    %v2262 = vpop.f32.mrb[0].mxu0
    %2263 = vmatprep.mubr.bf16.mxu0 0
    %2264 = vmatmul.mubr.bf16.gmra.mrb[0].mxu0 %v1604
    %v2265 = vpop.f32.mrb[0].mxu0
    %v2266 = vadd.f32 0.0, %v2265
    %v2267 = vpop.f32.mrb[0].mxu0
    %v2268 = vpop.f32.mrb[0].mxu0
    %v2269 = vadd.f32 0.0, %v2268
    %v2270 = vpop.f32.mrb[0].mxu0
    %2271 = vmatprep.mubr.bf16.mxu0 0
    %2272 = vmatmul.mubr.bf16.gmra.mrb[0].mxu0 %v1605
    %v2273 = vpop.f32.mrb[0].mxu0
    %v2274 = vadd.f32 0.0, %v2273
    %v2275 = vpop.f32.mrb[0].mxu0
    %v2276 = vpop.f32.mrb[0].mxu0
    %v2277 = vadd.f32 0.0, %v2276
    %v2278 = vpop.f32.mrb[0].mxu0
    %2279 = vmatprep.mubr.bf16.mxu0 0
    %2280 = vmatmul.mubr.bf16.gmra.mrb[0].mxu0 %v1606
    %v2281 = vpop.f32.mrb[0].mxu0
    %v2282 = vadd.f32 0.0, %v2281
    %v2283 = vpop.f32.mrb[0].mxu0
    %v2284 = vpop.f32.mrb[0].mxu0
    %v2285 = vadd.f32 0.0, %v2284
    %v2286 = vpop.f32.mrb[0].mxu0
    %2287 = vdwg.mxu0
    %v2288 = vpack.c.bf16 %v1717, %v1714
    %v2289 = vpack.c.bf16 %v1725, %v1722
    %v2290 = vpack.c.bf16 %v1733, %v1730
    %v2291 = vpack.c.bf16 %v1741, %v1738
    %v2292 = vpack.c.bf16 %v1749, %v1746
    %v2293 = vpack.c.bf16 %v1757, %v1754
    %v2294 = vpack.c.bf16 %v1765, %v1762
    %v2295 = vpack.c.bf16 %v1773, %v1770
    %v2296 = vpack.c.bf16 %v1781, %v1778
    %v2297 = vpack.c.bf16 %v1789, %v1786
    %v2298 = vpack.c.bf16 %v1797, %v1794
    %v2299 = vpack.c.bf16 %v1805, %v1802
    %v2300 = vpack.c.bf16 %v1813, %v1810
    %v2301 = vpack.c.bf16 %v1821, %v1818
    %v2302 = vpack.c.bf16 %v1829, %v1826
    %v2303 = vpack.c.bf16 %v1837, %v1834
    %v2308 = vunpack.c.l.b16 %v1215
    %v2309 = vunpack.c.l.b16 %v1216
    %v2310 = vunpack.c.l.b16 %v1217
    %v2311 = vunpack.c.l.b16 %v1218
    %v2312 = vpack.c.b16 %v2309, %v2308
    %v2313 = vpack.c.b16 %v2311, %v2310
    %vm2316 = vcmask 261120
    %v2318 = vsel %vm2316, %v2296, 0
    %v2321 = vsel %vm2316, %v2297, 0
    %v2324 = vsel %vm2316, %v2298, 0
    %v2327 = vsel %vm2316, %v2299, 0
    %v2330 = vsel %vm2316, %v2300, 0
    %v2333 = vsel %vm2316, %v2301, 0
    %v2336 = vsel %vm2316, %v2302, 0
    %v2339 = vsel %vm2316, %v2303, 0
    %2341 = vmatprep.subr.bf16.mxu0 0
    %2342 = vmatpush1.bf16.msra.mxu0 %v2312
    %2343 = vmatprep.subr.bf16.mxu0 0
    %2344 = vmatpush1.bf16.msra.mxu0 %v2313
    %2345 = vmatprep.subr.bf16.mxu0 0
    %2346 = vmatpush1.bf16.msra.mxu0 0
    %2347 = vmatprep.subr.bf16.mxu0 0
    %2348 = vmatpush1.bf16.msra.mxu0 0
    %2349 = vmatprep.subr.bf16.mxu0 0
    %2350 = vmatpush1.bf16.msra.mxu0 0
    %2351 = vmatprep.subr.bf16.mxu0 0
    %2352 = vmatpush1.bf16.msra.mxu0 0
    %2353 = vmatprep.subr.bf16.mxu0 0
    %2354 = vmatpush1.bf16.msra.mxu0 0
    %2355 = vmatprep.subr.bf16.mxu0 0
    %2356 = vmatpush1.bf16.msra.mxu0 0
    %2357 = vmatprep.subr.bf16.mxu0 0
    %2358 = vmatpush1.bf16.msra.mxu0 0
    %2359 = vmatprep.subr.bf16.mxu0 0
    %2360 = vmatpush1.bf16.msra.mxu0 0
    %2361 = vmatprep.subr.bf16.mxu0 0
    %2362 = vmatpush1.bf16.msra.mxu0 0
    %2363 = vmatprep.subr.bf16.mxu0 0
    %2364 = vmatpush1.bf16.msra.mxu0 0
    %2365 = vmatprep.subr.bf16.mxu0 0
    %2366 = vmatpush1.bf16.msra.mxu0 0
    %2367 = vmatprep.subr.bf16.mxu0 0
    %2368 = vmatpush1.bf16.msra.mxu0 0
    %2369 = vmatprep.subr.bf16.mxu0 0
    %2370 = vmatpush1.bf16.msra.mxu0 0
    %2371 = vmatprep.subr.bf16.mxu0 0
    %2372 = vmatpush1.bf16.msra.mxu0 0
    %2373 = vmatprep.mubr.bf16.mxu0 0
    %2374 = vmatmul.mubr.bf16.gmra.mrb[0].mxu0 %v2318
    %v2375 = vpop.f32.mrb[0].mxu0
    %v2376 = vadd.f32 0.0, %v2375
    %v2377 = vpop.f32.mrb[0].mxu0
    %v2378 = vpop.f32.mrb[0].mxu0
    %v2379 = vadd.f32 0.0, %v2378
    %v2380 = vpop.f32.mrb[0].mxu0
    %2381 = vmatprep.mubr.bf16.mxu0 0
    %2382 = vmatmul.mubr.bf16.gmra.mrb[0].mxu0 %v2321
    %v2383 = vpop.f32.mrb[0].mxu0
    %v2384 = vadd.f32 0.0, %v2383
    %v2385 = vpop.f32.mrb[0].mxu0
    %v2386 = vpop.f32.mrb[0].mxu0
    %v2387 = vadd.f32 0.0, %v2386
    %v2388 = vpop.f32.mrb[0].mxu0
    %2389 = vmatprep.mubr.bf16.mxu0 0
    %2390 = vmatmul.mubr.bf16.gmra.mrb[0].mxu0 %v2324
    %v2391 = vpop.f32.mrb[0].mxu0
    %v2392 = vadd.f32 0.0, %v2391
    %v2393 = vpop.f32.mrb[0].mxu0
    %v2394 = vpop.f32.mrb[0].mxu0
    %v2395 = vadd.f32 0.0, %v2394
    %v2396 = vpop.f32.mrb[0].mxu0
    %2397 = vmatprep.mubr.bf16.mxu0 0
    %2398 = vmatmul.mubr.bf16.gmra.mrb[0].mxu0 %v2327
    %v2399 = vpop.f32.mrb[0].mxu0
    %v2400 = vadd.f32 0.0, %v2399
    %v2401 = vpop.f32.mrb[0].mxu0
    %v2402 = vpop.f32.mrb[0].mxu0
    %v2403 = vadd.f32 0.0, %v2402
    %v2404 = vpop.f32.mrb[0].mxu0
    %2405 = vmatprep.mubr.bf16.mxu0 0
    %2406 = vmatmul.mubr.bf16.gmra.mrb[0].mxu0 %v2330
    %v2407 = vpop.f32.mrb[0].mxu0
    %v2408 = vadd.f32 0.0, %v2407
    %v2409 = vpop.f32.mrb[0].mxu0
    %v2410 = vpop.f32.mrb[0].mxu0
    %v2411 = vadd.f32 0.0, %v2410
    %v2412 = vpop.f32.mrb[0].mxu0
    %2413 = vmatprep.mubr.bf16.mxu0 0
    %2414 = vmatmul.mubr.bf16.gmra.mrb[0].mxu0 %v2333
    %v2415 = vpop.f32.mrb[0].mxu0
    %v2416 = vadd.f32 0.0, %v2415
    %v2417 = vpop.f32.mrb[0].mxu0
    %v2418 = vpop.f32.mrb[0].mxu0
    %v2419 = vadd.f32 0.0, %v2418
    %v2420 = vpop.f32.mrb[0].mxu0
    %2421 = vmatprep.mubr.bf16.mxu0 0
    %2422 = vmatmul.mubr.bf16.gmra.mrb[0].mxu0 %v2336
    %v2423 = vpop.f32.mrb[0].mxu0
    %v2424 = vadd.f32 0.0, %v2423
    %v2425 = vpop.f32.mrb[0].mxu0
    %v2426 = vpop.f32.mrb[0].mxu0
    %v2427 = vadd.f32 0.0, %v2426
    %v2428 = vpop.f32.mrb[0].mxu0
    %2429 = vmatprep.mubr.bf16.mxu0 0
    %2430 = vmatmul.mubr.bf16.gmra.mrb[0].mxu0 %v2339
    %v2431 = vpop.f32.mrb[0].mxu0
    %v2432 = vadd.f32 0.0, %v2431
    %v2433 = vpop.f32.mrb[0].mxu0
    %v2434 = vpop.f32.mrb[0].mxu0
    %v2435 = vadd.f32 0.0, %v2434
    %v2436 = vpop.f32.mrb[0].mxu0
    %2437 = vdwg.mxu0
    %v2442 = vunpack.c.l.b16 %v1211
    %v2443 = vunpack.c.l.b16 %v1212
    %v2444 = vunpack.c.l.b16 %v1213
    %v2445 = vunpack.c.l.b16 %v1214
    %v2446 = vpack.c.b16 %v2443, %v2442
    %v2447 = vpack.c.b16 %v2445, %v2444
    %v2451 = vsel %vm2316, %v2288, 0
    %v2454 = vsel %vm2316, %v2289, 0
    %v2457 = vsel %vm2316, %v2290, 0
    %v2460 = vsel %vm2316, %v2291, 0
    %v2463 = vsel %vm2316, %v2292, 0
    %v2466 = vsel %vm2316, %v2293, 0
    %v2469 = vsel %vm2316, %v2294, 0
    %v2472 = vsel %vm2316, %v2295, 0
    %2474 = vmatprep.subr.bf16.mxu0 0
    %2475 = vmatpush1.bf16.msra.mxu0 %v2446
    %2476 = vmatprep.subr.bf16.mxu0 0
    %2477 = vmatpush1.bf16.msra.mxu0 %v2447
    %2478 = vmatprep.subr.bf16.mxu0 0
    %2479 = vmatpush1.bf16.msra.mxu0 0
    %2480 = vmatprep.subr.bf16.mxu0 0
    %2481 = vmatpush1.bf16.msra.mxu0 0
    %2482 = vmatprep.subr.bf16.mxu0 0
    %2483 = vmatpush1.bf16.msra.mxu0 0
    %2484 = vmatprep.subr.bf16.mxu0 0
    %2485 = vmatpush1.bf16.msra.mxu0 0
    %2486 = vmatprep.subr.bf16.mxu0 0
    %2487 = vmatpush1.bf16.msra.mxu0 0
    %2488 = vmatprep.subr.bf16.mxu0 0
    %2489 = vmatpush1.bf16.msra.mxu0 0
    %2490 = vmatprep.subr.bf16.mxu0 0
    %2491 = vmatpush1.bf16.msra.mxu0 0
    %2492 = vmatprep.subr.bf16.mxu0 0
    %2493 = vmatpush1.bf16.msra.mxu0 0
    %2494 = vmatprep.subr.bf16.mxu0 0
    %2495 = vmatpush1.bf16.msra.mxu0 0
    %2496 = vmatprep.subr.bf16.mxu0 0
    %2497 = vmatpush1.bf16.msra.mxu0 0
    %2498 = vmatprep.subr.bf16.mxu0 0
    %2499 = vmatpush1.bf16.msra.mxu0 0
    %2500 = vmatprep.subr.bf16.mxu0 0
    %2501 = vmatpush1.bf16.msra.mxu0 0
    %2502 = vmatprep.subr.bf16.mxu0 0
    %2503 = vmatpush1.bf16.msra.mxu0 0
    %2504 = vmatprep.subr.bf16.mxu0 0
    %2505 = vmatpush1.bf16.msra.mxu0 0
    %2506 = vmatprep.mubr.bf16.mxu0 0
    %2507 = vmatmul.mubr.bf16.gmra.mrb[0].mxu0 %v2451
    %v2508 = vpop.f32.mrb[0].mxu0
    %v2509 = vadd.f32 %v2376, %v2508
    %v2510 = vpop.f32.mrb[0].mxu0
    %v2511 = vpop.f32.mrb[0].mxu0
    %v2512 = vadd.f32 %v2379, %v2511
    %v2513 = vpop.f32.mrb[0].mxu0
    %2514 = vmatprep.mubr.bf16.mxu0 0
    %2515 = vmatmul.mubr.bf16.gmra.mrb[0].mxu0 %v2454
    %v2516 = vpop.f32.mrb[0].mxu0
    %v2517 = vadd.f32 %v2384, %v2516
    %v2518 = vpop.f32.mrb[0].mxu0
    %v2519 = vpop.f32.mrb[0].mxu0
    %v2520 = vadd.f32 %v2387, %v2519
    %v2521 = vpop.f32.mrb[0].mxu0
    %2522 = vmatprep.mubr.bf16.mxu0 0
    %2523 = vmatmul.mubr.bf16.gmra.mrb[0].mxu0 %v2457
    %v2524 = vpop.f32.mrb[0].mxu0
    %v2525 = vadd.f32 %v2392, %v2524
    %v2526 = vpop.f32.mrb[0].mxu0
    %v2527 = vpop.f32.mrb[0].mxu0
    %v2528 = vadd.f32 %v2395, %v2527
    %v2529 = vpop.f32.mrb[0].mxu0
    %2530 = vmatprep.mubr.bf16.mxu0 0
    %2531 = vmatmul.mubr.bf16.gmra.mrb[0].mxu0 %v2460
    %v2532 = vpop.f32.mrb[0].mxu0
    %v2533 = vadd.f32 %v2400, %v2532
    %v2534 = vpop.f32.mrb[0].mxu0
    %v2535 = vpop.f32.mrb[0].mxu0
    %v2536 = vadd.f32 %v2403, %v2535
    %v2537 = vpop.f32.mrb[0].mxu0
    %2538 = vmatprep.mubr.bf16.mxu0 0
    %2539 = vmatmul.mubr.bf16.gmra.mrb[0].mxu0 %v2463
    %v2540 = vpop.f32.mrb[0].mxu0
    %v2541 = vadd.f32 %v2408, %v2540
    %v2542 = vpop.f32.mrb[0].mxu0
    %v2543 = vpop.f32.mrb[0].mxu0
    %v2544 = vadd.f32 %v2411, %v2543
    %v2545 = vpop.f32.mrb[0].mxu0
    %2546 = vmatprep.mubr.bf16.mxu0 0
    %2547 = vmatmul.mubr.bf16.gmra.mrb[0].mxu0 %v2466
    %v2548 = vpop.f32.mrb[0].mxu0
    %v2549 = vadd.f32 %v2416, %v2548
    %v2550 = vpop.f32.mrb[0].mxu0
    %v2551 = vpop.f32.mrb[0].mxu0
    %v2552 = vadd.f32 %v2419, %v2551
    %v2553 = vpop.f32.mrb[0].mxu0
    %2554 = vmatprep.mubr.bf16.mxu0 0
    %2555 = vmatmul.mubr.bf16.gmra.mrb[0].mxu0 %v2469
    %v2556 = vpop.f32.mrb[0].mxu0
    %v2557 = vadd.f32 %v2424, %v2556
    %v2558 = vpop.f32.mrb[0].mxu0
    %v2559 = vpop.f32.mrb[0].mxu0
    %v2560 = vadd.f32 %v2427, %v2559
    %v2561 = vpop.f32.mrb[0].mxu0
    %2562 = vmatprep.mubr.bf16.mxu0 0
    %2563 = vmatmul.mubr.bf16.gmra.mrb[0].mxu0 %v2472
    %v2564 = vpop.f32.mrb[0].mxu0
    %v2565 = vadd.f32 %v2432, %v2564
    %v2566 = vpop.f32.mrb[0].mxu0
    %v2567 = vpop.f32.mrb[0].mxu0
    %v2568 = vadd.f32 %v2435, %v2567
    %v2569 = vpop.f32.mrb[0].mxu0
    %2570 = vdwg.mxu0
    %v2571 = vpack.c.bf16 %v1845, %v1842
    %v2572 = vpack.c.bf16 %v1853, %v1850
    %v2573 = vpack.c.bf16 %v1861, %v1858
    %v2574 = vpack.c.bf16 %v1869, %v1866
    %v2575 = vpack.c.bf16 %v1877, %v1874
    %v2576 = vpack.c.bf16 %v1885, %v1882
    %v2577 = vpack.c.bf16 %v1893, %v1890
    %v2578 = vpack.c.bf16 %v1901, %v1898
    %v2583 = vunpack.c.l.b16 %v1219
    %v2584 = vunpack.c.l.b16 %v1220
    %v2585 = vunpack.c.l.b16 %v1221
    %v2586 = vunpack.c.l.b16 %v1222
    %v2587 = vpack.c.b16 %v2584, %v2583
    %v2588 = vpack.c.b16 %v2586, %v2585
    %v2592 = vsel %vm2316, %v2571, 0
    %v2595 = vsel %vm2316, %v2572, 0
    %v2598 = vsel %vm2316, %v2573, 0
    %v2601 = vsel %vm2316, %v2574, 0
    %v2604 = vsel %vm2316, %v2575, 0
    %v2607 = vsel %vm2316, %v2576, 0
    %v2610 = vsel %vm2316, %v2577, 0
    %v2613 = vsel %vm2316, %v2578, 0
    %2615 = vmatprep.subr.bf16.mxu0 0
    %2616 = vmatpush1.bf16.msra.mxu0 %v2587
    %2617 = vmatprep.subr.bf16.mxu0 0
    %2618 = vmatpush1.bf16.msra.mxu0 %v2588
    %2619 = vmatprep.subr.bf16.mxu0 0
    %2620 = vmatpush1.bf16.msra.mxu0 0
    %2621 = vmatprep.subr.bf16.mxu0 0
    %2622 = vmatpush1.bf16.msra.mxu0 0
    %2623 = vmatprep.subr.bf16.mxu0 0
    %2624 = vmatpush1.bf16.msra.mxu0 0
    %2625 = vmatprep.subr.bf16.mxu0 0
    %2626 = vmatpush1.bf16.msra.mxu0 0
    %2627 = vmatprep.subr.bf16.mxu0 0
    %2628 = vmatpush1.bf16.msra.mxu0 0
    %2629 = vmatprep.subr.bf16.mxu0 0
    %2630 = vmatpush1.bf16.msra.mxu0 0
    %2631 = vmatprep.subr.bf16.mxu0 0
    %2632 = vmatpush1.bf16.msra.mxu0 0
    %2633 = vmatprep.subr.bf16.mxu0 0
    %2634 = vmatpush1.bf16.msra.mxu0 0
    %2635 = vmatprep.subr.bf16.mxu0 0
    %2636 = vmatpush1.bf16.msra.mxu0 0
    %2637 = vmatprep.subr.bf16.mxu0 0
    %2638 = vmatpush1.bf16.msra.mxu0 0
    %2639 = vmatprep.subr.bf16.mxu0 0
    %2640 = vmatpush1.bf16.msra.mxu0 0
    %2641 = vmatprep.subr.bf16.mxu0 0
    %2642 = vmatpush1.bf16.msra.mxu0 0
    %2643 = vmatprep.subr.bf16.mxu0 0
    %2644 = vmatpush1.bf16.msra.mxu0 0
    %2645 = vmatprep.subr.bf16.mxu0 0
    %2646 = vmatpush1.bf16.msra.mxu0 0
    %2647 = vmatprep.mubr.bf16.mxu0 0
    %2648 = vmatmul.mubr.bf16.gmra.mrb[0].mxu0 %v2592
    %v2649 = vpop.f32.mrb[0].mxu0
    %v2650 = vadd.f32 0.0, %v2649
    %v2651 = vpop.f32.mrb[0].mxu0
    %v2652 = vpop.f32.mrb[0].mxu0
    %v2653 = vadd.f32 0.0, %v2652
    %v2654 = vpop.f32.mrb[0].mxu0
    %2655 = vmatprep.mubr.bf16.mxu0 0
    %2656 = vmatmul.mubr.bf16.gmra.mrb[0].mxu0 %v2595
    %v2657 = vpop.f32.mrb[0].mxu0
    %v2658 = vadd.f32 0.0, %v2657
    %v2659 = vpop.f32.mrb[0].mxu0
    %v2660 = vpop.f32.mrb[0].mxu0
    %v2661 = vadd.f32 0.0, %v2660
    %v2662 = vpop.f32.mrb[0].mxu0
    %2663 = vmatprep.mubr.bf16.mxu0 0
    %2664 = vmatmul.mubr.bf16.gmra.mrb[0].mxu0 %v2598
    %v2665 = vpop.f32.mrb[0].mxu0
    %v2666 = vadd.f32 0.0, %v2665
    %v2667 = vpop.f32.mrb[0].mxu0
    %v2668 = vpop.f32.mrb[0].mxu0
    %v2669 = vadd.f32 0.0, %v2668
    %v2670 = vpop.f32.mrb[0].mxu0
    %2671 = vmatprep.mubr.bf16.mxu0 0
    %2672 = vmatmul.mubr.bf16.gmra.mrb[0].mxu0 %v2601
    %v2673 = vpop.f32.mrb[0].mxu0
    %v2674 = vadd.f32 0.0, %v2673
    %v2675 = vpop.f32.mrb[0].mxu0
    %v2676 = vpop.f32.mrb[0].mxu0
    %v2677 = vadd.f32 0.0, %v2676
    %v2678 = vpop.f32.mrb[0].mxu0
    %2679 = vmatprep.mubr.bf16.mxu0 0
    %2680 = vmatmul.mubr.bf16.gmra.mrb[0].mxu0 %v2604
    %v2681 = vpop.f32.mrb[0].mxu0
    %v2682 = vadd.f32 0.0, %v2681
    %v2683 = vpop.f32.mrb[0].mxu0
    %v2684 = vpop.f32.mrb[0].mxu0
    %v2685 = vadd.f32 0.0, %v2684
    %v2686 = vpop.f32.mrb[0].mxu0
    %2687 = vmatprep.mubr.bf16.mxu0 0
    %2688 = vmatmul.mubr.bf16.gmra.mrb[0].mxu0 %v2607
    %v2689 = vpop.f32.mrb[0].mxu0
    %v2690 = vadd.f32 0.0, %v2689
    %v2691 = vpop.f32.mrb[0].mxu0
    %v2692 = vpop.f32.mrb[0].mxu0
    %v2693 = vadd.f32 0.0, %v2692
    %v2694 = vpop.f32.mrb[0].mxu0
    %2695 = vmatprep.mubr.bf16.mxu0 0
    %2696 = vmatmul.mubr.bf16.gmra.mrb[0].mxu0 %v2610
    %v2697 = vpop.f32.mrb[0].mxu0
    %v2698 = vadd.f32 0.0, %v2697
    %v2699 = vpop.f32.mrb[0].mxu0
    %v2700 = vpop.f32.mrb[0].mxu0
    %v2701 = vadd.f32 0.0, %v2700
    %v2702 = vpop.f32.mrb[0].mxu0
    %2703 = vmatprep.mubr.bf16.mxu0 0
    %2704 = vmatmul.mubr.bf16.gmra.mrb[0].mxu0 %v2613
    %v2705 = vpop.f32.mrb[0].mxu0
    %v2706 = vadd.f32 0.0, %v2705
    %v2707 = vpop.f32.mrb[0].mxu0
    %v2708 = vpop.f32.mrb[0].mxu0
    %v2709 = vadd.f32 0.0, %v2708
    %v2710 = vpop.f32.mrb[0].mxu0
    %2711 = vdwg.mxu0
    %v2712 = vadd.f32 %v2509, %v2650
    %v2713 = vadd.f32 %v2512, %v2653
    %v2714 = vadd.f32 %v2517, %v2658
    %v2715 = vadd.f32 %v2520, %v2661
    %v2716 = vadd.f32 %v2525, %v2666
    %v2717 = vadd.f32 %v2528, %v2669
    %v2718 = vadd.f32 %v2533, %v2674
    %v2719 = vadd.f32 %v2536, %v2677
    %v2720 = vadd.f32 %v2541, %v2682
    %v2721 = vadd.f32 %v2544, %v2685
    %v2722 = vadd.f32 %v2549, %v2690
    %v2723 = vadd.f32 %v2552, %v2693
    %v2724 = vadd.f32 %v2557, %v2698
    %v2725 = vadd.f32 %v2560, %v2701
    %v2726 = vadd.f32 %v2565, %v2706
    %v2727 = vadd.f32 %v2568, %v2709
    %v2728 = vpack.c.bf16 %v1909, %v1906
    %v2729 = vpack.c.bf16 %v1917, %v1914
    %v2730 = vpack.c.bf16 %v1925, %v1922
    %v2731 = vpack.c.bf16 %v1933, %v1930
    %v2732 = vpack.c.bf16 %v1941, %v1938
    %v2733 = vpack.c.bf16 %v1949, %v1946
    %v2734 = vpack.c.bf16 %v1957, %v1954
    %v2735 = vpack.c.bf16 %v1965, %v1962
    %v2740 = vunpack.c.l.b16 %v1223
    %v2741 = vunpack.c.l.b16 %v1224
    %v2742 = vunpack.c.l.b16 %v1225
    %v2743 = vunpack.c.l.b16 %v1226
    %v2744 = vpack.c.b16 %v2741, %v2740
    %v2745 = vpack.c.b16 %v2743, %v2742
    %v2749 = vsel %vm2316, %v2728, 0
    %v2752 = vsel %vm2316, %v2729, 0
    %v2755 = vsel %vm2316, %v2730, 0
    %v2758 = vsel %vm2316, %v2731, 0
    %v2761 = vsel %vm2316, %v2732, 0
    %v2764 = vsel %vm2316, %v2733, 0
    %v2767 = vsel %vm2316, %v2734, 0
    %v2770 = vsel %vm2316, %v2735, 0
    %2772 = vmatprep.subr.bf16.mxu0 0
    %2773 = vmatpush1.bf16.msra.mxu0 %v2744
    %2774 = vmatprep.subr.bf16.mxu0 0
    %2775 = vmatpush1.bf16.msra.mxu0 %v2745
    %2776 = vmatprep.subr.bf16.mxu0 0
    %2777 = vmatpush1.bf16.msra.mxu0 0
    %2778 = vmatprep.subr.bf16.mxu0 0
    %2779 = vmatpush1.bf16.msra.mxu0 0
    %2780 = vmatprep.subr.bf16.mxu0 0
    %2781 = vmatpush1.bf16.msra.mxu0 0
    %2782 = vmatprep.subr.bf16.mxu0 0
    %2783 = vmatpush1.bf16.msra.mxu0 0
    %2784 = vmatprep.subr.bf16.mxu0 0
    %2785 = vmatpush1.bf16.msra.mxu0 0
    %2786 = vmatprep.subr.bf16.mxu0 0
    %2787 = vmatpush1.bf16.msra.mxu0 0
    %2788 = vmatprep.subr.bf16.mxu0 0
    %2789 = vmatpush1.bf16.msra.mxu0 0
    %2790 = vmatprep.subr.bf16.mxu0 0
    %2791 = vmatpush1.bf16.msra.mxu0 0
    %2792 = vmatprep.subr.bf16.mxu0 0
    %2793 = vmatpush1.bf16.msra.mxu0 0
    %2794 = vmatprep.subr.bf16.mxu0 0
    %2795 = vmatpush1.bf16.msra.mxu0 0
    %2796 = vmatprep.subr.bf16.mxu0 0
    %2797 = vmatpush1.bf16.msra.mxu0 0
    %2798 = vmatprep.subr.bf16.mxu0 0
    %2799 = vmatpush1.bf16.msra.mxu0 0
    %2800 = vmatprep.subr.bf16.mxu0 0
    %2801 = vmatpush1.bf16.msra.mxu0 0
    %2802 = vmatprep.subr.bf16.mxu0 0
    %2803 = vmatpush1.bf16.msra.mxu0 0
    %2804 = vmatprep.mubr.bf16.mxu0 0
    %2805 = vmatmul.mubr.bf16.gmra.mrb[0].mxu0 %v2749
    %v2806 = vpop.f32.mrb[0].mxu0
    %v2807 = vadd.f32 0.0, %v2806
    %v2808 = vpop.f32.mrb[0].mxu0
    %v2809 = vpop.f32.mrb[0].mxu0
    %v2810 = vadd.f32 0.0, %v2809
    %v2811 = vpop.f32.mrb[0].mxu0
    %2812 = vmatprep.mubr.bf16.mxu0 0
    %2813 = vmatmul.mubr.bf16.gmra.mrb[0].mxu0 %v2752
    %v2814 = vpop.f32.mrb[0].mxu0
    %v2815 = vadd.f32 0.0, %v2814
    %v2816 = vpop.f32.mrb[0].mxu0
    %v2817 = vpop.f32.mrb[0].mxu0
    %v2818 = vadd.f32 0.0, %v2817
    %v2819 = vpop.f32.mrb[0].mxu0
    %2820 = vmatprep.mubr.bf16.mxu0 0
    %2821 = vmatmul.mubr.bf16.gmra.mrb[0].mxu0 %v2755
    %v2822 = vpop.f32.mrb[0].mxu0
    %v2823 = vadd.f32 0.0, %v2822
    %v2824 = vpop.f32.mrb[0].mxu0
    %v2825 = vpop.f32.mrb[0].mxu0
    %v2826 = vadd.f32 0.0, %v2825
    %v2827 = vpop.f32.mrb[0].mxu0
    %2828 = vmatprep.mubr.bf16.mxu0 0
    %2829 = vmatmul.mubr.bf16.gmra.mrb[0].mxu0 %v2758
    %v2830 = vpop.f32.mrb[0].mxu0
    %v2831 = vadd.f32 0.0, %v2830
    %v2832 = vpop.f32.mrb[0].mxu0
    %v2833 = vpop.f32.mrb[0].mxu0
    %v2834 = vadd.f32 0.0, %v2833
    %v2835 = vpop.f32.mrb[0].mxu0
    %2836 = vmatprep.mubr.bf16.mxu0 0
    %2837 = vmatmul.mubr.bf16.gmra.mrb[0].mxu0 %v2761
    %v2838 = vpop.f32.mrb[0].mxu0
    %v2839 = vadd.f32 0.0, %v2838
    %v2840 = vpop.f32.mrb[0].mxu0
    %v2841 = vpop.f32.mrb[0].mxu0
    %v2842 = vadd.f32 0.0, %v2841
    %v2843 = vpop.f32.mrb[0].mxu0
    %2844 = vmatprep.mubr.bf16.mxu0 0
    %2845 = vmatmul.mubr.bf16.gmra.mrb[0].mxu0 %v2764
    %v2846 = vpop.f32.mrb[0].mxu0
    %v2847 = vadd.f32 0.0, %v2846
    %v2848 = vpop.f32.mrb[0].mxu0
    %v2849 = vpop.f32.mrb[0].mxu0
    %v2850 = vadd.f32 0.0, %v2849
    %v2851 = vpop.f32.mrb[0].mxu0
    %2852 = vmatprep.mubr.bf16.mxu0 0
    %2853 = vmatmul.mubr.bf16.gmra.mrb[0].mxu0 %v2767
    %v2854 = vpop.f32.mrb[0].mxu0
    %v2855 = vadd.f32 0.0, %v2854
    %v2856 = vpop.f32.mrb[0].mxu0
    %v2857 = vpop.f32.mrb[0].mxu0
    %v2858 = vadd.f32 0.0, %v2857
    %v2859 = vpop.f32.mrb[0].mxu0
    %2860 = vmatprep.mubr.bf16.mxu0 0
    %2861 = vmatmul.mubr.bf16.gmra.mrb[0].mxu0 %v2770
    %v2862 = vpop.f32.mrb[0].mxu0
    %v2863 = vadd.f32 0.0, %v2862
    %v2864 = vpop.f32.mrb[0].mxu0
    %v2865 = vpop.f32.mrb[0].mxu0
    %v2866 = vadd.f32 0.0, %v2865
    %v2867 = vpop.f32.mrb[0].mxu0
    %2868 = vdwg.mxu0
    %v2869 = vadd.f32 %v2712, %v2807
    %v2870 = vadd.f32 %v2713, %v2810
    %v2871 = vadd.f32 %v2714, %v2815
    %v2872 = vadd.f32 %v2715, %v2818
    %v2873 = vadd.f32 %v2716, %v2823
    %v2874 = vadd.f32 %v2717, %v2826
    %v2875 = vadd.f32 %v2718, %v2831
    %v2876 = vadd.f32 %v2719, %v2834
    %v2877 = vadd.f32 %v2720, %v2839
    %v2878 = vadd.f32 %v2721, %v2842
    %v2879 = vadd.f32 %v2722, %v2847
    %v2880 = vadd.f32 %v2723, %v2850
    %v2881 = vadd.f32 %v2724, %v2855
    %v2882 = vadd.f32 %v2725, %v2858
    %v2883 = vadd.f32 %v2726, %v2863
    %v2884 = vadd.f32 %v2727, %v2866
    %v2885 = vpack.c.bf16 %v1973, %v1970
    %v2886 = vpack.c.bf16 %v1981, %v1978
    %v2887 = vpack.c.bf16 %v1989, %v1986
    %v2888 = vpack.c.bf16 %v1997, %v1994
    %v2889 = vpack.c.bf16 %v2005, %v2002
    %v2890 = vpack.c.bf16 %v2013, %v2010
    %v2891 = vpack.c.bf16 %v2021, %v2018
    %v2892 = vpack.c.bf16 %v2029, %v2026
    %v2897 = vunpack.c.l.b16 %v1227
    %v2898 = vunpack.c.l.b16 %v1228
    %v2899 = vunpack.c.l.b16 %v1229
    %v2900 = vunpack.c.l.b16 %v1230
    %v2901 = vpack.c.b16 %v2898, %v2897
    %v2902 = vpack.c.b16 %v2900, %v2899
    %v2906 = vsel %vm2316, %v2885, 0
    %v2909 = vsel %vm2316, %v2886, 0
    %v2912 = vsel %vm2316, %v2887, 0
    %v2915 = vsel %vm2316, %v2888, 0
    %v2918 = vsel %vm2316, %v2889, 0
    %v2921 = vsel %vm2316, %v2890, 0
    %v2924 = vsel %vm2316, %v2891, 0
    %v2927 = vsel %vm2316, %v2892, 0
    %2929 = vmatprep.subr.bf16.mxu0 0
    %2930 = vmatpush1.bf16.msra.mxu0 %v2901
    %2931 = vmatprep.subr.bf16.mxu0 0
    %2932 = vmatpush1.bf16.msra.mxu0 %v2902
    %2933 = vmatprep.subr.bf16.mxu0 0
    %2934 = vmatpush1.bf16.msra.mxu0 0
    %2935 = vmatprep.subr.bf16.mxu0 0
    %2936 = vmatpush1.bf16.msra.mxu0 0
    %2937 = vmatprep.subr.bf16.mxu0 0
    %2938 = vmatpush1.bf16.msra.mxu0 0
    %2939 = vmatprep.subr.bf16.mxu0 0
    %2940 = vmatpush1.bf16.msra.mxu0 0
    %2941 = vmatprep.subr.bf16.mxu0 0
    %2942 = vmatpush1.bf16.msra.mxu0 0
    %2943 = vmatprep.subr.bf16.mxu0 0
    %2944 = vmatpush1.bf16.msra.mxu0 0
    %2945 = vmatprep.subr.bf16.mxu0 0
    %2946 = vmatpush1.bf16.msra.mxu0 0
    %2947 = vmatprep.subr.bf16.mxu0 0
    %2948 = vmatpush1.bf16.msra.mxu0 0
    %2949 = vmatprep.subr.bf16.mxu0 0
    %2950 = vmatpush1.bf16.msra.mxu0 0
    %2951 = vmatprep.subr.bf16.mxu0 0
    %2952 = vmatpush1.bf16.msra.mxu0 0
    %2953 = vmatprep.subr.bf16.mxu0 0
    %2954 = vmatpush1.bf16.msra.mxu0 0
    %2955 = vmatprep.subr.bf16.mxu0 0
    %2956 = vmatpush1.bf16.msra.mxu0 0
    %2957 = vmatprep.subr.bf16.mxu0 0
    %2958 = vmatpush1.bf16.msra.mxu0 0
    %2959 = vmatprep.subr.bf16.mxu0 0
    %2960 = vmatpush1.bf16.msra.mxu0 0
    %2961 = vmatprep.mubr.bf16.mxu0 0
    %2962 = vmatmul.mubr.bf16.gmra.mrb[0].mxu0 %v2906
    %v2963 = vpop.f32.mrb[0].mxu0
    %v2964 = vadd.f32 0.0, %v2963
    %v2965 = vpop.f32.mrb[0].mxu0
    %v2966 = vpop.f32.mrb[0].mxu0
    %v2967 = vadd.f32 0.0, %v2966
    %v2968 = vpop.f32.mrb[0].mxu0
    %2969 = vmatprep.mubr.bf16.mxu0 0
    %2970 = vmatmul.mubr.bf16.gmra.mrb[0].mxu0 %v2909
    %v2971 = vpop.f32.mrb[0].mxu0
    %v2972 = vadd.f32 0.0, %v2971
    %v2973 = vpop.f32.mrb[0].mxu0
    %v2974 = vpop.f32.mrb[0].mxu0
    %v2975 = vadd.f32 0.0, %v2974
    %v2976 = vpop.f32.mrb[0].mxu0
    %2977 = vmatprep.mubr.bf16.mxu0 0
    %2978 = vmatmul.mubr.bf16.gmra.mrb[0].mxu0 %v2912
    %v2979 = vpop.f32.mrb[0].mxu0
    %v2980 = vadd.f32 0.0, %v2979
    %v2981 = vpop.f32.mrb[0].mxu0
    %v2982 = vpop.f32.mrb[0].mxu0
    %v2983 = vadd.f32 0.0, %v2982
    %v2984 = vpop.f32.mrb[0].mxu0
    %2985 = vmatprep.mubr.bf16.mxu0 0
    %2986 = vmatmul.mubr.bf16.gmra.mrb[0].mxu0 %v2915
    %v2987 = vpop.f32.mrb[0].mxu0
    %v2988 = vadd.f32 0.0, %v2987
    %v2989 = vpop.f32.mrb[0].mxu0
    %v2990 = vpop.f32.mrb[0].mxu0
    %v2991 = vadd.f32 0.0, %v2990
    %v2992 = vpop.f32.mrb[0].mxu0
    %2993 = vmatprep.mubr.bf16.mxu0 0
    %2994 = vmatmul.mubr.bf16.gmra.mrb[0].mxu0 %v2918
    %v2995 = vpop.f32.mrb[0].mxu0
    %v2996 = vadd.f32 0.0, %v2995
    %v2997 = vpop.f32.mrb[0].mxu0
    %v2998 = vpop.f32.mrb[0].mxu0
    %v2999 = vadd.f32 0.0, %v2998
    %v3000 = vpop.f32.mrb[0].mxu0
    %3001 = vmatprep.mubr.bf16.mxu0 0
    %3002 = vmatmul.mubr.bf16.gmra.mrb[0].mxu0 %v2921
    %v3003 = vpop.f32.mrb[0].mxu0
    %v3004 = vadd.f32 0.0, %v3003
    %v3005 = vpop.f32.mrb[0].mxu0
    %v3006 = vpop.f32.mrb[0].mxu0
    %v3007 = vadd.f32 0.0, %v3006
    %v3008 = vpop.f32.mrb[0].mxu0
    %3009 = vmatprep.mubr.bf16.mxu0 0
    %3010 = vmatmul.mubr.bf16.gmra.mrb[0].mxu0 %v2924
    %v3011 = vpop.f32.mrb[0].mxu0
    %v3012 = vadd.f32 0.0, %v3011
    %v3013 = vpop.f32.mrb[0].mxu0
    %v3014 = vpop.f32.mrb[0].mxu0
    %v3015 = vadd.f32 0.0, %v3014
    %v3016 = vpop.f32.mrb[0].mxu0
    %3017 = vmatprep.mubr.bf16.mxu0 0
    %3018 = vmatmul.mubr.bf16.gmra.mrb[0].mxu0 %v2927
    %v3019 = vpop.f32.mrb[0].mxu0
    %v3020 = vadd.f32 0.0, %v3019
    %v3021 = vpop.f32.mrb[0].mxu0
    %v3022 = vpop.f32.mrb[0].mxu0
    %v3023 = vadd.f32 0.0, %v3022
    %v3024 = vpop.f32.mrb[0].mxu0
    %3025 = vdwg.mxu0
    %v3026 = vadd.f32 %v2869, %v2964
    %v3027 = vadd.f32 %v2870, %v2967
    %v3028 = vadd.f32 %v2871, %v2972
    %v3029 = vadd.f32 %v2872, %v2975
    %v3030 = vadd.f32 %v2873, %v2980
    %v3031 = vadd.f32 %v2874, %v2983
    %v3032 = vadd.f32 %v2875, %v2988
    %v3033 = vadd.f32 %v2876, %v2991
    %v3034 = vadd.f32 %v2877, %v2996
    %v3035 = vadd.f32 %v2878, %v2999
    %v3036 = vadd.f32 %v2879, %v3004
    %v3037 = vadd.f32 %v2880, %v3007
    %v3038 = vadd.f32 %v2881, %v3012
    %v3039 = vadd.f32 %v2882, %v3015
    %v3040 = vadd.f32 %v2883, %v3020
    %v3041 = vadd.f32 %v2884, %v3023
    %v3042 = vpack.c.bf16 %v2037, %v2034
    %v3043 = vpack.c.bf16 %v2045, %v2042
    %v3044 = vpack.c.bf16 %v2053, %v2050
    %v3045 = vpack.c.bf16 %v2061, %v2058
    %v3046 = vpack.c.bf16 %v2069, %v2066
    %v3047 = vpack.c.bf16 %v2077, %v2074
    %v3048 = vpack.c.bf16 %v2085, %v2082
    %v3049 = vpack.c.bf16 %v2093, %v2090
    %v3054 = vunpack.c.l.b16 %v1231
    %v3055 = vunpack.c.l.b16 %v1232
    %v3056 = vunpack.c.l.b16 %v1233
    %v3057 = vunpack.c.l.b16 %v1234
    %v3058 = vpack.c.b16 %v3055, %v3054
    %v3059 = vpack.c.b16 %v3057, %v3056
    %v3063 = vsel %vm2316, %v3042, 0
    %v3066 = vsel %vm2316, %v3043, 0
    %v3069 = vsel %vm2316, %v3044, 0
    %v3072 = vsel %vm2316, %v3045, 0
    %v3075 = vsel %vm2316, %v3046, 0
    %v3078 = vsel %vm2316, %v3047, 0
    %v3081 = vsel %vm2316, %v3048, 0
    %v3084 = vsel %vm2316, %v3049, 0
    %3086 = vmatprep.subr.bf16.mxu0 0
    %3087 = vmatpush1.bf16.msra.mxu0 %v3058
    %3088 = vmatprep.subr.bf16.mxu0 0
    %3089 = vmatpush1.bf16.msra.mxu0 %v3059
    %3090 = vmatprep.subr.bf16.mxu0 0
    %3091 = vmatpush1.bf16.msra.mxu0 0
    %3092 = vmatprep.subr.bf16.mxu0 0
    %3093 = vmatpush1.bf16.msra.mxu0 0
    %3094 = vmatprep.subr.bf16.mxu0 0
    %3095 = vmatpush1.bf16.msra.mxu0 0
    %3096 = vmatprep.subr.bf16.mxu0 0
    %3097 = vmatpush1.bf16.msra.mxu0 0
    %3098 = vmatprep.subr.bf16.mxu0 0
    %3099 = vmatpush1.bf16.msra.mxu0 0
    %3100 = vmatprep.subr.bf16.mxu0 0
    %3101 = vmatpush1.bf16.msra.mxu0 0
    %3102 = vmatprep.subr.bf16.mxu0 0
    %3103 = vmatpush1.bf16.msra.mxu0 0
    %3104 = vmatprep.subr.bf16.mxu0 0
    %3105 = vmatpush1.bf16.msra.mxu0 0
    %3106 = vmatprep.subr.bf16.mxu0 0
    %3107 = vmatpush1.bf16.msra.mxu0 0
    %3108 = vmatprep.subr.bf16.mxu0 0
    %3109 = vmatpush1.bf16.msra.mxu0 0
    %3110 = vmatprep.subr.bf16.mxu0 0
    %3111 = vmatpush1.bf16.msra.mxu0 0
    %3112 = vmatprep.subr.bf16.mxu0 0
    %3113 = vmatpush1.bf16.msra.mxu0 0
    %3114 = vmatprep.subr.bf16.mxu0 0
    %3115 = vmatpush1.bf16.msra.mxu0 0
    %3116 = vmatprep.subr.bf16.mxu0 0
    %3117 = vmatpush1.bf16.msra.mxu0 0
    %3118 = vmatprep.mubr.bf16.mxu0 0
    %3119 = vmatmul.mubr.bf16.gmra.mrb[0].mxu0 %v3063
    %v3120 = vpop.f32.mrb[0].mxu0
    %v3121 = vadd.f32 0.0, %v3120
    %v3122 = vpop.f32.mrb[0].mxu0
    %v3123 = vpop.f32.mrb[0].mxu0
    %v3124 = vadd.f32 0.0, %v3123
    %v3125 = vpop.f32.mrb[0].mxu0
    %3126 = vmatprep.mubr.bf16.mxu0 0
    %3127 = vmatmul.mubr.bf16.gmra.mrb[0].mxu0 %v3066
    %v3128 = vpop.f32.mrb[0].mxu0
    %v3129 = vadd.f32 0.0, %v3128
    %v3130 = vpop.f32.mrb[0].mxu0
    %v3131 = vpop.f32.mrb[0].mxu0
    %v3132 = vadd.f32 0.0, %v3131
    %v3133 = vpop.f32.mrb[0].mxu0
    %3134 = vmatprep.mubr.bf16.mxu0 0
    %3135 = vmatmul.mubr.bf16.gmra.mrb[0].mxu0 %v3069
    %v3136 = vpop.f32.mrb[0].mxu0
    %v3137 = vadd.f32 0.0, %v3136
    %v3138 = vpop.f32.mrb[0].mxu0
    %v3139 = vpop.f32.mrb[0].mxu0
    %v3140 = vadd.f32 0.0, %v3139
    %v3141 = vpop.f32.mrb[0].mxu0
    %3142 = vmatprep.mubr.bf16.mxu0 0
    %3143 = vmatmul.mubr.bf16.gmra.mrb[0].mxu0 %v3072
    %v3144 = vpop.f32.mrb[0].mxu0
    %v3145 = vadd.f32 0.0, %v3144
    %v3146 = vpop.f32.mrb[0].mxu0
    %v3147 = vpop.f32.mrb[0].mxu0
    %v3148 = vadd.f32 0.0, %v3147
    %v3149 = vpop.f32.mrb[0].mxu0
    %3150 = vmatprep.mubr.bf16.mxu0 0
    %3151 = vmatmul.mubr.bf16.gmra.mrb[0].mxu0 %v3075
    %v3152 = vpop.f32.mrb[0].mxu0
    %v3153 = vadd.f32 0.0, %v3152
    %v3154 = vpop.f32.mrb[0].mxu0
    %v3155 = vpop.f32.mrb[0].mxu0
    %v3156 = vadd.f32 0.0, %v3155
    %v3157 = vpop.f32.mrb[0].mxu0
    %3158 = vmatprep.mubr.bf16.mxu0 0
    %3159 = vmatmul.mubr.bf16.gmra.mrb[0].mxu0 %v3078
    %v3160 = vpop.f32.mrb[0].mxu0
    %v3161 = vadd.f32 0.0, %v3160
    %v3162 = vpop.f32.mrb[0].mxu0
    %v3163 = vpop.f32.mrb[0].mxu0
    %v3164 = vadd.f32 0.0, %v3163
    %v3165 = vpop.f32.mrb[0].mxu0
    %3166 = vmatprep.mubr.bf16.mxu0 0
    %3167 = vmatmul.mubr.bf16.gmra.mrb[0].mxu0 %v3081
    %v3168 = vpop.f32.mrb[0].mxu0
    %v3169 = vadd.f32 0.0, %v3168
    %v3170 = vpop.f32.mrb[0].mxu0
    %v3171 = vpop.f32.mrb[0].mxu0
    %v3172 = vadd.f32 0.0, %v3171
    %v3173 = vpop.f32.mrb[0].mxu0
    %3174 = vmatprep.mubr.bf16.mxu0 0
    %3175 = vmatmul.mubr.bf16.gmra.mrb[0].mxu0 %v3084
    %v3176 = vpop.f32.mrb[0].mxu0
    %v3177 = vadd.f32 0.0, %v3176
    %v3178 = vpop.f32.mrb[0].mxu0
    %v3179 = vpop.f32.mrb[0].mxu0
    %v3180 = vadd.f32 0.0, %v3179
    %v3181 = vpop.f32.mrb[0].mxu0
    %3182 = vdwg.mxu0
    %v3183 = vadd.f32 %v3026, %v3121
    %v3184 = vadd.f32 %v3027, %v3124
    %v3185 = vadd.f32 %v3028, %v3129
    %v3186 = vadd.f32 %v3029, %v3132
    %v3187 = vadd.f32 %v3030, %v3137
    %v3188 = vadd.f32 %v3031, %v3140
    %v3189 = vadd.f32 %v3032, %v3145
    %v3190 = vadd.f32 %v3033, %v3148
    %v3191 = vadd.f32 %v3034, %v3153
    %v3192 = vadd.f32 %v3035, %v3156
    %v3193 = vadd.f32 %v3036, %v3161
    %v3194 = vadd.f32 %v3037, %v3164
    %v3195 = vadd.f32 %v3038, %v3169
    %v3196 = vadd.f32 %v3039, %v3172
    %v3197 = vadd.f32 %v3040, %v3177
    %v3198 = vadd.f32 %v3041, %v3180
    %v3199 = vpack.c.bf16 %v2101, %v2098
    %v3200 = vpack.c.bf16 %v2109, %v2106
    %v3201 = vpack.c.bf16 %v2117, %v2114
    %v3202 = vpack.c.bf16 %v2125, %v2122
    %v3203 = vpack.c.bf16 %v2133, %v2130
    %v3204 = vpack.c.bf16 %v2141, %v2138
    %v3205 = vpack.c.bf16 %v2149, %v2146
    %v3206 = vpack.c.bf16 %v2157, %v2154
    %v3211 = vunpack.c.l.b16 %v1235
    %v3212 = vunpack.c.l.b16 %v1236
    %v3213 = vunpack.c.l.b16 %v1237
    %v3214 = vunpack.c.l.b16 %v1238
    %v3215 = vpack.c.b16 %v3212, %v3211
    %v3216 = vpack.c.b16 %v3214, %v3213
    %v3220 = vsel %vm2316, %v3199, 0
    %v3223 = vsel %vm2316, %v3200, 0
    %v3226 = vsel %vm2316, %v3201, 0
    %v3229 = vsel %vm2316, %v3202, 0
    %v3232 = vsel %vm2316, %v3203, 0
    %v3235 = vsel %vm2316, %v3204, 0
    %v3238 = vsel %vm2316, %v3205, 0
    %v3241 = vsel %vm2316, %v3206, 0
    %3243 = vmatprep.subr.bf16.mxu0 0
    %3244 = vmatpush1.bf16.msra.mxu0 %v3215
    %3245 = vmatprep.subr.bf16.mxu0 0
    %3246 = vmatpush1.bf16.msra.mxu0 %v3216
    %3247 = vmatprep.subr.bf16.mxu0 0
    %3248 = vmatpush1.bf16.msra.mxu0 0
    %3249 = vmatprep.subr.bf16.mxu0 0
    %3250 = vmatpush1.bf16.msra.mxu0 0
    %3251 = vmatprep.subr.bf16.mxu0 0
    %3252 = vmatpush1.bf16.msra.mxu0 0
    %3253 = vmatprep.subr.bf16.mxu0 0
    %3254 = vmatpush1.bf16.msra.mxu0 0
    %3255 = vmatprep.subr.bf16.mxu0 0
    %3256 = vmatpush1.bf16.msra.mxu0 0
    %3257 = vmatprep.subr.bf16.mxu0 0
    %3258 = vmatpush1.bf16.msra.mxu0 0
    %3259 = vmatprep.subr.bf16.mxu0 0
    %3260 = vmatpush1.bf16.msra.mxu0 0
    %3261 = vmatprep.subr.bf16.mxu0 0
    %3262 = vmatpush1.bf16.msra.mxu0 0
    %3263 = vmatprep.subr.bf16.mxu0 0
    %3264 = vmatpush1.bf16.msra.mxu0 0
    %3265 = vmatprep.subr.bf16.mxu0 0
    %3266 = vmatpush1.bf16.msra.mxu0 0
    %3267 = vmatprep.subr.bf16.mxu0 0
    %3268 = vmatpush1.bf16.msra.mxu0 0
    %3269 = vmatprep.subr.bf16.mxu0 0
    %3270 = vmatpush1.bf16.msra.mxu0 0
    %3271 = vmatprep.subr.bf16.mxu0 0
    %3272 = vmatpush1.bf16.msra.mxu0 0
    %3273 = vmatprep.subr.bf16.mxu0 0
    %3274 = vmatpush1.bf16.msra.mxu0 0
    %3275 = vmatprep.mubr.bf16.mxu0 0
    %3276 = vmatmul.mubr.bf16.gmra.mrb[0].mxu0 %v3220
    %v3277 = vpop.f32.mrb[0].mxu0
    %v3278 = vadd.f32 0.0, %v3277
    %v3279 = vpop.f32.mrb[0].mxu0
    %v3280 = vpop.f32.mrb[0].mxu0
    %v3281 = vadd.f32 0.0, %v3280
    %v3282 = vpop.f32.mrb[0].mxu0
    %3283 = vmatprep.mubr.bf16.mxu0 0
    %3284 = vmatmul.mubr.bf16.gmra.mrb[0].mxu0 %v3223
    %v3285 = vpop.f32.mrb[0].mxu0
    %v3286 = vadd.f32 0.0, %v3285
    %v3287 = vpop.f32.mrb[0].mxu0
    %v3288 = vpop.f32.mrb[0].mxu0
    %v3289 = vadd.f32 0.0, %v3288
    %v3290 = vpop.f32.mrb[0].mxu0
    %3291 = vmatprep.mubr.bf16.mxu0 0
    %3292 = vmatmul.mubr.bf16.gmra.mrb[0].mxu0 %v3226
    %v3293 = vpop.f32.mrb[0].mxu0
    %v3294 = vadd.f32 0.0, %v3293
    %v3295 = vpop.f32.mrb[0].mxu0
    %v3296 = vpop.f32.mrb[0].mxu0
    %v3297 = vadd.f32 0.0, %v3296
    %v3298 = vpop.f32.mrb[0].mxu0
    %3299 = vmatprep.mubr.bf16.mxu0 0
    %3300 = vmatmul.mubr.bf16.gmra.mrb[0].mxu0 %v3229
    %v3301 = vpop.f32.mrb[0].mxu0
    %v3302 = vadd.f32 0.0, %v3301
    %v3303 = vpop.f32.mrb[0].mxu0
    %v3304 = vpop.f32.mrb[0].mxu0
    %v3305 = vadd.f32 0.0, %v3304
    %v3306 = vpop.f32.mrb[0].mxu0
    %3307 = vmatprep.mubr.bf16.mxu0 0
    %3308 = vmatmul.mubr.bf16.gmra.mrb[0].mxu0 %v3232
    %v3309 = vpop.f32.mrb[0].mxu0
    %v3310 = vadd.f32 0.0, %v3309
    %v3311 = vpop.f32.mrb[0].mxu0
    %v3312 = vpop.f32.mrb[0].mxu0
    %v3313 = vadd.f32 0.0, %v3312
    %v3314 = vpop.f32.mrb[0].mxu0
    %3315 = vmatprep.mubr.bf16.mxu0 0
    %3316 = vmatmul.mubr.bf16.gmra.mrb[0].mxu0 %v3235
    %v3317 = vpop.f32.mrb[0].mxu0
    %v3318 = vadd.f32 0.0, %v3317
    %v3319 = vpop.f32.mrb[0].mxu0
    %v3320 = vpop.f32.mrb[0].mxu0
    %v3321 = vadd.f32 0.0, %v3320
    %v3322 = vpop.f32.mrb[0].mxu0
    %3323 = vmatprep.mubr.bf16.mxu0 0
    %3324 = vmatmul.mubr.bf16.gmra.mrb[0].mxu0 %v3238
    %v3325 = vpop.f32.mrb[0].mxu0
    %v3326 = vadd.f32 0.0, %v3325
    %v3327 = vpop.f32.mrb[0].mxu0
    %v3328 = vpop.f32.mrb[0].mxu0
    %v3329 = vadd.f32 0.0, %v3328
    %v3330 = vpop.f32.mrb[0].mxu0
    %3331 = vmatprep.mubr.bf16.mxu0 0
    %3332 = vmatmul.mubr.bf16.gmra.mrb[0].mxu0 %v3241
    %v3333 = vpop.f32.mrb[0].mxu0
    %v3334 = vadd.f32 0.0, %v3333
    %v3335 = vpop.f32.mrb[0].mxu0
    %v3336 = vpop.f32.mrb[0].mxu0
    %v3337 = vadd.f32 0.0, %v3336
    %v3338 = vpop.f32.mrb[0].mxu0
    %3339 = vdwg.mxu0
    %v3340 = vadd.f32 %v3183, %v3278
    %v3341 = vadd.f32 %v3184, %v3281
    %v3342 = vadd.f32 %v3185, %v3286
    %v3343 = vadd.f32 %v3186, %v3289
    %v3344 = vadd.f32 %v3187, %v3294
    %v3345 = vadd.f32 %v3188, %v3297
    %v3346 = vadd.f32 %v3189, %v3302
    %v3347 = vadd.f32 %v3190, %v3305
    %v3348 = vadd.f32 %v3191, %v3310
    %v3349 = vadd.f32 %v3192, %v3313
    %v3350 = vadd.f32 %v3193, %v3318
    %v3351 = vadd.f32 %v3194, %v3321
    %v3352 = vadd.f32 %v3195, %v3326
    %v3353 = vadd.f32 %v3196, %v3329
    %v3354 = vadd.f32 %v3197, %v3334
    %v3355 = vadd.f32 %v3198, %v3337
    %v3356 = vpack.c.bf16 %v2165, %v2162
    %v3357 = vpack.c.bf16 %v2173, %v2170
    %v3358 = vpack.c.bf16 %v2181, %v2178
    %v3359 = vpack.c.bf16 %v2189, %v2186
    %v3360 = vpack.c.bf16 %v2197, %v2194
    %v3361 = vpack.c.bf16 %v2205, %v2202
    %v3362 = vpack.c.bf16 %v2213, %v2210
    %v3363 = vpack.c.bf16 %v2221, %v2218
    %v3368 = vunpack.c.l.b16 %v1239
    %v3369 = vunpack.c.l.b16 %v1240
    %v3370 = vunpack.c.l.b16 %v1241
    %v3371 = vunpack.c.l.b16 %v1242
    %v3372 = vpack.c.b16 %v3369, %v3368
    %v3373 = vpack.c.b16 %v3371, %v3370
    %v3377 = vsel %vm2316, %v3356, 0
    %v3380 = vsel %vm2316, %v3357, 0
    %v3383 = vsel %vm2316, %v3358, 0
    %v3386 = vsel %vm2316, %v3359, 0
    %v3389 = vsel %vm2316, %v3360, 0
    %v3392 = vsel %vm2316, %v3361, 0
    %v3395 = vsel %vm2316, %v3362, 0
    %v3398 = vsel %vm2316, %v3363, 0
    %3400 = vmatprep.subr.bf16.mxu0 0
    %3401 = vmatpush1.bf16.msra.mxu0 %v3372
    %3402 = vmatprep.subr.bf16.mxu0 0
    %3403 = vmatpush1.bf16.msra.mxu0 %v3373
    %3404 = vmatprep.subr.bf16.mxu0 0
    %3405 = vmatpush1.bf16.msra.mxu0 0
    %3406 = vmatprep.subr.bf16.mxu0 0
    %3407 = vmatpush1.bf16.msra.mxu0 0
    %3408 = vmatprep.subr.bf16.mxu0 0
    %3409 = vmatpush1.bf16.msra.mxu0 0
    %3410 = vmatprep.subr.bf16.mxu0 0
    %3411 = vmatpush1.bf16.msra.mxu0 0
    %3412 = vmatprep.subr.bf16.mxu0 0
    %3413 = vmatpush1.bf16.msra.mxu0 0
    %3414 = vmatprep.subr.bf16.mxu0 0
    %3415 = vmatpush1.bf16.msra.mxu0 0
    %3416 = vmatprep.subr.bf16.mxu0 0
    %3417 = vmatpush1.bf16.msra.mxu0 0
    %3418 = vmatprep.subr.bf16.mxu0 0
    %3419 = vmatpush1.bf16.msra.mxu0 0
    %3420 = vmatprep.subr.bf16.mxu0 0
    %3421 = vmatpush1.bf16.msra.mxu0 0
    %3422 = vmatprep.subr.bf16.mxu0 0
    %3423 = vmatpush1.bf16.msra.mxu0 0
    %3424 = vmatprep.subr.bf16.mxu0 0
    %3425 = vmatpush1.bf16.msra.mxu0 0
    %3426 = vmatprep.subr.bf16.mxu0 0
    %3427 = vmatpush1.bf16.msra.mxu0 0
    %3428 = vmatprep.subr.bf16.mxu0 0
    %3429 = vmatpush1.bf16.msra.mxu0 0
    %3430 = vmatprep.subr.bf16.mxu0 0
    %3431 = vmatpush1.bf16.msra.mxu0 0
    %3432 = vmatprep.mubr.bf16.mxu0 0
    %3433 = vmatmul.mubr.bf16.gmra.mrb[0].mxu0 %v3377
    %v3434 = vpop.f32.mrb[0].mxu0
    %v3435 = vadd.f32 0.0, %v3434
    %v3436 = vpop.f32.mrb[0].mxu0
    %v3437 = vpop.f32.mrb[0].mxu0
    %v3438 = vadd.f32 0.0, %v3437
    %v3439 = vpop.f32.mrb[0].mxu0
    %3440 = vmatprep.mubr.bf16.mxu0 0
    %3441 = vmatmul.mubr.bf16.gmra.mrb[0].mxu0 %v3380
    %v3442 = vpop.f32.mrb[0].mxu0
    %v3443 = vadd.f32 0.0, %v3442
    %v3444 = vpop.f32.mrb[0].mxu0
    %v3445 = vpop.f32.mrb[0].mxu0
    %v3446 = vadd.f32 0.0, %v3445
    %v3447 = vpop.f32.mrb[0].mxu0
    %3448 = vmatprep.mubr.bf16.mxu0 0
    %3449 = vmatmul.mubr.bf16.gmra.mrb[0].mxu0 %v3383
    %v3450 = vpop.f32.mrb[0].mxu0
    %v3451 = vadd.f32 0.0, %v3450
    %v3452 = vpop.f32.mrb[0].mxu0
    %v3453 = vpop.f32.mrb[0].mxu0
    %v3454 = vadd.f32 0.0, %v3453
    %v3455 = vpop.f32.mrb[0].mxu0
    %3456 = vmatprep.mubr.bf16.mxu0 0
    %3457 = vmatmul.mubr.bf16.gmra.mrb[0].mxu0 %v3386
    %v3458 = vpop.f32.mrb[0].mxu0
    %v3459 = vadd.f32 0.0, %v3458
    %v3460 = vpop.f32.mrb[0].mxu0
    %v3461 = vpop.f32.mrb[0].mxu0
    %v3462 = vadd.f32 0.0, %v3461
    %v3463 = vpop.f32.mrb[0].mxu0
    %3464 = vmatprep.mubr.bf16.mxu0 0
    %3465 = vmatmul.mubr.bf16.gmra.mrb[0].mxu0 %v3389
    %v3466 = vpop.f32.mrb[0].mxu0
    %v3467 = vadd.f32 0.0, %v3466
    %v3468 = vpop.f32.mrb[0].mxu0
    %v3469 = vpop.f32.mrb[0].mxu0
    %v3470 = vadd.f32 0.0, %v3469
    %v3471 = vpop.f32.mrb[0].mxu0
    %3472 = vmatprep.mubr.bf16.mxu0 0
    %3473 = vmatmul.mubr.bf16.gmra.mrb[0].mxu0 %v3392
    %v3474 = vpop.f32.mrb[0].mxu0
    %v3475 = vadd.f32 0.0, %v3474
    %v3476 = vpop.f32.mrb[0].mxu0
    %v3477 = vpop.f32.mrb[0].mxu0
    %v3478 = vadd.f32 0.0, %v3477
    %v3479 = vpop.f32.mrb[0].mxu0
    %3480 = vmatprep.mubr.bf16.mxu0 0
    %3481 = vmatmul.mubr.bf16.gmra.mrb[0].mxu0 %v3395
    %v3482 = vpop.f32.mrb[0].mxu0
    %v3483 = vadd.f32 0.0, %v3482
    %v3484 = vpop.f32.mrb[0].mxu0
    %v3485 = vpop.f32.mrb[0].mxu0
    %v3486 = vadd.f32 0.0, %v3485
    %v3487 = vpop.f32.mrb[0].mxu0
    %3488 = vmatprep.mubr.bf16.mxu0 0
    %3489 = vmatmul.mubr.bf16.gmra.mrb[0].mxu0 %v3398
    %v3490 = vpop.f32.mrb[0].mxu0
    %v3491 = vadd.f32 0.0, %v3490
    %v3492 = vpop.f32.mrb[0].mxu0
    %v3493 = vpop.f32.mrb[0].mxu0
    %v3494 = vadd.f32 0.0, %v3493
    %v3495 = vpop.f32.mrb[0].mxu0
    %3496 = vdwg.mxu0
    %v3497 = vadd.f32 %v3340, %v3435
    %v3498 = vadd.f32 %v3341, %v3438
    %v3499 = vadd.f32 %v3342, %v3443
    %v3500 = vadd.f32 %v3343, %v3446
    %v3501 = vadd.f32 %v3344, %v3451
    %v3502 = vadd.f32 %v3345, %v3454
    %v3503 = vadd.f32 %v3346, %v3459
    %v3504 = vadd.f32 %v3347, %v3462
    %v3505 = vadd.f32 %v3348, %v3467
    %v3506 = vadd.f32 %v3349, %v3470
    %v3507 = vadd.f32 %v3350, %v3475
    %v3508 = vadd.f32 %v3351, %v3478
    %v3509 = vadd.f32 %v3352, %v3483
    %v3510 = vadd.f32 %v3353, %v3486
    %v3511 = vadd.f32 %v3354, %v3491
    %v3512 = vadd.f32 %v3355, %v3494
    %v3513 = vpack.c.bf16 %v2229, %v2226
    %v3514 = vpack.c.bf16 %v2237, %v2234
    %v3515 = vpack.c.bf16 %v2245, %v2242
    %v3516 = vpack.c.bf16 %v2253, %v2250
    %v3517 = vpack.c.bf16 %v2261, %v2258
    %v3518 = vpack.c.bf16 %v2269, %v2266
    %v3519 = vpack.c.bf16 %v2277, %v2274
    %v3520 = vpack.c.bf16 %v2285, %v2282
    %v3525 = vunpack.c.l.b16 %v1243
    %v3526 = vunpack.c.l.b16 %v1244
    %v3527 = vunpack.c.l.b16 %v1245
    %v3528 = vunpack.c.l.b16 %v1246
    %v3529 = vpack.c.b16 %v3526, %v3525
    %v3530 = vpack.c.b16 %v3528, %v3527
    %v3534 = vsel %vm2316, %v3513, 0
    %v3537 = vsel %vm2316, %v3514, 0
    %v3540 = vsel %vm2316, %v3515, 0
    %v3543 = vsel %vm2316, %v3516, 0
    %v3546 = vsel %vm2316, %v3517, 0
    %v3549 = vsel %vm2316, %v3518, 0
    %v3552 = vsel %vm2316, %v3519, 0
    %v3555 = vsel %vm2316, %v3520, 0
    %3557 = vmatprep.subr.bf16.mxu0 0
    %3558 = vmatpush1.bf16.msra.mxu0 %v3529
    %3559 = vmatprep.subr.bf16.mxu0 0
    %3560 = vmatpush1.bf16.msra.mxu0 %v3530
    %3561 = vmatprep.subr.bf16.mxu0 0
    %3562 = vmatpush1.bf16.msra.mxu0 0
    %3563 = vmatprep.subr.bf16.mxu0 0
    %3564 = vmatpush1.bf16.msra.mxu0 0
    %3565 = vmatprep.subr.bf16.mxu0 0
    %3566 = vmatpush1.bf16.msra.mxu0 0
    %3567 = vmatprep.subr.bf16.mxu0 0
    %3568 = vmatpush1.bf16.msra.mxu0 0
    %3569 = vmatprep.subr.bf16.mxu0 0
    %3570 = vmatpush1.bf16.msra.mxu0 0
    %3571 = vmatprep.subr.bf16.mxu0 0
    %3572 = vmatpush1.bf16.msra.mxu0 0
    %3573 = vmatprep.subr.bf16.mxu0 0
    %3574 = vmatpush1.bf16.msra.mxu0 0
    %3575 = vmatprep.subr.bf16.mxu0 0
    %3576 = vmatpush1.bf16.msra.mxu0 0
    %3577 = vmatprep.subr.bf16.mxu0 0
    %3578 = vmatpush1.bf16.msra.mxu0 0
    %3579 = vmatprep.subr.bf16.mxu0 0
    %3580 = vmatpush1.bf16.msra.mxu0 0
    %3581 = vmatprep.subr.bf16.mxu0 0
    %3582 = vmatpush1.bf16.msra.mxu0 0
    %3583 = vmatprep.subr.bf16.mxu0 0
    %3584 = vmatpush1.bf16.msra.mxu0 0
    %3585 = vmatprep.subr.bf16.mxu0 0
    %3586 = vmatpush1.bf16.msra.mxu0 0
    %3587 = vmatprep.subr.bf16.mxu0 0
    %3588 = vmatpush1.bf16.msra.mxu0 0
    %3589 = vmatprep.mubr.bf16.mxu0 0
    %3590 = vmatmul.mubr.bf16.gmra.mrb[0].mxu0 %v3534
    %v3591 = vpop.f32.mrb[0].mxu0
    %v3592 = vadd.f32 0.0, %v3591
    %v3593 = vpop.f32.mrb[0].mxu0
    %v3594 = vpop.f32.mrb[0].mxu0
    %v3595 = vadd.f32 0.0, %v3594
    %v3596 = vpop.f32.mrb[0].mxu0
    %3597 = vmatprep.mubr.bf16.mxu0 0
    %3598 = vmatmul.mubr.bf16.gmra.mrb[0].mxu0 %v3537
    %v3599 = vpop.f32.mrb[0].mxu0
    %v3600 = vadd.f32 0.0, %v3599
    %v3601 = vpop.f32.mrb[0].mxu0
    %v3602 = vpop.f32.mrb[0].mxu0
    %v3603 = vadd.f32 0.0, %v3602
    %v3604 = vpop.f32.mrb[0].mxu0
    %3605 = vmatprep.mubr.bf16.mxu0 0
    %3606 = vmatmul.mubr.bf16.gmra.mrb[0].mxu0 %v3540
    %v3607 = vpop.f32.mrb[0].mxu0
    %v3608 = vadd.f32 0.0, %v3607
    %v3609 = vpop.f32.mrb[0].mxu0
    %v3610 = vpop.f32.mrb[0].mxu0
    %v3611 = vadd.f32 0.0, %v3610
    %v3612 = vpop.f32.mrb[0].mxu0
    %3613 = vmatprep.mubr.bf16.mxu0 0
    %3614 = vmatmul.mubr.bf16.gmra.mrb[0].mxu0 %v3543
    %v3615 = vpop.f32.mrb[0].mxu0
    %v3616 = vadd.f32 0.0, %v3615
    %v3617 = vpop.f32.mrb[0].mxu0
    %v3618 = vpop.f32.mrb[0].mxu0
    %v3619 = vadd.f32 0.0, %v3618
    %v3620 = vpop.f32.mrb[0].mxu0
    %3621 = vmatprep.mubr.bf16.mxu0 0
    %3622 = vmatmul.mubr.bf16.gmra.mrb[0].mxu0 %v3546
    %v3623 = vpop.f32.mrb[0].mxu0
    %v3624 = vadd.f32 0.0, %v3623
    %v3625 = vpop.f32.mrb[0].mxu0
    %v3626 = vpop.f32.mrb[0].mxu0
    %v3627 = vadd.f32 0.0, %v3626
    %v3628 = vpop.f32.mrb[0].mxu0
    %3629 = vmatprep.mubr.bf16.mxu0 0
    %3630 = vmatmul.mubr.bf16.gmra.mrb[0].mxu0 %v3549
    %v3631 = vpop.f32.mrb[0].mxu0
    %v3632 = vadd.f32 0.0, %v3631
    %v3633 = vpop.f32.mrb[0].mxu0
    %v3634 = vpop.f32.mrb[0].mxu0
    %v3635 = vadd.f32 0.0, %v3634
    %v3636 = vpop.f32.mrb[0].mxu0
    %3637 = vmatprep.mubr.bf16.mxu0 0
    %3638 = vmatmul.mubr.bf16.gmra.mrb[0].mxu0 %v3552
    %v3639 = vpop.f32.mrb[0].mxu0
    %v3640 = vadd.f32 0.0, %v3639
    %v3641 = vpop.f32.mrb[0].mxu0
    %v3642 = vpop.f32.mrb[0].mxu0
    %v3643 = vadd.f32 0.0, %v3642
    %v3644 = vpop.f32.mrb[0].mxu0
    %3645 = vmatprep.mubr.bf16.mxu0 0
    %3646 = vmatmul.mubr.bf16.gmra.mrb[0].mxu0 %v3555
    %v3647 = vpop.f32.mrb[0].mxu0
    %v3648 = vadd.f32 0.0, %v3647
    %v3649 = vpop.f32.mrb[0].mxu0
    %v3650 = vpop.f32.mrb[0].mxu0
    %v3651 = vadd.f32 0.0, %v3650
    %v3652 = vpop.f32.mrb[0].mxu0
    %3653 = vdwg.mxu0
    %v3654 = vadd.f32 %v3497, %v3592
    %v3655 = vadd.f32 %v3498, %v3595
    %v3656 = vadd.f32 %v3499, %v3600
    %v3657 = vadd.f32 %v3500, %v3603
    %v3658 = vadd.f32 %v3501, %v3608
    %v3659 = vadd.f32 %v3502, %v3611
    %v3660 = vadd.f32 %v3503, %v3616
    %v3661 = vadd.f32 %v3504, %v3619
    %v3662 = vadd.f32 %v3505, %v3624
    %v3663 = vadd.f32 %v3506, %v3627
    %v3664 = vadd.f32 %v3507, %v3632
    %v3665 = vadd.f32 %v3508, %v3635
    %v3666 = vadd.f32 %v3509, %v3640
    %v3667 = vadd.f32 %v3510, %v3643
    %v3668 = vadd.f32 %v3511, %v3648
    %v3669 = vadd.f32 %v3512, %v3651
    %v3670 = vld [vmem:[%s5] sm:$0x1]
    %v3672 = vlaneseq
    %v3673 = vshrl.u32 %v3672, 7
    %v3674 = vsub.s32 0, %v3673
    %v3675 = vrot.slane %v3670, %v3674
    %v3677 = vadd.f32 %v3654, %v3675
    %v3678 = vadd.f32 %v3655, %v3675
    %v3679 = vadd.f32 %v3656, %v3675
    %v3680 = vadd.f32 %v3657, %v3675
    %v3681 = vadd.f32 %v3658, %v3675
    %v3682 = vadd.f32 %v3659, %v3675
    %v3683 = vadd.f32 %v3660, %v3675
    %v3684 = vadd.f32 %v3661, %v3675
    %v3685 = vadd.f32 %v3662, %v3675
    %v3686 = vadd.f32 %v3663, %v3675
    %v3687 = vadd.f32 %v3664, %v3675
    %v3688 = vadd.f32 %v3665, %v3675
    %v3689 = vadd.f32 %v3666, %v3675
    %v3690 = vadd.f32 %v3667, %v3675
    %v3691 = vadd.f32 %v3668, %v3675
    %v3692 = vadd.f32 %v3669, %v3675
    %v3693 = vmul.f32 %v3677, 0.5
    %v3694 = vmul.f32 %v3678, 0.5
    %v3695 = vmul.f32 %v3679, 0.5
    %v3696 = vmul.f32 %v3680, 0.5
    %v3697 = vmul.f32 %v3681, 0.5
    %v3698 = vmul.f32 %v3682, 0.5
    %v3699 = vmul.f32 %v3683, 0.5
    %v3700 = vmul.f32 %v3684, 0.5
    %v3701 = vmul.f32 %v3685, 0.5
    %v3702 = vmul.f32 %v3686, 0.5
    %v3703 = vmul.f32 %v3687, 0.5
    %v3704 = vmul.f32 %v3688, 0.5
    %v3705 = vmul.f32 %v3689, 0.5
    %v3706 = vmul.f32 %v3690, 0.5
    %v3707 = vmul.f32 %v3691, 0.5
    %v3708 = vmul.f32 %v3692, 0.5
    %v3709 = vmul.f32 %v3677, 0.70710677
    %v3710 = vmul.f32 %v3678, 0.70710677
    %v3711 = vmul.f32 %v3679, 0.70710677
    %v3712 = vmul.f32 %v3680, 0.70710677
    %v3713 = vmul.f32 %v3681, 0.70710677
    %v3714 = vmul.f32 %v3682, 0.70710677
    %v3715 = vmul.f32 %v3683, 0.70710677
    %v3716 = vmul.f32 %v3684, 0.70710677
    %v3717 = vmul.f32 %v3685, 0.70710677
    %v3718 = vmul.f32 %v3686, 0.70710677
    %v3719 = vmul.f32 %v3687, 0.70710677
    %v3720 = vmul.f32 %v3688, 0.70710677
    %v3721 = vmul.f32 %v3689, 0.70710677
    %v3722 = vmul.f32 %v3690, 0.70710677
    %v3723 = vmul.f32 %v3691, 0.70710677
    %v3724 = vmul.f32 %v3692, 0.70710677
    %v3725 = verf.f32.pop %v3709
    %v3726 = verf.f32.pop %v3710
    %v3727 = verf.f32.pop %v3711
    %v3728 = verf.f32.pop %v3712
    %v3729 = verf.f32.pop %v3713
    %v3730 = verf.f32.pop %v3714
    %v3731 = verf.f32.pop %v3715
    %v3732 = verf.f32.pop %v3716
    %v3733 = verf.f32.pop %v3717
    %v3734 = verf.f32.pop %v3718
    %v3735 = verf.f32.pop %v3719
    %v3736 = verf.f32.pop %v3720
    %v3737 = verf.f32.pop %v3721
    %v3738 = verf.f32.pop %v3722
    %v3739 = verf.f32.pop %v3723
    %v3740 = verf.f32.pop %v3724
    %v3741 = vadd.f32 %v3725, 1.0
    %v3742 = vadd.f32 %v3726, 1.0
    %v3743 = vadd.f32 %v3727, 1.0
    %v3744 = vadd.f32 %v3728, 1.0
    %v3745 = vadd.f32 %v3729, 1.0
    %v3746 = vadd.f32 %v3730, 1.0
    %v3747 = vadd.f32 %v3731, 1.0
    %v3748 = vadd.f32 %v3732, 1.0
    %v3749 = vadd.f32 %v3733, 1.0
    %v3750 = vadd.f32 %v3734, 1.0
    %v3751 = vadd.f32 %v3735, 1.0
    %v3752 = vadd.f32 %v3736, 1.0
    %v3753 = vadd.f32 %v3737, 1.0
    %v3754 = vadd.f32 %v3738, 1.0
    %v3755 = vadd.f32 %v3739, 1.0
    %v3756 = vadd.f32 %v3740, 1.0
    %v3757 = vmul.f32 %v3693, %v3741
    %v3758 = vmul.f32 %v3694, %v3742
    %v3759 = vmul.f32 %v3695, %v3743
    %v3760 = vmul.f32 %v3696, %v3744
    %v3761 = vmul.f32 %v3697, %v3745
    %v3762 = vmul.f32 %v3698, %v3746
    %v3763 = vmul.f32 %v3699, %v3747
    %v3764 = vmul.f32 %v3700, %v3748
    %v3765 = vmul.f32 %v3701, %v3749
    %v3766 = vmul.f32 %v3702, %v3750
    %v3767 = vmul.f32 %v3703, %v3751
    %v3768 = vmul.f32 %v3704, %v3752
    %v3769 = vmul.f32 %v3705, %v3753
    %v3770 = vmul.f32 %v3706, %v3754
    %v3771 = vmul.f32 %v3707, %v3755
    %v3772 = vmul.f32 %v3708, %v3756
    %v3773 = vmax.f32 %v3757, %v3761
    %v3774 = vmax.f32 %v3758, %v3762
    %v3775 = vmax.f32 %v3759, %v3763
    %v3776 = vmax.f32 %v3760, %v3764
    %v3777 = vmax.f32 %v3765, %v3769
    %v3778 = vmax.f32 %v3766, %v3770
    %v3779 = vmax.f32 %v3767, %v3771
    %v3780 = vmax.f32 %v3768, %v3772
    %v3781 = vmax.f32 %v3773, %v3777
    %v3782 = vmax.f32 %v3774, %v3778
    %v3783 = vmax.f32 %v3775, %v3779
    %v3784 = vmax.f32 %v3776, %v3780
    %v3785 = vpack.c.bf16 %v3782, %v3781
    %v3786 = vpack.c.bf16 %v3784, %v3783
    %v3787 = vld [vmem:[%s6] sm:$0xf]
    %v3788 = vld [vmem:[%s6 + $0x4] sm:$0xf]
    %v3789 = vld [vmem:[%s6 + $0x8] sm:$0xf]
    %v3790 = vld [vmem:[%s6 + $0xc] sm:$0xf]
    %v3791 = vld [vmem:[%s6 + $0x10] sm:$0xf]
    %v3792 = vld [vmem:[%s6 + $0x14] sm:$0xf]
    %v3793 = vld [vmem:[%s6 + $0x18] sm:$0xf]
    %v3794 = vld [vmem:[%s6 + $0x1c] sm:$0xf]
    %v3795 = vld [vmem:[%s6 + $0x20] sm:$0xf]
    %v3796 = vld [vmem:[%s6 + $0x24] sm:$0xf]
    %v3797 = vld [vmem:[%s6 + $0x28] sm:$0xf]
    %v3798 = vld [vmem:[%s6 + $0x2c] sm:$0xf]
    %v3799 = vld [vmem:[%s6 + $0x30] sm:$0xf]
    %v3800 = vld [vmem:[%s6 + $0x34] sm:$0xf]
    %v3801 = vld [vmem:[%s6 + $0x38] sm:$0xf]
    %v3802 = vld [vmem:[%s6 + $0x3c] sm:$0xf]
    %v3803 = vld [vmem:[%s6 + $0x40] sm:$0xf]
    %v3804 = vld [vmem:[%s6 + $0x44] sm:$0xf]
    %v3805 = vld [vmem:[%s6 + $0x48] sm:$0xf]
    %v3806 = vld [vmem:[%s6 + $0x4c] sm:$0xf]
    %v3807 = vld [vmem:[%s6 + $0x50] sm:$0xf]
    %v3808 = vld [vmem:[%s6 + $0x54] sm:$0xf]
    %v3809 = vld [vmem:[%s6 + $0x58] sm:$0xf]
    %v3810 = vld [vmem:[%s6 + $0x5c] sm:$0xf]
    %v3811 = vld [vmem:[%s6 + $0x60] sm:$0xf]
    %v3812 = vld [vmem:[%s6 + $0x64] sm:$0xf]
    %v3813 = vld [vmem:[%s6 + $0x68] sm:$0xf]
    %v3814 = vld [vmem:[%s6 + $0x6c] sm:$0xf]
    %v3815 = vld [vmem:[%s6 + $0x70] sm:$0xf]
    %v3816 = vld [vmem:[%s6 + $0x74] sm:$0xf]
    %v3817 = vld [vmem:[%s6 + $0x78] sm:$0xf]
    %v3818 = vld [vmem:[%s6 + $0x7c] sm:$0xf]
    %v3819 = vld [vmem:[%s6 + $0x80] sm:$0xf]
    %v3820 = vld [vmem:[%s6 + $0x84] sm:$0xf]
    %v3821 = vld [vmem:[%s6 + $0x88] sm:$0xf]
    %v3822 = vld [vmem:[%s6 + $0x8c] sm:$0xf]
    %v3823 = vld [vmem:[%s7] sm:$0xf]
    %v3824 = vld [vmem:[%s7 + $0x4] sm:$0xf]
    %v3825 = vld [vmem:[%s7 + $0x8] sm:$0xf]
    %v3826 = vld [vmem:[%s7 + $0xc] sm:$0xf]
    %v3827 = vld [vmem:[%s7 + $0x10] sm:$0xf]
    %v3828 = vld [vmem:[%s7 + $0x14] sm:$0xf]
    %v3829 = vld [vmem:[%s7 + $0x18] sm:$0xf]
    %v3830 = vld [vmem:[%s7 + $0x1c] sm:$0xf]
    %v3831 = vld [vmem:[%s7 + $0x20] sm:$0xf]
    %v3832 = vld [vmem:[%s7 + $0x24] sm:$0xf]
    %v3833 = vld [vmem:[%s7 + $0x28] sm:$0xf]
    %v3834 = vld [vmem:[%s7 + $0x2c] sm:$0xf]
    %v3835 = vld [vmem:[%s7 + $0x30] sm:$0xf]
    %v3836 = vld [vmem:[%s7 + $0x34] sm:$0xf]
    %v3837 = vld [vmem:[%s7 + $0x38] sm:$0xf]
    %v3838 = vld [vmem:[%s7 + $0x3c] sm:$0xf]
    %v3839 = vld [vmem:[%s7 + $0x40] sm:$0xf]
    %v3840 = vld [vmem:[%s7 + $0x44] sm:$0xf]
    %v3841 = vld [vmem:[%s7 + $0x48] sm:$0xf]
    %v3842 = vld [vmem:[%s7 + $0x4c] sm:$0xf]
    %v3843 = vld [vmem:[%s7 + $0x50] sm:$0xf]
    %v3844 = vld [vmem:[%s7 + $0x54] sm:$0xf]
    %v3845 = vld [vmem:[%s7 + $0x58] sm:$0xf]
    %v3846 = vld [vmem:[%s7 + $0x5c] sm:$0xf]
    %v3847 = vld [vmem:[%s7 + $0x60] sm:$0xf]
    %v3848 = vld [vmem:[%s7 + $0x64] sm:$0xf]
    %v3849 = vld [vmem:[%s7 + $0x68] sm:$0xf]
    %v3850 = vld [vmem:[%s7 + $0x6c] sm:$0xf]
    %v3851 = vld [vmem:[%s7 + $0x70] sm:$0xf]
    %v3852 = vld [vmem:[%s7 + $0x74] sm:$0xf]
    %v3853 = vld [vmem:[%s7 + $0x78] sm:$0xf]
    %v3854 = vld [vmem:[%s7 + $0x7c] sm:$0xf]
    %v3855 = vld [vmem:[%s7 + $0x80] sm:$0xf]
    %v3856 = vld [vmem:[%s7 + $0x84] sm:$0xf]
    %v3857 = vld [vmem:[%s7 + $0x88] sm:$0xf]
    %v3858 = vld [vmem:[%s7 + $0x8c] sm:$0xf]
    %v3859 = vld [vmem:[%s7 + $0x90] sm:$0xf]
    %v3860 = vld [vmem:[%s7 + $0x94] sm:$0xf]
    %v3861 = vld [vmem:[%s7 + $0x98] sm:$0xf]
    %v3862 = vld [vmem:[%s7 + $0x9c] sm:$0xf]
    %v3863 = vld [vmem:[%s7 + $0xa0] sm:$0xf]
    %v3864 = vld [vmem:[%s7 + $0xa4] sm:$0xf]
    %v3865 = vld [vmem:[%s7 + $0xa8] sm:$0xf]
    %v3866 = vld [vmem:[%s7 + $0xac] sm:$0xf]
    %v3867 = vld [vmem:[%s7 + $0xb0] sm:$0xf]
    %v3868 = vld [vmem:[%s7 + $0xb4] sm:$0xf]
    %v3869 = vld [vmem:[%s7 + $0xb8] sm:$0xf]
    %v3870 = vld [vmem:[%s7 + $0xbc] sm:$0xf]
    %v3871 = vld [vmem:[%s7 + $0xc0] sm:$0xf]
    %v3872 = vld [vmem:[%s7 + $0xc4] sm:$0xf]
    %v3873 = vld [vmem:[%s7 + $0xc8] sm:$0xf]
    %v3874 = vld [vmem:[%s7 + $0xcc] sm:$0xf]
    %v3875 = vld [vmem:[%s7 + $0xd0] sm:$0xf]
    %v3876 = vld [vmem:[%s7 + $0xd4] sm:$0xf]
    %v3877 = vld [vmem:[%s7 + $0xd8] sm:$0xf]
    %v3878 = vld [vmem:[%s7 + $0xdc] sm:$0xf]
    %v3879 = vld [vmem:[%s7 + $0xe0] sm:$0xf]
    %v3880 = vld [vmem:[%s7 + $0xe4] sm:$0xf]
    %v3881 = vld [vmem:[%s7 + $0xe8] sm:$0xf]
    %v3882 = vld [vmem:[%s7 + $0xec] sm:$0xf]
    %v3883 = vld [vmem:[%s7 + $0xf0] sm:$0xf]
    %v3884 = vld [vmem:[%s7 + $0xf4] sm:$0xf]
    %v3885 = vld [vmem:[%s7 + $0xf8] sm:$0xf]
    %v3886 = vld [vmem:[%s7 + $0xfc] sm:$0xf]
    %v3887 = vld [vmem:[%s7 + $0x100] sm:$0xf]
    %v3888 = vld [vmem:[%s7 + $0x104] sm:$0xf]
    %v3889 = vld [vmem:[%s7 + $0x108] sm:$0xf]
    %v3890 = vld [vmem:[%s7 + $0x10c] sm:$0xf]
    %v3891 = vld [vmem:[%s7 + $0x110] sm:$0xf]
    %v3892 = vld [vmem:[%s7 + $0x114] sm:$0xf]
    %v3893 = vld [vmem:[%s7 + $0x118] sm:$0xf]
    %v3894 = vld [vmem:[%s7 + $0x11c] sm:$0xf]
    %v3931 = vunpack.c.l.b16 %v3787
    %v3932 = vunpack.c.l.b16 %v3788
    %v3933 = vunpack.c.l.b16 %v3789
    %v3934 = vunpack.c.l.b16 %v3790
    %v3935 = vunpack.c.l.b16 %v3791
    %v3936 = vunpack.c.l.b16 %v3792
    %v3937 = vunpack.c.l.b16 %v3793
    %v3938 = vunpack.c.l.b16 %v3794
    %v3939 = vunpack.c.l.b16 %v3795
    %v3940 = vunpack.c.l.b16 %v3796
    %v3941 = vunpack.c.l.b16 %v3797
    %v3942 = vunpack.c.l.b16 %v3798
    %v3943 = vunpack.c.l.b16 %v3799
    %v3944 = vunpack.c.l.b16 %v3800
    %v3945 = vunpack.c.l.b16 %v3801
    %v3946 = vunpack.c.l.b16 %v3802
    %v3947 = vunpack.c.l.b16 %v3803
    %v3948 = vunpack.c.l.b16 %v3804
    %v3949 = vunpack.c.l.b16 %v3805
    %v3950 = vunpack.c.l.b16 %v3806
    %v3951 = vunpack.c.l.b16 %v3807
    %v3952 = vunpack.c.l.b16 %v3808
    %v3953 = vunpack.c.l.b16 %v3809
    %v3954 = vunpack.c.l.b16 %v3810
    %v3955 = vunpack.c.l.b16 %v3811
    %v3956 = vunpack.c.l.b16 %v3812
    %v3957 = vunpack.c.l.b16 %v3813
    %v3958 = vunpack.c.l.b16 %v3814
    %v3959 = vunpack.c.l.b16 %v3815
    %v3960 = vunpack.c.l.b16 %v3816
    %v3961 = vunpack.c.l.b16 %v3817
    %v3962 = vunpack.c.l.b16 %v3818
    %v3963 = vunpack.c.l.b16 %v3819
    %v3964 = vunpack.c.l.b16 %v3820
    %v3965 = vunpack.c.l.b16 %v3821
    %v3966 = vunpack.c.l.b16 %v3822
    %v3967 = vpack.c.b16 %v3932, %v3931
    %v3968 = vpack.c.b16 %v3934, %v3933
    %v3969 = vpack.c.b16 %v3936, %v3935
    %v3970 = vpack.c.b16 %v3938, %v3937
    %v3971 = vpack.c.b16 %v3940, %v3939
    %v3972 = vpack.c.b16 %v3942, %v3941
    %v3973 = vpack.c.b16 %v3944, %v3943
    %v3974 = vpack.c.b16 %v3946, %v3945
    %v3975 = vpack.c.b16 %v3948, %v3947
    %v3976 = vpack.c.b16 %v3950, %v3949
    %v3977 = vpack.c.b16 %v3952, %v3951
    %v3978 = vpack.c.b16 %v3954, %v3953
    %v3979 = vpack.c.b16 %v3956, %v3955
    %v3980 = vpack.c.b16 %v3958, %v3957
    %v3981 = vpack.c.b16 %v3960, %v3959
    %v3982 = vpack.c.b16 %v3962, %v3961
    %v3983 = vpack.c.b16 %v3964, %v3963
    %v3984 = vpack.c.b16 %v3966, %v3965
    %v3986 = vsel %vm2316, %v3967, 0
    %v3989 = vsel %vm2316, %v3968, 0
    %v3992 = vsel %vm2316, %v3969, 0
    %v3995 = vsel %vm2316, %v3970, 0
    %v3998 = vsel %vm2316, %v3971, 0
    %v4001 = vsel %vm2316, %v3972, 0
    %v4004 = vsel %vm2316, %v3973, 0
    %v4007 = vsel %vm2316, %v3974, 0
    %v4010 = vsel %vm2316, %v3975, 0
    %v4013 = vsel %vm2316, %v3976, 0
    %v4016 = vsel %vm2316, %v3977, 0
    %v4019 = vsel %vm2316, %v3978, 0
    %v4022 = vsel %vm2316, %v3979, 0
    %v4025 = vsel %vm2316, %v3980, 0
    %v4028 = vsel %vm2316, %v3981, 0
    %v4031 = vsel %vm2316, %v3982, 0
    %v4034 = vsel %vm2316, %v3983, 0
    %v4037 = vsel %vm2316, %v3984, 0
    %4039 = vmatprep.subr.bf16.mxu0 0
    %4040 = vmatpush1.bf16.msra.mxu0 %v3785
    %4041 = vmatprep.subr.bf16.mxu0 0
    %4042 = vmatpush1.bf16.msra.mxu0 %v3786
    %4043 = vmatprep.subr.bf16.mxu0 0
    %4044 = vmatpush1.bf16.msra.mxu0 0
    %4045 = vmatprep.subr.bf16.mxu0 0
    %4046 = vmatpush1.bf16.msra.mxu0 0
    %4047 = vmatprep.subr.bf16.mxu0 0
    %4048 = vmatpush1.bf16.msra.mxu0 0
    %4049 = vmatprep.subr.bf16.mxu0 0
    %4050 = vmatpush1.bf16.msra.mxu0 0
    %4051 = vmatprep.subr.bf16.mxu0 0
    %4052 = vmatpush1.bf16.msra.mxu0 0
    %4053 = vmatprep.subr.bf16.mxu0 0
    %4054 = vmatpush1.bf16.msra.mxu0 0
    %4055 = vmatprep.subr.bf16.mxu0 0
    %4056 = vmatpush1.bf16.msra.mxu0 0
    %4057 = vmatprep.subr.bf16.mxu0 0
    %4058 = vmatpush1.bf16.msra.mxu0 0
    %4059 = vmatprep.subr.bf16.mxu0 0
    %4060 = vmatpush1.bf16.msra.mxu0 0
    %4061 = vmatprep.subr.bf16.mxu0 0
    %4062 = vmatpush1.bf16.msra.mxu0 0
    %4063 = vmatprep.subr.bf16.mxu0 0
    %4064 = vmatpush1.bf16.msra.mxu0 0
    %4065 = vmatprep.subr.bf16.mxu0 0
    %4066 = vmatpush1.bf16.msra.mxu0 0
    %4067 = vmatprep.subr.bf16.mxu0 0
    %4068 = vmatpush1.bf16.msra.mxu0 0
    %4069 = vmatprep.subr.bf16.mxu0 0
    %4070 = vmatpush1.bf16.msra.mxu0 0
    %4071 = vmatprep.mubr.bf16.mxu0 0
    %4072 = vmatmul.mubr.bf16.gmra.mrb[0].mxu0 %v3986
    %v4073 = vpop.f32.mrb[0].mxu0
    %v4074 = vadd.f32 0.0, %v4073
    %v4075 = vpop.f32.mrb[0].mxu0
    %v4076 = vpop.f32.mrb[0].mxu0
    %v4077 = vadd.f32 0.0, %v4076
    %v4078 = vpop.f32.mrb[0].mxu0
    %4079 = vmatprep.mubr.bf16.mxu0 0
    %4080 = vmatmul.mubr.bf16.gmra.mrb[0].mxu0 %v3989
    %v4081 = vpop.f32.mrb[0].mxu0
    %v4082 = vadd.f32 0.0, %v4081
    %v4083 = vpop.f32.mrb[0].mxu0
    %v4084 = vpop.f32.mrb[0].mxu0
    %v4085 = vadd.f32 0.0, %v4084
    %v4086 = vpop.f32.mrb[0].mxu0
    %4087 = vmatprep.mubr.bf16.mxu0 0
    %4088 = vmatmul.mubr.bf16.gmra.mrb[0].mxu0 %v3992
    %v4089 = vpop.f32.mrb[0].mxu0
    %v4090 = vadd.f32 0.0, %v4089
    %v4091 = vpop.f32.mrb[0].mxu0
    %v4092 = vpop.f32.mrb[0].mxu0
    %v4093 = vadd.f32 0.0, %v4092
    %v4094 = vpop.f32.mrb[0].mxu0
    %4095 = vmatprep.mubr.bf16.mxu0 0
    %4096 = vmatmul.mubr.bf16.gmra.mrb[0].mxu0 %v3995
    %v4097 = vpop.f32.mrb[0].mxu0
    %v4098 = vadd.f32 0.0, %v4097
    %v4099 = vpop.f32.mrb[0].mxu0
    %v4100 = vpop.f32.mrb[0].mxu0
    %v4101 = vadd.f32 0.0, %v4100
    %v4102 = vpop.f32.mrb[0].mxu0
    %4103 = vmatprep.mubr.bf16.mxu0 0
    %4104 = vmatmul.mubr.bf16.gmra.mrb[0].mxu0 %v3998
    %v4105 = vpop.f32.mrb[0].mxu0
    %v4106 = vadd.f32 0.0, %v4105
    %v4107 = vpop.f32.mrb[0].mxu0
    %v4108 = vpop.f32.mrb[0].mxu0
    %v4109 = vadd.f32 0.0, %v4108
    %v4110 = vpop.f32.mrb[0].mxu0
    %4111 = vmatprep.mubr.bf16.mxu0 0
    %4112 = vmatmul.mubr.bf16.gmra.mrb[0].mxu0 %v4001
    %v4113 = vpop.f32.mrb[0].mxu0
    %v4114 = vadd.f32 0.0, %v4113
    %v4115 = vpop.f32.mrb[0].mxu0
    %v4116 = vpop.f32.mrb[0].mxu0
    %v4117 = vadd.f32 0.0, %v4116
    %v4118 = vpop.f32.mrb[0].mxu0
    %4119 = vmatprep.mubr.bf16.mxu0 0
    %4120 = vmatmul.mubr.bf16.gmra.mrb[0].mxu0 %v4004
    %v4121 = vpop.f32.mrb[0].mxu0
    %v4122 = vadd.f32 0.0, %v4121
    %v4123 = vpop.f32.mrb[0].mxu0
    %v4124 = vpop.f32.mrb[0].mxu0
    %v4125 = vadd.f32 0.0, %v4124
    %v4126 = vpop.f32.mrb[0].mxu0
    %4127 = vmatprep.mubr.bf16.mxu0 0
    %4128 = vmatmul.mubr.bf16.gmra.mrb[0].mxu0 %v4007
    %v4129 = vpop.f32.mrb[0].mxu0
    %v4130 = vadd.f32 0.0, %v4129
    %v4131 = vpop.f32.mrb[0].mxu0
    %v4132 = vpop.f32.mrb[0].mxu0
    %v4133 = vadd.f32 0.0, %v4132
    %v4134 = vpop.f32.mrb[0].mxu0
    %4135 = vmatprep.mubr.bf16.mxu0 0
    %4136 = vmatmul.mubr.bf16.gmra.mrb[0].mxu0 %v4010
    %v4137 = vpop.f32.mrb[0].mxu0
    %v4138 = vadd.f32 0.0, %v4137
    %v4139 = vpop.f32.mrb[0].mxu0
    %v4140 = vpop.f32.mrb[0].mxu0
    %v4141 = vadd.f32 0.0, %v4140
    %v4142 = vpop.f32.mrb[0].mxu0
    %4143 = vmatprep.mubr.bf16.mxu0 0
    %4144 = vmatmul.mubr.bf16.gmra.mrb[0].mxu0 %v4013
    %v4145 = vpop.f32.mrb[0].mxu0
    %v4146 = vadd.f32 0.0, %v4145
    %v4147 = vpop.f32.mrb[0].mxu0
    %v4148 = vpop.f32.mrb[0].mxu0
    %v4149 = vadd.f32 0.0, %v4148
    %v4150 = vpop.f32.mrb[0].mxu0
    %4151 = vmatprep.mubr.bf16.mxu0 0
    %4152 = vmatmul.mubr.bf16.gmra.mrb[0].mxu0 %v4016
    %v4153 = vpop.f32.mrb[0].mxu0
    %v4154 = vadd.f32 0.0, %v4153
    %v4155 = vpop.f32.mrb[0].mxu0
    %v4156 = vpop.f32.mrb[0].mxu0
    %v4157 = vadd.f32 0.0, %v4156
    %v4158 = vpop.f32.mrb[0].mxu0
    %4159 = vmatprep.mubr.bf16.mxu0 0
    %4160 = vmatmul.mubr.bf16.gmra.mrb[0].mxu0 %v4019
    %v4161 = vpop.f32.mrb[0].mxu0
    %v4162 = vadd.f32 0.0, %v4161
    %v4163 = vpop.f32.mrb[0].mxu0
    %v4164 = vpop.f32.mrb[0].mxu0
    %v4165 = vadd.f32 0.0, %v4164
    %v4166 = vpop.f32.mrb[0].mxu0
    %4167 = vmatprep.mubr.bf16.mxu0 0
    %4168 = vmatmul.mubr.bf16.gmra.mrb[0].mxu0 %v4022
    %v4169 = vpop.f32.mrb[0].mxu0
    %v4170 = vadd.f32 0.0, %v4169
    %v4171 = vpop.f32.mrb[0].mxu0
    %v4172 = vpop.f32.mrb[0].mxu0
    %v4173 = vadd.f32 0.0, %v4172
    %v4174 = vpop.f32.mrb[0].mxu0
    %4175 = vmatprep.mubr.bf16.mxu0 0
    %4176 = vmatmul.mubr.bf16.gmra.mrb[0].mxu0 %v4025
    %v4177 = vpop.f32.mrb[0].mxu0
    %v4178 = vadd.f32 0.0, %v4177
    %v4179 = vpop.f32.mrb[0].mxu0
    %v4180 = vpop.f32.mrb[0].mxu0
    %v4181 = vadd.f32 0.0, %v4180
    %v4182 = vpop.f32.mrb[0].mxu0
    %4183 = vmatprep.mubr.bf16.mxu0 0
    %4184 = vmatmul.mubr.bf16.gmra.mrb[0].mxu0 %v4028
    %v4185 = vpop.f32.mrb[0].mxu0
    %v4186 = vadd.f32 0.0, %v4185
    %v4187 = vpop.f32.mrb[0].mxu0
    %v4188 = vpop.f32.mrb[0].mxu0
    %v4189 = vadd.f32 0.0, %v4188
    %v4190 = vpop.f32.mrb[0].mxu0
    %4191 = vmatprep.mubr.bf16.mxu0 0
    %4192 = vmatmul.mubr.bf16.gmra.mrb[0].mxu0 %v4031
    %v4193 = vpop.f32.mrb[0].mxu0
    %v4194 = vadd.f32 0.0, %v4193
    %v4195 = vpop.f32.mrb[0].mxu0
    %v4196 = vpop.f32.mrb[0].mxu0
    %v4197 = vadd.f32 0.0, %v4196
    %v4198 = vpop.f32.mrb[0].mxu0
    %4199 = vmatprep.mubr.bf16.mxu0 0
    %4200 = vmatmul.mubr.bf16.gmra.mrb[0].mxu0 %v4034
    %v4201 = vpop.f32.mrb[0].mxu0
    %v4202 = vadd.f32 0.0, %v4201
    %v4203 = vpop.f32.mrb[0].mxu0
    %v4204 = vpop.f32.mrb[0].mxu0
    %v4205 = vadd.f32 0.0, %v4204
    %v4206 = vpop.f32.mrb[0].mxu0
    %4207 = vmatprep.mubr.bf16.mxu0 0
    %4208 = vmatmul.mubr.bf16.gmra.mrb[0].mxu0 %v4037
    %v4209 = vpop.f32.mrb[0].mxu0
    %v4210 = vadd.f32 0.0, %v4209
    %v4211 = vpop.f32.mrb[0].mxu0
    %v4212 = vpop.f32.mrb[0].mxu0
    %v4213 = vadd.f32 0.0, %v4212
    %v4214 = vpop.f32.mrb[0].mxu0
    %4215 = vdwg.mxu0
    %v4216 = vpack.c.bf16 %v4077, %v4074
    %v4217 = vpack.c.bf16 %v4085, %v4082
    %v4218 = vpack.c.bf16 %v4093, %v4090
    %v4219 = vpack.c.bf16 %v4101, %v4098
    %v4228 = vunpack.c.l.b16 %v3831
    %v4229 = vunpack.c.l.b16 %v3832
    %v4230 = vunpack.c.l.b16 %v3833
    %v4231 = vunpack.c.l.b16 %v3834
    %v4232 = vunpack.c.l.b16 %v3835
    %v4233 = vunpack.c.l.b16 %v3836
    %v4234 = vunpack.c.l.b16 %v3837
    %v4235 = vunpack.c.l.b16 %v3838
    %v4236 = vpack.c.b16 %v4229, %v4228
    %v4237 = vpack.c.b16 %v4231, %v4230
    %v4238 = vpack.c.b16 %v4233, %v4232
    %v4239 = vpack.c.b16 %v4235, %v4234
    %vm4244 = vcmask 523264
    %v4246 = vsel %vm4244, %v4218, 0
    %v4249 = vsel %vm4244, %v4219, 0
    %4251 = vmatprep.subr.bf16.mxu0 0
    %4252 = vmatpush1.bf16.msra.mxu0 %v4236
    %4253 = vmatprep.subr.bf16.mxu0 0
    %4254 = vmatpush1.bf16.msra.mxu0 %v4237
    %4255 = vmatprep.subr.bf16.mxu0 0
    %4256 = vmatpush1.bf16.msra.mxu0 %v4238
    %4257 = vmatprep.subr.bf16.mxu0 0
    %4258 = vmatpush1.bf16.msra.mxu0 %v4239
    %4259 = vmatprep.subr.bf16.mxu0 0
    %4260 = vmatpush1.bf16.msra.mxu0 0
    %4261 = vmatprep.subr.bf16.mxu0 0
    %4262 = vmatpush1.bf16.msra.mxu0 0
    %4263 = vmatprep.subr.bf16.mxu0 0
    %4264 = vmatpush1.bf16.msra.mxu0 0
    %4265 = vmatprep.subr.bf16.mxu0 0
    %4266 = vmatpush1.bf16.msra.mxu0 0
    %4267 = vmatprep.subr.bf16.mxu0 0
    %4268 = vmatpush1.bf16.msra.mxu0 0
    %4269 = vmatprep.subr.bf16.mxu0 0
    %4270 = vmatpush1.bf16.msra.mxu0 0
    %4271 = vmatprep.subr.bf16.mxu0 0
    %4272 = vmatpush1.bf16.msra.mxu0 0
    %4273 = vmatprep.subr.bf16.mxu0 0
    %4274 = vmatpush1.bf16.msra.mxu0 0
    %4275 = vmatprep.subr.bf16.mxu0 0
    %4276 = vmatpush1.bf16.msra.mxu0 0
    %4277 = vmatprep.subr.bf16.mxu0 0
    %4278 = vmatpush1.bf16.msra.mxu0 0
    %4279 = vmatprep.subr.bf16.mxu0 0
    %4280 = vmatpush1.bf16.msra.mxu0 0
    %4281 = vmatprep.subr.bf16.mxu0 0
    %4282 = vmatpush1.bf16.msra.mxu0 0
    %4283 = vmatprep.mubr.bf16.mxu0 0
    %4284 = vmatmul.mubr.bf16.gmra.mrb[0].mxu0 %v4246
    %v4285 = vpop.f32.mrb[0].mxu0
    %v4286 = vadd.f32 0.0, %v4285
    %v4287 = vpop.f32.mrb[0].mxu0
    %v4288 = vpop.f32.mrb[0].mxu0
    %v4289 = vadd.f32 0.0, %v4288
    %v4290 = vpop.f32.mrb[0].mxu0
    %4291 = vmatprep.mubr.bf16.mxu0 0
    %4292 = vmatmul.mubr.bf16.gmra.mrb[0].mxu0 %v4249
    %v4293 = vpop.f32.mrb[0].mxu0
    %v4294 = vadd.f32 0.0, %v4293
    %v4295 = vpop.f32.mrb[0].mxu0
    %v4296 = vpop.f32.mrb[0].mxu0
    %v4297 = vadd.f32 0.0, %v4296
    %v4298 = vpop.f32.mrb[0].mxu0
    %4299 = vdwg.mxu0
    %v4308 = vunpack.c.l.b16 %v3823
    %v4309 = vunpack.c.l.b16 %v3824
    %v4310 = vunpack.c.l.b16 %v3825
    %v4311 = vunpack.c.l.b16 %v3826
    %v4312 = vunpack.c.l.b16 %v3827
    %v4313 = vunpack.c.l.b16 %v3828
    %v4314 = vunpack.c.l.b16 %v3829
    %v4315 = vunpack.c.l.b16 %v3830
    %v4316 = vpack.c.b16 %v4309, %v4308
    %v4317 = vpack.c.b16 %v4311, %v4310
    %v4318 = vpack.c.b16 %v4313, %v4312
    %v4319 = vpack.c.b16 %v4315, %v4314
    %v4325 = vsel %vm4244, %v4216, 0
    %v4328 = vsel %vm4244, %v4217, 0
    %4330 = vmatprep.subr.bf16.mxu0 0
    %4331 = vmatpush1.bf16.msra.mxu0 %v4316
    %4332 = vmatprep.subr.bf16.mxu0 0
    %4333 = vmatpush1.bf16.msra.mxu0 %v4317
    %4334 = vmatprep.subr.bf16.mxu0 0
    %4335 = vmatpush1.bf16.msra.mxu0 %v4318
    %4336 = vmatprep.subr.bf16.mxu0 0
    %4337 = vmatpush1.bf16.msra.mxu0 %v4319
    %4338 = vmatprep.subr.bf16.mxu0 0
    %4339 = vmatpush1.bf16.msra.mxu0 0
    %4340 = vmatprep.subr.bf16.mxu0 0
    %4341 = vmatpush1.bf16.msra.mxu0 0
    %4342 = vmatprep.subr.bf16.mxu0 0
    %4343 = vmatpush1.bf16.msra.mxu0 0
    %4344 = vmatprep.subr.bf16.mxu0 0
    %4345 = vmatpush1.bf16.msra.mxu0 0
    %4346 = vmatprep.subr.bf16.mxu0 0
    %4347 = vmatpush1.bf16.msra.mxu0 0
    %4348 = vmatprep.subr.bf16.mxu0 0
    %4349 = vmatpush1.bf16.msra.mxu0 0
    %4350 = vmatprep.subr.bf16.mxu0 0
    %4351 = vmatpush1.bf16.msra.mxu0 0
    %4352 = vmatprep.subr.bf16.mxu0 0
    %4353 = vmatpush1.bf16.msra.mxu0 0
    %4354 = vmatprep.subr.bf16.mxu0 0
    %4355 = vmatpush1.bf16.msra.mxu0 0
    %4356 = vmatprep.subr.bf16.mxu0 0
    %4357 = vmatpush1.bf16.msra.mxu0 0
    %4358 = vmatprep.subr.bf16.mxu0 0
    %4359 = vmatpush1.bf16.msra.mxu0 0
    %4360 = vmatprep.subr.bf16.mxu0 0
    %4361 = vmatpush1.bf16.msra.mxu0 0
    %4362 = vmatprep.mubr.bf16.mxu0 0
    %4363 = vmatmul.mubr.bf16.gmra.mrb[0].mxu0 %v4325
    %v4364 = vpop.f32.mrb[0].mxu0
    %v4365 = vadd.f32 %v4286, %v4364
    %v4366 = vpop.f32.mrb[0].mxu0
    %v4367 = vpop.f32.mrb[0].mxu0
    %v4368 = vadd.f32 %v4289, %v4367
    %v4369 = vpop.f32.mrb[0].mxu0
    %4370 = vmatprep.mubr.bf16.mxu0 0
    %4371 = vmatmul.mubr.bf16.gmra.mrb[0].mxu0 %v4328
    %v4372 = vpop.f32.mrb[0].mxu0
    %v4373 = vadd.f32 %v4294, %v4372
    %v4374 = vpop.f32.mrb[0].mxu0
    %v4375 = vpop.f32.mrb[0].mxu0
    %v4376 = vadd.f32 %v4297, %v4375
    %v4377 = vpop.f32.mrb[0].mxu0
    %4378 = vdwg.mxu0
    %v4379 = vpack.c.bf16 %v4109, %v4106
    %v4380 = vpack.c.bf16 %v4117, %v4114
    %v4389 = vunpack.c.l.b16 %v3839
    %v4390 = vunpack.c.l.b16 %v3840
    %v4391 = vunpack.c.l.b16 %v3841
    %v4392 = vunpack.c.l.b16 %v3842
    %v4393 = vunpack.c.l.b16 %v3843
    %v4394 = vunpack.c.l.b16 %v3844
    %v4395 = vunpack.c.l.b16 %v3845
    %v4396 = vunpack.c.l.b16 %v3846
    %v4397 = vpack.c.b16 %v4390, %v4389
    %v4398 = vpack.c.b16 %v4392, %v4391
    %v4399 = vpack.c.b16 %v4394, %v4393
    %v4400 = vpack.c.b16 %v4396, %v4395
    %v4406 = vsel %vm4244, %v4379, 0
    %v4409 = vsel %vm4244, %v4380, 0
    %4411 = vmatprep.subr.bf16.mxu0 0
    %4412 = vmatpush1.bf16.msra.mxu0 %v4397
    %4413 = vmatprep.subr.bf16.mxu0 0
    %4414 = vmatpush1.bf16.msra.mxu0 %v4398
    %4415 = vmatprep.subr.bf16.mxu0 0
    %4416 = vmatpush1.bf16.msra.mxu0 %v4399
    %4417 = vmatprep.subr.bf16.mxu0 0
    %4418 = vmatpush1.bf16.msra.mxu0 %v4400
    %4419 = vmatprep.subr.bf16.mxu0 0
    %4420 = vmatpush1.bf16.msra.mxu0 0
    %4421 = vmatprep.subr.bf16.mxu0 0
    %4422 = vmatpush1.bf16.msra.mxu0 0
    %4423 = vmatprep.subr.bf16.mxu0 0
    %4424 = vmatpush1.bf16.msra.mxu0 0
    %4425 = vmatprep.subr.bf16.mxu0 0
    %4426 = vmatpush1.bf16.msra.mxu0 0
    %4427 = vmatprep.subr.bf16.mxu0 0
    %4428 = vmatpush1.bf16.msra.mxu0 0
    %4429 = vmatprep.subr.bf16.mxu0 0
    %4430 = vmatpush1.bf16.msra.mxu0 0
    %4431 = vmatprep.subr.bf16.mxu0 0
    %4432 = vmatpush1.bf16.msra.mxu0 0
    %4433 = vmatprep.subr.bf16.mxu0 0
    %4434 = vmatpush1.bf16.msra.mxu0 0
    %4435 = vmatprep.subr.bf16.mxu0 0
    %4436 = vmatpush1.bf16.msra.mxu0 0
    %4437 = vmatprep.subr.bf16.mxu0 0
    %4438 = vmatpush1.bf16.msra.mxu0 0
    %4439 = vmatprep.subr.bf16.mxu0 0
    %4440 = vmatpush1.bf16.msra.mxu0 0
    %4441 = vmatprep.subr.bf16.mxu0 0
    %4442 = vmatpush1.bf16.msra.mxu0 0
    %4443 = vmatprep.mubr.bf16.mxu0 0
    %4444 = vmatmul.mubr.bf16.gmra.mrb[0].mxu0 %v4406
    %v4445 = vpop.f32.mrb[0].mxu0
    %v4446 = vadd.f32 0.0, %v4445
    %v4447 = vpop.f32.mrb[0].mxu0
    %v4448 = vpop.f32.mrb[0].mxu0
    %v4449 = vadd.f32 0.0, %v4448
    %v4450 = vpop.f32.mrb[0].mxu0
    %4451 = vmatprep.mubr.bf16.mxu0 0
    %4452 = vmatmul.mubr.bf16.gmra.mrb[0].mxu0 %v4409
    %v4453 = vpop.f32.mrb[0].mxu0
    %v4454 = vadd.f32 0.0, %v4453
    %v4455 = vpop.f32.mrb[0].mxu0
    %v4456 = vpop.f32.mrb[0].mxu0
    %v4457 = vadd.f32 0.0, %v4456
    %v4458 = vpop.f32.mrb[0].mxu0
    %4459 = vdwg.mxu0
    %v4460 = vadd.f32 %v4365, %v4446
    %v4461 = vadd.f32 %v4368, %v4449
    %v4462 = vadd.f32 %v4373, %v4454
    %v4463 = vadd.f32 %v4376, %v4457
    %v4464 = vpack.c.bf16 %v4125, %v4122
    %v4465 = vpack.c.bf16 %v4133, %v4130
    %v4474 = vunpack.c.l.b16 %v3847
    %v4475 = vunpack.c.l.b16 %v3848
    %v4476 = vunpack.c.l.b16 %v3849
    %v4477 = vunpack.c.l.b16 %v3850
    %v4478 = vunpack.c.l.b16 %v3851
    %v4479 = vunpack.c.l.b16 %v3852
    %v4480 = vunpack.c.l.b16 %v3853
    %v4481 = vunpack.c.l.b16 %v3854
    %v4482 = vpack.c.b16 %v4475, %v4474
    %v4483 = vpack.c.b16 %v4477, %v4476
    %v4484 = vpack.c.b16 %v4479, %v4478
    %v4485 = vpack.c.b16 %v4481, %v4480
    %v4491 = vsel %vm4244, %v4464, 0
    %v4494 = vsel %vm4244, %v4465, 0
    %4496 = vmatprep.subr.bf16.mxu0 0
    %4497 = vmatpush1.bf16.msra.mxu0 %v4482
    %4498 = vmatprep.subr.bf16.mxu0 0
    %4499 = vmatpush1.bf16.msra.mxu0 %v4483
    %4500 = vmatprep.subr.bf16.mxu0 0
    %4501 = vmatpush1.bf16.msra.mxu0 %v4484
    %4502 = vmatprep.subr.bf16.mxu0 0
    %4503 = vmatpush1.bf16.msra.mxu0 %v4485
    %4504 = vmatprep.subr.bf16.mxu0 0
    %4505 = vmatpush1.bf16.msra.mxu0 0
    %4506 = vmatprep.subr.bf16.mxu0 0
    %4507 = vmatpush1.bf16.msra.mxu0 0
    %4508 = vmatprep.subr.bf16.mxu0 0
    %4509 = vmatpush1.bf16.msra.mxu0 0
    %4510 = vmatprep.subr.bf16.mxu0 0
    %4511 = vmatpush1.bf16.msra.mxu0 0
    %4512 = vmatprep.subr.bf16.mxu0 0
    %4513 = vmatpush1.bf16.msra.mxu0 0
    %4514 = vmatprep.subr.bf16.mxu0 0
    %4515 = vmatpush1.bf16.msra.mxu0 0
    %4516 = vmatprep.subr.bf16.mxu0 0
    %4517 = vmatpush1.bf16.msra.mxu0 0
    %4518 = vmatprep.subr.bf16.mxu0 0
    %4519 = vmatpush1.bf16.msra.mxu0 0
    %4520 = vmatprep.subr.bf16.mxu0 0
    %4521 = vmatpush1.bf16.msra.mxu0 0
    %4522 = vmatprep.subr.bf16.mxu0 0
    %4523 = vmatpush1.bf16.msra.mxu0 0
    %4524 = vmatprep.subr.bf16.mxu0 0
    %4525 = vmatpush1.bf16.msra.mxu0 0
    %4526 = vmatprep.subr.bf16.mxu0 0
    %4527 = vmatpush1.bf16.msra.mxu0 0
    %4528 = vmatprep.mubr.bf16.mxu0 0
    %4529 = vmatmul.mubr.bf16.gmra.mrb[0].mxu0 %v4491
    %v4530 = vpop.f32.mrb[0].mxu0
    %v4531 = vadd.f32 0.0, %v4530
    %v4532 = vpop.f32.mrb[0].mxu0
    %v4533 = vpop.f32.mrb[0].mxu0
    %v4534 = vadd.f32 0.0, %v4533
    %v4535 = vpop.f32.mrb[0].mxu0
    %4536 = vmatprep.mubr.bf16.mxu0 0
    %4537 = vmatmul.mubr.bf16.gmra.mrb[0].mxu0 %v4494
    %v4538 = vpop.f32.mrb[0].mxu0
    %v4539 = vadd.f32 0.0, %v4538
    %v4540 = vpop.f32.mrb[0].mxu0
    %v4541 = vpop.f32.mrb[0].mxu0
    %v4542 = vadd.f32 0.0, %v4541
    %v4543 = vpop.f32.mrb[0].mxu0
    %4544 = vdwg.mxu0
    %v4545 = vadd.f32 %v4460, %v4531
    %v4546 = vadd.f32 %v4461, %v4534
    %v4547 = vadd.f32 %v4462, %v4539
    %v4548 = vadd.f32 %v4463, %v4542
    %v4549 = vpack.c.bf16 %v4141, %v4138
    %v4550 = vpack.c.bf16 %v4149, %v4146
    %v4559 = vunpack.c.l.b16 %v3855
    %v4560 = vunpack.c.l.b16 %v3856
    %v4561 = vunpack.c.l.b16 %v3857
    %v4562 = vunpack.c.l.b16 %v3858
    %v4563 = vunpack.c.l.b16 %v3859
    %v4564 = vunpack.c.l.b16 %v3860
    %v4565 = vunpack.c.l.b16 %v3861
    %v4566 = vunpack.c.l.b16 %v3862
    %v4567 = vpack.c.b16 %v4560, %v4559
    %v4568 = vpack.c.b16 %v4562, %v4561
    %v4569 = vpack.c.b16 %v4564, %v4563
    %v4570 = vpack.c.b16 %v4566, %v4565
    %v4576 = vsel %vm4244, %v4549, 0
    %v4579 = vsel %vm4244, %v4550, 0
    %4581 = vmatprep.subr.bf16.mxu0 0
    %4582 = vmatpush1.bf16.msra.mxu0 %v4567
    %4583 = vmatprep.subr.bf16.mxu0 0
    %4584 = vmatpush1.bf16.msra.mxu0 %v4568
    %4585 = vmatprep.subr.bf16.mxu0 0
    %4586 = vmatpush1.bf16.msra.mxu0 %v4569
    %4587 = vmatprep.subr.bf16.mxu0 0
    %4588 = vmatpush1.bf16.msra.mxu0 %v4570
    %4589 = vmatprep.subr.bf16.mxu0 0
    %4590 = vmatpush1.bf16.msra.mxu0 0
    %4591 = vmatprep.subr.bf16.mxu0 0
    %4592 = vmatpush1.bf16.msra.mxu0 0
    %4593 = vmatprep.subr.bf16.mxu0 0
    %4594 = vmatpush1.bf16.msra.mxu0 0
    %4595 = vmatprep.subr.bf16.mxu0 0
    %4596 = vmatpush1.bf16.msra.mxu0 0
    %4597 = vmatprep.subr.bf16.mxu0 0
    %4598 = vmatpush1.bf16.msra.mxu0 0
    %4599 = vmatprep.subr.bf16.mxu0 0
    %4600 = vmatpush1.bf16.msra.mxu0 0
    %4601 = vmatprep.subr.bf16.mxu0 0
    %4602 = vmatpush1.bf16.msra.mxu0 0
    %4603 = vmatprep.subr.bf16.mxu0 0
    %4604 = vmatpush1.bf16.msra.mxu0 0
    %4605 = vmatprep.subr.bf16.mxu0 0
    %4606 = vmatpush1.bf16.msra.mxu0 0
    %4607 = vmatprep.subr.bf16.mxu0 0
    %4608 = vmatpush1.bf16.msra.mxu0 0
    %4609 = vmatprep.subr.bf16.mxu0 0
    %4610 = vmatpush1.bf16.msra.mxu0 0
    %4611 = vmatprep.subr.bf16.mxu0 0
    %4612 = vmatpush1.bf16.msra.mxu0 0
    %4613 = vmatprep.mubr.bf16.mxu0 0
    %4614 = vmatmul.mubr.bf16.gmra.mrb[0].mxu0 %v4576
    %v4615 = vpop.f32.mrb[0].mxu0
    %v4616 = vadd.f32 0.0, %v4615
    %v4617 = vpop.f32.mrb[0].mxu0
    %v4618 = vpop.f32.mrb[0].mxu0
    %v4619 = vadd.f32 0.0, %v4618
    %v4620 = vpop.f32.mrb[0].mxu0
    %4621 = vmatprep.mubr.bf16.mxu0 0
    %4622 = vmatmul.mubr.bf16.gmra.mrb[0].mxu0 %v4579
    %v4623 = vpop.f32.mrb[0].mxu0
    %v4624 = vadd.f32 0.0, %v4623
    %v4625 = vpop.f32.mrb[0].mxu0
    %v4626 = vpop.f32.mrb[0].mxu0
    %v4627 = vadd.f32 0.0, %v4626
    %v4628 = vpop.f32.mrb[0].mxu0
    %4629 = vdwg.mxu0
    %v4630 = vadd.f32 %v4545, %v4616
    %v4631 = vadd.f32 %v4546, %v4619
    %v4632 = vadd.f32 %v4547, %v4624
    %v4633 = vadd.f32 %v4548, %v4627
    %v4634 = vpack.c.bf16 %v4157, %v4154
    %v4635 = vpack.c.bf16 %v4165, %v4162
    %v4644 = vunpack.c.l.b16 %v3863
    %v4645 = vunpack.c.l.b16 %v3864
    %v4646 = vunpack.c.l.b16 %v3865
    %v4647 = vunpack.c.l.b16 %v3866
    %v4648 = vunpack.c.l.b16 %v3867
    %v4649 = vunpack.c.l.b16 %v3868
    %v4650 = vunpack.c.l.b16 %v3869
    %v4651 = vunpack.c.l.b16 %v3870
    %v4652 = vpack.c.b16 %v4645, %v4644
    %v4653 = vpack.c.b16 %v4647, %v4646
    %v4654 = vpack.c.b16 %v4649, %v4648
    %v4655 = vpack.c.b16 %v4651, %v4650
    %v4661 = vsel %vm4244, %v4634, 0
    %v4664 = vsel %vm4244, %v4635, 0
    %4666 = vmatprep.subr.bf16.mxu0 0
    %4667 = vmatpush1.bf16.msra.mxu0 %v4652
    %4668 = vmatprep.subr.bf16.mxu0 0
    %4669 = vmatpush1.bf16.msra.mxu0 %v4653
    %4670 = vmatprep.subr.bf16.mxu0 0
    %4671 = vmatpush1.bf16.msra.mxu0 %v4654
    %4672 = vmatprep.subr.bf16.mxu0 0
    %4673 = vmatpush1.bf16.msra.mxu0 %v4655
    %4674 = vmatprep.subr.bf16.mxu0 0
    %4675 = vmatpush1.bf16.msra.mxu0 0
    %4676 = vmatprep.subr.bf16.mxu0 0
    %4677 = vmatpush1.bf16.msra.mxu0 0
    %4678 = vmatprep.subr.bf16.mxu0 0
    %4679 = vmatpush1.bf16.msra.mxu0 0
    %4680 = vmatprep.subr.bf16.mxu0 0
    %4681 = vmatpush1.bf16.msra.mxu0 0
    %4682 = vmatprep.subr.bf16.mxu0 0
    %4683 = vmatpush1.bf16.msra.mxu0 0
    %4684 = vmatprep.subr.bf16.mxu0 0
    %4685 = vmatpush1.bf16.msra.mxu0 0
    %4686 = vmatprep.subr.bf16.mxu0 0
    %4687 = vmatpush1.bf16.msra.mxu0 0
    %4688 = vmatprep.subr.bf16.mxu0 0
    %4689 = vmatpush1.bf16.msra.mxu0 0
    %4690 = vmatprep.subr.bf16.mxu0 0
    %4691 = vmatpush1.bf16.msra.mxu0 0
    %4692 = vmatprep.subr.bf16.mxu0 0
    %4693 = vmatpush1.bf16.msra.mxu0 0
    %4694 = vmatprep.subr.bf16.mxu0 0
    %4695 = vmatpush1.bf16.msra.mxu0 0
    %4696 = vmatprep.subr.bf16.mxu0 0
    %4697 = vmatpush1.bf16.msra.mxu0 0
    %4698 = vmatprep.mubr.bf16.mxu0 0
    %4699 = vmatmul.mubr.bf16.gmra.mrb[0].mxu0 %v4661
    %v4700 = vpop.f32.mrb[0].mxu0
    %v4701 = vadd.f32 0.0, %v4700
    %v4702 = vpop.f32.mrb[0].mxu0
    %v4703 = vpop.f32.mrb[0].mxu0
    %v4704 = vadd.f32 0.0, %v4703
    %v4705 = vpop.f32.mrb[0].mxu0
    %4706 = vmatprep.mubr.bf16.mxu0 0
    %4707 = vmatmul.mubr.bf16.gmra.mrb[0].mxu0 %v4664
    %v4708 = vpop.f32.mrb[0].mxu0
    %v4709 = vadd.f32 0.0, %v4708
    %v4710 = vpop.f32.mrb[0].mxu0
    %v4711 = vpop.f32.mrb[0].mxu0
    %v4712 = vadd.f32 0.0, %v4711
    %v4713 = vpop.f32.mrb[0].mxu0
    %4714 = vdwg.mxu0
    %v4715 = vadd.f32 %v4630, %v4701
    %v4716 = vadd.f32 %v4631, %v4704
    %v4717 = vadd.f32 %v4632, %v4709
    %v4718 = vadd.f32 %v4633, %v4712
    %v4719 = vpack.c.bf16 %v4173, %v4170
    %v4720 = vpack.c.bf16 %v4181, %v4178
    %v4729 = vunpack.c.l.b16 %v3871
    %v4730 = vunpack.c.l.b16 %v3872
    %v4731 = vunpack.c.l.b16 %v3873
    %v4732 = vunpack.c.l.b16 %v3874
    %v4733 = vunpack.c.l.b16 %v3875
    %v4734 = vunpack.c.l.b16 %v3876
    %v4735 = vunpack.c.l.b16 %v3877
    %v4736 = vunpack.c.l.b16 %v3878
    %v4737 = vpack.c.b16 %v4730, %v4729
    %v4738 = vpack.c.b16 %v4732, %v4731
    %v4739 = vpack.c.b16 %v4734, %v4733
    %v4740 = vpack.c.b16 %v4736, %v4735
    %v4746 = vsel %vm4244, %v4719, 0
    %v4749 = vsel %vm4244, %v4720, 0
    %4751 = vmatprep.subr.bf16.mxu0 0
    %4752 = vmatpush1.bf16.msra.mxu0 %v4737
    %4753 = vmatprep.subr.bf16.mxu0 0
    %4754 = vmatpush1.bf16.msra.mxu0 %v4738
    %4755 = vmatprep.subr.bf16.mxu0 0
    %4756 = vmatpush1.bf16.msra.mxu0 %v4739
    %4757 = vmatprep.subr.bf16.mxu0 0
    %4758 = vmatpush1.bf16.msra.mxu0 %v4740
    %4759 = vmatprep.subr.bf16.mxu0 0
    %4760 = vmatpush1.bf16.msra.mxu0 0
    %4761 = vmatprep.subr.bf16.mxu0 0
    %4762 = vmatpush1.bf16.msra.mxu0 0
    %4763 = vmatprep.subr.bf16.mxu0 0
    %4764 = vmatpush1.bf16.msra.mxu0 0
    %4765 = vmatprep.subr.bf16.mxu0 0
    %4766 = vmatpush1.bf16.msra.mxu0 0
    %4767 = vmatprep.subr.bf16.mxu0 0
    %4768 = vmatpush1.bf16.msra.mxu0 0
    %4769 = vmatprep.subr.bf16.mxu0 0
    %4770 = vmatpush1.bf16.msra.mxu0 0
    %4771 = vmatprep.subr.bf16.mxu0 0
    %4772 = vmatpush1.bf16.msra.mxu0 0
    %4773 = vmatprep.subr.bf16.mxu0 0
    %4774 = vmatpush1.bf16.msra.mxu0 0
    %4775 = vmatprep.subr.bf16.mxu0 0
    %4776 = vmatpush1.bf16.msra.mxu0 0
    %4777 = vmatprep.subr.bf16.mxu0 0
    %4778 = vmatpush1.bf16.msra.mxu0 0
    %4779 = vmatprep.subr.bf16.mxu0 0
    %4780 = vmatpush1.bf16.msra.mxu0 0
    %4781 = vmatprep.subr.bf16.mxu0 0
    %4782 = vmatpush1.bf16.msra.mxu0 0
    %4783 = vmatprep.mubr.bf16.mxu0 0
    %4784 = vmatmul.mubr.bf16.gmra.mrb[0].mxu0 %v4746
    %v4785 = vpop.f32.mrb[0].mxu0
    %v4786 = vadd.f32 0.0, %v4785
    %v4787 = vpop.f32.mrb[0].mxu0
    %v4788 = vpop.f32.mrb[0].mxu0
    %v4789 = vadd.f32 0.0, %v4788
    %v4790 = vpop.f32.mrb[0].mxu0
    %4791 = vmatprep.mubr.bf16.mxu0 0
    %4792 = vmatmul.mubr.bf16.gmra.mrb[0].mxu0 %v4749
    %v4793 = vpop.f32.mrb[0].mxu0
    %v4794 = vadd.f32 0.0, %v4793
    %v4795 = vpop.f32.mrb[0].mxu0
    %v4796 = vpop.f32.mrb[0].mxu0
    %v4797 = vadd.f32 0.0, %v4796
    %v4798 = vpop.f32.mrb[0].mxu0
    %4799 = vdwg.mxu0
    %v4800 = vadd.f32 %v4715, %v4786
    %v4801 = vadd.f32 %v4716, %v4789
    %v4802 = vadd.f32 %v4717, %v4794
    %v4803 = vadd.f32 %v4718, %v4797
    %v4804 = vpack.c.bf16 %v4189, %v4186
    %v4805 = vpack.c.bf16 %v4197, %v4194
    %v4814 = vunpack.c.l.b16 %v3879
    %v4815 = vunpack.c.l.b16 %v3880
    %v4816 = vunpack.c.l.b16 %v3881
    %v4817 = vunpack.c.l.b16 %v3882
    %v4818 = vunpack.c.l.b16 %v3883
    %v4819 = vunpack.c.l.b16 %v3884
    %v4820 = vunpack.c.l.b16 %v3885
    %v4821 = vunpack.c.l.b16 %v3886
    %v4822 = vpack.c.b16 %v4815, %v4814
    %v4823 = vpack.c.b16 %v4817, %v4816
    %v4824 = vpack.c.b16 %v4819, %v4818
    %v4825 = vpack.c.b16 %v4821, %v4820
    %v4831 = vsel %vm4244, %v4804, 0
    %v4834 = vsel %vm4244, %v4805, 0
    %4836 = vmatprep.subr.bf16.mxu0 0
    %4837 = vmatpush1.bf16.msra.mxu0 %v4822
    %4838 = vmatprep.subr.bf16.mxu0 0
    %4839 = vmatpush1.bf16.msra.mxu0 %v4823
    %4840 = vmatprep.subr.bf16.mxu0 0
    %4841 = vmatpush1.bf16.msra.mxu0 %v4824
    %4842 = vmatprep.subr.bf16.mxu0 0
    %4843 = vmatpush1.bf16.msra.mxu0 %v4825
    %4844 = vmatprep.subr.bf16.mxu0 0
    %4845 = vmatpush1.bf16.msra.mxu0 0
    %4846 = vmatprep.subr.bf16.mxu0 0
    %4847 = vmatpush1.bf16.msra.mxu0 0
    %4848 = vmatprep.subr.bf16.mxu0 0
    %4849 = vmatpush1.bf16.msra.mxu0 0
    %4850 = vmatprep.subr.bf16.mxu0 0
    %4851 = vmatpush1.bf16.msra.mxu0 0
    %4852 = vmatprep.subr.bf16.mxu0 0
    %4853 = vmatpush1.bf16.msra.mxu0 0
    %4854 = vmatprep.subr.bf16.mxu0 0
    %4855 = vmatpush1.bf16.msra.mxu0 0
    %4856 = vmatprep.subr.bf16.mxu0 0
    %4857 = vmatpush1.bf16.msra.mxu0 0
    %4858 = vmatprep.subr.bf16.mxu0 0
    %4859 = vmatpush1.bf16.msra.mxu0 0
    %4860 = vmatprep.subr.bf16.mxu0 0
    %4861 = vmatpush1.bf16.msra.mxu0 0
    %4862 = vmatprep.subr.bf16.mxu0 0
    %4863 = vmatpush1.bf16.msra.mxu0 0
    %4864 = vmatprep.subr.bf16.mxu0 0
    %4865 = vmatpush1.bf16.msra.mxu0 0
    %4866 = vmatprep.subr.bf16.mxu0 0
    %4867 = vmatpush1.bf16.msra.mxu0 0
    %4868 = vmatprep.mubr.bf16.mxu0 0
    %4869 = vmatmul.mubr.bf16.gmra.mrb[0].mxu0 %v4831
    %v4870 = vpop.f32.mrb[0].mxu0
    %v4871 = vadd.f32 0.0, %v4870
    %v4872 = vpop.f32.mrb[0].mxu0
    %v4873 = vpop.f32.mrb[0].mxu0
    %v4874 = vadd.f32 0.0, %v4873
    %v4875 = vpop.f32.mrb[0].mxu0
    %4876 = vmatprep.mubr.bf16.mxu0 0
    %4877 = vmatmul.mubr.bf16.gmra.mrb[0].mxu0 %v4834
    %v4878 = vpop.f32.mrb[0].mxu0
    %v4879 = vadd.f32 0.0, %v4878
    %v4880 = vpop.f32.mrb[0].mxu0
    %v4881 = vpop.f32.mrb[0].mxu0
    %v4882 = vadd.f32 0.0, %v4881
    %v4883 = vpop.f32.mrb[0].mxu0
    %4884 = vdwg.mxu0
    %v4885 = vadd.f32 %v4800, %v4871
    %v4886 = vadd.f32 %v4801, %v4874
    %v4887 = vadd.f32 %v4802, %v4879
    %v4888 = vadd.f32 %v4803, %v4882
    %v4889 = vpack.c.bf16 %v4205, %v4202
    %v4890 = vpack.c.bf16 %v4213, %v4210
    %v4899 = vunpack.c.l.b16 %v3887
    %v4900 = vunpack.c.l.b16 %v3888
    %v4901 = vunpack.c.l.b16 %v3889
    %v4902 = vunpack.c.l.b16 %v3890
    %v4903 = vunpack.c.l.b16 %v3891
    %v4904 = vunpack.c.l.b16 %v3892
    %v4905 = vunpack.c.l.b16 %v3893
    %v4906 = vunpack.c.l.b16 %v3894
    %v4907 = vpack.c.b16 %v4900, %v4899
    %v4908 = vpack.c.b16 %v4902, %v4901
    %v4909 = vpack.c.b16 %v4904, %v4903
    %v4910 = vpack.c.b16 %v4906, %v4905
    %v4916 = vsel %vm4244, %v4889, 0
    %v4919 = vsel %vm4244, %v4890, 0
    %4921 = vmatprep.subr.bf16.mxu0 0
    %4922 = vmatpush1.bf16.msra.mxu0 %v4907
    %4923 = vmatprep.subr.bf16.mxu0 0
    %4924 = vmatpush1.bf16.msra.mxu0 %v4908
    %4925 = vmatprep.subr.bf16.mxu0 0
    %4926 = vmatpush1.bf16.msra.mxu0 %v4909
    %4927 = vmatprep.subr.bf16.mxu0 0
    %4928 = vmatpush1.bf16.msra.mxu0 %v4910
    %4929 = vmatprep.subr.bf16.mxu0 0
    %4930 = vmatpush1.bf16.msra.mxu0 0
    %4931 = vmatprep.subr.bf16.mxu0 0
    %4932 = vmatpush1.bf16.msra.mxu0 0
    %4933 = vmatprep.subr.bf16.mxu0 0
    %4934 = vmatpush1.bf16.msra.mxu0 0
    %4935 = vmatprep.subr.bf16.mxu0 0
    %4936 = vmatpush1.bf16.msra.mxu0 0
    %4937 = vmatprep.subr.bf16.mxu0 0
    %4938 = vmatpush1.bf16.msra.mxu0 0
    %4939 = vmatprep.subr.bf16.mxu0 0
    %4940 = vmatpush1.bf16.msra.mxu0 0
    %4941 = vmatprep.subr.bf16.mxu0 0
    %4942 = vmatpush1.bf16.msra.mxu0 0
    %4943 = vmatprep.subr.bf16.mxu0 0
    %4944 = vmatpush1.bf16.msra.mxu0 0
    %4945 = vmatprep.subr.bf16.mxu0 0
    %4946 = vmatpush1.bf16.msra.mxu0 0
    %4947 = vmatprep.subr.bf16.mxu0 0
    %4948 = vmatpush1.bf16.msra.mxu0 0
    %4949 = vmatprep.subr.bf16.mxu0 0
    %4950 = vmatpush1.bf16.msra.mxu0 0
    %4951 = vmatprep.subr.bf16.mxu0 0
    %4952 = vmatpush1.bf16.msra.mxu0 0
    %4953 = vmatprep.mubr.bf16.mxu0 0
    %4954 = vmatmul.mubr.bf16.gmra.mrb[0].mxu0 %v4916
    %v4955 = vpop.f32.mrb[0].mxu0
    %v4956 = vadd.f32 0.0, %v4955
    %v4957 = vpop.f32.mrb[0].mxu0
    %v4958 = vpop.f32.mrb[0].mxu0
    %v4959 = vadd.f32 0.0, %v4958
    %v4960 = vpop.f32.mrb[0].mxu0
    %4961 = vmatprep.mubr.bf16.mxu0 0
    %4962 = vmatmul.mubr.bf16.gmra.mrb[0].mxu0 %v4919
    %v4963 = vpop.f32.mrb[0].mxu0
    %v4964 = vadd.f32 0.0, %v4963
    %v4965 = vpop.f32.mrb[0].mxu0
    %v4966 = vpop.f32.mrb[0].mxu0
    %v4967 = vadd.f32 0.0, %v4966
    %v4968 = vpop.f32.mrb[0].mxu0
    %4969 = vdwg.mxu0
    %v4970 = vadd.f32 %v4885, %v4956
    %v4971 = vadd.f32 %v4886, %v4959
    %v4972 = vadd.f32 %v4887, %v4964
    %v4973 = vadd.f32 %v4888, %v4967
    %v4974 = vld [vmem:[%s8] sm:$0x1]
    %v4976 = vlaneseq
    %v4977 = vshrl.u32 %v4976, 7
    %v4978 = vsub.s32 0, %v4977
    %v4979 = vrot.slane %v4974, %v4978
    %v4981 = vadd.f32 %v4970, %v4979
    %v4982 = vadd.f32 %v4971, %v4979
    %v4983 = vadd.f32 %v4972, %v4979
    %v4984 = vadd.f32 %v4973, %v4979
    %v4985 = vmul.f32 %v4981, 0.5
    %v4986 = vmul.f32 %v4982, 0.5
    %v4987 = vmul.f32 %v4983, 0.5
    %v4988 = vmul.f32 %v4984, 0.5
    %v4989 = vmul.f32 %v4981, 0.70710677
    %v4990 = vmul.f32 %v4982, 0.70710677
    %v4991 = vmul.f32 %v4983, 0.70710677
    %v4992 = vmul.f32 %v4984, 0.70710677
    %v4993 = verf.f32.pop %v4989
    %v4994 = verf.f32.pop %v4990
    %v4995 = verf.f32.pop %v4991
    %v4996 = verf.f32.pop %v4992
    %v4997 = vadd.f32 %v4993, 1.0
    %v4998 = vadd.f32 %v4994, 1.0
    %v4999 = vadd.f32 %v4995, 1.0
    %v5000 = vadd.f32 %v4996, 1.0
    %v5001 = vmul.f32 %v4985, %v4997
    %v5002 = vmul.f32 %v4986, %v4998
    %v5003 = vmul.f32 %v4987, %v4999
    %v5004 = vmul.f32 %v4988, %v5000
    %v5005 = vmax.f32 %v5001, %v5002
    %v5006 = vmax.f32 %v5003, %v5004
    %v5007 = vmax.f32 %v5005, %v5006
    %v5008 = vpack.c.bf16 %v5007, %v5007
    %v5009 = vld [vmem:[%s9] sm:$0xf]
    %v5010 = vld [vmem:[%s9 + $0x4] sm:$0xf]
    %v5011 = vld [vmem:[%s9 + $0x8] sm:$0xf]
    %v5012 = vld [vmem:[%s9 + $0xc] sm:$0xf]
    %v5013 = vld [vmem:[%s9 + $0x10] sm:$0xf]
    %v5014 = vld [vmem:[%s9 + $0x14] sm:$0xf]
    %v5015 = vld [vmem:[%s9 + $0x18] sm:$0xf]
    %v5016 = vld [vmem:[%s9 + $0x1c] sm:$0xf]
    %v5017 = vld [vmem:[%s9 + $0x20] sm:$0xf]
    %v5018 = vld [vmem:[%s10] sm:$0xff]
    %v5019 = vld [vmem:[%s10 + $0x8] sm:$0xff]
    %v5020 = vld [vmem:[%s10 + $0x10] sm:$0xff]
    %v5021 = vld [vmem:[%s10 + $0x18] sm:$0xff]
    %v5022 = vld [vmem:[%s10 + $0x20] sm:$0xff]
    %v5023 = vld [vmem:[%s10 + $0x28] sm:$0xff]
    %v5024 = vld [vmem:[%s10 + $0x30] sm:$0xff]
    %v5025 = vld [vmem:[%s10 + $0x38] sm:$0xff]
    %v5026 = vld [vmem:[%s10 + $0x40] sm:$0xff]
    %v5027 = vld [vmem:[%s10 + $0x48] sm:$0xff]
    %v5028 = vld [vmem:[%s10 + $0x50] sm:$0xff]
    %v5029 = vld [vmem:[%s10 + $0x58] sm:$0xff]
    %v5030 = vld [vmem:[%s10 + $0x60] sm:$0xff]
    %v5031 = vld [vmem:[%s10 + $0x68] sm:$0xff]
    %v5032 = vld [vmem:[%s10 + $0x70] sm:$0xff]
    %v5033 = vld [vmem:[%s10 + $0x78] sm:$0xff]
    %v5034 = vld [vmem:[%s10 + $0x80] sm:$0xff]
    %v5035 = vld [vmem:[%s10 + $0x88] sm:$0xff]
    %v5036 = vld [vmem:[%s10 + $0x90] sm:$0xff]
    %v5037 = vld [vmem:[%s10 + $0x98] sm:$0xff]
    %v5038 = vld [vmem:[%s10 + $0xa0] sm:$0xff]
    %v5039 = vld [vmem:[%s10 + $0xa8] sm:$0xff]
    %v5040 = vld [vmem:[%s10 + $0xb0] sm:$0xff]
    %v5041 = vld [vmem:[%s10 + $0xb8] sm:$0xff]
    %v5042 = vld [vmem:[%s10 + $0xc0] sm:$0xff]
    %v5043 = vld [vmem:[%s10 + $0xc8] sm:$0xff]
    %v5044 = vld [vmem:[%s10 + $0xd0] sm:$0xff]
    %v5045 = vld [vmem:[%s10 + $0xd8] sm:$0xff]
    %v5046 = vld [vmem:[%s10 + $0xe0] sm:$0xff]
    %v5047 = vld [vmem:[%s10 + $0xe8] sm:$0xff]
    %v5048 = vld [vmem:[%s10 + $0xf0] sm:$0xff]
    %v5049 = vld [vmem:[%s10 + $0xf8] sm:$0xff]
    %v5050 = vld [vmem:[%s10 + $0x100] sm:$0xff]
    %v5051 = vld [vmem:[%s10 + $0x108] sm:$0xff]
    %v5052 = vld [vmem:[%s10 + $0x110] sm:$0xff]
    %v5053 = vld [vmem:[%s10 + $0x118] sm:$0xff]
    %v5054 = vld [vmem:[%s10 + $0x120] sm:$0xff]
    %v5055 = vld [vmem:[%s10 + $0x128] sm:$0xff]
    %v5056 = vld [vmem:[%s10 + $0x130] sm:$0xff]
    %v5057 = vld [vmem:[%s10 + $0x138] sm:$0xff]
    %v5058 = vld [vmem:[%s10 + $0x140] sm:$0xff]
    %v5059 = vld [vmem:[%s10 + $0x148] sm:$0xff]
    %v5060 = vld [vmem:[%s10 + $0x150] sm:$0xff]
    %v5061 = vld [vmem:[%s10 + $0x158] sm:$0xff]
    %v5062 = vld [vmem:[%s10 + $0x160] sm:$0xff]
    %v5063 = vld [vmem:[%s10 + $0x168] sm:$0xff]
    %v5064 = vld [vmem:[%s10 + $0x170] sm:$0xff]
    %v5065 = vld [vmem:[%s10 + $0x178] sm:$0xff]
    %v5066 = vld [vmem:[%s10 + $0x180] sm:$0xff]
    %v5067 = vld [vmem:[%s10 + $0x188] sm:$0xff]
    %v5068 = vld [vmem:[%s10 + $0x190] sm:$0xff]
    %v5069 = vld [vmem:[%s10 + $0x198] sm:$0xff]
    %v5070 = vld [vmem:[%s10 + $0x1a0] sm:$0xff]
    %v5071 = vld [vmem:[%s10 + $0x1a8] sm:$0xff]
    %v5072 = vld [vmem:[%s10 + $0x1b0] sm:$0xff]
    %v5073 = vld [vmem:[%s10 + $0x1b8] sm:$0xff]
    %v5074 = vld [vmem:[%s10 + $0x1c0] sm:$0xff]
    %v5075 = vld [vmem:[%s10 + $0x1c8] sm:$0xff]
    %v5076 = vld [vmem:[%s10 + $0x1d0] sm:$0xff]
    %v5077 = vld [vmem:[%s10 + $0x1d8] sm:$0xff]
    %v5078 = vld [vmem:[%s10 + $0x1e0] sm:$0xff]
    %v5079 = vld [vmem:[%s10 + $0x1e8] sm:$0xff]
    %v5080 = vld [vmem:[%s10 + $0x1f0] sm:$0xff]
    %v5081 = vld [vmem:[%s10 + $0x1f8] sm:$0xff]
    %v5082 = vld [vmem:[%s10 + $0x200] sm:$0xff]
    %v5083 = vld [vmem:[%s10 + $0x208] sm:$0xff]
    %v5084 = vld [vmem:[%s10 + $0x210] sm:$0xff]
    %v5085 = vld [vmem:[%s10 + $0x218] sm:$0xff]
    %v5086 = vld [vmem:[%s10 + $0x220] sm:$0xff]
    %v5087 = vld [vmem:[%s10 + $0x228] sm:$0xff]
    %v5088 = vld [vmem:[%s10 + $0x230] sm:$0xff]
    %v5089 = vld [vmem:[%s10 + $0x238] sm:$0xff]
    %v5090 = vld [vmem:[%s10 + $0x240] sm:$0xff]
    %v5091 = vld [vmem:[%s10 + $0x248] sm:$0xff]
    %v5092 = vld [vmem:[%s10 + $0x250] sm:$0xff]
    %v5093 = vld [vmem:[%s10 + $0x258] sm:$0xff]
    %v5094 = vld [vmem:[%s10 + $0x260] sm:$0xff]
    %v5095 = vld [vmem:[%s10 + $0x268] sm:$0xff]
    %v5096 = vld [vmem:[%s10 + $0x270] sm:$0xff]
    %v5097 = vld [vmem:[%s10 + $0x278] sm:$0xff]
    %v5098 = vld [vmem:[%s10 + $0x280] sm:$0xff]
    %v5099 = vld [vmem:[%s10 + $0x288] sm:$0xff]
    %v5100 = vld [vmem:[%s10 + $0x290] sm:$0xff]
    %v5101 = vld [vmem:[%s10 + $0x298] sm:$0xff]
    %v5102 = vld [vmem:[%s10 + $0x2a0] sm:$0xff]
    %v5103 = vld [vmem:[%s10 + $0x2a8] sm:$0xff]
    %v5104 = vld [vmem:[%s10 + $0x2b0] sm:$0xff]
    %v5105 = vld [vmem:[%s10 + $0x2b8] sm:$0xff]
    %v5106 = vld [vmem:[%s10 + $0x2c0] sm:$0xff]
    %v5107 = vld [vmem:[%s10 + $0x2c8] sm:$0xff]
    %v5108 = vld [vmem:[%s10 + $0x2d0] sm:$0xff]
    %v5109 = vld [vmem:[%s10 + $0x2d8] sm:$0xff]
    %v5110 = vld [vmem:[%s10 + $0x2e0] sm:$0xff]
    %v5111 = vld [vmem:[%s10 + $0x2e8] sm:$0xff]
    %v5112 = vld [vmem:[%s10 + $0x2f0] sm:$0xff]
    %v5113 = vld [vmem:[%s10 + $0x2f8] sm:$0xff]
    %v5114 = vld [vmem:[%s10 + $0x300] sm:$0xff]
    %v5115 = vld [vmem:[%s10 + $0x308] sm:$0xff]
    %v5116 = vld [vmem:[%s10 + $0x310] sm:$0xff]
    %v5117 = vld [vmem:[%s10 + $0x318] sm:$0xff]
    %v5118 = vld [vmem:[%s10 + $0x320] sm:$0xff]
    %v5119 = vld [vmem:[%s10 + $0x328] sm:$0xff]
    %v5120 = vld [vmem:[%s10 + $0x330] sm:$0xff]
    %v5121 = vld [vmem:[%s10 + $0x338] sm:$0xff]
    %v5122 = vld [vmem:[%s10 + $0x340] sm:$0xff]
    %v5123 = vld [vmem:[%s10 + $0x348] sm:$0xff]
    %v5124 = vld [vmem:[%s10 + $0x350] sm:$0xff]
    %v5125 = vld [vmem:[%s10 + $0x358] sm:$0xff]
    %v5126 = vld [vmem:[%s10 + $0x360] sm:$0xff]
    %v5127 = vld [vmem:[%s10 + $0x368] sm:$0xff]
    %v5128 = vld [vmem:[%s10 + $0x370] sm:$0xff]
    %v5129 = vld [vmem:[%s10 + $0x378] sm:$0xff]
    %v5130 = vld [vmem:[%s10 + $0x380] sm:$0xff]
    %v5131 = vld [vmem:[%s10 + $0x388] sm:$0xff]
    %v5132 = vld [vmem:[%s10 + $0x390] sm:$0xff]
    %v5133 = vld [vmem:[%s10 + $0x398] sm:$0xff]
    %v5134 = vld [vmem:[%s10 + $0x3a0] sm:$0xff]
    %v5135 = vld [vmem:[%s10 + $0x3a8] sm:$0xff]
    %v5136 = vld [vmem:[%s10 + $0x3b0] sm:$0xff]
    %v5137 = vld [vmem:[%s10 + $0x3b8] sm:$0xff]
    %v5138 = vld [vmem:[%s10 + $0x3c0] sm:$0xff]
    %v5139 = vld [vmem:[%s10 + $0x3c8] sm:$0xff]
    %v5140 = vld [vmem:[%s10 + $0x3d0] sm:$0xff]
    %v5141 = vld [vmem:[%s10 + $0x3d8] sm:$0xff]
    %v5142 = vld [vmem:[%s10 + $0x3e0] sm:$0xff]
    %v5143 = vld [vmem:[%s10 + $0x3e8] sm:$0xff]
    %v5144 = vld [vmem:[%s10 + $0x3f0] sm:$0xff]
    %v5145 = vld [vmem:[%s10 + $0x3f8] sm:$0xff]
    %v5146 = vld [vmem:[%s10 + $0x400] sm:$0xff]
    %v5147 = vld [vmem:[%s10 + $0x408] sm:$0xff]
    %v5148 = vld [vmem:[%s10 + $0x410] sm:$0xff]
    %v5149 = vld [vmem:[%s10 + $0x418] sm:$0xff]
    %v5150 = vld [vmem:[%s10 + $0x420] sm:$0xff]
    %v5151 = vld [vmem:[%s10 + $0x428] sm:$0xff]
    %v5152 = vld [vmem:[%s10 + $0x430] sm:$0xff]
    %v5153 = vld [vmem:[%s10 + $0x438] sm:$0xff]
    %v5154 = vld [vmem:[%s10 + $0x440] sm:$0xff]
    %v5155 = vld [vmem:[%s10 + $0x448] sm:$0xff]
    %v5156 = vld [vmem:[%s10 + $0x450] sm:$0xff]
    %v5157 = vld [vmem:[%s10 + $0x458] sm:$0xff]
    %v5158 = vld [vmem:[%s10 + $0x460] sm:$0xff]
    %v5159 = vld [vmem:[%s10 + $0x468] sm:$0xff]
    %v5160 = vld [vmem:[%s10 + $0x470] sm:$0xff]
    %v5161 = vld [vmem:[%s10 + $0x478] sm:$0xff]
    %v5171 = vunpack.c.l.b16 %v5009
    %v5172 = vunpack.c.l.b16 %v5010
    %v5173 = vunpack.c.l.b16 %v5011
    %v5174 = vunpack.c.l.b16 %v5012
    %v5175 = vunpack.c.l.b16 %v5013
    %v5176 = vunpack.c.l.b16 %v5014
    %v5177 = vunpack.c.l.b16 %v5015
    %v5178 = vunpack.c.l.b16 %v5016
    %v5179 = vunpack.c.l.b16 %v5017
    %v5180 = vpack.c.b16 %v5172, %v5171
    %v5181 = vpack.c.b16 %v5174, %v5173
    %v5182 = vpack.c.b16 %v5176, %v5175
    %v5183 = vpack.c.b16 %v5178, %v5177
    %v5184 = vpack.c.b16 %v5179, %v5179
    %vm5185 = vcmask 64512
    %v5187 = vsel %vm5185, %v5180, 0
    %v5190 = vsel %vm5185, %v5181, 0
    %v5193 = vsel %vm5185, %v5182, 0
    %v5196 = vsel %vm5185, %v5183, 0
    %v5199 = vsel %vm5185, %v5184, 0
    %vm5201 = vcmask 1043456
    %v5203 = vsel %vm5201, %v5008, 0
    %5205 = vmatprep.subr.bf16.mxu0 0
    %5206 = vmatpush1.bf16.msra.mxu0 %v5203
    %5207 = vmatprep.subr.bf16.mxu0 0
    %5208 = vmatpush1.bf16.msra.mxu0 0
    %5209 = vmatprep.subr.bf16.mxu0 0
    %5210 = vmatpush1.bf16.msra.mxu0 0
    %5211 = vmatprep.subr.bf16.mxu0 0
    %5212 = vmatpush1.bf16.msra.mxu0 0
    %5213 = vmatprep.subr.bf16.mxu0 0
    %5214 = vmatpush1.bf16.msra.mxu0 0
    %5215 = vmatprep.subr.bf16.mxu0 0
    %5216 = vmatpush1.bf16.msra.mxu0 0
    %5217 = vmatprep.subr.bf16.mxu0 0
    %5218 = vmatpush1.bf16.msra.mxu0 0
    %5219 = vmatprep.subr.bf16.mxu0 0
    %5220 = vmatpush1.bf16.msra.mxu0 0
    %5221 = vmatprep.subr.bf16.mxu0 0
    %5222 = vmatpush1.bf16.msra.mxu0 0
    %5223 = vmatprep.subr.bf16.mxu0 0
    %5224 = vmatpush1.bf16.msra.mxu0 0
    %5225 = vmatprep.subr.bf16.mxu0 0
    %5226 = vmatpush1.bf16.msra.mxu0 0
    %5227 = vmatprep.subr.bf16.mxu0 0
    %5228 = vmatpush1.bf16.msra.mxu0 0
    %5229 = vmatprep.subr.bf16.mxu0 0
    %5230 = vmatpush1.bf16.msra.mxu0 0
    %5231 = vmatprep.subr.bf16.mxu0 0
    %5232 = vmatpush1.bf16.msra.mxu0 0
    %5233 = vmatprep.subr.bf16.mxu0 0
    %5234 = vmatpush1.bf16.msra.mxu0 0
    %5235 = vmatprep.subr.bf16.mxu0 0
    %5236 = vmatpush1.bf16.msra.mxu0 0
    %5237 = vmatprep.mubr.bf16.mxu0 0
    %5238 = vmatmul.mubr.bf16.gmra.mrb[0].mxu0 %v5187
    %v5239 = vpop.f32.mrb[0].mxu0
    %v5240 = vadd.f32 0.0, %v5239
    %v5241 = vpop.f32.mrb[0].mxu0
    %v5242 = vpop.f32.mrb[0].mxu0
    %v5243 = vadd.f32 0.0, %v5242
    %v5244 = vpop.f32.mrb[0].mxu0
    %5245 = vmatprep.mubr.bf16.mxu0 0
    %5246 = vmatmul.mubr.bf16.gmra.mrb[0].mxu0 %v5190
    %v5247 = vpop.f32.mrb[0].mxu0
    %v5248 = vadd.f32 0.0, %v5247
    %v5249 = vpop.f32.mrb[0].mxu0
    %v5250 = vpop.f32.mrb[0].mxu0
    %v5251 = vadd.f32 0.0, %v5250
    %v5252 = vpop.f32.mrb[0].mxu0
    %5253 = vmatprep.mubr.bf16.mxu0 0
    %5254 = vmatmul.mubr.bf16.gmra.mrb[0].mxu0 %v5193
    %v5255 = vpop.f32.mrb[0].mxu0
    %v5256 = vadd.f32 0.0, %v5255
    %v5257 = vpop.f32.mrb[0].mxu0
    %v5258 = vpop.f32.mrb[0].mxu0
    %v5259 = vadd.f32 0.0, %v5258
    %v5260 = vpop.f32.mrb[0].mxu0
    %5261 = vmatprep.mubr.bf16.mxu0 0
    %5262 = vmatmul.mubr.bf16.gmra.mrb[0].mxu0 %v5196
    %v5263 = vpop.f32.mrb[0].mxu0
    %v5264 = vadd.f32 0.0, %v5263
    %v5265 = vpop.f32.mrb[0].mxu0
    %v5266 = vpop.f32.mrb[0].mxu0
    %v5267 = vadd.f32 0.0, %v5266
    %v5268 = vpop.f32.mrb[0].mxu0
    %5269 = vmatprep.mubr.bf16.mxu0 0
    %5270 = vmatmul.mubr.bf16.gmra.mrb[0].mxu0 %v5199
    %v5271 = vpop.f32.mrb[0].mxu0
    %v5272 = vadd.f32 0.0, %v5271
    %v5273 = vpop.f32.mrb[0].mxu0
    %v5274 = vpop.f32.mrb[0].mxu0
    %v5275 = vpop.f32.mrb[0].mxu0
    %5276 = vdwg.mxu0
    %v5277 = vpack.c.bf16 %v5240, %v5240
    %v5278 = vpack.c.bf16 %v5243, %v5243
    %v5295 = vunpack.c.l.b16 %v5034
    %v5296 = vunpack.c.h.b16 %v5034
    %v5297 = vunpack.c.l.b16 %v5035
    %v5298 = vunpack.c.h.b16 %v5035
    %v5299 = vunpack.c.l.b16 %v5036
    %v5300 = vunpack.c.h.b16 %v5036
    %v5301 = vunpack.c.l.b16 %v5037
    %v5302 = vunpack.c.h.b16 %v5037
    %v5303 = vunpack.c.l.b16 %v5038
    %v5304 = vunpack.c.h.b16 %v5038
    %v5305 = vunpack.c.l.b16 %v5039
    %v5306 = vunpack.c.h.b16 %v5039
    %v5307 = vunpack.c.l.b16 %v5040
    %v5308 = vunpack.c.h.b16 %v5040
    %v5309 = vunpack.c.l.b16 %v5041
    %v5310 = vunpack.c.h.b16 %v5041
    %v5311 = vunpack.c.l.b16 %v5042
    %v5312 = vunpack.c.h.b16 %v5042
    %v5313 = vunpack.c.l.b16 %v5043
    %v5314 = vunpack.c.h.b16 %v5043
    %v5315 = vunpack.c.l.b16 %v5044
    %v5316 = vunpack.c.h.b16 %v5044
    %v5317 = vunpack.c.l.b16 %v5045
    %v5318 = vunpack.c.h.b16 %v5045
    %v5319 = vunpack.c.l.b16 %v5046
    %v5320 = vunpack.c.h.b16 %v5046
    %v5321 = vunpack.c.l.b16 %v5047
    %v5322 = vunpack.c.h.b16 %v5047
    %v5323 = vunpack.c.l.b16 %v5048
    %v5324 = vunpack.c.h.b16 %v5048
    %v5325 = vunpack.c.l.b16 %v5049
    %v5326 = vunpack.c.h.b16 %v5049
    %v5327 = vpack.c.b16 %v5297, %v5295
    %v5328 = vpack.c.b16 %v5298, %v5296
    %v5329 = vpack.c.b16 %v5301, %v5299
    %v5330 = vpack.c.b16 %v5302, %v5300
    %v5331 = vpack.c.b16 %v5305, %v5303
    %v5332 = vpack.c.b16 %v5306, %v5304
    %v5333 = vpack.c.b16 %v5309, %v5307
    %v5334 = vpack.c.b16 %v5310, %v5308
    %v5335 = vpack.c.b16 %v5313, %v5311
    %v5336 = vpack.c.b16 %v5314, %v5312
    %v5337 = vpack.c.b16 %v5317, %v5315
    %v5338 = vpack.c.b16 %v5318, %v5316
    %v5339 = vpack.c.b16 %v5321, %v5319
    %v5340 = vpack.c.b16 %v5322, %v5320
    %v5341 = vpack.c.b16 %v5325, %v5323
    %v5342 = vpack.c.b16 %v5326, %v5324
    %5359 = vmatprep.subr.bf16.mxu0 %v5328
    %5360 = vmatpush1.bf16.msra.mxu0 %v5327
    %5361 = vmatprep.subr.bf16.mxu0 %v5330
    %5362 = vmatpush1.bf16.msra.mxu0 %v5329
    %5363 = vmatprep.subr.bf16.mxu0 %v5332
    %5364 = vmatpush1.bf16.msra.mxu0 %v5331
    %5365 = vmatprep.subr.bf16.mxu0 %v5334
    %5366 = vmatpush1.bf16.msra.mxu0 %v5333
    %5367 = vmatprep.subr.bf16.mxu0 %v5336
    %5368 = vmatpush1.bf16.msra.mxu0 %v5335
    %5369 = vmatprep.subr.bf16.mxu0 %v5338
    %5370 = vmatpush1.bf16.msra.mxu0 %v5337
    %5371 = vmatprep.subr.bf16.mxu0 %v5340
    %5372 = vmatpush1.bf16.msra.mxu0 %v5339
    %5373 = vmatprep.subr.bf16.mxu0 %v5342
    %5374 = vmatpush1.bf16.msra.mxu0 %v5341
    %5375 = vmatprep.subr.bf16.mxu0 0
    %5376 = vmatpush1.bf16.msra.mxu0 0
    %5377 = vmatprep.subr.bf16.mxu0 0
    %5378 = vmatpush1.bf16.msra.mxu0 0
    %5379 = vmatprep.subr.bf16.mxu0 0
    %5380 = vmatpush1.bf16.msra.mxu0 0
    %5381 = vmatprep.subr.bf16.mxu0 0
    %5382 = vmatpush1.bf16.msra.mxu0 0
    %5383 = vmatprep.subr.bf16.mxu0 0
    %5384 = vmatpush1.bf16.msra.mxu0 0
    %5385 = vmatprep.subr.bf16.mxu0 0
    %5386 = vmatpush1.bf16.msra.mxu0 0
    %5387 = vmatprep.subr.bf16.mxu0 0
    %5388 = vmatpush1.bf16.msra.mxu0 0
    %5389 = vmatprep.subr.bf16.mxu0 0
    %5390 = vmatpush1.bf16.msra.mxu0 0
    %5391 = vmatprep.mubr.bf16.mxu0 0
    %5392 = vmatmul.mubr.bf16.gmra.mrb[0].mxu0 %v5278
    %v5393 = vpop.f32.mrb[0].mxu0
    %v5394 = vadd.f32 0.0, %v5393
    %v5395 = vpop.f32.mrb[0].mxu0
    %v5396 = vadd.f32 0.0, %v5395
    %v5397 = vpop.f32.mrb[0].mxu0
    %v5398 = vpop.f32.mrb[0].mxu0
    %5399 = vdwg.mxu0
    %v5416 = vunpack.c.l.b16 %v5018
    %v5417 = vunpack.c.h.b16 %v5018
    %v5418 = vunpack.c.l.b16 %v5019
    %v5419 = vunpack.c.h.b16 %v5019
    %v5420 = vunpack.c.l.b16 %v5020
    %v5421 = vunpack.c.h.b16 %v5020
    %v5422 = vunpack.c.l.b16 %v5021
    %v5423 = vunpack.c.h.b16 %v5021
    %v5424 = vunpack.c.l.b16 %v5022
    %v5425 = vunpack.c.h.b16 %v5022
    %v5426 = vunpack.c.l.b16 %v5023
    %v5427 = vunpack.c.h.b16 %v5023
    %v5428 = vunpack.c.l.b16 %v5024
    %v5429 = vunpack.c.h.b16 %v5024
    %v5430 = vunpack.c.l.b16 %v5025
    %v5431 = vunpack.c.h.b16 %v5025
    %v5432 = vunpack.c.l.b16 %v5026
    %v5433 = vunpack.c.h.b16 %v5026
    %v5434 = vunpack.c.l.b16 %v5027
    %v5435 = vunpack.c.h.b16 %v5027
    %v5436 = vunpack.c.l.b16 %v5028
    %v5437 = vunpack.c.h.b16 %v5028
    %v5438 = vunpack.c.l.b16 %v5029
    %v5439 = vunpack.c.h.b16 %v5029
    %v5440 = vunpack.c.l.b16 %v5030
    %v5441 = vunpack.c.h.b16 %v5030
    %v5442 = vunpack.c.l.b16 %v5031
    %v5443 = vunpack.c.h.b16 %v5031
    %v5444 = vunpack.c.l.b16 %v5032
    %v5445 = vunpack.c.h.b16 %v5032
    %v5446 = vunpack.c.l.b16 %v5033
    %v5447 = vunpack.c.h.b16 %v5033
    %v5448 = vpack.c.b16 %v5418, %v5416
    %v5449 = vpack.c.b16 %v5419, %v5417
    %v5450 = vpack.c.b16 %v5422, %v5420
    %v5451 = vpack.c.b16 %v5423, %v5421
    %v5452 = vpack.c.b16 %v5426, %v5424
    %v5453 = vpack.c.b16 %v5427, %v5425
    %v5454 = vpack.c.b16 %v5430, %v5428
    %v5455 = vpack.c.b16 %v5431, %v5429
    %v5456 = vpack.c.b16 %v5434, %v5432
    %v5457 = vpack.c.b16 %v5435, %v5433
    %v5458 = vpack.c.b16 %v5438, %v5436
    %v5459 = vpack.c.b16 %v5439, %v5437
    %v5460 = vpack.c.b16 %v5442, %v5440
    %v5461 = vpack.c.b16 %v5443, %v5441
    %v5462 = vpack.c.b16 %v5446, %v5444
    %v5463 = vpack.c.b16 %v5447, %v5445
    %5480 = vmatprep.subr.bf16.mxu0 %v5449
    %5481 = vmatpush1.bf16.msra.mxu0 %v5448
    %5482 = vmatprep.subr.bf16.mxu0 %v5451
    %5483 = vmatpush1.bf16.msra.mxu0 %v5450
    %5484 = vmatprep.subr.bf16.mxu0 %v5453
    %5485 = vmatpush1.bf16.msra.mxu0 %v5452
    %5486 = vmatprep.subr.bf16.mxu0 %v5455
    %5487 = vmatpush1.bf16.msra.mxu0 %v5454
    %5488 = vmatprep.subr.bf16.mxu0 %v5457
    %5489 = vmatpush1.bf16.msra.mxu0 %v5456
    %5490 = vmatprep.subr.bf16.mxu0 %v5459
    %5491 = vmatpush1.bf16.msra.mxu0 %v5458
    %5492 = vmatprep.subr.bf16.mxu0 %v5461
    %5493 = vmatpush1.bf16.msra.mxu0 %v5460
    %5494 = vmatprep.subr.bf16.mxu0 %v5463
    %5495 = vmatpush1.bf16.msra.mxu0 %v5462
    %5496 = vmatprep.subr.bf16.mxu0 0
    %5497 = vmatpush1.bf16.msra.mxu0 0
    %5498 = vmatprep.subr.bf16.mxu0 0
    %5499 = vmatpush1.bf16.msra.mxu0 0
    %5500 = vmatprep.subr.bf16.mxu0 0
    %5501 = vmatpush1.bf16.msra.mxu0 0
    %5502 = vmatprep.subr.bf16.mxu0 0
    %5503 = vmatpush1.bf16.msra.mxu0 0
    %5504 = vmatprep.subr.bf16.mxu0 0
    %5505 = vmatpush1.bf16.msra.mxu0 0
    %5506 = vmatprep.subr.bf16.mxu0 0
    %5507 = vmatpush1.bf16.msra.mxu0 0
    %5508 = vmatprep.subr.bf16.mxu0 0
    %5509 = vmatpush1.bf16.msra.mxu0 0
    %5510 = vmatprep.subr.bf16.mxu0 0
    %5511 = vmatpush1.bf16.msra.mxu0 0
    %5512 = vmatprep.mubr.bf16.mxu0 0
    %5513 = vmatmul.mubr.bf16.gmra.mrb[0].mxu0 %v5277
    %v5514 = vpop.f32.mrb[0].mxu0
    %v5515 = vadd.f32 %v5394, %v5514
    %v5516 = vpop.f32.mrb[0].mxu0
    %v5517 = vadd.f32 %v5396, %v5516
    %v5518 = vpop.f32.mrb[0].mxu0
    %v5519 = vpop.f32.mrb[0].mxu0
    %5520 = vdwg.mxu0
    %v5521 = vpack.c.bf16 %v5248, %v5248
    %v5538 = vunpack.c.l.b16 %v5050
    %v5539 = vunpack.c.h.b16 %v5050
    %v5540 = vunpack.c.l.b16 %v5051
    %v5541 = vunpack.c.h.b16 %v5051
    %v5542 = vunpack.c.l.b16 %v5052
    %v5543 = vunpack.c.h.b16 %v5052
    %v5544 = vunpack.c.l.b16 %v5053
    %v5545 = vunpack.c.h.b16 %v5053
    %v5546 = vunpack.c.l.b16 %v5054
    %v5547 = vunpack.c.h.b16 %v5054
    %v5548 = vunpack.c.l.b16 %v5055
    %v5549 = vunpack.c.h.b16 %v5055
    %v5550 = vunpack.c.l.b16 %v5056
    %v5551 = vunpack.c.h.b16 %v5056
    %v5552 = vunpack.c.l.b16 %v5057
    %v5553 = vunpack.c.h.b16 %v5057
    %v5554 = vunpack.c.l.b16 %v5058
    %v5555 = vunpack.c.h.b16 %v5058
    %v5556 = vunpack.c.l.b16 %v5059
    %v5557 = vunpack.c.h.b16 %v5059
    %v5558 = vunpack.c.l.b16 %v5060
    %v5559 = vunpack.c.h.b16 %v5060
    %v5560 = vunpack.c.l.b16 %v5061
    %v5561 = vunpack.c.h.b16 %v5061
    %v5562 = vunpack.c.l.b16 %v5062
    %v5563 = vunpack.c.h.b16 %v5062
    %v5564 = vunpack.c.l.b16 %v5063
    %v5565 = vunpack.c.h.b16 %v5063
    %v5566 = vunpack.c.l.b16 %v5064
    %v5567 = vunpack.c.h.b16 %v5064
    %v5568 = vunpack.c.l.b16 %v5065
    %v5569 = vunpack.c.h.b16 %v5065
    %v5570 = vpack.c.b16 %v5540, %v5538
    %v5571 = vpack.c.b16 %v5541, %v5539
    %v5572 = vpack.c.b16 %v5544, %v5542
    %v5573 = vpack.c.b16 %v5545, %v5543
    %v5574 = vpack.c.b16 %v5548, %v5546
    %v5575 = vpack.c.b16 %v5549, %v5547
    %v5576 = vpack.c.b16 %v5552, %v5550
    %v5577 = vpack.c.b16 %v5553, %v5551
    %v5578 = vpack.c.b16 %v5556, %v5554
    %v5579 = vpack.c.b16 %v5557, %v5555
    %v5580 = vpack.c.b16 %v5560, %v5558
    %v5581 = vpack.c.b16 %v5561, %v5559
    %v5582 = vpack.c.b16 %v5564, %v5562
    %v5583 = vpack.c.b16 %v5565, %v5563
    %v5584 = vpack.c.b16 %v5568, %v5566
    %v5585 = vpack.c.b16 %v5569, %v5567
    %5602 = vmatprep.subr.bf16.mxu0 %v5571
    %5603 = vmatpush1.bf16.msra.mxu0 %v5570
    %5604 = vmatprep.subr.bf16.mxu0 %v5573
    %5605 = vmatpush1.bf16.msra.mxu0 %v5572
    %5606 = vmatprep.subr.bf16.mxu0 %v5575
    %5607 = vmatpush1.bf16.msra.mxu0 %v5574
    %5608 = vmatprep.subr.bf16.mxu0 %v5577
    %5609 = vmatpush1.bf16.msra.mxu0 %v5576
    %5610 = vmatprep.subr.bf16.mxu0 %v5579
    %5611 = vmatpush1.bf16.msra.mxu0 %v5578
    %5612 = vmatprep.subr.bf16.mxu0 %v5581
    %5613 = vmatpush1.bf16.msra.mxu0 %v5580
    %5614 = vmatprep.subr.bf16.mxu0 %v5583
    %5615 = vmatpush1.bf16.msra.mxu0 %v5582
    %5616 = vmatprep.subr.bf16.mxu0 %v5585
    %5617 = vmatpush1.bf16.msra.mxu0 %v5584
    %5618 = vmatprep.subr.bf16.mxu0 0
    %5619 = vmatpush1.bf16.msra.mxu0 0
    %5620 = vmatprep.subr.bf16.mxu0 0
    %5621 = vmatpush1.bf16.msra.mxu0 0
    %5622 = vmatprep.subr.bf16.mxu0 0
    %5623 = vmatpush1.bf16.msra.mxu0 0
    %5624 = vmatprep.subr.bf16.mxu0 0
    %5625 = vmatpush1.bf16.msra.mxu0 0
    %5626 = vmatprep.subr.bf16.mxu0 0
    %5627 = vmatpush1.bf16.msra.mxu0 0
    %5628 = vmatprep.subr.bf16.mxu0 0
    %5629 = vmatpush1.bf16.msra.mxu0 0
    %5630 = vmatprep.subr.bf16.mxu0 0
    %5631 = vmatpush1.bf16.msra.mxu0 0
    %5632 = vmatprep.subr.bf16.mxu0 0
    %5633 = vmatpush1.bf16.msra.mxu0 0
    %5634 = vmatprep.mubr.bf16.mxu0 0
    %5635 = vmatmul.mubr.bf16.gmra.mrb[0].mxu0 %v5521
    %v5636 = vpop.f32.mrb[0].mxu0
    %v5637 = vadd.f32 0.0, %v5636
    %v5638 = vpop.f32.mrb[0].mxu0
    %v5639 = vadd.f32 0.0, %v5638
    %v5640 = vpop.f32.mrb[0].mxu0
    %v5641 = vpop.f32.mrb[0].mxu0
    %5642 = vdwg.mxu0
    %v5643 = vadd.f32 %v5515, %v5637
    %v5644 = vadd.f32 %v5517, %v5639
    %v5645 = vpack.c.bf16 %v5251, %v5251
    %v5662 = vunpack.c.l.b16 %v5066
    %v5663 = vunpack.c.h.b16 %v5066
    %v5664 = vunpack.c.l.b16 %v5067
    %v5665 = vunpack.c.h.b16 %v5067
    %v5666 = vunpack.c.l.b16 %v5068
    %v5667 = vunpack.c.h.b16 %v5068
    %v5668 = vunpack.c.l.b16 %v5069
    %v5669 = vunpack.c.h.b16 %v5069
    %v5670 = vunpack.c.l.b16 %v5070
    %v5671 = vunpack.c.h.b16 %v5070
    %v5672 = vunpack.c.l.b16 %v5071
    %v5673 = vunpack.c.h.b16 %v5071
    %v5674 = vunpack.c.l.b16 %v5072
    %v5675 = vunpack.c.h.b16 %v5072
    %v5676 = vunpack.c.l.b16 %v5073
    %v5677 = vunpack.c.h.b16 %v5073
    %v5678 = vunpack.c.l.b16 %v5074
    %v5679 = vunpack.c.h.b16 %v5074
    %v5680 = vunpack.c.l.b16 %v5075
    %v5681 = vunpack.c.h.b16 %v5075
    %v5682 = vunpack.c.l.b16 %v5076
    %v5683 = vunpack.c.h.b16 %v5076
    %v5684 = vunpack.c.l.b16 %v5077
    %v5685 = vunpack.c.h.b16 %v5077
    %v5686 = vunpack.c.l.b16 %v5078
    %v5687 = vunpack.c.h.b16 %v5078
    %v5688 = vunpack.c.l.b16 %v5079
    %v5689 = vunpack.c.h.b16 %v5079
    %v5690 = vunpack.c.l.b16 %v5080
    %v5691 = vunpack.c.h.b16 %v5080
    %v5692 = vunpack.c.l.b16 %v5081
    %v5693 = vunpack.c.h.b16 %v5081
    %v5694 = vpack.c.b16 %v5664, %v5662
    %v5695 = vpack.c.b16 %v5665, %v5663
    %v5696 = vpack.c.b16 %v5668, %v5666
    %v5697 = vpack.c.b16 %v5669, %v5667
    %v5698 = vpack.c.b16 %v5672, %v5670
    %v5699 = vpack.c.b16 %v5673, %v5671
    %v5700 = vpack.c.b16 %v5676, %v5674
    %v5701 = vpack.c.b16 %v5677, %v5675
    %v5702 = vpack.c.b16 %v5680, %v5678
    %v5703 = vpack.c.b16 %v5681, %v5679
    %v5704 = vpack.c.b16 %v5684, %v5682
    %v5705 = vpack.c.b16 %v5685, %v5683
    %v5706 = vpack.c.b16 %v5688, %v5686
    %v5707 = vpack.c.b16 %v5689, %v5687
    %v5708 = vpack.c.b16 %v5692, %v5690
    %v5709 = vpack.c.b16 %v5693, %v5691
    %5726 = vmatprep.subr.bf16.mxu0 %v5695
    %5727 = vmatpush1.bf16.msra.mxu0 %v5694
    %5728 = vmatprep.subr.bf16.mxu0 %v5697
    %5729 = vmatpush1.bf16.msra.mxu0 %v5696
    %5730 = vmatprep.subr.bf16.mxu0 %v5699
    %5731 = vmatpush1.bf16.msra.mxu0 %v5698
    %5732 = vmatprep.subr.bf16.mxu0 %v5701
    %5733 = vmatpush1.bf16.msra.mxu0 %v5700
    %5734 = vmatprep.subr.bf16.mxu0 %v5703
    %5735 = vmatpush1.bf16.msra.mxu0 %v5702
    %5736 = vmatprep.subr.bf16.mxu0 %v5705
    %5737 = vmatpush1.bf16.msra.mxu0 %v5704
    %5738 = vmatprep.subr.bf16.mxu0 %v5707
    %5739 = vmatpush1.bf16.msra.mxu0 %v5706
    %5740 = vmatprep.subr.bf16.mxu0 %v5709
    %5741 = vmatpush1.bf16.msra.mxu0 %v5708
    %5742 = vmatprep.subr.bf16.mxu0 0
    %5743 = vmatpush1.bf16.msra.mxu0 0
    %5744 = vmatprep.subr.bf16.mxu0 0
    %5745 = vmatpush1.bf16.msra.mxu0 0
    %5746 = vmatprep.subr.bf16.mxu0 0
    %5747 = vmatpush1.bf16.msra.mxu0 0
    %5748 = vmatprep.subr.bf16.mxu0 0
    %5749 = vmatpush1.bf16.msra.mxu0 0
    %5750 = vmatprep.subr.bf16.mxu0 0
    %5751 = vmatpush1.bf16.msra.mxu0 0
    %5752 = vmatprep.subr.bf16.mxu0 0
    %5753 = vmatpush1.bf16.msra.mxu0 0
    %5754 = vmatprep.subr.bf16.mxu0 0
    %5755 = vmatpush1.bf16.msra.mxu0 0
    %5756 = vmatprep.subr.bf16.mxu0 0
    %5757 = vmatpush1.bf16.msra.mxu0 0
    %5758 = vmatprep.mubr.bf16.mxu0 0
    %5759 = vmatmul.mubr.bf16.gmra.mrb[0].mxu0 %v5645
    %v5760 = vpop.f32.mrb[0].mxu0
    %v5761 = vadd.f32 0.0, %v5760
    %v5762 = vpop.f32.mrb[0].mxu0
    %v5763 = vadd.f32 0.0, %v5762
    %v5764 = vpop.f32.mrb[0].mxu0
    %v5765 = vpop.f32.mrb[0].mxu0
    %5766 = vdwg.mxu0
    %v5767 = vadd.f32 %v5643, %v5761
    %v5768 = vadd.f32 %v5644, %v5763
    %v5769 = vpack.c.bf16 %v5256, %v5256
    %v5786 = vunpack.c.l.b16 %v5082
    %v5787 = vunpack.c.h.b16 %v5082
    %v5788 = vunpack.c.l.b16 %v5083
    %v5789 = vunpack.c.h.b16 %v5083
    %v5790 = vunpack.c.l.b16 %v5084
    %v5791 = vunpack.c.h.b16 %v5084
    %v5792 = vunpack.c.l.b16 %v5085
    %v5793 = vunpack.c.h.b16 %v5085
    %v5794 = vunpack.c.l.b16 %v5086
    %v5795 = vunpack.c.h.b16 %v5086
    %v5796 = vunpack.c.l.b16 %v5087
    %v5797 = vunpack.c.h.b16 %v5087
    %v5798 = vunpack.c.l.b16 %v5088
    %v5799 = vunpack.c.h.b16 %v5088
    %v5800 = vunpack.c.l.b16 %v5089
    %v5801 = vunpack.c.h.b16 %v5089
    %v5802 = vunpack.c.l.b16 %v5090
    %v5803 = vunpack.c.h.b16 %v5090
    %v5804 = vunpack.c.l.b16 %v5091
    %v5805 = vunpack.c.h.b16 %v5091
    %v5806 = vunpack.c.l.b16 %v5092
    %v5807 = vunpack.c.h.b16 %v5092
    %v5808 = vunpack.c.l.b16 %v5093
    %v5809 = vunpack.c.h.b16 %v5093
    %v5810 = vunpack.c.l.b16 %v5094
    %v5811 = vunpack.c.h.b16 %v5094
    %v5812 = vunpack.c.l.b16 %v5095
    %v5813 = vunpack.c.h.b16 %v5095
    %v5814 = vunpack.c.l.b16 %v5096
    %v5815 = vunpack.c.h.b16 %v5096
    %v5816 = vunpack.c.l.b16 %v5097
    %v5817 = vunpack.c.h.b16 %v5097
    %v5818 = vpack.c.b16 %v5788, %v5786
    %v5819 = vpack.c.b16 %v5789, %v5787
    %v5820 = vpack.c.b16 %v5792, %v5790
    %v5821 = vpack.c.b16 %v5793, %v5791
    %v5822 = vpack.c.b16 %v5796, %v5794
    %v5823 = vpack.c.b16 %v5797, %v5795
    %v5824 = vpack.c.b16 %v5800, %v5798
    %v5825 = vpack.c.b16 %v5801, %v5799
    %v5826 = vpack.c.b16 %v5804, %v5802
    %v5827 = vpack.c.b16 %v5805, %v5803
    %v5828 = vpack.c.b16 %v5808, %v5806
    %v5829 = vpack.c.b16 %v5809, %v5807
    %v5830 = vpack.c.b16 %v5812, %v5810
    %v5831 = vpack.c.b16 %v5813, %v5811
    %v5832 = vpack.c.b16 %v5816, %v5814
    %v5833 = vpack.c.b16 %v5817, %v5815
    %5850 = vmatprep.subr.bf16.mxu0 %v5819
    %5851 = vmatpush1.bf16.msra.mxu0 %v5818
    %5852 = vmatprep.subr.bf16.mxu0 %v5821
    %5853 = vmatpush1.bf16.msra.mxu0 %v5820
    %5854 = vmatprep.subr.bf16.mxu0 %v5823
    %5855 = vmatpush1.bf16.msra.mxu0 %v5822
    %5856 = vmatprep.subr.bf16.mxu0 %v5825
    %5857 = vmatpush1.bf16.msra.mxu0 %v5824
    %5858 = vmatprep.subr.bf16.mxu0 %v5827
    %5859 = vmatpush1.bf16.msra.mxu0 %v5826
    %5860 = vmatprep.subr.bf16.mxu0 %v5829
    %5861 = vmatpush1.bf16.msra.mxu0 %v5828
    %5862 = vmatprep.subr.bf16.mxu0 %v5831
    %5863 = vmatpush1.bf16.msra.mxu0 %v5830
    %5864 = vmatprep.subr.bf16.mxu0 %v5833
    %5865 = vmatpush1.bf16.msra.mxu0 %v5832
    %5866 = vmatprep.subr.bf16.mxu0 0
    %5867 = vmatpush1.bf16.msra.mxu0 0
    %5868 = vmatprep.subr.bf16.mxu0 0
    %5869 = vmatpush1.bf16.msra.mxu0 0
    %5870 = vmatprep.subr.bf16.mxu0 0
    %5871 = vmatpush1.bf16.msra.mxu0 0
    %5872 = vmatprep.subr.bf16.mxu0 0
    %5873 = vmatpush1.bf16.msra.mxu0 0
    %5874 = vmatprep.subr.bf16.mxu0 0
    %5875 = vmatpush1.bf16.msra.mxu0 0
    %5876 = vmatprep.subr.bf16.mxu0 0
    %5877 = vmatpush1.bf16.msra.mxu0 0
    %5878 = vmatprep.subr.bf16.mxu0 0
    %5879 = vmatpush1.bf16.msra.mxu0 0
    %5880 = vmatprep.subr.bf16.mxu0 0
    %5881 = vmatpush1.bf16.msra.mxu0 0
    %5882 = vmatprep.mubr.bf16.mxu0 0
    %5883 = vmatmul.mubr.bf16.gmra.mrb[0].mxu0 %v5769
    %v5884 = vpop.f32.mrb[0].mxu0
    %v5885 = vadd.f32 0.0, %v5884
    %v5886 = vpop.f32.mrb[0].mxu0
    %v5887 = vadd.f32 0.0, %v5886
    %v5888 = vpop.f32.mrb[0].mxu0
    %v5889 = vpop.f32.mrb[0].mxu0
    %5890 = vdwg.mxu0
    %v5891 = vadd.f32 %v5767, %v5885
    %v5892 = vadd.f32 %v5768, %v5887
    %v5893 = vpack.c.bf16 %v5259, %v5259
    %v5910 = vunpack.c.l.b16 %v5098
    %v5911 = vunpack.c.h.b16 %v5098
    %v5912 = vunpack.c.l.b16 %v5099
    %v5913 = vunpack.c.h.b16 %v5099
    %v5914 = vunpack.c.l.b16 %v5100
    %v5915 = vunpack.c.h.b16 %v5100
    %v5916 = vunpack.c.l.b16 %v5101
    %v5917 = vunpack.c.h.b16 %v5101
    %v5918 = vunpack.c.l.b16 %v5102
    %v5919 = vunpack.c.h.b16 %v5102
    %v5920 = vunpack.c.l.b16 %v5103
    %v5921 = vunpack.c.h.b16 %v5103
    %v5922 = vunpack.c.l.b16 %v5104
    %v5923 = vunpack.c.h.b16 %v5104
    %v5924 = vunpack.c.l.b16 %v5105
    %v5925 = vunpack.c.h.b16 %v5105
    %v5926 = vunpack.c.l.b16 %v5106
    %v5927 = vunpack.c.h.b16 %v5106
    %v5928 = vunpack.c.l.b16 %v5107
    %v5929 = vunpack.c.h.b16 %v5107
    %v5930 = vunpack.c.l.b16 %v5108
    %v5931 = vunpack.c.h.b16 %v5108
    %v5932 = vunpack.c.l.b16 %v5109
    %v5933 = vunpack.c.h.b16 %v5109
    %v5934 = vunpack.c.l.b16 %v5110
    %v5935 = vunpack.c.h.b16 %v5110
    %v5936 = vunpack.c.l.b16 %v5111
    %v5937 = vunpack.c.h.b16 %v5111
    %v5938 = vunpack.c.l.b16 %v5112
    %v5939 = vunpack.c.h.b16 %v5112
    %v5940 = vunpack.c.l.b16 %v5113
    %v5941 = vunpack.c.h.b16 %v5113
    %v5942 = vpack.c.b16 %v5912, %v5910
    %v5943 = vpack.c.b16 %v5913, %v5911
    %v5944 = vpack.c.b16 %v5916, %v5914
    %v5945 = vpack.c.b16 %v5917, %v5915
    %v5946 = vpack.c.b16 %v5920, %v5918
    %v5947 = vpack.c.b16 %v5921, %v5919
    %v5948 = vpack.c.b16 %v5924, %v5922
    %v5949 = vpack.c.b16 %v5925, %v5923
    %v5950 = vpack.c.b16 %v5928, %v5926
    %v5951 = vpack.c.b16 %v5929, %v5927
    %v5952 = vpack.c.b16 %v5932, %v5930
    %v5953 = vpack.c.b16 %v5933, %v5931
    %v5954 = vpack.c.b16 %v5936, %v5934
    %v5955 = vpack.c.b16 %v5937, %v5935
    %v5956 = vpack.c.b16 %v5940, %v5938
    %v5957 = vpack.c.b16 %v5941, %v5939
    %5974 = vmatprep.subr.bf16.mxu0 %v5943
    %5975 = vmatpush1.bf16.msra.mxu0 %v5942
    %5976 = vmatprep.subr.bf16.mxu0 %v5945
    %5977 = vmatpush1.bf16.msra.mxu0 %v5944
    %5978 = vmatprep.subr.bf16.mxu0 %v5947
    %5979 = vmatpush1.bf16.msra.mxu0 %v5946
    %5980 = vmatprep.subr.bf16.mxu0 %v5949
    %5981 = vmatpush1.bf16.msra.mxu0 %v5948
    %5982 = vmatprep.subr.bf16.mxu0 %v5951
    %5983 = vmatpush1.bf16.msra.mxu0 %v5950
    %5984 = vmatprep.subr.bf16.mxu0 %v5953
    %5985 = vmatpush1.bf16.msra.mxu0 %v5952
    %5986 = vmatprep.subr.bf16.mxu0 %v5955
    %5987 = vmatpush1.bf16.msra.mxu0 %v5954
    %5988 = vmatprep.subr.bf16.mxu0 %v5957
    %5989 = vmatpush1.bf16.msra.mxu0 %v5956
    %5990 = vmatprep.subr.bf16.mxu0 0
    %5991 = vmatpush1.bf16.msra.mxu0 0
    %5992 = vmatprep.subr.bf16.mxu0 0
    %5993 = vmatpush1.bf16.msra.mxu0 0
    %5994 = vmatprep.subr.bf16.mxu0 0
    %5995 = vmatpush1.bf16.msra.mxu0 0
    %5996 = vmatprep.subr.bf16.mxu0 0
    %5997 = vmatpush1.bf16.msra.mxu0 0
    %5998 = vmatprep.subr.bf16.mxu0 0
    %5999 = vmatpush1.bf16.msra.mxu0 0
    %6000 = vmatprep.subr.bf16.mxu0 0
    %6001 = vmatpush1.bf16.msra.mxu0 0
    %6002 = vmatprep.subr.bf16.mxu0 0
    %6003 = vmatpush1.bf16.msra.mxu0 0
    %6004 = vmatprep.subr.bf16.mxu0 0
    %6005 = vmatpush1.bf16.msra.mxu0 0
    %6006 = vmatprep.mubr.bf16.mxu0 0
    %6007 = vmatmul.mubr.bf16.gmra.mrb[0].mxu0 %v5893
    %v6008 = vpop.f32.mrb[0].mxu0
    %v6009 = vadd.f32 0.0, %v6008
    %v6010 = vpop.f32.mrb[0].mxu0
    %v6011 = vadd.f32 0.0, %v6010
    %v6012 = vpop.f32.mrb[0].mxu0
    %v6013 = vpop.f32.mrb[0].mxu0
    %6014 = vdwg.mxu0
    %v6015 = vadd.f32 %v5891, %v6009
    %v6016 = vadd.f32 %v5892, %v6011
    %v6017 = vpack.c.bf16 %v5264, %v5264
    %v6034 = vunpack.c.l.b16 %v5114
    %v6035 = vunpack.c.h.b16 %v5114
    %v6036 = vunpack.c.l.b16 %v5115
    %v6037 = vunpack.c.h.b16 %v5115
    %v6038 = vunpack.c.l.b16 %v5116
    %v6039 = vunpack.c.h.b16 %v5116
    %v6040 = vunpack.c.l.b16 %v5117
    %v6041 = vunpack.c.h.b16 %v5117
    %v6042 = vunpack.c.l.b16 %v5118
    %v6043 = vunpack.c.h.b16 %v5118
    %v6044 = vunpack.c.l.b16 %v5119
    %v6045 = vunpack.c.h.b16 %v5119
    %v6046 = vunpack.c.l.b16 %v5120
    %v6047 = vunpack.c.h.b16 %v5120
    %v6048 = vunpack.c.l.b16 %v5121
    %v6049 = vunpack.c.h.b16 %v5121
    %v6050 = vunpack.c.l.b16 %v5122
    %v6051 = vunpack.c.h.b16 %v5122
    %v6052 = vunpack.c.l.b16 %v5123
    %v6053 = vunpack.c.h.b16 %v5123
    %v6054 = vunpack.c.l.b16 %v5124
    %v6055 = vunpack.c.h.b16 %v5124
    %v6056 = vunpack.c.l.b16 %v5125
    %v6057 = vunpack.c.h.b16 %v5125
    %v6058 = vunpack.c.l.b16 %v5126
    %v6059 = vunpack.c.h.b16 %v5126
    %v6060 = vunpack.c.l.b16 %v5127
    %v6061 = vunpack.c.h.b16 %v5127
    %v6062 = vunpack.c.l.b16 %v5128
    %v6063 = vunpack.c.h.b16 %v5128
    %v6064 = vunpack.c.l.b16 %v5129
    %v6065 = vunpack.c.h.b16 %v5129
    %v6066 = vpack.c.b16 %v6036, %v6034
    %v6067 = vpack.c.b16 %v6037, %v6035
    %v6068 = vpack.c.b16 %v6040, %v6038
    %v6069 = vpack.c.b16 %v6041, %v6039
    %v6070 = vpack.c.b16 %v6044, %v6042
    %v6071 = vpack.c.b16 %v6045, %v6043
    %v6072 = vpack.c.b16 %v6048, %v6046
    %v6073 = vpack.c.b16 %v6049, %v6047
    %v6074 = vpack.c.b16 %v6052, %v6050
    %v6075 = vpack.c.b16 %v6053, %v6051
    %v6076 = vpack.c.b16 %v6056, %v6054
    %v6077 = vpack.c.b16 %v6057, %v6055
    %v6078 = vpack.c.b16 %v6060, %v6058
    %v6079 = vpack.c.b16 %v6061, %v6059
    %v6080 = vpack.c.b16 %v6064, %v6062
    %v6081 = vpack.c.b16 %v6065, %v6063
    %6098 = vmatprep.subr.bf16.mxu0 %v6067
    %6099 = vmatpush1.bf16.msra.mxu0 %v6066
    %6100 = vmatprep.subr.bf16.mxu0 %v6069
    %6101 = vmatpush1.bf16.msra.mxu0 %v6068
    %6102 = vmatprep.subr.bf16.mxu0 %v6071
    %6103 = vmatpush1.bf16.msra.mxu0 %v6070
    %6104 = vmatprep.subr.bf16.mxu0 %v6073
    %6105 = vmatpush1.bf16.msra.mxu0 %v6072
    %6106 = vmatprep.subr.bf16.mxu0 %v6075
    %6107 = vmatpush1.bf16.msra.mxu0 %v6074
    %6108 = vmatprep.subr.bf16.mxu0 %v6077
    %6109 = vmatpush1.bf16.msra.mxu0 %v6076
    %6110 = vmatprep.subr.bf16.mxu0 %v6079
    %6111 = vmatpush1.bf16.msra.mxu0 %v6078
    %6112 = vmatprep.subr.bf16.mxu0 %v6081
    %6113 = vmatpush1.bf16.msra.mxu0 %v6080
    %6114 = vmatprep.subr.bf16.mxu0 0
    %6115 = vmatpush1.bf16.msra.mxu0 0
    %6116 = vmatprep.subr.bf16.mxu0 0
    %6117 = vmatpush1.bf16.msra.mxu0 0
    %6118 = vmatprep.subr.bf16.mxu0 0
    %6119 = vmatpush1.bf16.msra.mxu0 0
    %6120 = vmatprep.subr.bf16.mxu0 0
    %6121 = vmatpush1.bf16.msra.mxu0 0
    %6122 = vmatprep.subr.bf16.mxu0 0
    %6123 = vmatpush1.bf16.msra.mxu0 0
    %6124 = vmatprep.subr.bf16.mxu0 0
    %6125 = vmatpush1.bf16.msra.mxu0 0
    %6126 = vmatprep.subr.bf16.mxu0 0
    %6127 = vmatpush1.bf16.msra.mxu0 0
    %6128 = vmatprep.subr.bf16.mxu0 0
    %6129 = vmatpush1.bf16.msra.mxu0 0
    %6130 = vmatprep.mubr.bf16.mxu0 0
    %6131 = vmatmul.mubr.bf16.gmra.mrb[0].mxu0 %v6017
    %v6132 = vpop.f32.mrb[0].mxu0
    %v6133 = vadd.f32 0.0, %v6132
    %v6134 = vpop.f32.mrb[0].mxu0
    %v6135 = vadd.f32 0.0, %v6134
    %v6136 = vpop.f32.mrb[0].mxu0
    %v6137 = vpop.f32.mrb[0].mxu0
    %6138 = vdwg.mxu0
    %v6139 = vadd.f32 %v6015, %v6133
    %v6140 = vadd.f32 %v6016, %v6135
    %v6141 = vpack.c.bf16 %v5267, %v5267
    %v6158 = vunpack.c.l.b16 %v5130
    %v6159 = vunpack.c.h.b16 %v5130
    %v6160 = vunpack.c.l.b16 %v5131
    %v6161 = vunpack.c.h.b16 %v5131
    %v6162 = vunpack.c.l.b16 %v5132
    %v6163 = vunpack.c.h.b16 %v5132
    %v6164 = vunpack.c.l.b16 %v5133
    %v6165 = vunpack.c.h.b16 %v5133
    %v6166 = vunpack.c.l.b16 %v5134
    %v6167 = vunpack.c.h.b16 %v5134
    %v6168 = vunpack.c.l.b16 %v5135
    %v6169 = vunpack.c.h.b16 %v5135
    %v6170 = vunpack.c.l.b16 %v5136
    %v6171 = vunpack.c.h.b16 %v5136
    %v6172 = vunpack.c.l.b16 %v5137
    %v6173 = vunpack.c.h.b16 %v5137
    %v6174 = vunpack.c.l.b16 %v5138
    %v6175 = vunpack.c.h.b16 %v5138
    %v6176 = vunpack.c.l.b16 %v5139
    %v6177 = vunpack.c.h.b16 %v5139
    %v6178 = vunpack.c.l.b16 %v5140
    %v6179 = vunpack.c.h.b16 %v5140
    %v6180 = vunpack.c.l.b16 %v5141
    %v6181 = vunpack.c.h.b16 %v5141
    %v6182 = vunpack.c.l.b16 %v5142
    %v6183 = vunpack.c.h.b16 %v5142
    %v6184 = vunpack.c.l.b16 %v5143
    %v6185 = vunpack.c.h.b16 %v5143
    %v6186 = vunpack.c.l.b16 %v5144
    %v6187 = vunpack.c.h.b16 %v5144
    %v6188 = vunpack.c.l.b16 %v5145
    %v6189 = vunpack.c.h.b16 %v5145
    %v6190 = vpack.c.b16 %v6160, %v6158
    %v6191 = vpack.c.b16 %v6161, %v6159
    %v6192 = vpack.c.b16 %v6164, %v6162
    %v6193 = vpack.c.b16 %v6165, %v6163
    %v6194 = vpack.c.b16 %v6168, %v6166
    %v6195 = vpack.c.b16 %v6169, %v6167
    %v6196 = vpack.c.b16 %v6172, %v6170
    %v6197 = vpack.c.b16 %v6173, %v6171
    %v6198 = vpack.c.b16 %v6176, %v6174
    %v6199 = vpack.c.b16 %v6177, %v6175
    %v6200 = vpack.c.b16 %v6180, %v6178
    %v6201 = vpack.c.b16 %v6181, %v6179
    %v6202 = vpack.c.b16 %v6184, %v6182
    %v6203 = vpack.c.b16 %v6185, %v6183
    %v6204 = vpack.c.b16 %v6188, %v6186
    %v6205 = vpack.c.b16 %v6189, %v6187
    %6222 = vmatprep.subr.bf16.mxu0 %v6191
    %6223 = vmatpush1.bf16.msra.mxu0 %v6190
    %6224 = vmatprep.subr.bf16.mxu0 %v6193
    %6225 = vmatpush1.bf16.msra.mxu0 %v6192
    %6226 = vmatprep.subr.bf16.mxu0 %v6195
    %6227 = vmatpush1.bf16.msra.mxu0 %v6194
    %6228 = vmatprep.subr.bf16.mxu0 %v6197
    %6229 = vmatpush1.bf16.msra.mxu0 %v6196
    %6230 = vmatprep.subr.bf16.mxu0 %v6199
    %6231 = vmatpush1.bf16.msra.mxu0 %v6198
    %6232 = vmatprep.subr.bf16.mxu0 %v6201
    %6233 = vmatpush1.bf16.msra.mxu0 %v6200
    %6234 = vmatprep.subr.bf16.mxu0 %v6203
    %6235 = vmatpush1.bf16.msra.mxu0 %v6202
    %6236 = vmatprep.subr.bf16.mxu0 %v6205
    %6237 = vmatpush1.bf16.msra.mxu0 %v6204
    %6238 = vmatprep.subr.bf16.mxu0 0
    %6239 = vmatpush1.bf16.msra.mxu0 0
    %6240 = vmatprep.subr.bf16.mxu0 0
    %6241 = vmatpush1.bf16.msra.mxu0 0
    %6242 = vmatprep.subr.bf16.mxu0 0
    %6243 = vmatpush1.bf16.msra.mxu0 0
    %6244 = vmatprep.subr.bf16.mxu0 0
    %6245 = vmatpush1.bf16.msra.mxu0 0
    %6246 = vmatprep.subr.bf16.mxu0 0
    %6247 = vmatpush1.bf16.msra.mxu0 0
    %6248 = vmatprep.subr.bf16.mxu0 0
    %6249 = vmatpush1.bf16.msra.mxu0 0
    %6250 = vmatprep.subr.bf16.mxu0 0
    %6251 = vmatpush1.bf16.msra.mxu0 0
    %6252 = vmatprep.subr.bf16.mxu0 0
    %6253 = vmatpush1.bf16.msra.mxu0 0
    %6254 = vmatprep.mubr.bf16.mxu0 0
    %6255 = vmatmul.mubr.bf16.gmra.mrb[0].mxu0 %v6141
    %v6256 = vpop.f32.mrb[0].mxu0
    %v6257 = vadd.f32 0.0, %v6256
    %v6258 = vpop.f32.mrb[0].mxu0
    %v6259 = vadd.f32 0.0, %v6258
    %v6260 = vpop.f32.mrb[0].mxu0
    %v6261 = vpop.f32.mrb[0].mxu0
    %6262 = vdwg.mxu0
    %v6263 = vadd.f32 %v6139, %v6257
    %v6264 = vadd.f32 %v6140, %v6259
    %v6265 = vpack.c.bf16 %v5272, %v5272
    %v6282 = vunpack.c.l.b16 %v5146
    %v6283 = vunpack.c.h.b16 %v5146
    %v6284 = vunpack.c.l.b16 %v5147
    %v6285 = vunpack.c.h.b16 %v5147
    %v6286 = vunpack.c.l.b16 %v5148
    %v6287 = vunpack.c.h.b16 %v5148
    %v6288 = vunpack.c.l.b16 %v5149
    %v6289 = vunpack.c.h.b16 %v5149
    %v6290 = vunpack.c.l.b16 %v5150
    %v6291 = vunpack.c.h.b16 %v5150
    %v6292 = vunpack.c.l.b16 %v5151
    %v6293 = vunpack.c.h.b16 %v5151
    %v6294 = vunpack.c.l.b16 %v5152
    %v6295 = vunpack.c.h.b16 %v5152
    %v6296 = vunpack.c.l.b16 %v5153
    %v6297 = vunpack.c.h.b16 %v5153
    %v6298 = vunpack.c.l.b16 %v5154
    %v6299 = vunpack.c.h.b16 %v5154
    %v6300 = vunpack.c.l.b16 %v5155
    %v6301 = vunpack.c.h.b16 %v5155
    %v6302 = vunpack.c.l.b16 %v5156
    %v6303 = vunpack.c.h.b16 %v5156
    %v6304 = vunpack.c.l.b16 %v5157
    %v6305 = vunpack.c.h.b16 %v5157
    %v6306 = vunpack.c.l.b16 %v5158
    %v6307 = vunpack.c.h.b16 %v5158
    %v6308 = vunpack.c.l.b16 %v5159
    %v6309 = vunpack.c.h.b16 %v5159
    %v6310 = vunpack.c.l.b16 %v5160
    %v6311 = vunpack.c.h.b16 %v5160
    %v6312 = vunpack.c.l.b16 %v5161
    %v6313 = vunpack.c.h.b16 %v5161
    %v6314 = vpack.c.b16 %v6284, %v6282
    %v6315 = vpack.c.b16 %v6285, %v6283
    %v6316 = vpack.c.b16 %v6288, %v6286
    %v6317 = vpack.c.b16 %v6289, %v6287
    %v6318 = vpack.c.b16 %v6292, %v6290
    %v6319 = vpack.c.b16 %v6293, %v6291
    %v6320 = vpack.c.b16 %v6296, %v6294
    %v6321 = vpack.c.b16 %v6297, %v6295
    %v6322 = vpack.c.b16 %v6300, %v6298
    %v6323 = vpack.c.b16 %v6301, %v6299
    %v6324 = vpack.c.b16 %v6304, %v6302
    %v6325 = vpack.c.b16 %v6305, %v6303
    %v6326 = vpack.c.b16 %v6308, %v6306
    %v6327 = vpack.c.b16 %v6309, %v6307
    %v6328 = vpack.c.b16 %v6312, %v6310
    %v6329 = vpack.c.b16 %v6313, %v6311
    %6346 = vmatprep.subr.bf16.mxu0 %v6315
    %6347 = vmatpush1.bf16.msra.mxu0 %v6314
    %6348 = vmatprep.subr.bf16.mxu0 %v6317
    %6349 = vmatpush1.bf16.msra.mxu0 %v6316
    %6350 = vmatprep.subr.bf16.mxu0 %v6319
    %6351 = vmatpush1.bf16.msra.mxu0 %v6318
    %6352 = vmatprep.subr.bf16.mxu0 %v6321
    %6353 = vmatpush1.bf16.msra.mxu0 %v6320
    %6354 = vmatprep.subr.bf16.mxu0 %v6323
    %6355 = vmatpush1.bf16.msra.mxu0 %v6322
    %6356 = vmatprep.subr.bf16.mxu0 %v6325
    %6357 = vmatpush1.bf16.msra.mxu0 %v6324
    %6358 = vmatprep.subr.bf16.mxu0 %v6327
    %6359 = vmatpush1.bf16.msra.mxu0 %v6326
    %6360 = vmatprep.subr.bf16.mxu0 %v6329
    %6361 = vmatpush1.bf16.msra.mxu0 %v6328
    %6362 = vmatprep.subr.bf16.mxu0 0
    %6363 = vmatpush1.bf16.msra.mxu0 0
    %6364 = vmatprep.subr.bf16.mxu0 0
    %6365 = vmatpush1.bf16.msra.mxu0 0
    %6366 = vmatprep.subr.bf16.mxu0 0
    %6367 = vmatpush1.bf16.msra.mxu0 0
    %6368 = vmatprep.subr.bf16.mxu0 0
    %6369 = vmatpush1.bf16.msra.mxu0 0
    %6370 = vmatprep.subr.bf16.mxu0 0
    %6371 = vmatpush1.bf16.msra.mxu0 0
    %6372 = vmatprep.subr.bf16.mxu0 0
    %6373 = vmatpush1.bf16.msra.mxu0 0
    %6374 = vmatprep.subr.bf16.mxu0 0
    %6375 = vmatpush1.bf16.msra.mxu0 0
    %6376 = vmatprep.subr.bf16.mxu0 0
    %6377 = vmatpush1.bf16.msra.mxu0 0
    %6378 = vmatprep.mubr.bf16.mxu0 0
    %6379 = vmatmul.mubr.bf16.gmra.mrb[0].mxu0 %v6265
    %v6380 = vpop.f32.mrb[0].mxu0
    %v6381 = vadd.f32 0.0, %v6380
    %v6382 = vpop.f32.mrb[0].mxu0
    %v6383 = vadd.f32 0.0, %v6382
    %v6384 = vpop.f32.mrb[0].mxu0
    %v6385 = vpop.f32.mrb[0].mxu0
    %6386 = vdwg.mxu0
    %v6387 = vadd.f32 %v6263, %v6381
    %v6388 = vadd.f32 %v6264, %v6383
    %v6389 = vld [vmem:[%s11] sm:$0x3]
    %v6391 = vlaneseq
    %v6392 = vshrl.u32 %v6391, 7
    %v6393 = vsub.s32 0, %v6392
    %v6394 = vrot.slane %v6389, %v6393
    %v6395 = vlaneseq
    %v6396 = vshrl.u32 %v6395, 7
    %v6397 = vsub.s32 1, %v6396
    %v6398 = vrot.slane %v6389, %v6397
    %v6401 = vadd.f32 %v6387, %v6394
    %v6402 = vadd.f32 %v6388, %v6398
    %vm6403 = vcmp.ge.f32.partialorder %v6401, 0.0
    %vm6404 = vcmp.ge.f32.partialorder %v6402, 0.0
    %v6405 = vmul.f32 %v6401, 0.01
    %v6406 = vmul.f32 %v6402, 0.01
    %v6407 = vsel %vm6403, %v6401, %v6405
    %v6408 = vsel %vm6404, %v6402, %v6406
    %v6409 = vpack.c.bf16 %v6407, %v6407
    %v6410 = vpack.c.bf16 %v6408, %v6408
    %v6411 = vld [vmem:[%s12] sm:$0x1]
    %v6413 = vsel %vm5185, %v6411, 0
    %v6416 = vsel %vm5201, %v6409, 0
    %v6419 = vsel %vm5201, %v6410, 0
    %6421 = vmatprep.subr.bf16.mxu0 %v6419
    %6422 = vmatpush1.bf16.msra.mxu0 %v6416
    %6423 = vmatprep.subr.bf16.mxu0 0
    %6424 = vmatpush1.bf16.msra.mxu0 0
    %6425 = vmatprep.subr.bf16.mxu0 0
    %6426 = vmatpush1.bf16.msra.mxu0 0
    %6427 = vmatprep.subr.bf16.mxu0 0
    %6428 = vmatpush1.bf16.msra.mxu0 0
    %6429 = vmatprep.subr.bf16.mxu0 0
    %6430 = vmatpush1.bf16.msra.mxu0 0
    %6431 = vmatprep.subr.bf16.mxu0 0
    %6432 = vmatpush1.bf16.msra.mxu0 0
    %6433 = vmatprep.subr.bf16.mxu0 0
    %6434 = vmatpush1.bf16.msra.mxu0 0
    %6435 = vmatprep.subr.bf16.mxu0 0
    %6436 = vmatpush1.bf16.msra.mxu0 0
    %6437 = vmatprep.subr.bf16.mxu0 0
    %6438 = vmatpush1.bf16.msra.mxu0 0
    %6439 = vmatprep.subr.bf16.mxu0 0
    %6440 = vmatpush1.bf16.msra.mxu0 0
    %6441 = vmatprep.subr.bf16.mxu0 0
    %6442 = vmatpush1.bf16.msra.mxu0 0
    %6443 = vmatprep.subr.bf16.mxu0 0
    %6444 = vmatpush1.bf16.msra.mxu0 0
    %6445 = vmatprep.subr.bf16.mxu0 0
    %6446 = vmatpush1.bf16.msra.mxu0 0
    %6447 = vmatprep.subr.bf16.mxu0 0
    %6448 = vmatpush1.bf16.msra.mxu0 0
    %6449 = vmatprep.subr.bf16.mxu0 0
    %6450 = vmatpush1.bf16.msra.mxu0 0
    %6451 = vmatprep.subr.bf16.mxu0 0
    %6452 = vmatpush1.bf16.msra.mxu0 0
    %6453 = vmatprep.mubr.bf16.mxu0 0
    %6454 = vmatmul.mubr.bf16.gmra.mrb[0].mxu0 %v6413
    %v6455 = vpop.f32.mrb[0].mxu0
    %v6456 = vadd.f32 0.0, %v6455
    %v6457 = vpop.f32.mrb[0].mxu0
    %v6458 = vadd.f32 0.0, %v6457
    %v6459 = vpop.f32.mrb[0].mxu0
    %v6460 = vpop.f32.mrb[0].mxu0
    %6461 = vdwg.mxu0
    %v6462 = vpack.c.bf16 %v6456, %v6456
    %v6463 = vpack.c.bf16 %v6458, %v6458
    %v6464 = vld [vmem:[%s13] sm:$0xff]
    %v6465 = vld [vmem:[%s13 + $0x8] sm:$0xff]
    %v6466 = vld [vmem:[%s13 + $0x10] sm:$0xff]
    %v6467 = vld [vmem:[%s13 + $0x18] sm:$0xff]
    %v6468 = vld [vmem:[%s13 + $0x20] sm:$0xff]
    %v6469 = vld [vmem:[%s13 + $0x28] sm:$0xff]
    %v6470 = vld [vmem:[%s13 + $0x30] sm:$0xff]
    %v6471 = vld [vmem:[%s13 + $0x38] sm:$0xff]
    %v6472 = vld [vmem:[%s13 + $0x40] sm:$0xff]
    %v6473 = vld [vmem:[%s13 + $0x48] sm:$0xff]
    %v6474 = vld [vmem:[%s13 + $0x50] sm:$0xff]
    %v6475 = vld [vmem:[%s13 + $0x58] sm:$0xff]
    %v6476 = vld [vmem:[%s13 + $0x60] sm:$0xff]
    %v6477 = vld [vmem:[%s13 + $0x68] sm:$0xff]
    %v6478 = vld [vmem:[%s13 + $0x70] sm:$0xff]
    %v6479 = vld [vmem:[%s13 + $0x78] sm:$0xff]
    %v6480 = vld [vmem:[%s13 + $0x80] sm:$0xff]
    %v6481 = vld [vmem:[%s13 + $0x88] sm:$0xff]
    %v6482 = vld [vmem:[%s13 + $0x90] sm:$0xff]
    %v6483 = vld [vmem:[%s13 + $0x98] sm:$0xff]
    %v6484 = vld [vmem:[%s13 + $0xa0] sm:$0xff]
    %v6485 = vld [vmem:[%s13 + $0xa8] sm:$0xff]
    %v6486 = vld [vmem:[%s13 + $0xb0] sm:$0xff]
    %v6487 = vld [vmem:[%s13 + $0xb8] sm:$0xff]
    %v6488 = vld [vmem:[%s13 + $0xc0] sm:$0xff]
    %v6489 = vld [vmem:[%s13 + $0xc8] sm:$0xff]
    %v6490 = vld [vmem:[%s13 + $0xd0] sm:$0xff]
    %v6491 = vld [vmem:[%s13 + $0xd8] sm:$0xff]
    %v6492 = vld [vmem:[%s13 + $0xe0] sm:$0xff]
    %v6493 = vld [vmem:[%s13 + $0xe8] sm:$0xff]
    %v6494 = vld [vmem:[%s13 + $0xf0] sm:$0xff]
    %v6495 = vld [vmem:[%s13 + $0xf8] sm:$0xff]
    %v6496 = vld [vmem:[%s14] sm:$0x3]
    %v6498 = vlaneseq
    %v6499 = vshrl.u32 %v6498, 7
    %v6500 = vsub.s32 0, %v6499
    %v6501 = vrot.slane %v6496, %v6500
    %v6502 = vlaneseq
    %v6503 = vshrl.u32 %v6502, 7
    %v6504 = vsub.s32 1, %v6503
    %v6505 = vrot.slane %v6496, %v6504
    %v6540 = vunpack.c.l.b16 %v6464
    %v6541 = vunpack.c.h.b16 %v6464
    %v6542 = vunpack.c.l.b16 %v6465
    %v6543 = vunpack.c.h.b16 %v6465
    %v6544 = vunpack.c.l.b16 %v6466
    %v6545 = vunpack.c.h.b16 %v6466
    %v6546 = vunpack.c.l.b16 %v6467
    %v6547 = vunpack.c.h.b16 %v6467
    %v6548 = vunpack.c.l.b16 %v6468
    %v6549 = vunpack.c.h.b16 %v6468
    %v6550 = vunpack.c.l.b16 %v6469
    %v6551 = vunpack.c.h.b16 %v6469
    %v6552 = vunpack.c.l.b16 %v6470
    %v6553 = vunpack.c.h.b16 %v6470
    %v6554 = vunpack.c.l.b16 %v6471
    %v6555 = vunpack.c.h.b16 %v6471
    %v6556 = vunpack.c.l.b16 %v6472
    %v6557 = vunpack.c.h.b16 %v6472
    %v6558 = vunpack.c.l.b16 %v6473
    %v6559 = vunpack.c.h.b16 %v6473
    %v6560 = vunpack.c.l.b16 %v6474
    %v6561 = vunpack.c.h.b16 %v6474
    %v6562 = vunpack.c.l.b16 %v6475
    %v6563 = vunpack.c.h.b16 %v6475
    %v6564 = vunpack.c.l.b16 %v6476
    %v6565 = vunpack.c.h.b16 %v6476
    %v6566 = vunpack.c.l.b16 %v6477
    %v6567 = vunpack.c.h.b16 %v6477
    %v6568 = vunpack.c.l.b16 %v6478
    %v6569 = vunpack.c.h.b16 %v6478
    %v6570 = vunpack.c.l.b16 %v6479
    %v6571 = vunpack.c.h.b16 %v6479
    %v6572 = vunpack.c.l.b16 %v6480
    %v6573 = vunpack.c.h.b16 %v6480
    %v6574 = vunpack.c.l.b16 %v6481
    %v6575 = vunpack.c.h.b16 %v6481
    %v6576 = vunpack.c.l.b16 %v6482
    %v6577 = vunpack.c.h.b16 %v6482
    %v6578 = vunpack.c.l.b16 %v6483
    %v6579 = vunpack.c.h.b16 %v6483
    %v6580 = vunpack.c.l.b16 %v6484
    %v6581 = vunpack.c.h.b16 %v6484
    %v6582 = vunpack.c.l.b16 %v6485
    %v6583 = vunpack.c.h.b16 %v6485
    %v6584 = vunpack.c.l.b16 %v6486
    %v6585 = vunpack.c.h.b16 %v6486
    %v6586 = vunpack.c.l.b16 %v6487
    %v6587 = vunpack.c.h.b16 %v6487
    %v6588 = vunpack.c.l.b16 %v6488
    %v6589 = vunpack.c.h.b16 %v6488
    %v6590 = vunpack.c.l.b16 %v6489
    %v6591 = vunpack.c.h.b16 %v6489
    %v6592 = vunpack.c.l.b16 %v6490
    %v6593 = vunpack.c.h.b16 %v6490
    %v6594 = vunpack.c.l.b16 %v6491
    %v6595 = vunpack.c.h.b16 %v6491
    %v6596 = vunpack.c.l.b16 %v6492
    %v6597 = vunpack.c.h.b16 %v6492
    %v6598 = vunpack.c.l.b16 %v6493
    %v6599 = vunpack.c.h.b16 %v6493
    %v6600 = vunpack.c.l.b16 %v6494
    %v6601 = vunpack.c.h.b16 %v6494
    %v6602 = vunpack.c.l.b16 %v6495
    %v6603 = vunpack.c.h.b16 %v6495
    %v6604 = vpack.c.b16 %v6542, %v6540
    %v6605 = vpack.c.b16 %v6543, %v6541
    %v6606 = vpack.c.b16 %v6546, %v6544
    %v6607 = vpack.c.b16 %v6547, %v6545
    %v6608 = vpack.c.b16 %v6550, %v6548
    %v6609 = vpack.c.b16 %v6551, %v6549
    %v6610 = vpack.c.b16 %v6554, %v6552
    %v6611 = vpack.c.b16 %v6555, %v6553
    %v6612 = vpack.c.b16 %v6558, %v6556
    %v6613 = vpack.c.b16 %v6559, %v6557
    %v6614 = vpack.c.b16 %v6562, %v6560
    %v6615 = vpack.c.b16 %v6563, %v6561
    %v6616 = vpack.c.b16 %v6566, %v6564
    %v6617 = vpack.c.b16 %v6567, %v6565
    %v6618 = vpack.c.b16 %v6570, %v6568
    %v6619 = vpack.c.b16 %v6571, %v6569
    %v6620 = vpack.c.b16 %v6574, %v6572
    %v6621 = vpack.c.b16 %v6575, %v6573
    %v6622 = vpack.c.b16 %v6578, %v6576
    %v6623 = vpack.c.b16 %v6579, %v6577
    %v6624 = vpack.c.b16 %v6582, %v6580
    %v6625 = vpack.c.b16 %v6583, %v6581
    %v6626 = vpack.c.b16 %v6586, %v6584
    %v6627 = vpack.c.b16 %v6587, %v6585
    %v6628 = vpack.c.b16 %v6590, %v6588
    %v6629 = vpack.c.b16 %v6591, %v6589
    %v6630 = vpack.c.b16 %v6594, %v6592
    %v6631 = vpack.c.b16 %v6595, %v6593
    %v6632 = vpack.c.b16 %v6598, %v6596
    %v6633 = vpack.c.b16 %v6599, %v6597
    %v6634 = vpack.c.b16 %v6602, %v6600
    %v6635 = vpack.c.b16 %v6603, %v6601
    %6668 = vmatprep.subr.bf16.mxu0 %v6605
    %6669 = vmatpush1.bf16.msra.mxu0 %v6604
    %6670 = vmatprep.subr.bf16.mxu0 %v6607
    %6671 = vmatpush1.bf16.msra.mxu0 %v6606
    %6672 = vmatprep.subr.bf16.mxu0 %v6609
    %6673 = vmatpush1.bf16.msra.mxu0 %v6608
    %6674 = vmatprep.subr.bf16.mxu0 %v6611
    %6675 = vmatpush1.bf16.msra.mxu0 %v6610
    %6676 = vmatprep.subr.bf16.mxu0 %v6613
    %6677 = vmatpush1.bf16.msra.mxu0 %v6612
    %6678 = vmatprep.subr.bf16.mxu0 %v6615
    %6679 = vmatpush1.bf16.msra.mxu0 %v6614
    %6680 = vmatprep.subr.bf16.mxu0 %v6617
    %6681 = vmatpush1.bf16.msra.mxu0 %v6616
    %6682 = vmatprep.subr.bf16.mxu0 %v6619
    %6683 = vmatpush1.bf16.msra.mxu0 %v6618
    %6684 = vmatprep.subr.bf16.mxu0 %v6621
    %6685 = vmatpush1.bf16.msra.mxu0 %v6620
    %6686 = vmatprep.subr.bf16.mxu0 %v6623
    %6687 = vmatpush1.bf16.msra.mxu0 %v6622
    %6688 = vmatprep.subr.bf16.mxu0 %v6625
    %6689 = vmatpush1.bf16.msra.mxu0 %v6624
    %6690 = vmatprep.subr.bf16.mxu0 %v6627
    %6691 = vmatpush1.bf16.msra.mxu0 %v6626
    %6692 = vmatprep.subr.bf16.mxu0 %v6629
    %6693 = vmatpush1.bf16.msra.mxu0 %v6628
    %6694 = vmatprep.subr.bf16.mxu0 %v6631
    %6695 = vmatpush1.bf16.msra.mxu0 %v6630
    %6696 = vmatprep.subr.bf16.mxu0 %v6633
    %6697 = vmatpush1.bf16.msra.mxu0 %v6632
    %6698 = vmatprep.subr.bf16.mxu0 %v6635
    %6699 = vmatpush1.bf16.msra.mxu0 %v6634
    %6700 = vmatprep.mubr.bf16.mxu0 %v6463
    %6701 = vmatmul.mubr.bf16.gmra.mrb[0].mxu0 %v6462
    %v6702 = vpop.f32.mrb[0].mxu0
    %v6703 = vadd.f32 %v6501, %v6702
    %v6704 = vpop.f32.mrb[0].mxu0
    %v6705 = vadd.f32 %v6505, %v6704
    %v6706 = vpop.f32.mrb[0].mxu0
    %v6707 = vpop.f32.mrb[0].mxu0
    %6708 = vdwg.mxu0
    %v6711 = vcombine.low %v6703, %v6705
    %v6713 = vunpack.c.l.s4 1983009808
    %v6714 = vunpack.c.0.s8 %v6713
    %v6715 = vlaneseq
    %v6716 = vshrl.u32 %v6715, 7
    %v6717 = vsub.s32 %v6714, %v6716
    %v6718 = vrot.slane %v6711, %v6717
    %6720 = vst [vmem:[#allocation2] sm:$0xf] %v6718
    // Predicated region
    $region62: #{feature_extractor_forward.1} parent=1 // pred_check
      _
    $region63: #{feature_extractor_forward.1} parent=1 // pred_check_branch
      %6722 = sbr.rel (0) target = $region65
    $region64: #{feature_extractor_forward.1} parent=1 // pred_region
      %s6724 = ssub.s32 64, 64
      %6725 = vsyncadd [#allocation3], %s6724
      %s6727 = sshll.u32 [#allocation2], 4
      %s6728 = int_to_ptr.vmem [resolvable:$true] %s6727
      %6730 = dma.vmem_to_hbm [thread:$0]  %s6728, 64, %s15, [#allocation3]
    $region65: #{feature_extractor_forward.1} parent=1 // pred_fallthru
      _
    // Predicated region
    $region66: #{feature_extractor_forward.1} parent=1 // pred_check
      _
    $region67: #{feature_extractor_forward.1} parent=1 // pred_check_branch
      %6732 = sbr.rel (0) target = $region69
    $region68: #{feature_extractor_forward.1} parent=1 // pred_region
      %6733 = dma.done [#allocation3], 64
    $region69: #{feature_extractor_forward.1} parent=1 // pred_fallthru
      _
    %6734 = vsyncpa [#allocation3], 1

</llo_original>
